<compile_context>
chip_gen: v6e
topology: v6e:2x2x1
jax: 0.10.0
libtpu: 0.0.40
codegen_flags: <defaults>
</compile_context>

<pallas_src>
import math
import functools

import jax
import jax.numpy as jnp
from jax.experimental import pallas as pl
from jax.experimental.pallas import tpu as pltpu


# ------------------------- model hyper-parameters -------------------------
BATCH = 2
SEQ = 16
D_MODEL = 64          # input_size (divisible by num_heads -> project = Identity)
NUM_HEADS = 8         # -> head_dim = 8
HIDDEN = 128          # dim_feedforward (hidden_size)
NUM_LAYERS = 2
LN_EPS = 1e-5


def _layer_norm(v, gamma, beta):
    mu = jnp.mean(v, axis=-1, keepdims=True)
    var = jnp.mean((v - mu) ** 2, axis=-1, keepdims=True)
    return (v - mu) * jax.lax.rsqrt(var + LN_EPS) * gamma + beta


# ------------------------------ Pallas kernel ------------------------------
def transformer_kernel(
    x_ref,          # (S, D)        rows of one batch element
    w_qkv_ref,      # (L, D, 3*SEC) fused in_proj weight, pre-transposed, Q pre-scaled,
                    #               zero-padded so Q/K/V sections start at lane 0/SEC/2*SEC
    b_qkv_ref,      # (L, 1, 3*SEC)
    w_out_ref,      # (L, D, D)     out_proj.weight, pre-transposed
    b_out_ref,      # (L, 1, D)
    g1_ref,         # (L, 1, D)     norm1.weight
    be1_ref,        # (L, 1, D)     norm1.bias
    w1_ref,         # (L, D, FF)    linear1.weight, pre-transposed
    b1_ref,         # (L, 1, FF)
    w2_ref,         # (L, FF, D)    linear2.weight, pre-transposed
    b2_ref,         # (L, 1, D)
    g2_ref,         # (L, 1, D)     norm2.weight
    be2_ref,        # (L, 1, D)     norm2.bias
    o_ref,          # (S, D)
    *,
    num_heads: int,
    num_layers: int,
    sec: int,
):
    S, D = x_ref.shape
    H = num_heads
    hd = D // H

    # keep everything f32 (v5e has no bf16 VPU/EUP; sizes are tiny, MXU far from bound)
    x = x_ref[...].astype(jnp.float32)                                  # (S, D)

    for layer in range(num_layers):                                     # fused layers
        # ---- fused QKV projection: one (S, D) @ (D, 3*SEC) MXU matmul ----
        # Q columns/bias already carry the 1/sqrt(hd) scale (folded host-side).
        qkv = (jnp.dot(x, w_qkv_ref[layer], preferred_element_type=jnp.float32)
               + b_qkv_ref[layer])                                      # (S, 3*SEC)
        w_out = w_out_ref[layer]                                        # (D, D)

        # ---- attention: out-projection folded into the per-head loop ----
        # residual + out_proj bias seed the accumulator -> no attn scratch slab,
        # no masked 8-lane stores, no (S,D)@(D,D) out-proj matmul afterwards.
        acc = x + b_out_ref[layer]                                      # (S, D)
        for h in range(H):
            c0 = h * hd
            qh = qkv[:, c0:c0 + hd]                                     # (S, hd)
            kh = qkv[:, sec + c0:sec + c0 + hd]
            vh = qkv[:, 2 * sec + c0:2 * sec + c0 + hd]
            # contract head_dim of both operands -> q @ k^T without a .T
            s = jax.lax.dot_general(
                qh, kh, (((1,), (1,)), ((), ())),
                preferred_element_type=jnp.float32)                     # (S, S)
            s = s - jnp.max(s, axis=-1, keepdims=True)
            p = jnp.exp(s)
            inv_den = 1.0 / jnp.sum(p, axis=-1, keepdims=True)          # exact, (S,1)
            o_h = jnp.dot(p, vh, preferred_element_type=jnp.float32) * inv_den
            # fold out-projection: rows h*hd:(h+1)*hd of w_out (sublane-aligned slice)
            acc = acc + jnp.dot(o_h, w_out[c0:c0 + hd, :],
                                preferred_element_type=jnp.float32)     # (S, D)

        # ---- residual + LayerNorm1 (post-norm) ----
        y = _layer_norm(acc, g1_ref[layer], be1_ref[layer])

        # ---- feed-forward: linear1 -> relu -> linear2, residual + LayerNorm2 ----
        h1 = jnp.maximum(
            jnp.dot(y, w1_ref[layer], preferred_element_type=jnp.float32)
            + b1_ref[layer], 0.0)
        h2 = (jnp.dot(h1, w2_ref[layer], preferred_element_type=jnp.float32)
              + b2_ref[layer])
        x = _layer_norm(y + h2, g2_ref[layer], be2_ref[layer])

    o_ref[...] = x.astype(o_ref.dtype)                                  # one slab store


# ------------------------------- wrapper -----------------------------------
def transformer_forward(x, torch_layer_params, num_heads):
    """x: (B, S, D) batch_first; torch_layer_params: PyTorch-convention weights."""
    B, S, D = x.shape
    L = len(torch_layer_params)
    hd = D // num_heads
    scale = 1.0 / math.sqrt(hd)
    sec = ((D + 127) // 128) * 128          # 128-lane-aligned Q/K/V section stride

    # Host-side (one-time) weight prep: transpose every Linear weight, fold the
    # attention scale into the Q projection, pad Q/K/V sections to 128-lane
    # boundaries, and stack all layers along a leading axis so the whole encoder
    # runs in a single pallas_call.
    def prep(p):
        w_in_t = p["w_in"].T                # (D, 3D), columns [Q | K | V]
        b_in = p["b_in"]                    # (3D,)
        w_qkv = jnp.zeros((D, 3 * sec), jnp.float32)
        w_qkv = (w_qkv
                 .at[:, 0:D].set(w_in_t[:, 0:D] * scale)
                 .at[:, sec:sec + D].set(w_in_t[:, D:2 * D])
                 .at[:, 2 * sec:2 * sec + D].set(w_in_t[:, 2 * D:]))
        b_qkv = jnp.zeros((1, 3 * sec), jnp.float32)
        b_qkv = (b_qkv
                 .at[:, 0:D].set(b_in[0:D] * scale)
                 .at[:, sec:sec + D].set(b_in[D:2 * D])
                 .at[:, 2 * sec:2 * sec + D].set(b_in[2 * D:]))
        return dict(
            w_qkv=w_qkv, b_qkv=b_qkv,
            w_out=p["w_out"].T,                      # (D, D)
            b_out=p["b_out"].reshape(1, -1),
            g1=p["g1"].reshape(1, -1), be1=p["be1"].reshape(1, -1),
            w1=p["w1"].T,                            # (D, FF)
            b1=p["b1"].reshape(1, -1),
            w2=p["w2"].T,                            # (FF, D)
            b2=p["b2"].reshape(1, -1),
            g2=p["g2"].reshape(1, -1), be2=p["be2"].reshape(1, -1),
        )

    prepped = [prep(p) for p in torch_layer_params]
    names = ["w_qkv", "b_qkv", "w_out", "b_out", "g1", "be1",
             "w1", "b1", "w2", "b2", "g2", "be2"]
    stacked = [jnp.stack([pp[n] for pp in prepped], axis=0) for n in names]

    kernel = functools.partial(
        transformer_kernel, num_heads=num_heads, num_layers=L, sec=sec)

    def full_spec(a):
        # whole stacked-weight array resident in VMEM; constant block index ->
        # fetched once, stays across grid steps.
        return pl.BlockSpec(a.shape, lambda b, _nd=a.ndim: (0,) * _nd)

    x2d = x.reshape(B * S, D)               # collapse batch into rows (host-side view)
    out2d = pl.pallas_call(
        kernel,
        out_shape=jax.ShapeDtypeStruct((B * S, D), x.dtype),
        grid=(B,),                          # one program per batch element
        in_specs=[pl.BlockSpec((S, D), lambda b: (b, 0))]
                 + [full_spec(a) for a in stacked],
        out_specs=pl.BlockSpec((S, D), lambda b: (b, 0)),
        compiler_params=pltpu.CompilerParams(
            dimension_semantics=("parallel",)),   # v7x: batches on both TensorCores
    )(x2d, *stacked)
    return out2d.reshape(B, S, D)


# ------------------------- pure-JAX reference check -------------------------
def encoder_layer_ref(x, p, num_heads):
    B, S, D = x.shape
    hd = D // num_heads
    scale = 1.0 / math.sqrt(hd)
    q = x @ p["w_in"][:D].T + p["b_in"][:D]
    k = x @ p["w_in"][D:2 * D].T + p["b_in"][D:2 * D]
    v = x @ p["w_in"][2 * D:].T + p["b_in"][2 * D:]

    def split(t):  # (B, S, D) -> (B, H, S, hd)
        return t.reshape(B, S, num_heads, hd).transpose(0, 2, 1, 3)

    qh, kh, vh = split(q), split(k), split(v)
    s = jnp.einsum("bhqd,bhkd->bhqk", qh * scale, kh)
    pattn = jax.nn.softmax(s, axis=-1)
    a = jnp.einsum("bhqk,bhkd->bhqd", pattn, vh).transpose(0, 2, 1, 3).reshape(B, S, D)
    a = a @ p["w_out"].T + p["b_out"]

    def ln(v_, g, b):
        mu = v_.mean(-1, keepdims=True)
        var = ((v_ - mu) ** 2).mean(-1, keepdims=True)
        return (v_ - mu) / jnp.sqrt(var + LN_EPS) * g + b

    y = ln(x + a, p["g1"], p["be1"])
    h = jnp.maximum(y @ p["w1"].T + p["b1"], 0.0)
    h = h @ p["w2"].T + p["b2"]
    return ln(y + h, p["g2"], p["be2"])


# --------------------------------- main -------------------------------------
def make_layer_params(key, d_model, hidden):
    ks = jax.random.split(key, 8)
    s = 0.1
    return {
        "w_in": s * jax.random.normal(ks[0], (3 * d_model, d_model), jnp.float32),
        "b_in": s * jax.random.normal(ks[1], (3 * d_model,), jnp.float32),
        "w_out": s * jax.random.normal(ks[2], (d_model, d_model), jnp.float32),
        "b_out": s * jax.random.normal(ks[3], (d_model,), jnp.float32),
        "g1": jnp.ones((d_model,), jnp.float32),
        "be1": jnp.zeros((d_model,), jnp.float32),
        "w1": s * jax.random.normal(ks[4], (hidden, d_model), jnp.float32),
        "b1": s * jax.random.normal(ks[5], (hidden,), jnp.float32),
        "w2": s * jax.random.normal(ks[6], (d_model, hidden), jnp.float32),
        "b2": s * jax.random.normal(ks[7], (d_model,), jnp.float32),
        "g2": jnp.ones((d_model,), jnp.float32),
        "be2": jnp.zeros((d_model,), jnp.float32),
    }


if __name__ == "__main__":
    key = jax.random.PRNGKey(0)
    kx, *kl = jax.random.split(key, 1 + NUM_LAYERS)

    x = jax.random.normal(kx, (BATCH, SEQ, D_MODEL), jnp.float32)
    layer_params = [make_layer_params(k, D_MODEL, HIDDEN) for k in kl]

    # project = Identity (D_MODEL % NUM_HEADS == 0), then the fused encoder stack
    out = transformer_forward(x, layer_params, NUM_HEADS)
    out = jax.block_until_ready(out)

    # correctness check against pure-JAX reference (exact softmax reciprocal now)
    ref = x
    for lp in layer_params:
        ref = encoder_layer_ref(ref, lp, NUM_HEADS)

    assert out.shape == (BATCH, SEQ, D_MODEL)
    max_err = float(jnp.max(jnp.abs(out - ref)))
    assert jnp.allclose(out, ref, atol=1e-4, rtol=1e-4), max_err

    print("KERNEL_OK")
</pallas_src>

<mosaic_0001>
module attributes {stable_mosaic.version = 11 : i64} {
  func.func @transformer_kernel(%arg0: i32, %arg1: memref<16x64xf32, #tpu.memory_space<vmem>>, %arg2: memref<2x64x384xf32, #tpu.memory_space<vmem>>, %arg3: memref<2x1x384xf32, #tpu.memory_space<vmem>>, %arg4: memref<2x64x64xf32, #tpu.memory_space<vmem>>, %arg5: memref<2x1x64xf32, #tpu.memory_space<vmem>>, %arg6: memref<2x1x64xf32, #tpu.memory_space<vmem>>, %arg7: memref<2x1x64xf32, #tpu.memory_space<vmem>>, %arg8: memref<2x64x128xf32, #tpu.memory_space<vmem>>, %arg9: memref<2x1x128xf32, #tpu.memory_space<vmem>>, %arg10: memref<2x128x64xf32, #tpu.memory_space<vmem>>, %arg11: memref<2x1x64xf32, #tpu.memory_space<vmem>>, %arg12: memref<2x1x64xf32, #tpu.memory_space<vmem>>, %arg13: memref<2x1x64xf32, #tpu.memory_space<vmem>>, %arg14: memref<16x64xf32, #tpu.memory_space<vmem>>) attributes {dimension_semantics = [#tpu.dimension_semantics<parallel>], iteration_bounds = array<i64: 2>, scalar_prefetch = 0 : i64, scratch_operands = 0 : i64, tpu.core_type = #tpu.core_type<tc>, window_params = [{transform_indices = @transform_0, window_bounds = array<i64: 16, 64>}, {pipeline_mode = #tpu.pipeline_mode<synchronous>, transform_indices = @transform_1, window_bounds = array<i64: 2, 64, 384>}, {pipeline_mode = #tpu.pipeline_mode<synchronous>, transform_indices = @transform_2, window_bounds = array<i64: 2, 1, 384>}, {pipeline_mode = #tpu.pipeline_mode<synchronous>, transform_indices = @transform_3, window_bounds = array<i64: 2, 64, 64>}, {pipeline_mode = #tpu.pipeline_mode<synchronous>, transform_indices = @transform_4, window_bounds = array<i64: 2, 1, 64>}, {pipeline_mode = #tpu.pipeline_mode<synchronous>, transform_indices = @transform_5, window_bounds = array<i64: 2, 1, 64>}, {pipeline_mode = #tpu.pipeline_mode<synchronous>, transform_indices = @transform_6, window_bounds = array<i64: 2, 1, 64>}, {pipeline_mode = #tpu.pipeline_mode<synchronous>, transform_indices = @transform_7, window_bounds = array<i64: 2, 64, 128>}, {pipeline_mode = #tpu.pipeline_mode<synchronous>, transform_indices = @transform_8, window_bounds = array<i64: 2, 1, 128>}, {pipeline_mode = #tpu.pipeline_mode<synchronous>, transform_indices = @transform_9, window_bounds = array<i64: 2, 128, 64>}, {pipeline_mode = #tpu.pipeline_mode<synchronous>, transform_indices = @transform_10, window_bounds = array<i64: 2, 1, 64>}, {pipeline_mode = #tpu.pipeline_mode<synchronous>, transform_indices = @transform_11, window_bounds = array<i64: 2, 1, 64>}, {pipeline_mode = #tpu.pipeline_mode<synchronous>, transform_indices = @transform_12, window_bounds = array<i64: 2, 1, 64>}, {transform_indices = @transform_13, window_bounds = array<i64: 16, 64>}]} {
    %c0 = arith.constant 0 : index
    %c0_0 = arith.constant 0 : index
    %0 = vector.load %arg1[%c0, %c0_0] : memref<16x64xf32, #tpu.memory_space<vmem>>, vector<16x64xf32>
    %c0_1 = arith.constant 0 : index
    %c0_2 = arith.constant 0 : index
    %c0_3 = arith.constant 0 : index
    %1 = vector.load %arg2[%c0_1, %c0_2, %c0_3] : memref<2x64x384xf32, #tpu.memory_space<vmem>>, vector<1x64x384xf32>
    %2 = vector.shape_cast %1 : vector<1x64x384xf32> to vector<64x384xf32>
    %cst = arith.constant dense<0.000000e+00> : vector<16x384xf32>
    %3 = tpu.matmul %0, %2, %cst {dimension_numbers = #tpu.dot_dimension_numbers<[1], [0], [0], [1], [0, 0, 1, 1], [], []>} : vector<16x64xf32>, vector<64x384xf32>, vector<16x384xf32> -> vector<16x384xf32>
    %c0_4 = arith.constant 0 : index
    %c0_5 = arith.constant 0 : index
    %c0_6 = arith.constant 0 : index
    %4 = vector.load %arg3[%c0_4, %c0_5, %c0_6] : memref<2x1x384xf32, #tpu.memory_space<vmem>>, vector<1x1x384xf32>
    %5 = vector.shape_cast %4 : vector<1x1x384xf32> to vector<1x384xf32>
    %6 = vector.broadcast %5 : vector<1x384xf32> to vector<16x384xf32>
    %7 = arith.addf %3, %6 : vector<16x384xf32>
    %c0_7 = arith.constant 0 : index
    %c0_8 = arith.constant 0 : index
    %c0_9 = arith.constant 0 : index
    %8 = vector.load %arg4[%c0_7, %c0_8, %c0_9] : memref<2x64x64xf32, #tpu.memory_space<vmem>>, vector<1x64x64xf32>
    %9 = vector.shape_cast %8 : vector<1x64x64xf32> to vector<64x64xf32>
    %c0_10 = arith.constant 0 : index
    %c0_11 = arith.constant 0 : index
    %c0_12 = arith.constant 0 : index
    %10 = vector.load %arg5[%c0_10, %c0_11, %c0_12] : memref<2x1x64xf32, #tpu.memory_space<vmem>>, vector<1x1x64xf32>
    %11 = vector.shape_cast %10 : vector<1x1x64xf32> to vector<1x64xf32>
    %12 = vector.broadcast %11 : vector<1x64xf32> to vector<16x64xf32>
    %13 = arith.addf %0, %12 : vector<16x64xf32>
    %14 = vector.extract_strided_slice %7 {offsets = [0, 0], sizes = [16, 8], strides = [1, 1]} : vector<16x384xf32> to vector<16x8xf32>
    %15 = vector.extract_strided_slice %7 {offsets = [0, 128], sizes = [16, 8], strides = [1, 1]} : vector<16x384xf32> to vector<16x8xf32>
    %16 = vector.extract_strided_slice %7 {offsets = [0, 256], sizes = [16, 8], strides = [1, 1]} : vector<16x384xf32> to vector<16x8xf32>
    %cst_13 = arith.constant dense<0.000000e+00> : vector<16x16xf32>
    %17 = tpu.matmul %14, %15, %cst_13 {dimension_numbers = #tpu.dot_dimension_numbers<[1], [1], [0], [0], [0, 0, 1, 0], [], []>} : vector<16x8xf32>, vector<16x8xf32>, vector<16x16xf32> -> vector<16x16xf32>
    %cst_14 = arith.constant dense<0xFF800000> : vector<16xf32>
    %18 = vector.multi_reduction <maximumf>, %17, %cst_14 [1] : vector<16x16xf32> to vector<16xf32>
    %19 = vector.shape_cast %18 : vector<16xf32> to vector<16x1xf32>
    %20 = vector.broadcast %19 : vector<16x1xf32> to vector<16x16xf32>
    %21 = arith.subf %17, %20 : vector<16x16xf32>
    %22 = math.exp %21 : vector<16x16xf32>
    %cst_15 = arith.constant dense<0.000000e+00> : vector<16xf32>
    %23 = vector.multi_reduction <add>, %22, %cst_15 [1] : vector<16x16xf32> to vector<16xf32>
    %24 = vector.shape_cast %23 : vector<16xf32> to vector<16x1xf32>
    %cst_16 = arith.constant 1.000000e+00 : f32
    %25 = vector.broadcast %cst_16 : f32 to vector<16x1xf32>
    %26 = arith.divf %25, %24 : vector<16x1xf32>
    %cst_17 = arith.constant dense<0.000000e+00> : vector<16x8xf32>
    %27 = tpu.matmul %22, %16, %cst_17 {dimension_numbers = #tpu.dot_dimension_numbers<[1], [0], [0], [1], [0, 0, 1, 1], [], []>} : vector<16x16xf32>, vector<16x8xf32>, vector<16x8xf32> -> vector<16x8xf32>
    %28 = vector.broadcast %26 : vector<16x1xf32> to vector<16x8xf32>
    %29 = arith.mulf %27, %28 : vector<16x8xf32>
    %30 = vector.extract_strided_slice %9 {offsets = [0, 0], sizes = [8, 64], strides = [1, 1]} : vector<64x64xf32> to vector<8x64xf32>
    %cst_18 = arith.constant dense<0.000000e+00> : vector<16x64xf32>
    %31 = tpu.matmul %29, %30, %cst_18 {dimension_numbers = #tpu.dot_dimension_numbers<[1], [0], [0], [1], [0, 0, 1, 1], [], []>} : vector<16x8xf32>, vector<8x64xf32>, vector<16x64xf32> -> vector<16x64xf32>
    %32 = arith.addf %13, %31 : vector<16x64xf32>
    %33 = vector.extract_strided_slice %7 {offsets = [0, 8], sizes = [16, 8], strides = [1, 1]} : vector<16x384xf32> to vector<16x8xf32>
    %34 = vector.extract_strided_slice %7 {offsets = [0, 136], sizes = [16, 8], strides = [1, 1]} : vector<16x384xf32> to vector<16x8xf32>
    %35 = vector.extract_strided_slice %7 {offsets = [0, 264], sizes = [16, 8], strides = [1, 1]} : vector<16x384xf32> to vector<16x8xf32>
    %cst_19 = arith.constant dense<0.000000e+00> : vector<16x16xf32>
    %36 = tpu.matmul %33, %34, %cst_19 {dimension_numbers = #tpu.dot_dimension_numbers<[1], [1], [0], [0], [0, 0, 1, 0], [], []>} : vector<16x8xf32>, vector<16x8xf32>, vector<16x16xf32> -> vector<16x16xf32>
    %cst_20 = arith.constant dense<0xFF800000> : vector<16xf32>
    %37 = vector.multi_reduction <maximumf>, %36, %cst_20 [1] : vector<16x16xf32> to vector<16xf32>
    %38 = vector.shape_cast %37 : vector<16xf32> to vector<16x1xf32>
    %39 = vector.broadcast %38 : vector<16x1xf32> to vector<16x16xf32>
    %40 = arith.subf %36, %39 : vector<16x16xf32>
    %41 = math.exp %40 : vector<16x16xf32>
    %cst_21 = arith.constant dense<0.000000e+00> : vector<16xf32>
    %42 = vector.multi_reduction <add>, %41, %cst_21 [1] : vector<16x16xf32> to vector<16xf32>
    %43 = vector.shape_cast %42 : vector<16xf32> to vector<16x1xf32>
    %cst_22 = arith.constant 1.000000e+00 : f32
    %44 = vector.broadcast %cst_22 : f32 to vector<16x1xf32>
    %45 = arith.divf %44, %43 : vector<16x1xf32>
    %cst_23 = arith.constant dense<0.000000e+00> : vector<16x8xf32>
    %46 = tpu.matmul %41, %35, %cst_23 {dimension_numbers = #tpu.dot_dimension_numbers<[1], [0], [0], [1], [0, 0, 1, 1], [], []>} : vector<16x16xf32>, vector<16x8xf32>, vector<16x8xf32> -> vector<16x8xf32>
    %47 = vector.broadcast %45 : vector<16x1xf32> to vector<16x8xf32>
    %48 = arith.mulf %46, %47 : vector<16x8xf32>
    %49 = vector.extract_strided_slice %9 {offsets = [8, 0], sizes = [8, 64], strides = [1, 1]} : vector<64x64xf32> to vector<8x64xf32>
    %cst_24 = arith.constant dense<0.000000e+00> : vector<16x64xf32>
    %50 = tpu.matmul %48, %49, %cst_24 {dimension_numbers = #tpu.dot_dimension_numbers<[1], [0], [0], [1], [0, 0, 1, 1], [], []>} : vector<16x8xf32>, vector<8x64xf32>, vector<16x64xf32> -> vector<16x64xf32>
    %51 = arith.addf %32, %50 : vector<16x64xf32>
    %52 = vector.extract_strided_slice %7 {offsets = [0, 16], sizes = [16, 8], strides = [1, 1]} : vector<16x384xf32> to vector<16x8xf32>
    %53 = vector.extract_strided_slice %7 {offsets = [0, 144], sizes = [16, 8], strides = [1, 1]} : vector<16x384xf32> to vector<16x8xf32>
    %54 = vector.extract_strided_slice %7 {offsets = [0, 272], sizes = [16, 8], strides = [1, 1]} : vector<16x384xf32> to vector<16x8xf32>
    %cst_25 = arith.constant dense<0.000000e+00> : vector<16x16xf32>
    %55 = tpu.matmul %52, %53, %cst_25 {dimension_numbers = #tpu.dot_dimension_numbers<[1], [1], [0], [0], [0, 0, 1, 0], [], []>} : vector<16x8xf32>, vector<16x8xf32>, vector<16x16xf32> -> vector<16x16xf32>
    %cst_26 = arith.constant dense<0xFF800000> : vector<16xf32>
    %56 = vector.multi_reduction <maximumf>, %55, %cst_26 [1] : vector<16x16xf32> to vector<16xf32>
    %57 = vector.shape_cast %56 : vector<16xf32> to vector<16x1xf32>
    %58 = vector.broadcast %57 : vector<16x1xf32> to vector<16x16xf32>
    %59 = arith.subf %55, %58 : vector<16x16xf32>
    %60 = math.exp %59 : vector<16x16xf32>
    %cst_27 = arith.constant dense<0.000000e+00> : vector<16xf32>
    %61 = vector.multi_reduction <add>, %60, %cst_27 [1] : vector<16x16xf32> to vector<16xf32>
    %62 = vector.shape_cast %61 : vector<16xf32> to vector<16x1xf32>
    %cst_28 = arith.constant 1.000000e+00 : f32
    %63 = vector.broadcast %cst_28 : f32 to vector<16x1xf32>
    %64 = arith.divf %63, %62 : vector<16x1xf32>
    %cst_29 = arith.constant dense<0.000000e+00> : vector<16x8xf32>
    %65 = tpu.matmul %60, %54, %cst_29 {dimension_numbers = #tpu.dot_dimension_numbers<[1], [0], [0], [1], [0, 0, 1, 1], [], []>} : vector<16x16xf32>, vector<16x8xf32>, vector<16x8xf32> -> vector<16x8xf32>
    %66 = vector.broadcast %64 : vector<16x1xf32> to vector<16x8xf32>
    %67 = arith.mulf %65, %66 : vector<16x8xf32>
    %68 = vector.extract_strided_slice %9 {offsets = [16, 0], sizes = [8, 64], strides = [1, 1]} : vector<64x64xf32> to vector<8x64xf32>
    %cst_30 = arith.constant dense<0.000000e+00> : vector<16x64xf32>
    %69 = tpu.matmul %67, %68, %cst_30 {dimension_numbers = #tpu.dot_dimension_numbers<[1], [0], [0], [1], [0, 0, 1, 1], [], []>} : vector<16x8xf32>, vector<8x64xf32>, vector<16x64xf32> -> vector<16x64xf32>
    %70 = arith.addf %51, %69 : vector<16x64xf32>
    %71 = vector.extract_strided_slice %7 {offsets = [0, 24], sizes = [16, 8], strides = [1, 1]} : vector<16x384xf32> to vector<16x8xf32>
    %72 = vector.extract_strided_slice %7 {offsets = [0, 152], sizes = [16, 8], strides = [1, 1]} : vector<16x384xf32> to vector<16x8xf32>
    %73 = vector.extract_strided_slice %7 {offsets = [0, 280], sizes = [16, 8], strides = [1, 1]} : vector<16x384xf32> to vector<16x8xf32>
    %cst_31 = arith.constant dense<0.000000e+00> : vector<16x16xf32>
    %74 = tpu.matmul %71, %72, %cst_31 {dimension_numbers = #tpu.dot_dimension_numbers<[1], [1], [0], [0], [0, 0, 1, 0], [], []>} : vector<16x8xf32>, vector<16x8xf32>, vector<16x16xf32> -> vector<16x16xf32>
    %cst_32 = arith.constant dense<0xFF800000> : vector<16xf32>
    %75 = vector.multi_reduction <maximumf>, %74, %cst_32 [1] : vector<16x16xf32> to vector<16xf32>
    %76 = vector.shape_cast %75 : vector<16xf32> to vector<16x1xf32>
    %77 = vector.broadcast %76 : vector<16x1xf32> to vector<16x16xf32>
    %78 = arith.subf %74, %77 : vector<16x16xf32>
    %79 = math.exp %78 : vector<16x16xf32>
    %cst_33 = arith.constant dense<0.000000e+00> : vector<16xf32>
    %80 = vector.multi_reduction <add>, %79, %cst_33 [1] : vector<16x16xf32> to vector<16xf32>
    %81 = vector.shape_cast %80 : vector<16xf32> to vector<16x1xf32>
    %cst_34 = arith.constant 1.000000e+00 : f32
    %82 = vector.broadcast %cst_34 : f32 to vector<16x1xf32>
    %83 = arith.divf %82, %81 : vector<16x1xf32>
    %cst_35 = arith.constant dense<0.000000e+00> : vector<16x8xf32>
    %84 = tpu.matmul %79, %73, %cst_35 {dimension_numbers = #tpu.dot_dimension_numbers<[1], [0], [0], [1], [0, 0, 1, 1], [], []>} : vector<16x16xf32>, vector<16x8xf32>, vector<16x8xf32> -> vector<16x8xf32>
    %85 = vector.broadcast %83 : vector<16x1xf32> to vector<16x8xf32>
    %86 = arith.mulf %84, %85 : vector<16x8xf32>
    %87 = vector.extract_strided_slice %9 {offsets = [24, 0], sizes = [8, 64], strides = [1, 1]} : vector<64x64xf32> to vector<8x64xf32>
    %cst_36 = arith.constant dense<0.000000e+00> : vector<16x64xf32>
    %88 = tpu.matmul %86, %87, %cst_36 {dimension_numbers = #tpu.dot_dimension_numbers<[1], [0], [0], [1], [0, 0, 1, 1], [], []>} : vector<16x8xf32>, vector<8x64xf32>, vector<16x64xf32> -> vector<16x64xf32>
    %89 = arith.addf %70, %88 : vector<16x64xf32>
    %90 = vector.extract_strided_slice %7 {offsets = [0, 32], sizes = [16, 8], strides = [1, 1]} : vector<16x384xf32> to vector<16x8xf32>
    %91 = vector.extract_strided_slice %7 {offsets = [0, 160], sizes = [16, 8], strides = [1, 1]} : vector<16x384xf32> to vector<16x8xf32>
    %92 = vector.extract_strided_slice %7 {offsets = [0, 288], sizes = [16, 8], strides = [1, 1]} : vector<16x384xf32> to vector<16x8xf32>
    %cst_37 = arith.constant dense<0.000000e+00> : vector<16x16xf32>
    %93 = tpu.matmul %90, %91, %cst_37 {dimension_numbers = #tpu.dot_dimension_numbers<[1], [1], [0], [0], [0, 0, 1, 0], [], []>} : vector<16x8xf32>, vector<16x8xf32>, vector<16x16xf32> -> vector<16x16xf32>
    %cst_38 = arith.constant dense<0xFF800000> : vector<16xf32>
    %94 = vector.multi_reduction <maximumf>, %93, %cst_38 [1] : vector<16x16xf32> to vector<16xf32>
    %95 = vector.shape_cast %94 : vector<16xf32> to vector<16x1xf32>
    %96 = vector.broadcast %95 : vector<16x1xf32> to vector<16x16xf32>
    %97 = arith.subf %93, %96 : vector<16x16xf32>
    %98 = math.exp %97 : vector<16x16xf32>
    %cst_39 = arith.constant dense<0.000000e+00> : vector<16xf32>
    %99 = vector.multi_reduction <add>, %98, %cst_39 [1] : vector<16x16xf32> to vector<16xf32>
    %100 = vector.shape_cast %99 : vector<16xf32> to vector<16x1xf32>
    %cst_40 = arith.constant 1.000000e+00 : f32
    %101 = vector.broadcast %cst_40 : f32 to vector<16x1xf32>
    %102 = arith.divf %101, %100 : vector<16x1xf32>
    %cst_41 = arith.constant dense<0.000000e+00> : vector<16x8xf32>
    %103 = tpu.matmul %98, %92, %cst_41 {dimension_numbers = #tpu.dot_dimension_numbers<[1], [0], [0], [1], [0, 0, 1, 1], [], []>} : vector<16x16xf32>, vector<16x8xf32>, vector<16x8xf32> -> vector<16x8xf32>
    %104 = vector.broadcast %102 : vector<16x1xf32> to vector<16x8xf32>
    %105 = arith.mulf %103, %104 : vector<16x8xf32>
    %106 = vector.extract_strided_slice %9 {offsets = [32, 0], sizes = [8, 64], strides = [1, 1]} : vector<64x64xf32> to vector<8x64xf32>
    %cst_42 = arith.constant dense<0.000000e+00> : vector<16x64xf32>
    %107 = tpu.matmul %105, %106, %cst_42 {dimension_numbers = #tpu.dot_dimension_numbers<[1], [0], [0], [1], [0, 0, 1, 1], [], []>} : vector<16x8xf32>, vector<8x64xf32>, vector<16x64xf32> -> vector<16x64xf32>
    %108 = arith.addf %89, %107 : vector<16x64xf32>
    %109 = vector.extract_strided_slice %7 {offsets = [0, 40], sizes = [16, 8], strides = [1, 1]} : vector<16x384xf32> to vector<16x8xf32>
    %110 = vector.extract_strided_slice %7 {offsets = [0, 168], sizes = [16, 8], strides = [1, 1]} : vector<16x384xf32> to vector<16x8xf32>
    %111 = vector.extract_strided_slice %7 {offsets = [0, 296], sizes = [16, 8], strides = [1, 1]} : vector<16x384xf32> to vector<16x8xf32>
    %cst_43 = arith.constant dense<0.000000e+00> : vector<16x16xf32>
    %112 = tpu.matmul %109, %110, %cst_43 {dimension_numbers = #tpu.dot_dimension_numbers<[1], [1], [0], [0], [0, 0, 1, 0], [], []>} : vector<16x8xf32>, vector<16x8xf32>, vector<16x16xf32> -> vector<16x16xf32>
    %cst_44 = arith.constant dense<0xFF800000> : vector<16xf32>
    %113 = vector.multi_reduction <maximumf>, %112, %cst_44 [1] : vector<16x16xf32> to vector<16xf32>
    %114 = vector.shape_cast %113 : vector<16xf32> to vector<16x1xf32>
    %115 = vector.broadcast %114 : vector<16x1xf32> to vector<16x16xf32>
    %116 = arith.subf %112, %115 : vector<16x16xf32>
    %117 = math.exp %116 : vector<16x16xf32>
    %cst_45 = arith.constant dense<0.000000e+00> : vector<16xf32>
    %118 = vector.multi_reduction <add>, %117, %cst_45 [1] : vector<16x16xf32> to vector<16xf32>
    %119 = vector.shape_cast %118 : vector<16xf32> to vector<16x1xf32>
    %cst_46 = arith.constant 1.000000e+00 : f32
    %120 = vector.broadcast %cst_46 : f32 to vector<16x1xf32>
    %121 = arith.divf %120, %119 : vector<16x1xf32>
    %cst_47 = arith.constant dense<0.000000e+00> : vector<16x8xf32>
    %122 = tpu.matmul %117, %111, %cst_47 {dimension_numbers = #tpu.dot_dimension_numbers<[1], [0], [0], [1], [0, 0, 1, 1], [], []>} : vector<16x16xf32>, vector<16x8xf32>, vector<16x8xf32> -> vector<16x8xf32>
    %123 = vector.broadcast %121 : vector<16x1xf32> to vector<16x8xf32>
    %124 = arith.mulf %122, %123 : vector<16x8xf32>
    %125 = vector.extract_strided_slice %9 {offsets = [40, 0], sizes = [8, 64], strides = [1, 1]} : vector<64x64xf32> to vector<8x64xf32>
    %cst_48 = arith.constant dense<0.000000e+00> : vector<16x64xf32>
    %126 = tpu.matmul %124, %125, %cst_48 {dimension_numbers = #tpu.dot_dimension_numbers<[1], [0], [0], [1], [0, 0, 1, 1], [], []>} : vector<16x8xf32>, vector<8x64xf32>, vector<16x64xf32> -> vector<16x64xf32>
    %127 = arith.addf %108, %126 : vector<16x64xf32>
    %128 = vector.extract_strided_slice %7 {offsets = [0, 48], sizes = [16, 8], strides = [1, 1]} : vector<16x384xf32> to vector<16x8xf32>
    %129 = vector.extract_strided_slice %7 {offsets = [0, 176], sizes = [16, 8], strides = [1, 1]} : vector<16x384xf32> to vector<16x8xf32>
    %130 = vector.extract_strided_slice %7 {offsets = [0, 304], sizes = [16, 8], strides = [1, 1]} : vector<16x384xf32> to vector<16x8xf32>
    %cst_49 = arith.constant dense<0.000000e+00> : vector<16x16xf32>
    %131 = tpu.matmul %128, %129, %cst_49 {dimension_numbers = #tpu.dot_dimension_numbers<[1], [1], [0], [0], [0, 0, 1, 0], [], []>} : vector<16x8xf32>, vector<16x8xf32>, vector<16x16xf32> -> vector<16x16xf32>
    %cst_50 = arith.constant dense<0xFF800000> : vector<16xf32>
    %132 = vector.multi_reduction <maximumf>, %131, %cst_50 [1] : vector<16x16xf32> to vector<16xf32>
    %133 = vector.shape_cast %132 : vector<16xf32> to vector<16x1xf32>
    %134 = vector.broadcast %133 : vector<16x1xf32> to vector<16x16xf32>
    %135 = arith.subf %131, %134 : vector<16x16xf32>
    %136 = math.exp %135 : vector<16x16xf32>
    %cst_51 = arith.constant dense<0.000000e+00> : vector<16xf32>
    %137 = vector.multi_reduction <add>, %136, %cst_51 [1] : vector<16x16xf32> to vector<16xf32>
    %138 = vector.shape_cast %137 : vector<16xf32> to vector<16x1xf32>
    %cst_52 = arith.constant 1.000000e+00 : f32
    %139 = vector.broadcast %cst_52 : f32 to vector<16x1xf32>
    %140 = arith.divf %139, %138 : vector<16x1xf32>
    %cst_53 = arith.constant dense<0.000000e+00> : vector<16x8xf32>
    %141 = tpu.matmul %136, %130, %cst_53 {dimension_numbers = #tpu.dot_dimension_numbers<[1], [0], [0], [1], [0, 0, 1, 1], [], []>} : vector<16x16xf32>, vector<16x8xf32>, vector<16x8xf32> -> vector<16x8xf32>
    %142 = vector.broadcast %140 : vector<16x1xf32> to vector<16x8xf32>
    %143 = arith.mulf %141, %142 : vector<16x8xf32>
    %144 = vector.extract_strided_slice %9 {offsets = [48, 0], sizes = [8, 64], strides = [1, 1]} : vector<64x64xf32> to vector<8x64xf32>
    %cst_54 = arith.constant dense<0.000000e+00> : vector<16x64xf32>
    %145 = tpu.matmul %143, %144, %cst_54 {dimension_numbers = #tpu.dot_dimension_numbers<[1], [0], [0], [1], [0, 0, 1, 1], [], []>} : vector<16x8xf32>, vector<8x64xf32>, vector<16x64xf32> -> vector<16x64xf32>
    %146 = arith.addf %127, %145 : vector<16x64xf32>
    %147 = vector.extract_strided_slice %7 {offsets = [0, 56], sizes = [16, 8], strides = [1, 1]} : vector<16x384xf32> to vector<16x8xf32>
    %148 = vector.extract_strided_slice %7 {offsets = [0, 184], sizes = [16, 8], strides = [1, 1]} : vector<16x384xf32> to vector<16x8xf32>
    %149 = vector.extract_strided_slice %7 {offsets = [0, 312], sizes = [16, 8], strides = [1, 1]} : vector<16x384xf32> to vector<16x8xf32>
    %cst_55 = arith.constant dense<0.000000e+00> : vector<16x16xf32>
    %150 = tpu.matmul %147, %148, %cst_55 {dimension_numbers = #tpu.dot_dimension_numbers<[1], [1], [0], [0], [0, 0, 1, 0], [], []>} : vector<16x8xf32>, vector<16x8xf32>, vector<16x16xf32> -> vector<16x16xf32>
    %cst_56 = arith.constant dense<0xFF800000> : vector<16xf32>
    %151 = vector.multi_reduction <maximumf>, %150, %cst_56 [1] : vector<16x16xf32> to vector<16xf32>
    %152 = vector.shape_cast %151 : vector<16xf32> to vector<16x1xf32>
    %153 = vector.broadcast %152 : vector<16x1xf32> to vector<16x16xf32>
    %154 = arith.subf %150, %153 : vector<16x16xf32>
    %155 = math.exp %154 : vector<16x16xf32>
    %cst_57 = arith.constant dense<0.000000e+00> : vector<16xf32>
    %156 = vector.multi_reduction <add>, %155, %cst_57 [1] : vector<16x16xf32> to vector<16xf32>
    %157 = vector.shape_cast %156 : vector<16xf32> to vector<16x1xf32>
    %cst_58 = arith.constant 1.000000e+00 : f32
    %158 = vector.broadcast %cst_58 : f32 to vector<16x1xf32>
    %159 = arith.divf %158, %157 : vector<16x1xf32>
    %cst_59 = arith.constant dense<0.000000e+00> : vector<16x8xf32>
    %160 = tpu.matmul %155, %149, %cst_59 {dimension_numbers = #tpu.dot_dimension_numbers<[1], [0], [0], [1], [0, 0, 1, 1], [], []>} : vector<16x16xf32>, vector<16x8xf32>, vector<16x8xf32> -> vector<16x8xf32>
    %161 = vector.broadcast %159 : vector<16x1xf32> to vector<16x8xf32>
    %162 = arith.mulf %160, %161 : vector<16x8xf32>
    %163 = vector.extract_strided_slice %9 {offsets = [56, 0], sizes = [8, 64], strides = [1, 1]} : vector<64x64xf32> to vector<8x64xf32>
    %cst_60 = arith.constant dense<0.000000e+00> : vector<16x64xf32>
    %164 = tpu.matmul %162, %163, %cst_60 {dimension_numbers = #tpu.dot_dimension_numbers<[1], [0], [0], [1], [0, 0, 1, 1], [], []>} : vector<16x8xf32>, vector<8x64xf32>, vector<16x64xf32> -> vector<16x64xf32>
    %165 = arith.addf %146, %164 : vector<16x64xf32>
    %c0_61 = arith.constant 0 : index
    %c0_62 = arith.constant 0 : index
    %c0_63 = arith.constant 0 : index
    %166 = vector.load %arg6[%c0_61, %c0_62, %c0_63] : memref<2x1x64xf32, #tpu.memory_space<vmem>>, vector<1x1x64xf32>
    %167 = vector.shape_cast %166 : vector<1x1x64xf32> to vector<1x64xf32>
    %c0_64 = arith.constant 0 : index
    %c0_65 = arith.constant 0 : index
    %c0_66 = arith.constant 0 : index
    %168 = vector.load %arg7[%c0_64, %c0_65, %c0_66] : memref<2x1x64xf32, #tpu.memory_space<vmem>>, vector<1x1x64xf32>
    %169 = vector.shape_cast %168 : vector<1x1x64xf32> to vector<1x64xf32>
    %cst_67 = arith.constant dense<0.000000e+00> : vector<16xf32>
    %170 = vector.multi_reduction <add>, %165, %cst_67 [1] : vector<16x64xf32> to vector<16xf32>
    %171 = vector.shape_cast %170 : vector<16xf32> to vector<16x1xf32>
    %cst_68 = arith.constant 6.400000e+01 : f32
    %172 = vector.broadcast %cst_68 : f32 to vector<16x1xf32>
    %173 = arith.divf %171, %172 : vector<16x1xf32>
    %174 = vector.broadcast %173 : vector<16x1xf32> to vector<16x64xf32>
    %175 = arith.subf %165, %174 : vector<16x64xf32>
    %176 = arith.mulf %175, %175 : vector<16x64xf32>
    %cst_69 = arith.constant dense<0.000000e+00> : vector<16xf32>
    %177 = vector.multi_reduction <add>, %176, %cst_69 [1] : vector<16x64xf32> to vector<16xf32>
    %178 = vector.shape_cast %177 : vector<16xf32> to vector<16x1xf32>
    %cst_70 = arith.constant 6.400000e+01 : f32
    %179 = vector.broadcast %cst_70 : f32 to vector<16x1xf32>
    %180 = arith.divf %178, %179 : vector<16x1xf32>
    %181 = vector.broadcast %173 : vector<16x1xf32> to vector<16x64xf32>
    %182 = arith.subf %165, %181 : vector<16x64xf32>
    %cst_71 = arith.constant 9.99999974E-6 : f32
    %183 = vector.broadcast %cst_71 : f32 to vector<16x1xf32>
    %184 = arith.addf %180, %183 : vector<16x1xf32>
    %185 = math.rsqrt %184 : vector<16x1xf32>
    %186 = vector.broadcast %185 : vector<16x1xf32> to vector<16x64xf32>
    %187 = arith.mulf %182, %186 : vector<16x64xf32>
    %188 = vector.broadcast %167 : vector<1x64xf32> to vector<16x64xf32>
    %189 = arith.mulf %187, %188 : vector<16x64xf32>
    %190 = vector.broadcast %169 : vector<1x64xf32> to vector<16x64xf32>
    %191 = arith.addf %189, %190 : vector<16x64xf32>
    %c0_72 = arith.constant 0 : index
    %c0_73 = arith.constant 0 : index
    %c0_74 = arith.constant 0 : index
    %192 = vector.load %arg8[%c0_72, %c0_73, %c0_74] : memref<2x64x128xf32, #tpu.memory_space<vmem>>, vector<1x64x128xf32>
    %193 = vector.shape_cast %192 : vector<1x64x128xf32> to vector<64x128xf32>
    %cst_75 = arith.constant dense<0.000000e+00> : vector<16x128xf32>
    %194 = tpu.matmul %191, %193, %cst_75 {dimension_numbers = #tpu.dot_dimension_numbers<[1], [0], [0], [1], [0, 0, 1, 1], [], []>} : vector<16x64xf32>, vector<64x128xf32>, vector<16x128xf32> -> vector<16x128xf32>
    %c0_76 = arith.constant 0 : index
    %c0_77 = arith.constant 0 : index
    %c0_78 = arith.constant 0 : index
    %195 = vector.load %arg9[%c0_76, %c0_77, %c0_78] : memref<2x1x128xf32, #tpu.memory_space<vmem>>, vector<1x1x128xf32>
    %196 = vector.shape_cast %195 : vector<1x1x128xf32> to vector<1x128xf32>
    %197 = vector.broadcast %196 : vector<1x128xf32> to vector<16x128xf32>
    %198 = arith.addf %194, %197 : vector<16x128xf32>
    %cst_79 = arith.constant 0.000000e+00 : f32
    %199 = vector.broadcast %cst_79 : f32 to vector<16x128xf32>
    %200 = arith.maximumf %198, %199 : vector<16x128xf32>
    %c0_80 = arith.constant 0 : index
    %c0_81 = arith.constant 0 : index
    %c0_82 = arith.constant 0 : index
    %201 = vector.load %arg10[%c0_80, %c0_81, %c0_82] : memref<2x128x64xf32, #tpu.memory_space<vmem>>, vector<1x128x64xf32>
    %202 = vector.shape_cast %201 : vector<1x128x64xf32> to vector<128x64xf32>
    %cst_83 = arith.constant dense<0.000000e+00> : vector<16x64xf32>
    %203 = tpu.matmul %200, %202, %cst_83 {dimension_numbers = #tpu.dot_dimension_numbers<[1], [0], [0], [1], [0, 0, 1, 1], [], []>} : vector<16x128xf32>, vector<128x64xf32>, vector<16x64xf32> -> vector<16x64xf32>
    %c0_84 = arith.constant 0 : index
    %c0_85 = arith.constant 0 : index
    %c0_86 = arith.constant 0 : index
    %204 = vector.load %arg11[%c0_84, %c0_85, %c0_86] : memref<2x1x64xf32, #tpu.memory_space<vmem>>, vector<1x1x64xf32>
    %205 = vector.shape_cast %204 : vector<1x1x64xf32> to vector<1x64xf32>
    %206 = vector.broadcast %205 : vector<1x64xf32> to vector<16x64xf32>
    %207 = arith.addf %203, %206 : vector<16x64xf32>
    %208 = arith.addf %191, %207 : vector<16x64xf32>
    %c0_87 = arith.constant 0 : index
    %c0_88 = arith.constant 0 : index
    %c0_89 = arith.constant 0 : index
    %209 = vector.load %arg12[%c0_87, %c0_88, %c0_89] : memref<2x1x64xf32, #tpu.memory_space<vmem>>, vector<1x1x64xf32>
    %210 = vector.shape_cast %209 : vector<1x1x64xf32> to vector<1x64xf32>
    %c0_90 = arith.constant 0 : index
    %c0_91 = arith.constant 0 : index
    %c0_92 = arith.constant 0 : index
    %211 = vector.load %arg13[%c0_90, %c0_91, %c0_92] : memref<2x1x64xf32, #tpu.memory_space<vmem>>, vector<1x1x64xf32>
    %212 = vector.shape_cast %211 : vector<1x1x64xf32> to vector<1x64xf32>
    %cst_93 = arith.constant dense<0.000000e+00> : vector<16xf32>
    %213 = vector.multi_reduction <add>, %208, %cst_93 [1] : vector<16x64xf32> to vector<16xf32>
    %214 = vector.shape_cast %213 : vector<16xf32> to vector<16x1xf32>
    %cst_94 = arith.constant 6.400000e+01 : f32
    %215 = vector.broadcast %cst_94 : f32 to vector<16x1xf32>
    %216 = arith.divf %214, %215 : vector<16x1xf32>
    %217 = vector.broadcast %216 : vector<16x1xf32> to vector<16x64xf32>
    %218 = arith.subf %208, %217 : vector<16x64xf32>
    %219 = arith.mulf %218, %218 : vector<16x64xf32>
    %cst_95 = arith.constant dense<0.000000e+00> : vector<16xf32>
    %220 = vector.multi_reduction <add>, %219, %cst_95 [1] : vector<16x64xf32> to vector<16xf32>
    %221 = vector.shape_cast %220 : vector<16xf32> to vector<16x1xf32>
    %cst_96 = arith.constant 6.400000e+01 : f32
    %222 = vector.broadcast %cst_96 : f32 to vector<16x1xf32>
    %223 = arith.divf %221, %222 : vector<16x1xf32>
    %224 = vector.broadcast %216 : vector<16x1xf32> to vector<16x64xf32>
    %225 = arith.subf %208, %224 : vector<16x64xf32>
    %cst_97 = arith.constant 9.99999974E-6 : f32
    %226 = vector.broadcast %cst_97 : f32 to vector<16x1xf32>
    %227 = arith.addf %223, %226 : vector<16x1xf32>
    %228 = math.rsqrt %227 : vector<16x1xf32>
    %229 = vector.broadcast %228 : vector<16x1xf32> to vector<16x64xf32>
    %230 = arith.mulf %225, %229 : vector<16x64xf32>
    %231 = vector.broadcast %210 : vector<1x64xf32> to vector<16x64xf32>
    %232 = arith.mulf %230, %231 : vector<16x64xf32>
    %233 = vector.broadcast %212 : vector<1x64xf32> to vector<16x64xf32>
    %234 = arith.addf %232, %233 : vector<16x64xf32>
    %c1 = arith.constant 1 : index
    %c0_98 = arith.constant 0 : index
    %c0_99 = arith.constant 0 : index
    %235 = vector.load %arg2[%c1, %c0_98, %c0_99] : memref<2x64x384xf32, #tpu.memory_space<vmem>>, vector<1x64x384xf32>
    %236 = vector.shape_cast %235 : vector<1x64x384xf32> to vector<64x384xf32>
    %cst_100 = arith.constant dense<0.000000e+00> : vector<16x384xf32>
    %237 = tpu.matmul %234, %236, %cst_100 {dimension_numbers = #tpu.dot_dimension_numbers<[1], [0], [0], [1], [0, 0, 1, 1], [], []>} : vector<16x64xf32>, vector<64x384xf32>, vector<16x384xf32> -> vector<16x384xf32>
    %c1_101 = arith.constant 1 : index
    %c0_102 = arith.constant 0 : index
    %c0_103 = arith.constant 0 : index
    %238 = vector.load %arg3[%c1_101, %c0_102, %c0_103] : memref<2x1x384xf32, #tpu.memory_space<vmem>>, vector<1x1x384xf32>
    %239 = vector.shape_cast %238 : vector<1x1x384xf32> to vector<1x384xf32>
    %240 = vector.broadcast %239 : vector<1x384xf32> to vector<16x384xf32>
    %241 = arith.addf %237, %240 : vector<16x384xf32>
    %c1_104 = arith.constant 1 : index
    %c0_105 = arith.constant 0 : index
    %c0_106 = arith.constant 0 : index
    %242 = vector.load %arg4[%c1_104, %c0_105, %c0_106] : memref<2x64x64xf32, #tpu.memory_space<vmem>>, vector<1x64x64xf32>
    %243 = vector.shape_cast %242 : vector<1x64x64xf32> to vector<64x64xf32>
    %c1_107 = arith.constant 1 : index
    %c0_108 = arith.constant 0 : index
    %c0_109 = arith.constant 0 : index
    %244 = vector.load %arg5[%c1_107, %c0_108, %c0_109] : memref<2x1x64xf32, #tpu.memory_space<vmem>>, vector<1x1x64xf32>
    %245 = vector.shape_cast %244 : vector<1x1x64xf32> to vector<1x64xf32>
    %246 = vector.broadcast %245 : vector<1x64xf32> to vector<16x64xf32>
    %247 = arith.addf %234, %246 : vector<16x64xf32>
    %248 = vector.extract_strided_slice %241 {offsets = [0, 0], sizes = [16, 8], strides = [1, 1]} : vector<16x384xf32> to vector<16x8xf32>
    %249 = vector.extract_strided_slice %241 {offsets = [0, 128], sizes = [16, 8], strides = [1, 1]} : vector<16x384xf32> to vector<16x8xf32>
    %250 = vector.extract_strided_slice %241 {offsets = [0, 256], sizes = [16, 8], strides = [1, 1]} : vector<16x384xf32> to vector<16x8xf32>
    %cst_110 = arith.constant dense<0.000000e+00> : vector<16x16xf32>
    %251 = tpu.matmul %248, %249, %cst_110 {dimension_numbers = #tpu.dot_dimension_numbers<[1], [1], [0], [0], [0, 0, 1, 0], [], []>} : vector<16x8xf32>, vector<16x8xf32>, vector<16x16xf32> -> vector<16x16xf32>
    %cst_111 = arith.constant dense<0xFF800000> : vector<16xf32>
    %252 = vector.multi_reduction <maximumf>, %251, %cst_111 [1] : vector<16x16xf32> to vector<16xf32>
    %253 = vector.shape_cast %252 : vector<16xf32> to vector<16x1xf32>
    %254 = vector.broadcast %253 : vector<16x1xf32> to vector<16x16xf32>
    %255 = arith.subf %251, %254 : vector<16x16xf32>
    %256 = math.exp %255 : vector<16x16xf32>
    %cst_112 = arith.constant dense<0.000000e+00> : vector<16xf32>
    %257 = vector.multi_reduction <add>, %256, %cst_112 [1] : vector<16x16xf32> to vector<16xf32>
    %258 = vector.shape_cast %257 : vector<16xf32> to vector<16x1xf32>
    %cst_113 = arith.constant 1.000000e+00 : f32
    %259 = vector.broadcast %cst_113 : f32 to vector<16x1xf32>
    %260 = arith.divf %259, %258 : vector<16x1xf32>
    %cst_114 = arith.constant dense<0.000000e+00> : vector<16x8xf32>
    %261 = tpu.matmul %256, %250, %cst_114 {dimension_numbers = #tpu.dot_dimension_numbers<[1], [0], [0], [1], [0, 0, 1, 1], [], []>} : vector<16x16xf32>, vector<16x8xf32>, vector<16x8xf32> -> vector<16x8xf32>
    %262 = vector.broadcast %260 : vector<16x1xf32> to vector<16x8xf32>
    %263 = arith.mulf %261, %262 : vector<16x8xf32>
    %264 = vector.extract_strided_slice %243 {offsets = [0, 0], sizes = [8, 64], strides = [1, 1]} : vector<64x64xf32> to vector<8x64xf32>
    %cst_115 = arith.constant dense<0.000000e+00> : vector<16x64xf32>
    %265 = tpu.matmul %263, %264, %cst_115 {dimension_numbers = #tpu.dot_dimension_numbers<[1], [0], [0], [1], [0, 0, 1, 1], [], []>} : vector<16x8xf32>, vector<8x64xf32>, vector<16x64xf32> -> vector<16x64xf32>
    %266 = arith.addf %247, %265 : vector<16x64xf32>
    %267 = vector.extract_strided_slice %241 {offsets = [0, 8], sizes = [16, 8], strides = [1, 1]} : vector<16x384xf32> to vector<16x8xf32>
    %268 = vector.extract_strided_slice %241 {offsets = [0, 136], sizes = [16, 8], strides = [1, 1]} : vector<16x384xf32> to vector<16x8xf32>
    %269 = vector.extract_strided_slice %241 {offsets = [0, 264], sizes = [16, 8], strides = [1, 1]} : vector<16x384xf32> to vector<16x8xf32>
    %cst_116 = arith.constant dense<0.000000e+00> : vector<16x16xf32>
    %270 = tpu.matmul %267, %268, %cst_116 {dimension_numbers = #tpu.dot_dimension_numbers<[1], [1], [0], [0], [0, 0, 1, 0], [], []>} : vector<16x8xf32>, vector<16x8xf32>, vector<16x16xf32> -> vector<16x16xf32>
    %cst_117 = arith.constant dense<0xFF800000> : vector<16xf32>
    %271 = vector.multi_reduction <maximumf>, %270, %cst_117 [1] : vector<16x16xf32> to vector<16xf32>
    %272 = vector.shape_cast %271 : vector<16xf32> to vector<16x1xf32>
    %273 = vector.broadcast %272 : vector<16x1xf32> to vector<16x16xf32>
    %274 = arith.subf %270, %273 : vector<16x16xf32>
    %275 = math.exp %274 : vector<16x16xf32>
    %cst_118 = arith.constant dense<0.000000e+00> : vector<16xf32>
    %276 = vector.multi_reduction <add>, %275, %cst_118 [1] : vector<16x16xf32> to vector<16xf32>
    %277 = vector.shape_cast %276 : vector<16xf32> to vector<16x1xf32>
    %cst_119 = arith.constant 1.000000e+00 : f32
    %278 = vector.broadcast %cst_119 : f32 to vector<16x1xf32>
    %279 = arith.divf %278, %277 : vector<16x1xf32>
    %cst_120 = arith.constant dense<0.000000e+00> : vector<16x8xf32>
    %280 = tpu.matmul %275, %269, %cst_120 {dimension_numbers = #tpu.dot_dimension_numbers<[1], [0], [0], [1], [0, 0, 1, 1], [], []>} : vector<16x16xf32>, vector<16x8xf32>, vector<16x8xf32> -> vector<16x8xf32>
    %281 = vector.broadcast %279 : vector<16x1xf32> to vector<16x8xf32>
    %282 = arith.mulf %280, %281 : vector<16x8xf32>
    %283 = vector.extract_strided_slice %243 {offsets = [8, 0], sizes = [8, 64], strides = [1, 1]} : vector<64x64xf32> to vector<8x64xf32>
    %cst_121 = arith.constant dense<0.000000e+00> : vector<16x64xf32>
    %284 = tpu.matmul %282, %283, %cst_121 {dimension_numbers = #tpu.dot_dimension_numbers<[1], [0], [0], [1], [0, 0, 1, 1], [], []>} : vector<16x8xf32>, vector<8x64xf32>, vector<16x64xf32> -> vector<16x64xf32>
    %285 = arith.addf %266, %284 : vector<16x64xf32>
    %286 = vector.extract_strided_slice %241 {offsets = [0, 16], sizes = [16, 8], strides = [1, 1]} : vector<16x384xf32> to vector<16x8xf32>
    %287 = vector.extract_strided_slice %241 {offsets = [0, 144], sizes = [16, 8], strides = [1, 1]} : vector<16x384xf32> to vector<16x8xf32>
    %288 = vector.extract_strided_slice %241 {offsets = [0, 272], sizes = [16, 8], strides = [1, 1]} : vector<16x384xf32> to vector<16x8xf32>
    %cst_122 = arith.constant dense<0.000000e+00> : vector<16x16xf32>
    %289 = tpu.matmul %286, %287, %cst_122 {dimension_numbers = #tpu.dot_dimension_numbers<[1], [1], [0], [0], [0, 0, 1, 0], [], []>} : vector<16x8xf32>, vector<16x8xf32>, vector<16x16xf32> -> vector<16x16xf32>
    %cst_123 = arith.constant dense<0xFF800000> : vector<16xf32>
    %290 = vector.multi_reduction <maximumf>, %289, %cst_123 [1] : vector<16x16xf32> to vector<16xf32>
    %291 = vector.shape_cast %290 : vector<16xf32> to vector<16x1xf32>
    %292 = vector.broadcast %291 : vector<16x1xf32> to vector<16x16xf32>
    %293 = arith.subf %289, %292 : vector<16x16xf32>
    %294 = math.exp %293 : vector<16x16xf32>
    %cst_124 = arith.constant dense<0.000000e+00> : vector<16xf32>
    %295 = vector.multi_reduction <add>, %294, %cst_124 [1] : vector<16x16xf32> to vector<16xf32>
    %296 = vector.shape_cast %295 : vector<16xf32> to vector<16x1xf32>
    %cst_125 = arith.constant 1.000000e+00 : f32
    %297 = vector.broadcast %cst_125 : f32 to vector<16x1xf32>
    %298 = arith.divf %297, %296 : vector<16x1xf32>
    %cst_126 = arith.constant dense<0.000000e+00> : vector<16x8xf32>
    %299 = tpu.matmul %294, %288, %cst_126 {dimension_numbers = #tpu.dot_dimension_numbers<[1], [0], [0], [1], [0, 0, 1, 1], [], []>} : vector<16x16xf32>, vector<16x8xf32>, vector<16x8xf32> -> vector<16x8xf32>
    %300 = vector.broadcast %298 : vector<16x1xf32> to vector<16x8xf32>
    %301 = arith.mulf %299, %300 : vector<16x8xf32>
    %302 = vector.extract_strided_slice %243 {offsets = [16, 0], sizes = [8, 64], strides = [1, 1]} : vector<64x64xf32> to vector<8x64xf32>
    %cst_127 = arith.constant dense<0.000000e+00> : vector<16x64xf32>
    %303 = tpu.matmul %301, %302, %cst_127 {dimension_numbers = #tpu.dot_dimension_numbers<[1], [0], [0], [1], [0, 0, 1, 1], [], []>} : vector<16x8xf32>, vector<8x64xf32>, vector<16x64xf32> -> vector<16x64xf32>
    %304 = arith.addf %285, %303 : vector<16x64xf32>
    %305 = vector.extract_strided_slice %241 {offsets = [0, 24], sizes = [16, 8], strides = [1, 1]} : vector<16x384xf32> to vector<16x8xf32>
    %306 = vector.extract_strided_slice %241 {offsets = [0, 152], sizes = [16, 8], strides = [1, 1]} : vector<16x384xf32> to vector<16x8xf32>
    %307 = vector.extract_strided_slice %241 {offsets = [0, 280], sizes = [16, 8], strides = [1, 1]} : vector<16x384xf32> to vector<16x8xf32>
    %cst_128 = arith.constant dense<0.000000e+00> : vector<16x16xf32>
    %308 = tpu.matmul %305, %306, %cst_128 {dimension_numbers = #tpu.dot_dimension_numbers<[1], [1], [0], [0], [0, 0, 1, 0], [], []>} : vector<16x8xf32>, vector<16x8xf32>, vector<16x16xf32> -> vector<16x16xf32>
    %cst_129 = arith.constant dense<0xFF800000> : vector<16xf32>
    %309 = vector.multi_reduction <maximumf>, %308, %cst_129 [1] : vector<16x16xf32> to vector<16xf32>
    %310 = vector.shape_cast %309 : vector<16xf32> to vector<16x1xf32>
    %311 = vector.broadcast %310 : vector<16x1xf32> to vector<16x16xf32>
    %312 = arith.subf %308, %311 : vector<16x16xf32>
    %313 = math.exp %312 : vector<16x16xf32>
    %cst_130 = arith.constant dense<0.000000e+00> : vector<16xf32>
    %314 = vector.multi_reduction <add>, %313, %cst_130 [1] : vector<16x16xf32> to vector<16xf32>
    %315 = vector.shape_cast %314 : vector<16xf32> to vector<16x1xf32>
    %cst_131 = arith.constant 1.000000e+00 : f32
    %316 = vector.broadcast %cst_131 : f32 to vector<16x1xf32>
    %317 = arith.divf %316, %315 : vector<16x1xf32>
    %cst_132 = arith.constant dense<0.000000e+00> : vector<16x8xf32>
    %318 = tpu.matmul %313, %307, %cst_132 {dimension_numbers = #tpu.dot_dimension_numbers<[1], [0], [0], [1], [0, 0, 1, 1], [], []>} : vector<16x16xf32>, vector<16x8xf32>, vector<16x8xf32> -> vector<16x8xf32>
    %319 = vector.broadcast %317 : vector<16x1xf32> to vector<16x8xf32>
    %320 = arith.mulf %318, %319 : vector<16x8xf32>
    %321 = vector.extract_strided_slice %243 {offsets = [24, 0], sizes = [8, 64], strides = [1, 1]} : vector<64x64xf32> to vector<8x64xf32>
    %cst_133 = arith.constant dense<0.000000e+00> : vector<16x64xf32>
    %322 = tpu.matmul %320, %321, %cst_133 {dimension_numbers = #tpu.dot_dimension_numbers<[1], [0], [0], [1], [0, 0, 1, 1], [], []>} : vector<16x8xf32>, vector<8x64xf32>, vector<16x64xf32> -> vector<16x64xf32>
    %323 = arith.addf %304, %322 : vector<16x64xf32>
    %324 = vector.extract_strided_slice %241 {offsets = [0, 32], sizes = [16, 8], strides = [1, 1]} : vector<16x384xf32> to vector<16x8xf32>
    %325 = vector.extract_strided_slice %241 {offsets = [0, 160], sizes = [16, 8], strides = [1, 1]} : vector<16x384xf32> to vector<16x8xf32>
    %326 = vector.extract_strided_slice %241 {offsets = [0, 288], sizes = [16, 8], strides = [1, 1]} : vector<16x384xf32> to vector<16x8xf32>
    %cst_134 = arith.constant dense<0.000000e+00> : vector<16x16xf32>
    %327 = tpu.matmul %324, %325, %cst_134 {dimension_numbers = #tpu.dot_dimension_numbers<[1], [1], [0], [0], [0, 0, 1, 0], [], []>} : vector<16x8xf32>, vector<16x8xf32>, vector<16x16xf32> -> vector<16x16xf32>
    %cst_135 = arith.constant dense<0xFF800000> : vector<16xf32>
    %328 = vector.multi_reduction <maximumf>, %327, %cst_135 [1] : vector<16x16xf32> to vector<16xf32>
    %329 = vector.shape_cast %328 : vector<16xf32> to vector<16x1xf32>
    %330 = vector.broadcast %329 : vector<16x1xf32> to vector<16x16xf32>
    %331 = arith.subf %327, %330 : vector<16x16xf32>
    %332 = math.exp %331 : vector<16x16xf32>
    %cst_136 = arith.constant dense<0.000000e+00> : vector<16xf32>
    %333 = vector.multi_reduction <add>, %332, %cst_136 [1] : vector<16x16xf32> to vector<16xf32>
    %334 = vector.shape_cast %333 : vector<16xf32> to vector<16x1xf32>
    %cst_137 = arith.constant 1.000000e+00 : f32
    %335 = vector.broadcast %cst_137 : f32 to vector<16x1xf32>
    %336 = arith.divf %335, %334 : vector<16x1xf32>
    %cst_138 = arith.constant dense<0.000000e+00> : vector<16x8xf32>
    %337 = tpu.matmul %332, %326, %cst_138 {dimension_numbers = #tpu.dot_dimension_numbers<[1], [0], [0], [1], [0, 0, 1, 1], [], []>} : vector<16x16xf32>, vector<16x8xf32>, vector<16x8xf32> -> vector<16x8xf32>
    %338 = vector.broadcast %336 : vector<16x1xf32> to vector<16x8xf32>
    %339 = arith.mulf %337, %338 : vector<16x8xf32>
    %340 = vector.extract_strided_slice %243 {offsets = [32, 0], sizes = [8, 64], strides = [1, 1]} : vector<64x64xf32> to vector<8x64xf32>
    %cst_139 = arith.constant dense<0.000000e+00> : vector<16x64xf32>
    %341 = tpu.matmul %339, %340, %cst_139 {dimension_numbers = #tpu.dot_dimension_numbers<[1], [0], [0], [1], [0, 0, 1, 1], [], []>} : vector<16x8xf32>, vector<8x64xf32>, vector<16x64xf32> -> vector<16x64xf32>
    %342 = arith.addf %323, %341 : vector<16x64xf32>
    %343 = vector.extract_strided_slice %241 {offsets = [0, 40], sizes = [16, 8], strides = [1, 1]} : vector<16x384xf32> to vector<16x8xf32>
    %344 = vector.extract_strided_slice %241 {offsets = [0, 168], sizes = [16, 8], strides = [1, 1]} : vector<16x384xf32> to vector<16x8xf32>
    %345 = vector.extract_strided_slice %241 {offsets = [0, 296], sizes = [16, 8], strides = [1, 1]} : vector<16x384xf32> to vector<16x8xf32>
    %cst_140 = arith.constant dense<0.000000e+00> : vector<16x16xf32>
    %346 = tpu.matmul %343, %344, %cst_140 {dimension_numbers = #tpu.dot_dimension_numbers<[1], [1], [0], [0], [0, 0, 1, 0], [], []>} : vector<16x8xf32>, vector<16x8xf32>, vector<16x16xf32> -> vector<16x16xf32>
    %cst_141 = arith.constant dense<0xFF800000> : vector<16xf32>
    %347 = vector.multi_reduction <maximumf>, %346, %cst_141 [1] : vector<16x16xf32> to vector<16xf32>
    %348 = vector.shape_cast %347 : vector<16xf32> to vector<16x1xf32>
    %349 = vector.broadcast %348 : vector<16x1xf32> to vector<16x16xf32>
    %350 = arith.subf %346, %349 : vector<16x16xf32>
    %351 = math.exp %350 : vector<16x16xf32>
    %cst_142 = arith.constant dense<0.000000e+00> : vector<16xf32>
    %352 = vector.multi_reduction <add>, %351, %cst_142 [1] : vector<16x16xf32> to vector<16xf32>
    %353 = vector.shape_cast %352 : vector<16xf32> to vector<16x1xf32>
    %cst_143 = arith.constant 1.000000e+00 : f32
    %354 = vector.broadcast %cst_143 : f32 to vector<16x1xf32>
    %355 = arith.divf %354, %353 : vector<16x1xf32>
    %cst_144 = arith.constant dense<0.000000e+00> : vector<16x8xf32>
    %356 = tpu.matmul %351, %345, %cst_144 {dimension_numbers = #tpu.dot_dimension_numbers<[1], [0], [0], [1], [0, 0, 1, 1], [], []>} : vector<16x16xf32>, vector<16x8xf32>, vector<16x8xf32> -> vector<16x8xf32>
    %357 = vector.broadcast %355 : vector<16x1xf32> to vector<16x8xf32>
    %358 = arith.mulf %356, %357 : vector<16x8xf32>
    %359 = vector.extract_strided_slice %243 {offsets = [40, 0], sizes = [8, 64], strides = [1, 1]} : vector<64x64xf32> to vector<8x64xf32>
    %cst_145 = arith.constant dense<0.000000e+00> : vector<16x64xf32>
    %360 = tpu.matmul %358, %359, %cst_145 {dimension_numbers = #tpu.dot_dimension_numbers<[1], [0], [0], [1], [0, 0, 1, 1], [], []>} : vector<16x8xf32>, vector<8x64xf32>, vector<16x64xf32> -> vector<16x64xf32>
    %361 = arith.addf %342, %360 : vector<16x64xf32>
    %362 = vector.extract_strided_slice %241 {offsets = [0, 48], sizes = [16, 8], strides = [1, 1]} : vector<16x384xf32> to vector<16x8xf32>
    %363 = vector.extract_strided_slice %241 {offsets = [0, 176], sizes = [16, 8], strides = [1, 1]} : vector<16x384xf32> to vector<16x8xf32>
    %364 = vector.extract_strided_slice %241 {offsets = [0, 304], sizes = [16, 8], strides = [1, 1]} : vector<16x384xf32> to vector<16x8xf32>
    %cst_146 = arith.constant dense<0.000000e+00> : vector<16x16xf32>
    %365 = tpu.matmul %362, %363, %cst_146 {dimension_numbers = #tpu.dot_dimension_numbers<[1], [1], [0], [0], [0, 0, 1, 0], [], []>} : vector<16x8xf32>, vector<16x8xf32>, vector<16x16xf32> -> vector<16x16xf32>
    %cst_147 = arith.constant dense<0xFF800000> : vector<16xf32>
    %366 = vector.multi_reduction <maximumf>, %365, %cst_147 [1] : vector<16x16xf32> to vector<16xf32>
    %367 = vector.shape_cast %366 : vector<16xf32> to vector<16x1xf32>
    %368 = vector.broadcast %367 : vector<16x1xf32> to vector<16x16xf32>
    %369 = arith.subf %365, %368 : vector<16x16xf32>
    %370 = math.exp %369 : vector<16x16xf32>
    %cst_148 = arith.constant dense<0.000000e+00> : vector<16xf32>
    %371 = vector.multi_reduction <add>, %370, %cst_148 [1] : vector<16x16xf32> to vector<16xf32>
    %372 = vector.shape_cast %371 : vector<16xf32> to vector<16x1xf32>
    %cst_149 = arith.constant 1.000000e+00 : f32
    %373 = vector.broadcast %cst_149 : f32 to vector<16x1xf32>
    %374 = arith.divf %373, %372 : vector<16x1xf32>
    %cst_150 = arith.constant dense<0.000000e+00> : vector<16x8xf32>
    %375 = tpu.matmul %370, %364, %cst_150 {dimension_numbers = #tpu.dot_dimension_numbers<[1], [0], [0], [1], [0, 0, 1, 1], [], []>} : vector<16x16xf32>, vector<16x8xf32>, vector<16x8xf32> -> vector<16x8xf32>
    %376 = vector.broadcast %374 : vector<16x1xf32> to vector<16x8xf32>
    %377 = arith.mulf %375, %376 : vector<16x8xf32>
    %378 = vector.extract_strided_slice %243 {offsets = [48, 0], sizes = [8, 64], strides = [1, 1]} : vector<64x64xf32> to vector<8x64xf32>
    %cst_151 = arith.constant dense<0.000000e+00> : vector<16x64xf32>
    %379 = tpu.matmul %377, %378, %cst_151 {dimension_numbers = #tpu.dot_dimension_numbers<[1], [0], [0], [1], [0, 0, 1, 1], [], []>} : vector<16x8xf32>, vector<8x64xf32>, vector<16x64xf32> -> vector<16x64xf32>
    %380 = arith.addf %361, %379 : vector<16x64xf32>
    %381 = vector.extract_strided_slice %241 {offsets = [0, 56], sizes = [16, 8], strides = [1, 1]} : vector<16x384xf32> to vector<16x8xf32>
    %382 = vector.extract_strided_slice %241 {offsets = [0, 184], sizes = [16, 8], strides = [1, 1]} : vector<16x384xf32> to vector<16x8xf32>
    %383 = vector.extract_strided_slice %241 {offsets = [0, 312], sizes = [16, 8], strides = [1, 1]} : vector<16x384xf32> to vector<16x8xf32>
    %cst_152 = arith.constant dense<0.000000e+00> : vector<16x16xf32>
    %384 = tpu.matmul %381, %382, %cst_152 {dimension_numbers = #tpu.dot_dimension_numbers<[1], [1], [0], [0], [0, 0, 1, 0], [], []>} : vector<16x8xf32>, vector<16x8xf32>, vector<16x16xf32> -> vector<16x16xf32>
    %cst_153 = arith.constant dense<0xFF800000> : vector<16xf32>
    %385 = vector.multi_reduction <maximumf>, %384, %cst_153 [1] : vector<16x16xf32> to vector<16xf32>
    %386 = vector.shape_cast %385 : vector<16xf32> to vector<16x1xf32>
    %387 = vector.broadcast %386 : vector<16x1xf32> to vector<16x16xf32>
    %388 = arith.subf %384, %387 : vector<16x16xf32>
    %389 = math.exp %388 : vector<16x16xf32>
    %cst_154 = arith.constant dense<0.000000e+00> : vector<16xf32>
    %390 = vector.multi_reduction <add>, %389, %cst_154 [1] : vector<16x16xf32> to vector<16xf32>
    %391 = vector.shape_cast %390 : vector<16xf32> to vector<16x1xf32>
    %cst_155 = arith.constant 1.000000e+00 : f32
    %392 = vector.broadcast %cst_155 : f32 to vector<16x1xf32>
    %393 = arith.divf %392, %391 : vector<16x1xf32>
    %cst_156 = arith.constant dense<0.000000e+00> : vector<16x8xf32>
    %394 = tpu.matmul %389, %383, %cst_156 {dimension_numbers = #tpu.dot_dimension_numbers<[1], [0], [0], [1], [0, 0, 1, 1], [], []>} : vector<16x16xf32>, vector<16x8xf32>, vector<16x8xf32> -> vector<16x8xf32>
    %395 = vector.broadcast %393 : vector<16x1xf32> to vector<16x8xf32>
    %396 = arith.mulf %394, %395 : vector<16x8xf32>
    %397 = vector.extract_strided_slice %243 {offsets = [56, 0], sizes = [8, 64], strides = [1, 1]} : vector<64x64xf32> to vector<8x64xf32>
    %cst_157 = arith.constant dense<0.000000e+00> : vector<16x64xf32>
    %398 = tpu.matmul %396, %397, %cst_157 {dimension_numbers = #tpu.dot_dimension_numbers<[1], [0], [0], [1], [0, 0, 1, 1], [], []>} : vector<16x8xf32>, vector<8x64xf32>, vector<16x64xf32> -> vector<16x64xf32>
    %399 = arith.addf %380, %398 : vector<16x64xf32>
    %c1_158 = arith.constant 1 : index
    %c0_159 = arith.constant 0 : index
    %c0_160 = arith.constant 0 : index
    %400 = vector.load %arg6[%c1_158, %c0_159, %c0_160] : memref<2x1x64xf32, #tpu.memory_space<vmem>>, vector<1x1x64xf32>
    %401 = vector.shape_cast %400 : vector<1x1x64xf32> to vector<1x64xf32>
    %c1_161 = arith.constant 1 : index
    %c0_162 = arith.constant 0 : index
    %c0_163 = arith.constant 0 : index
    %402 = vector.load %arg7[%c1_161, %c0_162, %c0_163] : memref<2x1x64xf32, #tpu.memory_space<vmem>>, vector<1x1x64xf32>
    %403 = vector.shape_cast %402 : vector<1x1x64xf32> to vector<1x64xf32>
    %cst_164 = arith.constant dense<0.000000e+00> : vector<16xf32>
    %404 = vector.multi_reduction <add>, %399, %cst_164 [1] : vector<16x64xf32> to vector<16xf32>
    %405 = vector.shape_cast %404 : vector<16xf32> to vector<16x1xf32>
    %cst_165 = arith.constant 6.400000e+01 : f32
    %406 = vector.broadcast %cst_165 : f32 to vector<16x1xf32>
    %407 = arith.divf %405, %406 : vector<16x1xf32>
    %408 = vector.broadcast %407 : vector<16x1xf32> to vector<16x64xf32>
    %409 = arith.subf %399, %408 : vector<16x64xf32>
    %410 = arith.mulf %409, %409 : vector<16x64xf32>
    %cst_166 = arith.constant dense<0.000000e+00> : vector<16xf32>
    %411 = vector.multi_reduction <add>, %410, %cst_166 [1] : vector<16x64xf32> to vector<16xf32>
    %412 = vector.shape_cast %411 : vector<16xf32> to vector<16x1xf32>
    %cst_167 = arith.constant 6.400000e+01 : f32
    %413 = vector.broadcast %cst_167 : f32 to vector<16x1xf32>
    %414 = arith.divf %412, %413 : vector<16x1xf32>
    %415 = vector.broadcast %407 : vector<16x1xf32> to vector<16x64xf32>
    %416 = arith.subf %399, %415 : vector<16x64xf32>
    %cst_168 = arith.constant 9.99999974E-6 : f32
    %417 = vector.broadcast %cst_168 : f32 to vector<16x1xf32>
    %418 = arith.addf %414, %417 : vector<16x1xf32>
    %419 = math.rsqrt %418 : vector<16x1xf32>
    %420 = vector.broadcast %419 : vector<16x1xf32> to vector<16x64xf32>
    %421 = arith.mulf %416, %420 : vector<16x64xf32>
    %422 = vector.broadcast %401 : vector<1x64xf32> to vector<16x64xf32>
    %423 = arith.mulf %421, %422 : vector<16x64xf32>
    %424 = vector.broadcast %403 : vector<1x64xf32> to vector<16x64xf32>
    %425 = arith.addf %423, %424 : vector<16x64xf32>
    %c1_169 = arith.constant 1 : index
    %c0_170 = arith.constant 0 : index
    %c0_171 = arith.constant 0 : index
    %426 = vector.load %arg8[%c1_169, %c0_170, %c0_171] : memref<2x64x128xf32, #tpu.memory_space<vmem>>, vector<1x64x128xf32>
    %427 = vector.shape_cast %426 : vector<1x64x128xf32> to vector<64x128xf32>
    %cst_172 = arith.constant dense<0.000000e+00> : vector<16x128xf32>
    %428 = tpu.matmul %425, %427, %cst_172 {dimension_numbers = #tpu.dot_dimension_numbers<[1], [0], [0], [1], [0, 0, 1, 1], [], []>} : vector<16x64xf32>, vector<64x128xf32>, vector<16x128xf32> -> vector<16x128xf32>
    %c1_173 = arith.constant 1 : index
    %c0_174 = arith.constant 0 : index
    %c0_175 = arith.constant 0 : index
    %429 = vector.load %arg9[%c1_173, %c0_174, %c0_175] : memref<2x1x128xf32, #tpu.memory_space<vmem>>, vector<1x1x128xf32>
    %430 = vector.shape_cast %429 : vector<1x1x128xf32> to vector<1x128xf32>
    %431 = vector.broadcast %430 : vector<1x128xf32> to vector<16x128xf32>
    %432 = arith.addf %428, %431 : vector<16x128xf32>
    %cst_176 = arith.constant 0.000000e+00 : f32
    %433 = vector.broadcast %cst_176 : f32 to vector<16x128xf32>
    %434 = arith.maximumf %432, %433 : vector<16x128xf32>
    %c1_177 = arith.constant 1 : index
    %c0_178 = arith.constant 0 : index
    %c0_179 = arith.constant 0 : index
    %435 = vector.load %arg10[%c1_177, %c0_178, %c0_179] : memref<2x128x64xf32, #tpu.memory_space<vmem>>, vector<1x128x64xf32>
    %436 = vector.shape_cast %435 : vector<1x128x64xf32> to vector<128x64xf32>
    %cst_180 = arith.constant dense<0.000000e+00> : vector<16x64xf32>
    %437 = tpu.matmul %434, %436, %cst_180 {dimension_numbers = #tpu.dot_dimension_numbers<[1], [0], [0], [1], [0, 0, 1, 1], [], []>} : vector<16x128xf32>, vector<128x64xf32>, vector<16x64xf32> -> vector<16x64xf32>
    %c1_181 = arith.constant 1 : index
    %c0_182 = arith.constant 0 : index
    %c0_183 = arith.constant 0 : index
    %438 = vector.load %arg11[%c1_181, %c0_182, %c0_183] : memref<2x1x64xf32, #tpu.memory_space<vmem>>, vector<1x1x64xf32>
    %439 = vector.shape_cast %438 : vector<1x1x64xf32> to vector<1x64xf32>
    %440 = vector.broadcast %439 : vector<1x64xf32> to vector<16x64xf32>
    %441 = arith.addf %437, %440 : vector<16x64xf32>
    %442 = arith.addf %425, %441 : vector<16x64xf32>
    %c1_184 = arith.constant 1 : index
    %c0_185 = arith.constant 0 : index
    %c0_186 = arith.constant 0 : index
    %443 = vector.load %arg12[%c1_184, %c0_185, %c0_186] : memref<2x1x64xf32, #tpu.memory_space<vmem>>, vector<1x1x64xf32>
    %444 = vector.shape_cast %443 : vector<1x1x64xf32> to vector<1x64xf32>
    %c1_187 = arith.constant 1 : index
    %c0_188 = arith.constant 0 : index
    %c0_189 = arith.constant 0 : index
    %445 = vector.load %arg13[%c1_187, %c0_188, %c0_189] : memref<2x1x64xf32, #tpu.memory_space<vmem>>, vector<1x1x64xf32>
    %446 = vector.shape_cast %445 : vector<1x1x64xf32> to vector<1x64xf32>
    %cst_190 = arith.constant dense<0.000000e+00> : vector<16xf32>
    %447 = vector.multi_reduction <add>, %442, %cst_190 [1] : vector<16x64xf32> to vector<16xf32>
    %448 = vector.shape_cast %447 : vector<16xf32> to vector<16x1xf32>
    %cst_191 = arith.constant 6.400000e+01 : f32
    %449 = vector.broadcast %cst_191 : f32 to vector<16x1xf32>
    %450 = arith.divf %448, %449 : vector<16x1xf32>
    %451 = vector.broadcast %450 : vector<16x1xf32> to vector<16x64xf32>
    %452 = arith.subf %442, %451 : vector<16x64xf32>
    %453 = arith.mulf %452, %452 : vector<16x64xf32>
    %cst_192 = arith.constant dense<0.000000e+00> : vector<16xf32>
    %454 = vector.multi_reduction <add>, %453, %cst_192 [1] : vector<16x64xf32> to vector<16xf32>
    %455 = vector.shape_cast %454 : vector<16xf32> to vector<16x1xf32>
    %cst_193 = arith.constant 6.400000e+01 : f32
    %456 = vector.broadcast %cst_193 : f32 to vector<16x1xf32>
    %457 = arith.divf %455, %456 : vector<16x1xf32>
    %458 = vector.broadcast %450 : vector<16x1xf32> to vector<16x64xf32>
    %459 = arith.subf %442, %458 : vector<16x64xf32>
    %cst_194 = arith.constant 9.99999974E-6 : f32
    %460 = vector.broadcast %cst_194 : f32 to vector<16x1xf32>
    %461 = arith.addf %457, %460 : vector<16x1xf32>
    %462 = math.rsqrt %461 : vector<16x1xf32>
    %463 = vector.broadcast %462 : vector<16x1xf32> to vector<16x64xf32>
    %464 = arith.mulf %459, %463 : vector<16x64xf32>
    %465 = vector.broadcast %444 : vector<1x64xf32> to vector<16x64xf32>
    %466 = arith.mulf %464, %465 : vector<16x64xf32>
    %467 = vector.broadcast %446 : vector<1x64xf32> to vector<16x64xf32>
    %468 = arith.addf %466, %467 : vector<16x64xf32>
    %c0_195 = arith.constant 0 : index
    %c0_196 = arith.constant 0 : index
    %469 = vector.load %arg14[%c0_195, %c0_196] : memref<16x64xf32, #tpu.memory_space<vmem>>, vector<16x64xf32>
    tpu.vector_store %arg14[%c0_195, %c0_196], %468 {strides = array<i32>} : memref<16x64xf32, #tpu.memory_space<vmem>>, vector<16x64xf32>,
    return
  }
  func.func @transform_0(%arg0: i32) -> (i32, i32) {
    %c0_i32 = arith.constant 0 : i32
    %c0_i32_0 = arith.constant 0 : i32
    return %arg0, %c0_i32 : i32, i32
  }
  func.func @transform_1(%arg0: i32) -> (i32, i32, i32) {
    %c0_i32 = arith.constant 0 : i32
    %c0_i32_0 = arith.constant 0 : i32
    %c0_i32_1 = arith.constant 0 : i32
    %c0_i32_2 = arith.constant 0 : i32
    return %c0_i32, %c0_i32_0, %c0_i32_1 : i32, i32, i32
  }
  func.func @transform_2(%arg0: i32) -> (i32, i32, i32) {
    %c0_i32 = arith.constant 0 : i32
    %c0_i32_0 = arith.constant 0 : i32
    %c0_i32_1 = arith.constant 0 : i32
    %c0_i32_2 = arith.constant 0 : i32
    return %c0_i32, %c0_i32_0, %c0_i32_1 : i32, i32, i32
  }
  func.func @transform_3(%arg0: i32) -> (i32, i32, i32) {
    %c0_i32 = arith.constant 0 : i32
    %c0_i32_0 = arith.constant 0 : i32
    %c0_i32_1 = arith.constant 0 : i32
    %c0_i32_2 = arith.constant 0 : i32
    return %c0_i32, %c0_i32_0, %c0_i32_1 : i32, i32, i32
  }
  func.func @transform_4(%arg0: i32) -> (i32, i32, i32) {
    %c0_i32 = arith.constant 0 : i32
    %c0_i32_0 = arith.constant 0 : i32
    %c0_i32_1 = arith.constant 0 : i32
    %c0_i32_2 = arith.constant 0 : i32
    return %c0_i32, %c0_i32_0, %c0_i32_1 : i32, i32, i32
  }
  func.func @transform_5(%arg0: i32) -> (i32, i32, i32) {
    %c0_i32 = arith.constant 0 : i32
    %c0_i32_0 = arith.constant 0 : i32
    %c0_i32_1 = arith.constant 0 : i32
    %c0_i32_2 = arith.constant 0 : i32
    return %c0_i32, %c0_i32_0, %c0_i32_1 : i32, i32, i32
  }
  func.func @transform_6(%arg0: i32) -> (i32, i32, i32) {
    %c0_i32 = arith.constant 0 : i32
    %c0_i32_0 = arith.constant 0 : i32
    %c0_i32_1 = arith.constant 0 : i32
    %c0_i32_2 = arith.constant 0 : i32
    return %c0_i32, %c0_i32_0, %c0_i32_1 : i32, i32, i32
  }
  func.func @transform_7(%arg0: i32) -> (i32, i32, i32) {
    %c0_i32 = arith.constant 0 : i32
    %c0_i32_0 = arith.constant 0 : i32
    %c0_i32_1 = arith.constant 0 : i32
    %c0_i32_2 = arith.constant 0 : i32
    return %c0_i32, %c0_i32_0, %c0_i32_1 : i32, i32, i32
  }
  func.func @transform_8(%arg0: i32) -> (i32, i32, i32) {
    %c0_i32 = arith.constant 0 : i32
    %c0_i32_0 = arith.constant 0 : i32
    %c0_i32_1 = arith.constant 0 : i32
    %c0_i32_2 = arith.constant 0 : i32
    return %c0_i32, %c0_i32_0, %c0_i32_1 : i32, i32, i32
  }
  func.func @transform_9(%arg0: i32) -> (i32, i32, i32) {
    %c0_i32 = arith.constant 0 : i32
    %c0_i32_0 = arith.constant 0 : i32
    %c0_i32_1 = arith.constant 0 : i32
    %c0_i32_2 = arith.constant 0 : i32
    return %c0_i32, %c0_i32_0, %c0_i32_1 : i32, i32, i32
  }
  func.func @transform_10(%arg0: i32) -> (i32, i32, i32) {
    %c0_i32 = arith.constant 0 : i32
    %c0_i32_0 = arith.constant 0 : i32
    %c0_i32_1 = arith.constant 0 : i32
    %c0_i32_2 = arith.constant 0 : i32
    return %c0_i32, %c0_i32_0, %c0_i32_1 : i32, i32, i32
  }
  func.func @transform_11(%arg0: i32) -> (i32, i32, i32) {
    %c0_i32 = arith.constant 0 : i32
    %c0_i32_0 = arith.constant 0 : i32
    %c0_i32_1 = arith.constant 0 : i32
    %c0_i32_2 = arith.constant 0 : i32
    return %c0_i32, %c0_i32_0, %c0_i32_1 : i32, i32, i32
  }
  func.func @transform_12(%arg0: i32) -> (i32, i32, i32) {
    %c0_i32 = arith.constant 0 : i32
    %c0_i32_0 = arith.constant 0 : i32
    %c0_i32_1 = arith.constant 0 : i32
    %c0_i32_2 = arith.constant 0 : i32
    return %c0_i32, %c0_i32_0, %c0_i32_1 : i32, i32, i32
  }
  func.func @transform_13(%arg0: i32) -> (i32, i32) {
    %c0_i32 = arith.constant 0 : i32
    %c0_i32_0 = arith.constant 0 : i32
    return %arg0, %c0_i32 : i32, i32
  }
}

</mosaic_0001>

<llo_original>
// kernel: tpu_custom_call.1
$region0: #{tpu_custom_call.1}
  #allocation0 [shape = 'u32[]', space=smem, size = 0x4, offset = 0x4, fixed_abs, tag = 'smem constant byte address 0x4 - core index']
  #allocation1 [shape = 'u32[144,128]{1,0:T(1,128)}', space=vmem, size = 0x12000, scoped, tag = 'internal scratch']
  %s0 = inlined_call_operand.hbm [shape: f32[32,64], index: 0, kind: input, shape index: {}]
  %s1 = inlined_call_operand.vmem [shape: f32[2,64,384], index: 1, kind: input, shape index: {}]
  %s2 = inlined_call_operand.hbm [shape: f32[2,1,384], index: 2, kind: input, shape index: {}]
  %s3 = inlined_call_operand.hbm [shape: f32[2,64,64], index: 3, kind: input, shape index: {}]
  %s4 = inlined_call_operand.vmem [shape: f32[2,1,64], index: 4, kind: input, shape index: {}]
  %s5 = inlined_call_operand.vmem [shape: f32[2,1,64], index: 5, kind: input, shape index: {}]
  %s6 = inlined_call_operand.vmem [shape: f32[2,1,64], index: 6, kind: input, shape index: {}]
  %s7 = inlined_call_operand.hbm [shape: f32[2,64,128], index: 7, kind: input, shape index: {}]
  %s8 = inlined_call_operand.vmem [shape: f32[2,1,128], index: 8, kind: input, shape index: {}]
  %s9 = inlined_call_operand.vmem [shape: f32[2,128,64], index: 9, kind: input, shape index: {}]
  %s10 = inlined_call_operand.vmem [shape: f32[2,1,64], index: 10, kind: input, shape index: {}]
  %s11 = inlined_call_operand.vmem [shape: f32[2,1,64], index: 11, kind: input, shape index: {}]
  %s12 = inlined_call_operand.vmem [shape: f32[2,1,64], index: 12, kind: input, shape index: {}]
  %s13 = inlined_call_operand.hbm [shape: f32[32,64], index: 13, kind: output, shape index: {}]
  %s14 = sld [smem:[#allocation0]]
  $region101: #{tpu_custom_call.1} parent=0
    _
  %s16 = ssub.s32 1, %s14
  %s17 = scalar_select 0, %s16, %s14
  $region1: #{tpu_custom_call.1} parent=0
    #allocation2 [shape = 'u8[16384]{0}', space=vmem, size = 0x4000, scoped, tag = 'input window, operand 0']
    #allocation3 [shape = 's32[2]{0}', space=sflag, size = 0x8, scoped, tag = 'scoped memory for tpu_custom_call.1']
    #allocation4 [shape = 's32[2]{0}', space=sflag, size = 0x8, scoped, tag = 'scoped memory for tpu_custom_call.1']
    #allocation5 [shape = 'u8[3072]{0}', space=vmem, size = 0xc00, scoped, tag = 'input window, operand 2, single buffered']
    #allocation6 [shape = 's32[1]{0}', space=sflag, size = 0x4, scoped, tag = 'scoped memory for tpu_custom_call.1']
    #allocation7 [shape = 'u8[65536]{0}', space=vmem, size = 0x10000, scoped, tag = 'input window, operand 3, single buffered']
    #allocation8 [shape = 'u8[65536]{0}', space=vmem, size = 0x10000, scoped, tag = 'input window, operand 7, single buffered']
    #allocation9 [shape = 's32[1]{0}', space=sflag, size = 0x4, scoped, tag = 'scoped memory for tpu_custom_call.1']
    #allocation10 [shape = 'u8[16384]{0}', space=vmem, size = 0x4000, scoped, tag = 'output window, operand 0']
    %18 = vsyncpa [#allocation3], 0
    %s19 = scalar_lea.sflag [#allocation3], 1
    %20 = vsyncpa %s19, 0
    %21 = vsyncpa [#allocation6], 0
    %22 = vsyncpa [#allocation9], 0
    %23 = vsyncpa [#allocation4], 0
    %s24 = scalar_lea.sflag [#allocation4], 1
    %25 = vsyncpa %s24, 0
    loop: start=0, step=1, limit=4
    $region2: #{tpu_custom_call.1} parent=1 // loop_pre_header
      _
    $region3: #{tpu_custom_call.1} parent=1 // loop_header
      %s27 = sphi 0, %s31
      %p28 = scmp.ge.s32.totalorder %s27, 4
      %s37 = sphi 0, %s39
      %s40 = sphi 0, %s37
      %s41 = sphi 0, %s40
      %s57 = sphi 0, %s41
      %s61 = sphi 0, %s61
      %s63 = sphi 0, %s61
      %s64 = sphi 0, %s63
      %s78 = sphi 0, %s64
      %s82 = sphi 0, %s82
      %s84 = sphi 0, %s82
      %s85 = sphi 0, %s84
      %s99 = sphi 0, %s85
      %s103 = sphi 0, %s103
      %s105 = sphi 0, %s103
      %s106 = sphi 0, %s105
      %s120 = sphi 0, %s106
      %s124 = sphi 0, %s124
      %s126 = sphi 0, %s124
      %s127 = sphi 0, %s126
      %s141 = sphi 0, %s127
      %s145 = sphi 0, %s145
      %s147 = sphi 0, %s145
      %s148 = sphi 0, %s147
      %s162 = sphi 0, %s148
      %s166 = sphi 0, %s166
      %s168 = sphi 0, %s166
      %s169 = sphi 0, %s168
      %s183 = sphi 0, %s169
      %s187 = sphi 0, %s187
      %s189 = sphi 0, %s187
      %s190 = sphi 0, %s189
      %s204 = sphi 0, %s190
      %s208 = sphi 0, %s208
      %s210 = sphi 0, %s208
      %s211 = sphi 0, %s210
      %s225 = sphi 0, %s211
      %s229 = sphi 0, %s229
      %s231 = sphi 0, %s229
      %s232 = sphi 0, %s231
      %s246 = sphi 0, %s232
      %s250 = sphi 0, %s250
      %s252 = sphi 0, %s250
      %s253 = sphi 0, %s252
      %s267 = sphi 0, %s253
      %s271 = sphi 0, %s271
      %s273 = sphi 0, %s271
      %s274 = sphi 0, %s273
      %s288 = sphi 0, %s274
      %s292 = sphi 0, %s292
      %s294 = sphi 0, %s292
      %s295 = sphi 0, %s294
      %s309 = sphi 0, %s295
      %s315 = sphi 0, %s317
      %s318 = sphi 0, %s315
      %s319 = sphi 0, %s318
      %s335 = sphi 0, %s319
    $region4: #{tpu_custom_call.1} parent=1 // loop_header_branch
      %30 = sbr.rel (%p28) target = $region8
    $region5: #{tpu_custom_call.1} parent=1 // loop_body
      %s32 = ssub.s32 %s27, 1
      %s33 = ssub.s32 %s27, 2
      %s34 = sadd.s32 %s27, 1
      %s35 = ssub.s32 %s27, %s34
      %p36 = scmp.eq.s32.totalorder %s35, 0
      %s38 = sadd.s32 %s37, 1
      %s39 = scalar_select %p36, %s37, %s38
      %p42 = pneg %p36
      %p43 = scmp.eq.s32.totalorder %s27, 1
      %p44 = por %p42, %p43
      %p45 = scmp.ne.s32.totalorder %s37, %s40
      %p46 = scmp.eq.s32.totalorder %s27, 0
      %p47 = por %p45, %p46
      %p48 = scmp.ne.s32.totalorder %s37, %s40
      %p49 = scmp.eq.s32.totalorder %s32, 1
      %p50 = por %p48, %p49
      %p51 = scmp.ne.s32.totalorder %s40, %s41
      %p52 = scmp.eq.s32.totalorder %s32, 0
      %p53 = por %p51, %p52
      %p54 = scmp.ne.s32.totalorder %s40, %s41
      %p55 = scmp.eq.s32.totalorder %s33, 1
      %p56 = por %p54, %p55
      %p58 = scmp.ne.s32.totalorder %s41, %s57
      %p59 = scmp.eq.s32.totalorder %s33, 0
      %p60 = por %p58, %p59
      %s62 = sadd.s32 %s61, 1
      %p65 = scmp.eq.s32.totalorder %s27, 1
      %p66 = scmp.ne.s32.totalorder %s61, %s63
      %p67 = scmp.eq.s32.totalorder %s27, 0
      %p68 = por %p66, %p67
      %p69 = scmp.ne.s32.totalorder %s61, %s63
      %p70 = scmp.eq.s32.totalorder %s32, 1
      %p71 = por %p69, %p70
      %p72 = scmp.ne.s32.totalorder %s63, %s64
      %p73 = scmp.eq.s32.totalorder %s32, 0
      %p74 = por %p72, %p73
      %p75 = scmp.ne.s32.totalorder %s63, %s64
      %p76 = scmp.eq.s32.totalorder %s33, 1
      %p77 = por %p75, %p76
      %p79 = scmp.ne.s32.totalorder %s64, %s78
      %p80 = scmp.eq.s32.totalorder %s33, 0
      %p81 = por %p79, %p80
      %s83 = sadd.s32 %s82, 1
      %p86 = scmp.eq.s32.totalorder %s27, 1
      %p87 = scmp.ne.s32.totalorder %s82, %s84
      %p88 = scmp.eq.s32.totalorder %s27, 0
      %p89 = por %p87, %p88
      %p90 = scmp.ne.s32.totalorder %s82, %s84
      %p91 = scmp.eq.s32.totalorder %s32, 1
      %p92 = por %p90, %p91
      %p93 = scmp.ne.s32.totalorder %s84, %s85
      %p94 = scmp.eq.s32.totalorder %s32, 0
      %p95 = por %p93, %p94
      %p96 = scmp.ne.s32.totalorder %s84, %s85
      %p97 = scmp.eq.s32.totalorder %s33, 1
      %p98 = por %p96, %p97
      %p100 = scmp.ne.s32.totalorder %s85, %s99
      %p101 = scmp.eq.s32.totalorder %s33, 0
      %p102 = por %p100, %p101
      %s104 = sadd.s32 %s103, 1
      %p107 = scmp.eq.s32.totalorder %s27, 1
      %p108 = scmp.ne.s32.totalorder %s103, %s105
      %p109 = scmp.eq.s32.totalorder %s27, 0
      %p110 = por %p108, %p109
      %p111 = scmp.ne.s32.totalorder %s103, %s105
      %p112 = scmp.eq.s32.totalorder %s32, 1
      %p113 = por %p111, %p112
      %p114 = scmp.ne.s32.totalorder %s105, %s106
      %p115 = scmp.eq.s32.totalorder %s32, 0
      %p116 = por %p114, %p115
      %p117 = scmp.ne.s32.totalorder %s105, %s106
      %p118 = scmp.eq.s32.totalorder %s33, 1
      %p119 = por %p117, %p118
      %p121 = scmp.ne.s32.totalorder %s106, %s120
      %p122 = scmp.eq.s32.totalorder %s33, 0
      %p123 = por %p121, %p122
      %s125 = sadd.s32 %s124, 1
      %p128 = scmp.eq.s32.totalorder %s27, 1
      %p129 = scmp.ne.s32.totalorder %s124, %s126
      %p130 = scmp.eq.s32.totalorder %s27, 0
      %p131 = por %p129, %p130
      %p132 = scmp.ne.s32.totalorder %s124, %s126
      %p133 = scmp.eq.s32.totalorder %s32, 1
      %p134 = por %p132, %p133
      %p135 = scmp.ne.s32.totalorder %s126, %s127
      %p136 = scmp.eq.s32.totalorder %s32, 0
      %p137 = por %p135, %p136
      %p138 = scmp.ne.s32.totalorder %s126, %s127
      %p139 = scmp.eq.s32.totalorder %s33, 1
      %p140 = por %p138, %p139
      %p142 = scmp.ne.s32.totalorder %s127, %s141
      %p143 = scmp.eq.s32.totalorder %s33, 0
      %p144 = por %p142, %p143
      %s146 = sadd.s32 %s145, 1
      %p149 = scmp.eq.s32.totalorder %s27, 1
      %p150 = scmp.ne.s32.totalorder %s145, %s147
      %p151 = scmp.eq.s32.totalorder %s27, 0
      %p152 = por %p150, %p151
      %p153 = scmp.ne.s32.totalorder %s145, %s147
      %p154 = scmp.eq.s32.totalorder %s32, 1
      %p155 = por %p153, %p154
      %p156 = scmp.ne.s32.totalorder %s147, %s148
      %p157 = scmp.eq.s32.totalorder %s32, 0
      %p158 = por %p156, %p157
      %p159 = scmp.ne.s32.totalorder %s147, %s148
      %p160 = scmp.eq.s32.totalorder %s33, 1
      %p161 = por %p159, %p160
      %p163 = scmp.ne.s32.totalorder %s148, %s162
      %p164 = scmp.eq.s32.totalorder %s33, 0
      %p165 = por %p163, %p164
      %s167 = sadd.s32 %s166, 1
      %p170 = scmp.eq.s32.totalorder %s27, 1
      %p171 = scmp.ne.s32.totalorder %s166, %s168
      %p172 = scmp.eq.s32.totalorder %s27, 0
      %p173 = por %p171, %p172
      %p174 = scmp.ne.s32.totalorder %s166, %s168
      %p175 = scmp.eq.s32.totalorder %s32, 1
      %p176 = por %p174, %p175
      %p177 = scmp.ne.s32.totalorder %s168, %s169
      %p178 = scmp.eq.s32.totalorder %s32, 0
      %p179 = por %p177, %p178
      %p180 = scmp.ne.s32.totalorder %s168, %s169
      %p181 = scmp.eq.s32.totalorder %s33, 1
      %p182 = por %p180, %p181
      %p184 = scmp.ne.s32.totalorder %s169, %s183
      %p185 = scmp.eq.s32.totalorder %s33, 0
      %p186 = por %p184, %p185
      %s188 = sadd.s32 %s187, 1
      %p191 = scmp.eq.s32.totalorder %s27, 1
      %p192 = scmp.ne.s32.totalorder %s187, %s189
      %p193 = scmp.eq.s32.totalorder %s27, 0
      %p194 = por %p192, %p193
      %p195 = scmp.ne.s32.totalorder %s187, %s189
      %p196 = scmp.eq.s32.totalorder %s32, 1
      %p197 = por %p195, %p196
      %p198 = scmp.ne.s32.totalorder %s189, %s190
      %p199 = scmp.eq.s32.totalorder %s32, 0
      %p200 = por %p198, %p199
      %p201 = scmp.ne.s32.totalorder %s189, %s190
      %p202 = scmp.eq.s32.totalorder %s33, 1
      %p203 = por %p201, %p202
      %p205 = scmp.ne.s32.totalorder %s190, %s204
      %p206 = scmp.eq.s32.totalorder %s33, 0
      %p207 = por %p205, %p206
      %s209 = sadd.s32 %s208, 1
      %p212 = scmp.eq.s32.totalorder %s27, 1
      %p213 = scmp.ne.s32.totalorder %s208, %s210
      %p214 = scmp.eq.s32.totalorder %s27, 0
      %p215 = por %p213, %p214
      %p216 = scmp.ne.s32.totalorder %s208, %s210
      %p217 = scmp.eq.s32.totalorder %s32, 1
      %p218 = por %p216, %p217
      %p219 = scmp.ne.s32.totalorder %s210, %s211
      %p220 = scmp.eq.s32.totalorder %s32, 0
      %p221 = por %p219, %p220
      %p222 = scmp.ne.s32.totalorder %s210, %s211
      %p223 = scmp.eq.s32.totalorder %s33, 1
      %p224 = por %p222, %p223
      %p226 = scmp.ne.s32.totalorder %s211, %s225
      %p227 = scmp.eq.s32.totalorder %s33, 0
      %p228 = por %p226, %p227
      %s230 = sadd.s32 %s229, 1
      %p233 = scmp.eq.s32.totalorder %s27, 1
      %p234 = scmp.ne.s32.totalorder %s229, %s231
      %p235 = scmp.eq.s32.totalorder %s27, 0
      %p236 = por %p234, %p235
      %p237 = scmp.ne.s32.totalorder %s229, %s231
      %p238 = scmp.eq.s32.totalorder %s32, 1
      %p239 = por %p237, %p238
      %p240 = scmp.ne.s32.totalorder %s231, %s232
      %p241 = scmp.eq.s32.totalorder %s32, 0
      %p242 = por %p240, %p241
      %p243 = scmp.ne.s32.totalorder %s231, %s232
      %p244 = scmp.eq.s32.totalorder %s33, 1
      %p245 = por %p243, %p244
      %p247 = scmp.ne.s32.totalorder %s232, %s246
      %p248 = scmp.eq.s32.totalorder %s33, 0
      %p249 = por %p247, %p248
      %s251 = sadd.s32 %s250, 1
      %p254 = scmp.eq.s32.totalorder %s27, 1
      %p255 = scmp.ne.s32.totalorder %s250, %s252
      %p256 = scmp.eq.s32.totalorder %s27, 0
      %p257 = por %p255, %p256
      %p258 = scmp.ne.s32.totalorder %s250, %s252
      %p259 = scmp.eq.s32.totalorder %s32, 1
      %p260 = por %p258, %p259
      %p261 = scmp.ne.s32.totalorder %s252, %s253
      %p262 = scmp.eq.s32.totalorder %s32, 0
      %p263 = por %p261, %p262
      %p264 = scmp.ne.s32.totalorder %s252, %s253
      %p265 = scmp.eq.s32.totalorder %s33, 1
      %p266 = por %p264, %p265
      %p268 = scmp.ne.s32.totalorder %s253, %s267
      %p269 = scmp.eq.s32.totalorder %s33, 0
      %p270 = por %p268, %p269
      %s272 = sadd.s32 %s271, 1
      %p275 = scmp.eq.s32.totalorder %s27, 1
      %p276 = scmp.ne.s32.totalorder %s271, %s273
      %p277 = scmp.eq.s32.totalorder %s27, 0
      %p278 = por %p276, %p277
      %p279 = scmp.ne.s32.totalorder %s271, %s273
      %p280 = scmp.eq.s32.totalorder %s32, 1
      %p281 = por %p279, %p280
      %p282 = scmp.ne.s32.totalorder %s273, %s274
      %p283 = scmp.eq.s32.totalorder %s32, 0
      %p284 = por %p282, %p283
      %p285 = scmp.ne.s32.totalorder %s273, %s274
      %p286 = scmp.eq.s32.totalorder %s33, 1
      %p287 = por %p285, %p286
      %p289 = scmp.ne.s32.totalorder %s274, %s288
      %p290 = scmp.eq.s32.totalorder %s33, 0
      %p291 = por %p289, %p290
      %s293 = sadd.s32 %s292, 1
      %p296 = scmp.eq.s32.totalorder %s27, 1
      %p297 = scmp.ne.s32.totalorder %s292, %s294
      %p298 = scmp.eq.s32.totalorder %s27, 0
      %p299 = por %p297, %p298
      %p300 = scmp.ne.s32.totalorder %s292, %s294
      %p301 = scmp.eq.s32.totalorder %s32, 1
      %p302 = por %p300, %p301
      %p303 = scmp.ne.s32.totalorder %s294, %s295
      %p304 = scmp.eq.s32.totalorder %s32, 0
      %p305 = por %p303, %p304
      %p306 = scmp.ne.s32.totalorder %s294, %s295
      %p307 = scmp.eq.s32.totalorder %s33, 1
      %p308 = por %p306, %p307
      %p310 = scmp.ne.s32.totalorder %s295, %s309
      %p311 = scmp.eq.s32.totalorder %s33, 0
      %p312 = por %p310, %p311
      %s313 = ssub.s32 %s27, %s34
      %p314 = scmp.eq.s32.totalorder %s313, 0
      %s316 = sadd.s32 %s315, 1
      %s317 = scalar_select %p314, %s315, %s316
      %p320 = pneg %p314
      %p321 = scmp.eq.s32.totalorder %s27, 1
      %p322 = por %p320, %p321
      %p323 = scmp.ne.s32.totalorder %s315, %s318
      %p324 = scmp.eq.s32.totalorder %s27, 0
      %p325 = por %p323, %p324
      %p326 = scmp.ne.s32.totalorder %s315, %s318
      %p327 = scmp.eq.s32.totalorder %s32, 1
      %p328 = por %p326, %p327
      %p329 = scmp.ne.s32.totalorder %s318, %s319
      %p330 = scmp.eq.s32.totalorder %s32, 0
      %p331 = por %p329, %p330
      %p332 = scmp.ne.s32.totalorder %s318, %s319
      %p333 = scmp.eq.s32.totalorder %s33, 1
      %p334 = por %p332, %p333
      %p336 = scmp.ne.s32.totalorder %s319, %s335
      %p337 = scmp.eq.s32.totalorder %s33, 0
      %p338 = por %p336, %p337
      %p339 = scmp.le.s32.totalorder 1, %s27
      %p340 = scmp.lt.s32.totalorder %s27, 3
      %p341 = pnand %p339, %p340
      %p342 = pneg %p341
      // Predicated region
      $region9: #{tpu_custom_call.1} parent=5 // pred_check
        _
      $region10: #{tpu_custom_call.1} parent=5 // pred_check_branch
        %344 = sbr.rel (%p341) target = $region12
      $region11: #{tpu_custom_call.1} parent=5 // pred_region
        %s345 = ssub.s32 %s27, 1
        // Predicated region
        $region13: #{tpu_custom_call.1} parent=11 // pred_check
          %p346 = pneg %p74
        $region14: #{tpu_custom_call.1} parent=11 // pred_check_branch
          %348 = sbr.rel (%p346) target = $region16
        $region15: #{tpu_custom_call.1} parent=11 // pred_region
          _
        $region16: #{tpu_custom_call.1} parent=11 // pred_fallthru
          _
        // Predicated region
        $region17: #{tpu_custom_call.1} parent=11 // pred_check
          %p349 = pneg %p95
        $region18: #{tpu_custom_call.1} parent=11 // pred_check_branch
          %351 = sbr.rel (%p349) target = $region20
        $region19: #{tpu_custom_call.1} parent=11 // pred_region
          %s353 = ssub.s32 96, 96
          %354 = vsyncadd [#allocation6], %s353
          %s355 = sshll.u32 [#allocation5], 4
          %s356 = int_to_ptr.vmem [resolvable:$true] %s355
          %361 = dma.hbm_to_vmem [thread:$0]  %s2, 96, %s356, [#allocation6], 48, 48, 3
        $region20: #{tpu_custom_call.1} parent=11 // pred_fallthru
          _
        // Predicated region
        $region21: #{tpu_custom_call.1} parent=11 // pred_check
          %p362 = pneg %p116
        $region22: #{tpu_custom_call.1} parent=11 // pred_check_branch
          %364 = sbr.rel (%p362) target = $region24
        $region23: #{tpu_custom_call.1} parent=11 // pred_region
          %s366 = ssub.s32 2048, 2048
          %367 = vsyncadd [#allocation6], %s366
          %s368 = sshll.u32 [#allocation7], 4
          %s369 = int_to_ptr.vmem [resolvable:$true] %s368
          %374 = dma.hbm_to_vmem [thread:$0]  %s3, 2048, %s369, [#allocation6], 128, 128, 8
        $region24: #{tpu_custom_call.1} parent=11 // pred_fallthru
          _
        // Predicated region
        $region25: #{tpu_custom_call.1} parent=11 // pred_check
          %p375 = pneg %p137
        $region26: #{tpu_custom_call.1} parent=11 // pred_check_branch
          %377 = sbr.rel (%p375) target = $region28
        $region27: #{tpu_custom_call.1} parent=11 // pred_region
          _
        $region28: #{tpu_custom_call.1} parent=11 // pred_fallthru
          _
        // Predicated region
        $region29: #{tpu_custom_call.1} parent=11 // pred_check
          %p378 = pneg %p158
        $region30: #{tpu_custom_call.1} parent=11 // pred_check_branch
          %380 = sbr.rel (%p378) target = $region32
        $region31: #{tpu_custom_call.1} parent=11 // pred_region
          _
        $region32: #{tpu_custom_call.1} parent=11 // pred_fallthru
          _
        // Predicated region
        $region33: #{tpu_custom_call.1} parent=11 // pred_check
          %p381 = pneg %p179
        $region34: #{tpu_custom_call.1} parent=11 // pred_check_branch
          %383 = sbr.rel (%p381) target = $region36
        $region35: #{tpu_custom_call.1} parent=11 // pred_region
          _
        $region36: #{tpu_custom_call.1} parent=11 // pred_fallthru
          _
        // Predicated region
        $region37: #{tpu_custom_call.1} parent=11 // pred_check
          %p384 = pneg %p200
        $region38: #{tpu_custom_call.1} parent=11 // pred_check_branch
          %386 = sbr.rel (%p384) target = $region40
        $region39: #{tpu_custom_call.1} parent=11 // pred_region
          %s388 = ssub.s32 2048, 2048
          %389 = vsyncadd [#allocation9], %s388
          %s390 = sshll.u32 [#allocation8], 4
          %s391 = int_to_ptr.vmem [resolvable:$true] %s390
          %396 = dma.hbm_to_vmem [thread:$0]  %s7, 2048, %s391, [#allocation9], 128, 128, 8
        $region40: #{tpu_custom_call.1} parent=11 // pred_fallthru
          _
        // Predicated region
        $region41: #{tpu_custom_call.1} parent=11 // pred_check
          %p397 = pneg %p221
        $region42: #{tpu_custom_call.1} parent=11 // pred_check_branch
          %399 = sbr.rel (%p397) target = $region44
        $region43: #{tpu_custom_call.1} parent=11 // pred_region
          _
        $region44: #{tpu_custom_call.1} parent=11 // pred_fallthru
          _
        // Predicated region
        $region45: #{tpu_custom_call.1} parent=11 // pred_check
          %p400 = pneg %p242
        $region46: #{tpu_custom_call.1} parent=11 // pred_check_branch
          %402 = sbr.rel (%p400) target = $region48
        $region47: #{tpu_custom_call.1} parent=11 // pred_region
          _
        $region48: #{tpu_custom_call.1} parent=11 // pred_fallthru
          _
        // Predicated region
        $region49: #{tpu_custom_call.1} parent=11 // pred_check
          %p403 = pneg %p263
        $region50: #{tpu_custom_call.1} parent=11 // pred_check_branch
          %405 = sbr.rel (%p403) target = $region52
        $region51: #{tpu_custom_call.1} parent=11 // pred_region
          _
        $region52: #{tpu_custom_call.1} parent=11 // pred_fallthru
          _
        // Predicated region
        $region53: #{tpu_custom_call.1} parent=11 // pred_check
          %p406 = pneg %p284
        $region54: #{tpu_custom_call.1} parent=11 // pred_check_branch
          %408 = sbr.rel (%p406) target = $region56
        $region55: #{tpu_custom_call.1} parent=11 // pred_region
          _
        $region56: #{tpu_custom_call.1} parent=11 // pred_fallthru
          _
        // Predicated region
        $region57: #{tpu_custom_call.1} parent=11 // pred_check
          %p409 = pneg %p305
        $region58: #{tpu_custom_call.1} parent=11 // pred_check_branch
          %411 = sbr.rel (%p409) target = $region60
        $region59: #{tpu_custom_call.1} parent=11 // pred_region
          _
        $region60: #{tpu_custom_call.1} parent=11 // pred_fallthru
          _
      $region12: #{tpu_custom_call.1} parent=5 // pred_fallthru
        _
      %p412 = scmp.lt.s32.totalorder %s27, 2
      // Predicated region
      $region61: #{tpu_custom_call.1} parent=5 // pred_check
        %p413 = pneg %p412
      $region62: #{tpu_custom_call.1} parent=5 // pred_check_branch
        %415 = sbr.rel (%p413) target = $region64
      $region63: #{tpu_custom_call.1} parent=5 // pred_region
        // Predicated region
        $region65: #{tpu_custom_call.1} parent=63 // pred_check
          %p416 = pneg %p47
        $region66: #{tpu_custom_call.1} parent=63 // pred_check_branch
          %418 = sbr.rel (%p416) target = $region68
        $region67: #{tpu_custom_call.1} parent=63 // pred_region
          %s419 = sand.u32 %s37, 1
          %s420 = scalar_lea.sflag [#allocation3], %s419
          %s421 = sand.u32 %s37, 1
          %s422 = smul.addr %s421, 16
          %s423 = scalar_lea.vmem [#allocation2], %s422
          %s424 = smul.u32 2, %s27
          %s426 = ssub.s32 256, 256
          %427 = vsyncadd %s420, %s426
          %s428 = smul.addr %s424, 128
          %s429 = scalar_lea.hbm %s0, %s428
          %s430 = sshll.u32 %s423, 4
          %s431 = int_to_ptr.vmem [resolvable:$true] %s430
          %436 = dma.hbm_to_vmem [thread:$0]  %s429, 256, %s431, %s420, 128, 128, 8
        $region68: #{tpu_custom_call.1} parent=63 // pred_fallthru
          _
      $region64: #{tpu_custom_call.1} parent=5 // pred_fallthru
        _
      %p437 = scmp.le.s32.totalorder 1, %s27
      %p438 = scmp.lt.s32.totalorder %s27, 3
      %p439 = pnand %p437, %p438
      %p440 = pneg %p439
      // Predicated region
      $region69: #{tpu_custom_call.1} parent=5 // pred_check
        _
      $region70: #{tpu_custom_call.1} parent=5 // pred_check_branch
        %442 = sbr.rel (%p439) target = $region72
      $region71: #{tpu_custom_call.1} parent=5 // pred_region
        %s443 = ssub.s32 %s27, 1
        %s444 = sand.u32 %s40, 1
        %s445 = scalar_lea.sflag [#allocation3], %s444
        %s446 = sand.u32 %s40, 1
        %s447 = smul.addr %s446, 16
        %s448 = scalar_lea.vmem [#allocation2], %s447
        // Predicated region
        $region73: #{tpu_custom_call.1} parent=71 // pred_check
          %p449 = pneg %p53
        $region74: #{tpu_custom_call.1} parent=71 // pred_check_branch
          %451 = sbr.rel (%p449) target = $region76
        $region75: #{tpu_custom_call.1} parent=71 // pred_region
          %452 = dma.done %s445, 256
        $region76: #{tpu_custom_call.1} parent=71 // pred_fallthru
          _
        // Predicated region
        $region77: #{tpu_custom_call.1} parent=71 // pred_check
          %p453 = pneg %p95
        $region78: #{tpu_custom_call.1} parent=71 // pred_check_branch
          %455 = sbr.rel (%p453) target = $region80
        $region79: #{tpu_custom_call.1} parent=71 // pred_region
          %456 = dma.done [#allocation6], 96
        $region80: #{tpu_custom_call.1} parent=71 // pred_fallthru
          _
        // Predicated region
        $region81: #{tpu_custom_call.1} parent=71 // pred_check
          %p457 = pneg %p116
        $region82: #{tpu_custom_call.1} parent=71 // pred_check_branch
          %459 = sbr.rel (%p457) target = $region84
        $region83: #{tpu_custom_call.1} parent=71 // pred_region
          %460 = dma.done [#allocation6], 2048
        $region84: #{tpu_custom_call.1} parent=71 // pred_fallthru
          _
        // Predicated region
        $region85: #{tpu_custom_call.1} parent=71 // pred_check
          %p461 = pneg %p200
        $region86: #{tpu_custom_call.1} parent=71 // pred_check_branch
          %463 = sbr.rel (%p461) target = $region88
        $region87: #{tpu_custom_call.1} parent=71 // pred_region
          %464 = dma.done [#allocation9], 2048
        $region88: #{tpu_custom_call.1} parent=71 // pred_fallthru
          _
        %s465 = sand.u32 %s40, 1
        %s466 = scalar_lea.sflag [#allocation3], %s465
        %s467 = sand.u32 %s40, 1
        %s468 = smul.addr %s467, 16
        %s469 = scalar_lea.vmem [#allocation2], %s468
        %p470 = pneg %p53
        %p471 = pneg %p50
        %p472 = pneg %p74
        %p473 = pneg %p71
        %p474 = pneg %p95
        %p475 = pneg %p92
        %p476 = pneg %p116
        %p477 = pneg %p113
        %p478 = pneg %p137
        %p479 = pneg %p134
        %p480 = pneg %p158
        %p481 = pneg %p155
        %p482 = pneg %p179
        %p483 = pneg %p176
        %p484 = pneg %p200
        %p485 = pneg %p197
        %p486 = pneg %p221
        %p487 = pneg %p218
        %p488 = pneg %p242
        %p489 = pneg %p239
        %p490 = pneg %p263
        %p491 = pneg %p260
        %p492 = pneg %p284
        %p493 = pneg %p281
        %p494 = pneg %p305
        %p495 = pneg %p302
        %p496 = pneg %p331
        %p497 = pneg %p328
        %s498 = sand.u32 %s318, 1
        %s499 = scalar_lea.sflag [#allocation4], %s498
        %s500 = sand.u32 %s318, 1
        %s501 = smul.addr %s500, 16
        %s502 = scalar_lea.vmem [#allocation10], %s501
        %s503 = smul.u32 2, %s32
        %s504 = smul.u32 2, %s32
        %v505 = vld [vmem:[%s448] sm:$0xff]
        %v506 = vld [vmem:[%s448 + $0x8] sm:$0xff]
        %v507 = vld [vmem:[%s1] sm:$0xff]
        %v508 = vld [vmem:[%s1 + $0x8] sm:$0xff]
        %v509 = vld [vmem:[%s1 + $0x10] sm:$0xff]
        %v510 = vld [vmem:[%s1 + $0x18] sm:$0xff]
        %v511 = vld [vmem:[%s1 + $0x20] sm:$0xff]
        %v512 = vld [vmem:[%s1 + $0x28] sm:$0xff]
        %v513 = vld [vmem:[%s1 + $0x30] sm:$0xff]
        %v514 = vld [vmem:[%s1 + $0x38] sm:$0xff]
        %v515 = vld [vmem:[%s1 + $0x40] sm:$0xff]
        %v516 = vld [vmem:[%s1 + $0x48] sm:$0xff]
        %v517 = vld [vmem:[%s1 + $0x50] sm:$0xff]
        %v518 = vld [vmem:[%s1 + $0x58] sm:$0xff]
        %v519 = vld [vmem:[%s1 + $0x60] sm:$0xff]
        %v520 = vld [vmem:[%s1 + $0x68] sm:$0xff]
        %v521 = vld [vmem:[%s1 + $0x70] sm:$0xff]
        %v522 = vld [vmem:[%s1 + $0x78] sm:$0xff]
        %v523 = vld [vmem:[%s1 + $0x80] sm:$0xff]
        %v524 = vld [vmem:[%s1 + $0x88] sm:$0xff]
        %v525 = vld [vmem:[%s1 + $0x90] sm:$0xff]
        %v526 = vld [vmem:[%s1 + $0x98] sm:$0xff]
        %v527 = vld [vmem:[%s1 + $0xa0] sm:$0xff]
        %v528 = vld [vmem:[%s1 + $0xa8] sm:$0xff]
        %v529 = vld [vmem:[%s1 + $0xb0] sm:$0xff]
        %v530 = vld [vmem:[%s1 + $0xb8] sm:$0xff]
        %v531 = vld [vmem:[#allocation5] sm:$0x7]
        %v533 = vlaneseq
        %v534 = vshrl.u32 %v533, 7
        %v535 = vsub.s32 0, %v534
        %v536 = vrot.slane %v531, %v535
        %v537 = vlaneseq
        %v538 = vshrl.u32 %v537, 7
        %v539 = vsub.s32 1, %v538
        %v540 = vrot.slane %v531, %v539
        %v541 = vlaneseq
        %v542 = vshrl.u32 %v541, 7
        %v543 = vsub.s32 2, %v542
        %v544 = vrot.slane %v531, %v543
        %vm548 = vcmask 523264
        %v550 = vsel %vm548, %v505, 0
        %v553 = vsel %vm548, %v506, 0
        %555 = vmatprep.subr.mxu0 0.0
        %556 = vmatpush1.msra.mxu0 0.0
        %557 = vmatprep.subr.mxu0 0.0
        %558 = vmatpush1.msra.mxu0 0.0
        %559 = vmatprep.subr.mxu0 0.0
        %560 = vmatpush1.msra.mxu0 0.0
        %561 = vmatprep.subr.mxu0 0.0
        %562 = vmatpush1.msra.mxu0 0.0
        %563 = vmatprep.subr.mxu0 0.0
        %564 = vmatpush1.msra.mxu0 0.0
        %565 = vmatprep.subr.mxu0 0.0
        %566 = vmatpush1.msra.mxu0 0.0
        %567 = vmatprep.subr.mxu0 0.0
        %568 = vmatpush1.msra.mxu0 0.0
        %569 = vmatprep.subr.mxu0 0.0
        %570 = vmatpush1.msra.mxu0 0.0
        %571 = vmatprep.subr.mxu0 %v529
        %572 = vmatpush1.msra.mxu0 %v528
        %573 = vmatprep.subr.mxu0 %v526
        %574 = vmatpush1.msra.mxu0 %v525
        %575 = vmatprep.subr.mxu0 %v523
        %576 = vmatpush1.msra.mxu0 %v522
        %577 = vmatprep.subr.mxu0 %v520
        %578 = vmatpush1.msra.mxu0 %v519
        %579 = vmatprep.subr.mxu0 %v517
        %580 = vmatpush1.msra.mxu0 %v516
        %581 = vmatprep.subr.mxu0 %v514
        %582 = vmatpush1.msra.mxu0 %v513
        %583 = vmatprep.subr.mxu0 %v511
        %584 = vmatpush1.msra.mxu0 %v510
        %585 = vmatprep.subr.mxu0 %v508
        %586 = vmatpush1.msra.mxu0 %v507
        %587 = vmatprep.subr.mxu0 0.0
        %588 = vmatpush2.msra.mxu0 0.0
        %589 = vmatprep.subr.mxu0 0.0
        %590 = vmatpush2.msra.mxu0 0.0
        %591 = vmatprep.subr.mxu0 0.0
        %592 = vmatpush2.msra.mxu0 0.0
        %593 = vmatprep.subr.mxu0 0.0
        %594 = vmatpush2.msra.mxu0 0.0
        %595 = vmatprep.subr.mxu0 0.0
        %596 = vmatpush2.msra.mxu0 0.0
        %597 = vmatprep.subr.mxu0 0.0
        %598 = vmatpush2.msra.mxu0 0.0
        %599 = vmatprep.subr.mxu0 0.0
        %600 = vmatpush2.msra.mxu0 0.0
        %601 = vmatprep.subr.mxu0 0.0
        %602 = vmatpush2.msra.mxu0 0.0
        %603 = vmatprep.subr.mxu0 0.0
        %604 = vmatpush2.msra.mxu0 0.0
        %605 = vmatprep.subr.mxu0 0.0
        %606 = vmatpush2.msra.mxu0 0.0
        %607 = vmatprep.subr.mxu0 0.0
        %608 = vmatpush2.msra.mxu0 0.0
        %609 = vmatprep.subr.mxu0 0.0
        %610 = vmatpush2.msra.mxu0 0.0
        %611 = vmatprep.subr.mxu0 0.0
        %612 = vmatpush2.msra.mxu0 0.0
        %613 = vmatprep.subr.mxu0 0.0
        %614 = vmatpush2.msra.mxu0 0.0
        %615 = vmatprep.subr.mxu0 0.0
        %616 = vmatpush2.msra.mxu0 0.0
        %617 = vmatprep.subr.mxu0 0.0
        %618 = vmatpush2.msra.mxu0 0.0
        %619 = vmatprep.mubr.f32.mxu0 0.0
        %620 = vmatmul.mubr.f32.gmra.mxu0 %v550
        %v621 = vpop.f32.mrf.mxu0
        %v622 = vadd.f32 %v536, %v621
        %v623 = vpop.f32.mrf.mxu0
        %v624 = vadd.f32 %v540, %v623
        %625 = vmatprep.mubr.f32.mxu0 0.0
        %626 = vmatmul.mubr.f32.gmra.mxu0 %v553
        %v627 = vpop.f32.mrf.mxu0
        %v628 = vadd.f32 %v536, %v627
        %v629 = vpop.f32.mrf.mxu0
        %v630 = vadd.f32 %v540, %v629
        %631 = vdwg.mxu0
        %632 = vmatprep.subr.mxu0 0.0
        %633 = vmatpush1.msra.mxu0 0.0
        %634 = vmatprep.subr.mxu0 0.0
        %635 = vmatpush1.msra.mxu0 0.0
        %636 = vmatprep.subr.mxu0 0.0
        %637 = vmatpush1.msra.mxu0 0.0
        %638 = vmatprep.subr.mxu0 0.0
        %639 = vmatpush1.msra.mxu0 0.0
        %640 = vmatprep.subr.mxu0 0.0
        %641 = vmatpush1.msra.mxu0 0.0
        %642 = vmatprep.subr.mxu0 0.0
        %643 = vmatpush1.msra.mxu0 0.0
        %644 = vmatprep.subr.mxu0 0.0
        %645 = vmatpush1.msra.mxu0 0.0
        %646 = vmatprep.subr.mxu0 0.0
        %647 = vmatpush1.msra.mxu0 0.0
        %648 = vmatprep.subr.mxu0 0.0
        %649 = vmatpush1.msra.mxu0 %v530
        %650 = vmatprep.subr.mxu0 0.0
        %651 = vmatpush1.msra.mxu0 %v527
        %652 = vmatprep.subr.mxu0 0.0
        %653 = vmatpush1.msra.mxu0 %v524
        %654 = vmatprep.subr.mxu0 0.0
        %655 = vmatpush1.msra.mxu0 %v521
        %656 = vmatprep.subr.mxu0 0.0
        %657 = vmatpush1.msra.mxu0 %v518
        %658 = vmatprep.subr.mxu0 0.0
        %659 = vmatpush1.msra.mxu0 %v515
        %660 = vmatprep.subr.mxu0 0.0
        %661 = vmatpush1.msra.mxu0 %v512
        %662 = vmatprep.subr.mxu0 0.0
        %663 = vmatpush1.msra.mxu0 %v509
        %664 = vmatprep.subr.mxu0 0.0
        %665 = vmatpush2.msra.mxu0 0.0
        %666 = vmatprep.subr.mxu0 0.0
        %667 = vmatpush2.msra.mxu0 0.0
        %668 = vmatprep.subr.mxu0 0.0
        %669 = vmatpush2.msra.mxu0 0.0
        %670 = vmatprep.subr.mxu0 0.0
        %671 = vmatpush2.msra.mxu0 0.0
        %672 = vmatprep.subr.mxu0 0.0
        %673 = vmatpush2.msra.mxu0 0.0
        %674 = vmatprep.subr.mxu0 0.0
        %675 = vmatpush2.msra.mxu0 0.0
        %676 = vmatprep.subr.mxu0 0.0
        %677 = vmatpush2.msra.mxu0 0.0
        %678 = vmatprep.subr.mxu0 0.0
        %679 = vmatpush2.msra.mxu0 0.0
        %680 = vmatprep.subr.mxu0 0.0
        %681 = vmatpush2.msra.mxu0 0.0
        %682 = vmatprep.subr.mxu0 0.0
        %683 = vmatpush2.msra.mxu0 0.0
        %684 = vmatprep.subr.mxu0 0.0
        %685 = vmatpush2.msra.mxu0 0.0
        %686 = vmatprep.subr.mxu0 0.0
        %687 = vmatpush2.msra.mxu0 0.0
        %688 = vmatprep.subr.mxu0 0.0
        %689 = vmatpush2.msra.mxu0 0.0
        %690 = vmatprep.subr.mxu0 0.0
        %691 = vmatpush2.msra.mxu0 0.0
        %692 = vmatprep.subr.mxu0 0.0
        %693 = vmatpush2.msra.mxu0 0.0
        %694 = vmatprep.subr.mxu0 0.0
        %695 = vmatpush2.msra.mxu0 0.0
        %696 = vmatprep.mubr.f32.mxu0 0.0
        %697 = vmatmul.mubr.f32.gmra.mxu0 %v550
        %v698 = vpop.f32.mrf.mxu0
        %v699 = vadd.f32 %v544, %v698
        %v700 = vpop.f32.mrf.mxu0
        %701 = vmatprep.mubr.f32.mxu0 0.0
        %702 = vmatmul.mubr.f32.gmra.mxu0 %v553
        %v703 = vpop.f32.mrf.mxu0
        %v704 = vadd.f32 %v544, %v703
        %v705 = vpop.f32.mrf.mxu0
        %706 = vdwg.mxu0
        %v707 = vld [vmem:[#allocation7] sm:$0xff]
        %v708 = vld [vmem:[#allocation7 + $0x8] sm:$0xff]
        %v709 = vld [vmem:[#allocation7 + $0x10] sm:$0xff]
        %v710 = vld [vmem:[#allocation7 + $0x18] sm:$0xff]
        %v711 = vld [vmem:[#allocation7 + $0x20] sm:$0xff]
        %v712 = vld [vmem:[#allocation7 + $0x28] sm:$0xff]
        %v713 = vld [vmem:[#allocation7 + $0x30] sm:$0xff]
        %v714 = vld [vmem:[#allocation7 + $0x38] sm:$0xff]
        %v715 = vld [vmem:[%s4] sm:$0x1]
        %v717 = vlaneseq
        %v718 = vshrl.u32 %v717, 7
        %v719 = vsub.s32 0, %v718
        %v720 = vrot.slane %v715, %v719
        %v722 = vadd.f32 %v505, %v720
        %v723 = vadd.f32 %v506, %v720
        %vm724 = vcmask 64512
        %v726 = vsel %vm724, %v622, 0
        %v729 = vsel %vm724, %v628, 0
        %v732 = vsel %vm724, %v624, 0
        %v735 = vsel %vm724, %v630, 0
        %737 = vmatprep.subr.mxu0 0.0
        %738 = vmatpush1.xpose.msra.mxu0 0.0
        %739 = vmatprep.subr.mxu0 0.0
        %740 = vmatpush1.xpose.msra.mxu0 0.0
        %741 = vmatprep.subr.mxu0 0.0
        %742 = vmatpush1.xpose.msra.mxu0 0.0
        %743 = vmatprep.subr.mxu0 0.0
        %744 = vmatpush1.xpose.msra.mxu0 0.0
        %745 = vmatprep.subr.mxu0 0.0
        %746 = vmatpush1.xpose.msra.mxu0 0.0
        %747 = vmatprep.subr.mxu0 0.0
        %748 = vmatpush1.xpose.msra.mxu0 0.0
        %749 = vmatprep.subr.mxu0 0.0
        %750 = vmatpush1.xpose.msra.mxu0 0.0
        %751 = vmatprep.subr.mxu0 0.0
        %752 = vmatpush1.xpose.msra.mxu0 0.0
        %753 = vmatprep.subr.mxu0 0.0
        %754 = vmatpush1.xpose.msra.mxu0 0.0
        %755 = vmatprep.subr.mxu0 0.0
        %756 = vmatpush1.xpose.msra.mxu0 0.0
        %757 = vmatprep.subr.mxu0 0.0
        %758 = vmatpush1.xpose.msra.mxu0 0.0
        %759 = vmatprep.subr.mxu0 0.0
        %760 = vmatpush1.xpose.msra.mxu0 0.0
        %761 = vmatprep.subr.mxu0 0.0
        %762 = vmatpush1.xpose.msra.mxu0 0.0
        %763 = vmatprep.subr.mxu0 0.0
        %764 = vmatpush1.xpose.msra.mxu0 0.0
        %765 = vmatprep.subr.mxu0 0.0
        %766 = vmatpush1.xpose.msra.mxu0 %v735
        %767 = vmatprep.subr.mxu0 0.0
        %768 = vmatpush1.xpose.msra.mxu0 %v732
        %769 = vmatprep.subr.mxu0 0.0
        %770 = vmatpush2.xpose.msra.mxu0 0.0
        %771 = vmatprep.subr.mxu0 0.0
        %772 = vmatpush2.xpose.msra.mxu0 0.0
        %773 = vmatprep.subr.mxu0 0.0
        %774 = vmatpush2.xpose.msra.mxu0 0.0
        %775 = vmatprep.subr.mxu0 0.0
        %776 = vmatpush2.xpose.msra.mxu0 0.0
        %777 = vmatprep.subr.mxu0 0.0
        %778 = vmatpush2.xpose.msra.mxu0 0.0
        %779 = vmatprep.subr.mxu0 0.0
        %780 = vmatpush2.xpose.msra.mxu0 0.0
        %781 = vmatprep.subr.mxu0 0.0
        %782 = vmatpush2.xpose.msra.mxu0 0.0
        %783 = vmatprep.subr.mxu0 0.0
        %784 = vmatpush2.xpose.msra.mxu0 0.0
        %785 = vmatprep.subr.mxu0 0.0
        %786 = vmatpush2.xpose.msra.mxu0 0.0
        %787 = vmatprep.subr.mxu0 0.0
        %788 = vmatpush2.xpose.msra.mxu0 0.0
        %789 = vmatprep.subr.mxu0 0.0
        %790 = vmatpush2.xpose.msra.mxu0 0.0
        %791 = vmatprep.subr.mxu0 0.0
        %792 = vmatpush2.xpose.msra.mxu0 0.0
        %793 = vmatprep.subr.mxu0 0.0
        %794 = vmatpush2.xpose.msra.mxu0 0.0
        %795 = vmatprep.subr.mxu0 0.0
        %796 = vmatpush2.xpose.msra.mxu0 0.0
        %797 = vmatprep.subr.mxu0 0.0
        %798 = vmatpush2.xpose.msra.mxu0 0.0
        %799 = vmatprep.subr.mxu0 0.0
        %800 = vmatpush2.xpose.msra.mxu0 0.0
        %801 = vmatprep.mubr.f32.mxu0 0.0
        %802 = vmatmul.mubr.f32.gmra.mxu0 %v726
        %v803 = vpop.f32.mrf.mxu0
        %v804 = vadd.f32 0.0, %v803
        %v805 = vpop.f32.mrf.mxu0
        %806 = vmatprep.mubr.f32.mxu0 0.0
        %807 = vmatmul.mubr.f32.gmra.mxu0 %v729
        %v808 = vpop.f32.mrf.mxu0
        %v809 = vadd.f32 0.0, %v808
        %v810 = vpop.f32.mrf.mxu0
        %811 = vdwg.mxu0
        %vm812 = vcmask 130048
        %v813 = vsel %vm812, %v804, -inf
        %814 = vmax.xlane.f32.xlu0 %v813
        %v815 = vpop.xlane.xlu0 %814
        %v816 = vsel %vm812, %v809, -inf
        %817 = vmax.xlane.f32.xlu0 %v816
        %v818 = vpop.xlane.xlu0 %817
        %v819 = vsub.f32 %v804, %v815
        %v820 = vsub.f32 %v809, %v818
        %v821 = vmul.f32 %v819, 1.442695
        %v822 = vpow.pop %v821
        %v823 = vmul.f32 %v820, 1.442695
        %v824 = vpow.pop %v823
        %v825 = vsel %vm812, %v822, 0.0
        %826 = vadd.xlane.f32.xlu0 %v825
        %v827 = vpop.xlane.xlu0 %826
        %v828 = vsel %vm812, %v824, 0.0
        %829 = vadd.xlane.f32.xlu0 %v828
        %v830 = vpop.xlane.xlu0 %829
        %v831 = vrcp.pop %v827
        %v832 = vmul.f32 1.0, %v831
        %v833 = vrcp.pop %v830
        %v834 = vmul.f32 1.0, %v833
        %v836 = vsel %vm812, %v822, 0
        %v839 = vsel %vm812, %v824, 0
        %841 = vmatprep.subr.mxu0 0.0
        %842 = vmatpush1.msra.mxu0 0.0
        %843 = vmatprep.subr.mxu0 0.0
        %844 = vmatpush1.msra.mxu0 0.0
        %845 = vmatprep.subr.mxu0 0.0
        %846 = vmatpush1.msra.mxu0 0.0
        %847 = vmatprep.subr.mxu0 0.0
        %848 = vmatpush1.msra.mxu0 0.0
        %849 = vmatprep.subr.mxu0 0.0
        %850 = vmatpush1.msra.mxu0 0.0
        %851 = vmatprep.subr.mxu0 0.0
        %852 = vmatpush1.msra.mxu0 0.0
        %853 = vmatprep.subr.mxu0 0.0
        %854 = vmatpush1.msra.mxu0 0.0
        %855 = vmatprep.subr.mxu0 0.0
        %856 = vmatpush1.msra.mxu0 0.0
        %857 = vmatprep.subr.mxu0 0.0
        %858 = vmatpush1.msra.mxu0 0.0
        %859 = vmatprep.subr.mxu0 0.0
        %860 = vmatpush1.msra.mxu0 0.0
        %861 = vmatprep.subr.mxu0 0.0
        %862 = vmatpush1.msra.mxu0 0.0
        %863 = vmatprep.subr.mxu0 0.0
        %864 = vmatpush1.msra.mxu0 0.0
        %865 = vmatprep.subr.mxu0 0.0
        %866 = vmatpush1.msra.mxu0 0.0
        %867 = vmatprep.subr.mxu0 0.0
        %868 = vmatpush1.msra.mxu0 0.0
        %869 = vmatprep.subr.mxu0 0.0
        %870 = vmatpush1.msra.mxu0 %v704
        %871 = vmatprep.subr.mxu0 0.0
        %872 = vmatpush1.msra.mxu0 %v699
        %873 = vmatprep.subr.mxu0 0.0
        %874 = vmatpush2.msra.mxu0 0.0
        %875 = vmatprep.subr.mxu0 0.0
        %876 = vmatpush2.msra.mxu0 0.0
        %877 = vmatprep.subr.mxu0 0.0
        %878 = vmatpush2.msra.mxu0 0.0
        %879 = vmatprep.subr.mxu0 0.0
        %880 = vmatpush2.msra.mxu0 0.0
        %881 = vmatprep.subr.mxu0 0.0
        %882 = vmatpush2.msra.mxu0 0.0
        %883 = vmatprep.subr.mxu0 0.0
        %884 = vmatpush2.msra.mxu0 0.0
        %885 = vmatprep.subr.mxu0 0.0
        %886 = vmatpush2.msra.mxu0 0.0
        %887 = vmatprep.subr.mxu0 0.0
        %888 = vmatpush2.msra.mxu0 0.0
        %889 = vmatprep.subr.mxu0 0.0
        %890 = vmatpush2.msra.mxu0 0.0
        %891 = vmatprep.subr.mxu0 0.0
        %892 = vmatpush2.msra.mxu0 0.0
        %893 = vmatprep.subr.mxu0 0.0
        %894 = vmatpush2.msra.mxu0 0.0
        %895 = vmatprep.subr.mxu0 0.0
        %896 = vmatpush2.msra.mxu0 0.0
        %897 = vmatprep.subr.mxu0 0.0
        %898 = vmatpush2.msra.mxu0 0.0
        %899 = vmatprep.subr.mxu0 0.0
        %900 = vmatpush2.msra.mxu0 0.0
        %901 = vmatprep.subr.mxu0 0.0
        %902 = vmatpush2.msra.mxu0 0.0
        %903 = vmatprep.subr.mxu0 0.0
        %904 = vmatpush2.msra.mxu0 0.0
        %905 = vmatprep.mubr.f32.mxu0 0.0
        %906 = vmatmul.mubr.f32.gmra.mxu0 %v836
        %v907 = vpop.f32.mrf.mxu0
        %v908 = vadd.f32 0.0, %v907
        %v909 = vpop.f32.mrf.mxu0
        %910 = vmatprep.mubr.f32.mxu0 0.0
        %911 = vmatmul.mubr.f32.gmra.mxu0 %v839
        %v912 = vpop.f32.mrf.mxu0
        %v913 = vadd.f32 0.0, %v912
        %v914 = vpop.f32.mrf.mxu0
        %915 = vdwg.mxu0
        %v916 = vmul.f32 %v908, %v832
        %v917 = vmul.f32 %v913, %v834
        %v919 = vsel %vm724, %v916, 0
        %v922 = vsel %vm724, %v917, 0
        %924 = vmatprep.subr.mxu0 0.0
        %925 = vmatpush1.msra.mxu0 0.0
        %926 = vmatprep.subr.mxu0 0.0
        %927 = vmatpush1.msra.mxu0 0.0
        %928 = vmatprep.subr.mxu0 0.0
        %929 = vmatpush1.msra.mxu0 0.0
        %930 = vmatprep.subr.mxu0 0.0
        %931 = vmatpush1.msra.mxu0 0.0
        %932 = vmatprep.subr.mxu0 0.0
        %933 = vmatpush1.msra.mxu0 0.0
        %934 = vmatprep.subr.mxu0 0.0
        %935 = vmatpush1.msra.mxu0 0.0
        %936 = vmatprep.subr.mxu0 0.0
        %937 = vmatpush1.msra.mxu0 0.0
        %938 = vmatprep.subr.mxu0 0.0
        %939 = vmatpush1.msra.mxu0 0.0
        %940 = vmatprep.subr.mxu0 0.0
        %941 = vmatpush1.msra.mxu0 0.0
        %942 = vmatprep.subr.mxu0 0.0
        %943 = vmatpush1.msra.mxu0 0.0
        %944 = vmatprep.subr.mxu0 0.0
        %945 = vmatpush1.msra.mxu0 0.0
        %946 = vmatprep.subr.mxu0 0.0
        %947 = vmatpush1.msra.mxu0 0.0
        %948 = vmatprep.subr.mxu0 0.0
        %949 = vmatpush1.msra.mxu0 0.0
        %950 = vmatprep.subr.mxu0 0.0
        %951 = vmatpush1.msra.mxu0 0.0
        %952 = vmatprep.subr.mxu0 0.0
        %953 = vmatpush1.msra.mxu0 0.0
        %954 = vmatprep.subr.mxu0 0.0
        %955 = vmatpush1.msra.mxu0 %v707
        %956 = vmatprep.subr.mxu0 0.0
        %957 = vmatpush2.msra.mxu0 0.0
        %958 = vmatprep.subr.mxu0 0.0
        %959 = vmatpush2.msra.mxu0 0.0
        %960 = vmatprep.subr.mxu0 0.0
        %961 = vmatpush2.msra.mxu0 0.0
        %962 = vmatprep.subr.mxu0 0.0
        %963 = vmatpush2.msra.mxu0 0.0
        %964 = vmatprep.subr.mxu0 0.0
        %965 = vmatpush2.msra.mxu0 0.0
        %966 = vmatprep.subr.mxu0 0.0
        %967 = vmatpush2.msra.mxu0 0.0
        %968 = vmatprep.subr.mxu0 0.0
        %969 = vmatpush2.msra.mxu0 0.0
        %970 = vmatprep.subr.mxu0 0.0
        %971 = vmatpush2.msra.mxu0 0.0
        %972 = vmatprep.subr.mxu0 0.0
        %973 = vmatpush2.msra.mxu0 0.0
        %974 = vmatprep.subr.mxu0 0.0
        %975 = vmatpush2.msra.mxu0 0.0
        %976 = vmatprep.subr.mxu0 0.0
        %977 = vmatpush2.msra.mxu0 0.0
        %978 = vmatprep.subr.mxu0 0.0
        %979 = vmatpush2.msra.mxu0 0.0
        %980 = vmatprep.subr.mxu0 0.0
        %981 = vmatpush2.msra.mxu0 0.0
        %982 = vmatprep.subr.mxu0 0.0
        %983 = vmatpush2.msra.mxu0 0.0
        %984 = vmatprep.subr.mxu0 0.0
        %985 = vmatpush2.msra.mxu0 0.0
        %986 = vmatprep.subr.mxu0 0.0
        %987 = vmatpush2.msra.mxu0 0.0
        %988 = vmatprep.mubr.f32.mxu0 0.0
        %989 = vmatmul.mubr.f32.gmra.mxu0 %v919
        %v990 = vpop.f32.mrf.mxu0
        %v991 = vadd.f32 0.0, %v990
        %v992 = vpop.f32.mrf.mxu0
        %993 = vmatprep.mubr.f32.mxu0 0.0
        %994 = vmatmul.mubr.f32.gmra.mxu0 %v922
        %v995 = vpop.f32.mrf.mxu0
        %v996 = vadd.f32 0.0, %v995
        %v997 = vpop.f32.mrf.mxu0
        %998 = vdwg.mxu0
        %v999 = vadd.f32 %v722, %v991
        %v1000 = vadd.f32 %v723, %v996
        %1001 = vrot.lane.b32.xlu0 %v622, 120
        %v1002 = vpop.permute.xlu0 %1001
        %1003 = vrot.lane.b32.xlu0 %v628, 120
        %v1004 = vpop.permute.xlu0 %1003
        %1005 = vrot.lane.b32.xlu0 %v624, 120
        %v1006 = vpop.permute.xlu0 %1005
        %1007 = vrot.lane.b32.xlu0 %v630, 120
        %v1008 = vpop.permute.xlu0 %1007
        %v1009 = vsel %vm724, %v1002, 0
        %v1011 = vsel %vm724, %v1004, 0
        %v1013 = vsel %vm724, %v1006, 0
        %v1015 = vsel %vm724, %v1008, 0
        %1017 = vmatprep.subr.mxu0 0.0
        %1018 = vmatpush1.xpose.msra.mxu0 0.0
        %1019 = vmatprep.subr.mxu0 0.0
        %1020 = vmatpush1.xpose.msra.mxu0 0.0
        %1021 = vmatprep.subr.mxu0 0.0
        %1022 = vmatpush1.xpose.msra.mxu0 0.0
        %1023 = vmatprep.subr.mxu0 0.0
        %1024 = vmatpush1.xpose.msra.mxu0 0.0
        %1025 = vmatprep.subr.mxu0 0.0
        %1026 = vmatpush1.xpose.msra.mxu0 0.0
        %1027 = vmatprep.subr.mxu0 0.0
        %1028 = vmatpush1.xpose.msra.mxu0 0.0
        %1029 = vmatprep.subr.mxu0 0.0
        %1030 = vmatpush1.xpose.msra.mxu0 0.0
        %1031 = vmatprep.subr.mxu0 0.0
        %1032 = vmatpush1.xpose.msra.mxu0 0.0
        %1033 = vmatprep.subr.mxu0 0.0
        %1034 = vmatpush1.xpose.msra.mxu0 0.0
        %1035 = vmatprep.subr.mxu0 0.0
        %1036 = vmatpush1.xpose.msra.mxu0 0.0
        %1037 = vmatprep.subr.mxu0 0.0
        %1038 = vmatpush1.xpose.msra.mxu0 0.0
        %1039 = vmatprep.subr.mxu0 0.0
        %1040 = vmatpush1.xpose.msra.mxu0 0.0
        %1041 = vmatprep.subr.mxu0 0.0
        %1042 = vmatpush1.xpose.msra.mxu0 0.0
        %1043 = vmatprep.subr.mxu0 0.0
        %1044 = vmatpush1.xpose.msra.mxu0 0.0
        %1045 = vmatprep.subr.mxu0 0.0
        %1046 = vmatpush1.xpose.msra.mxu0 %v1015
        %1047 = vmatprep.subr.mxu0 0.0
        %1048 = vmatpush1.xpose.msra.mxu0 %v1013
        %1049 = vmatprep.subr.mxu0 0.0
        %1050 = vmatpush2.xpose.msra.mxu0 0.0
        %1051 = vmatprep.subr.mxu0 0.0
        %1052 = vmatpush2.xpose.msra.mxu0 0.0
        %1053 = vmatprep.subr.mxu0 0.0
        %1054 = vmatpush2.xpose.msra.mxu0 0.0
        %1055 = vmatprep.subr.mxu0 0.0
        %1056 = vmatpush2.xpose.msra.mxu0 0.0
        %1057 = vmatprep.subr.mxu0 0.0
        %1058 = vmatpush2.xpose.msra.mxu0 0.0
        %1059 = vmatprep.subr.mxu0 0.0
        %1060 = vmatpush2.xpose.msra.mxu0 0.0
        %1061 = vmatprep.subr.mxu0 0.0
        %1062 = vmatpush2.xpose.msra.mxu0 0.0
        %1063 = vmatprep.subr.mxu0 0.0
        %1064 = vmatpush2.xpose.msra.mxu0 0.0
        %1065 = vmatprep.subr.mxu0 0.0
        %1066 = vmatpush2.xpose.msra.mxu0 0.0
        %1067 = vmatprep.subr.mxu0 0.0
        %1068 = vmatpush2.xpose.msra.mxu0 0.0
        %1069 = vmatprep.subr.mxu0 0.0
        %1070 = vmatpush2.xpose.msra.mxu0 0.0
        %1071 = vmatprep.subr.mxu0 0.0
        %1072 = vmatpush2.xpose.msra.mxu0 0.0
        %1073 = vmatprep.subr.mxu0 0.0
        %1074 = vmatpush2.xpose.msra.mxu0 0.0
        %1075 = vmatprep.subr.mxu0 0.0
        %1076 = vmatpush2.xpose.msra.mxu0 0.0
        %1077 = vmatprep.subr.mxu0 0.0
        %1078 = vmatpush2.xpose.msra.mxu0 0.0
        %1079 = vmatprep.subr.mxu0 0.0
        %1080 = vmatpush2.xpose.msra.mxu0 0.0
        %1081 = vmatprep.mubr.f32.mxu0 0.0
        %1082 = vmatmul.mubr.f32.gmra.mxu0 %v1009
        %v1083 = vpop.f32.mrf.mxu0
        %v1084 = vadd.f32 0.0, %v1083
        %v1085 = vpop.f32.mrf.mxu0
        %1086 = vmatprep.mubr.f32.mxu0 0.0
        %1087 = vmatmul.mubr.f32.gmra.mxu0 %v1011
        %v1088 = vpop.f32.mrf.mxu0
        %v1089 = vadd.f32 0.0, %v1088
        %v1090 = vpop.f32.mrf.mxu0
        %1091 = vdwg.mxu0
        %v1092 = vsel %vm812, %v1084, -inf
        %1093 = vmax.xlane.f32.xlu0 %v1092
        %v1094 = vpop.xlane.xlu0 %1093
        %v1095 = vsel %vm812, %v1089, -inf
        %1096 = vmax.xlane.f32.xlu0 %v1095
        %v1097 = vpop.xlane.xlu0 %1096
        %v1098 = vsub.f32 %v1084, %v1094
        %v1099 = vsub.f32 %v1089, %v1097
        %v1100 = vmul.f32 %v1098, 1.442695
        %v1101 = vpow.pop %v1100
        %v1102 = vmul.f32 %v1099, 1.442695
        %v1103 = vpow.pop %v1102
        %v1104 = vsel %vm812, %v1101, 0.0
        %1105 = vadd.xlane.f32.xlu0 %v1104
        %v1106 = vpop.xlane.xlu0 %1105
        %v1107 = vsel %vm812, %v1103, 0.0
        %1108 = vadd.xlane.f32.xlu0 %v1107
        %v1109 = vpop.xlane.xlu0 %1108
        %v1110 = vrcp.pop %v1106
        %v1111 = vmul.f32 1.0, %v1110
        %v1112 = vrcp.pop %v1109
        %v1113 = vmul.f32 1.0, %v1112
        %1116 = vrot.lane.b32.xlu0 %v699, 120
        %v1117 = vpop.permute.xlu0 %1116
        %1118 = vrot.lane.b32.xlu0 %v704, 120
        %v1119 = vpop.permute.xlu0 %1118
        %v1123 = vsel %vm812, %v1101, 0
        %v1126 = vsel %vm812, %v1103, 0
        %1128 = vmatprep.subr.mxu0 0.0
        %1129 = vmatpush1.msra.mxu0 0.0
        %1130 = vmatprep.subr.mxu0 0.0
        %1131 = vmatpush1.msra.mxu0 0.0
        %1132 = vmatprep.subr.mxu0 0.0
        %1133 = vmatpush1.msra.mxu0 0.0
        %1134 = vmatprep.subr.mxu0 0.0
        %1135 = vmatpush1.msra.mxu0 0.0
        %1136 = vmatprep.subr.mxu0 0.0
        %1137 = vmatpush1.msra.mxu0 0.0
        %1138 = vmatprep.subr.mxu0 0.0
        %1139 = vmatpush1.msra.mxu0 0.0
        %1140 = vmatprep.subr.mxu0 0.0
        %1141 = vmatpush1.msra.mxu0 0.0
        %1142 = vmatprep.subr.mxu0 0.0
        %1143 = vmatpush1.msra.mxu0 0.0
        %1144 = vmatprep.subr.mxu0 0.0
        %1145 = vmatpush1.msra.mxu0 0.0
        %1146 = vmatprep.subr.mxu0 0.0
        %1147 = vmatpush1.msra.mxu0 0.0
        %1148 = vmatprep.subr.mxu0 0.0
        %1149 = vmatpush1.msra.mxu0 0.0
        %1150 = vmatprep.subr.mxu0 0.0
        %1151 = vmatpush1.msra.mxu0 0.0
        %1152 = vmatprep.subr.mxu0 0.0
        %1153 = vmatpush1.msra.mxu0 0.0
        %1154 = vmatprep.subr.mxu0 0.0
        %1155 = vmatpush1.msra.mxu0 0.0
        %1156 = vmatprep.subr.mxu0 0.0
        %1157 = vmatpush1.msra.mxu0 %v1119
        %1158 = vmatprep.subr.mxu0 0.0
        %1159 = vmatpush1.msra.mxu0 %v1117
        %1160 = vmatprep.subr.mxu0 0.0
        %1161 = vmatpush2.msra.mxu0 0.0
        %1162 = vmatprep.subr.mxu0 0.0
        %1163 = vmatpush2.msra.mxu0 0.0
        %1164 = vmatprep.subr.mxu0 0.0
        %1165 = vmatpush2.msra.mxu0 0.0
        %1166 = vmatprep.subr.mxu0 0.0
        %1167 = vmatpush2.msra.mxu0 0.0
        %1168 = vmatprep.subr.mxu0 0.0
        %1169 = vmatpush2.msra.mxu0 0.0
        %1170 = vmatprep.subr.mxu0 0.0
        %1171 = vmatpush2.msra.mxu0 0.0
        %1172 = vmatprep.subr.mxu0 0.0
        %1173 = vmatpush2.msra.mxu0 0.0
        %1174 = vmatprep.subr.mxu0 0.0
        %1175 = vmatpush2.msra.mxu0 0.0
        %1176 = vmatprep.subr.mxu0 0.0
        %1177 = vmatpush2.msra.mxu0 0.0
        %1178 = vmatprep.subr.mxu0 0.0
        %1179 = vmatpush2.msra.mxu0 0.0
        %1180 = vmatprep.subr.mxu0 0.0
        %1181 = vmatpush2.msra.mxu0 0.0
        %1182 = vmatprep.subr.mxu0 0.0
        %1183 = vmatpush2.msra.mxu0 0.0
        %1184 = vmatprep.subr.mxu0 0.0
        %1185 = vmatpush2.msra.mxu0 0.0
        %1186 = vmatprep.subr.mxu0 0.0
        %1187 = vmatpush2.msra.mxu0 0.0
        %1188 = vmatprep.subr.mxu0 0.0
        %1189 = vmatpush2.msra.mxu0 0.0
        %1190 = vmatprep.subr.mxu0 0.0
        %1191 = vmatpush2.msra.mxu0 0.0
        %1192 = vmatprep.mubr.f32.mxu0 0.0
        %1193 = vmatmul.mubr.f32.gmra.mxu0 %v1123
        %v1194 = vpop.f32.mrf.mxu0
        %v1195 = vadd.f32 0.0, %v1194
        %v1196 = vpop.f32.mrf.mxu0
        %1197 = vmatprep.mubr.f32.mxu0 0.0
        %1198 = vmatmul.mubr.f32.gmra.mxu0 %v1126
        %v1199 = vpop.f32.mrf.mxu0
        %v1200 = vadd.f32 0.0, %v1199
        %v1201 = vpop.f32.mrf.mxu0
        %1202 = vdwg.mxu0
        %v1203 = vmul.f32 %v1195, %v1111
        %v1204 = vmul.f32 %v1200, %v1113
        %v1206 = vsel %vm724, %v1203, 0
        %v1209 = vsel %vm724, %v1204, 0
        %1211 = vmatprep.subr.mxu0 0.0
        %1212 = vmatpush1.msra.mxu0 0.0
        %1213 = vmatprep.subr.mxu0 0.0
        %1214 = vmatpush1.msra.mxu0 0.0
        %1215 = vmatprep.subr.mxu0 0.0
        %1216 = vmatpush1.msra.mxu0 0.0
        %1217 = vmatprep.subr.mxu0 0.0
        %1218 = vmatpush1.msra.mxu0 0.0
        %1219 = vmatprep.subr.mxu0 0.0
        %1220 = vmatpush1.msra.mxu0 0.0
        %1221 = vmatprep.subr.mxu0 0.0
        %1222 = vmatpush1.msra.mxu0 0.0
        %1223 = vmatprep.subr.mxu0 0.0
        %1224 = vmatpush1.msra.mxu0 0.0
        %1225 = vmatprep.subr.mxu0 0.0
        %1226 = vmatpush1.msra.mxu0 0.0
        %1227 = vmatprep.subr.mxu0 0.0
        %1228 = vmatpush1.msra.mxu0 0.0
        %1229 = vmatprep.subr.mxu0 0.0
        %1230 = vmatpush1.msra.mxu0 0.0
        %1231 = vmatprep.subr.mxu0 0.0
        %1232 = vmatpush1.msra.mxu0 0.0
        %1233 = vmatprep.subr.mxu0 0.0
        %1234 = vmatpush1.msra.mxu0 0.0
        %1235 = vmatprep.subr.mxu0 0.0
        %1236 = vmatpush1.msra.mxu0 0.0
        %1237 = vmatprep.subr.mxu0 0.0
        %1238 = vmatpush1.msra.mxu0 0.0
        %1239 = vmatprep.subr.mxu0 0.0
        %1240 = vmatpush1.msra.mxu0 0.0
        %1241 = vmatprep.subr.mxu0 0.0
        %1242 = vmatpush1.msra.mxu0 %v708
        %1243 = vmatprep.subr.mxu0 0.0
        %1244 = vmatpush2.msra.mxu0 0.0
        %1245 = vmatprep.subr.mxu0 0.0
        %1246 = vmatpush2.msra.mxu0 0.0
        %1247 = vmatprep.subr.mxu0 0.0
        %1248 = vmatpush2.msra.mxu0 0.0
        %1249 = vmatprep.subr.mxu0 0.0
        %1250 = vmatpush2.msra.mxu0 0.0
        %1251 = vmatprep.subr.mxu0 0.0
        %1252 = vmatpush2.msra.mxu0 0.0
        %1253 = vmatprep.subr.mxu0 0.0
        %1254 = vmatpush2.msra.mxu0 0.0
        %1255 = vmatprep.subr.mxu0 0.0
        %1256 = vmatpush2.msra.mxu0 0.0
        %1257 = vmatprep.subr.mxu0 0.0
        %1258 = vmatpush2.msra.mxu0 0.0
        %1259 = vmatprep.subr.mxu0 0.0
        %1260 = vmatpush2.msra.mxu0 0.0
        %1261 = vmatprep.subr.mxu0 0.0
        %1262 = vmatpush2.msra.mxu0 0.0
        %1263 = vmatprep.subr.mxu0 0.0
        %1264 = vmatpush2.msra.mxu0 0.0
        %1265 = vmatprep.subr.mxu0 0.0
        %1266 = vmatpush2.msra.mxu0 0.0
        %1267 = vmatprep.subr.mxu0 0.0
        %1268 = vmatpush2.msra.mxu0 0.0
        %1269 = vmatprep.subr.mxu0 0.0
        %1270 = vmatpush2.msra.mxu0 0.0
        %1271 = vmatprep.subr.mxu0 0.0
        %1272 = vmatpush2.msra.mxu0 0.0
        %1273 = vmatprep.subr.mxu0 0.0
        %1274 = vmatpush2.msra.mxu0 0.0
        %1275 = vmatprep.mubr.f32.mxu0 0.0
        %1276 = vmatmul.mubr.f32.gmra.mxu0 %v1206
        %v1277 = vpop.f32.mrf.mxu0
        %v1278 = vadd.f32 0.0, %v1277
        %v1279 = vpop.f32.mrf.mxu0
        %1280 = vmatprep.mubr.f32.mxu0 0.0
        %1281 = vmatmul.mubr.f32.gmra.mxu0 %v1209
        %v1282 = vpop.f32.mrf.mxu0
        %v1283 = vadd.f32 0.0, %v1282
        %v1284 = vpop.f32.mrf.mxu0
        %1285 = vdwg.mxu0
        %v1286 = vadd.f32 %v999, %v1278
        %v1287 = vadd.f32 %v1000, %v1283
        %1288 = vrot.lane.b32.xlu0 %v622, 112
        %v1289 = vpop.permute.xlu0 %1288
        %1290 = vrot.lane.b32.xlu0 %v628, 112
        %v1291 = vpop.permute.xlu0 %1290
        %1292 = vrot.lane.b32.xlu0 %v624, 112
        %v1293 = vpop.permute.xlu0 %1292
        %1294 = vrot.lane.b32.xlu0 %v630, 112
        %v1295 = vpop.permute.xlu0 %1294
        %v1296 = vsel %vm724, %v1289, 0
        %v1298 = vsel %vm724, %v1291, 0
        %v1300 = vsel %vm724, %v1293, 0
        %v1302 = vsel %vm724, %v1295, 0
        %1304 = vmatprep.subr.mxu0 0.0
        %1305 = vmatpush1.xpose.msra.mxu0 0.0
        %1306 = vmatprep.subr.mxu0 0.0
        %1307 = vmatpush1.xpose.msra.mxu0 0.0
        %1308 = vmatprep.subr.mxu0 0.0
        %1309 = vmatpush1.xpose.msra.mxu0 0.0
        %1310 = vmatprep.subr.mxu0 0.0
        %1311 = vmatpush1.xpose.msra.mxu0 0.0
        %1312 = vmatprep.subr.mxu0 0.0
        %1313 = vmatpush1.xpose.msra.mxu0 0.0
        %1314 = vmatprep.subr.mxu0 0.0
        %1315 = vmatpush1.xpose.msra.mxu0 0.0
        %1316 = vmatprep.subr.mxu0 0.0
        %1317 = vmatpush1.xpose.msra.mxu0 0.0
        %1318 = vmatprep.subr.mxu0 0.0
        %1319 = vmatpush1.xpose.msra.mxu0 0.0
        %1320 = vmatprep.subr.mxu0 0.0
        %1321 = vmatpush1.xpose.msra.mxu0 0.0
        %1322 = vmatprep.subr.mxu0 0.0
        %1323 = vmatpush1.xpose.msra.mxu0 0.0
        %1324 = vmatprep.subr.mxu0 0.0
        %1325 = vmatpush1.xpose.msra.mxu0 0.0
        %1326 = vmatprep.subr.mxu0 0.0
        %1327 = vmatpush1.xpose.msra.mxu0 0.0
        %1328 = vmatprep.subr.mxu0 0.0
        %1329 = vmatpush1.xpose.msra.mxu0 0.0
        %1330 = vmatprep.subr.mxu0 0.0
        %1331 = vmatpush1.xpose.msra.mxu0 0.0
        %1332 = vmatprep.subr.mxu0 0.0
        %1333 = vmatpush1.xpose.msra.mxu0 %v1302
        %1334 = vmatprep.subr.mxu0 0.0
        %1335 = vmatpush1.xpose.msra.mxu0 %v1300
        %1336 = vmatprep.subr.mxu0 0.0
        %1337 = vmatpush2.xpose.msra.mxu0 0.0
        %1338 = vmatprep.subr.mxu0 0.0
        %1339 = vmatpush2.xpose.msra.mxu0 0.0
        %1340 = vmatprep.subr.mxu0 0.0
        %1341 = vmatpush2.xpose.msra.mxu0 0.0
        %1342 = vmatprep.subr.mxu0 0.0
        %1343 = vmatpush2.xpose.msra.mxu0 0.0
        %1344 = vmatprep.subr.mxu0 0.0
        %1345 = vmatpush2.xpose.msra.mxu0 0.0
        %1346 = vmatprep.subr.mxu0 0.0
        %1347 = vmatpush2.xpose.msra.mxu0 0.0
        %1348 = vmatprep.subr.mxu0 0.0
        %1349 = vmatpush2.xpose.msra.mxu0 0.0
        %1350 = vmatprep.subr.mxu0 0.0
        %1351 = vmatpush2.xpose.msra.mxu0 0.0
        %1352 = vmatprep.subr.mxu0 0.0
        %1353 = vmatpush2.xpose.msra.mxu0 0.0
        %1354 = vmatprep.subr.mxu0 0.0
        %1355 = vmatpush2.xpose.msra.mxu0 0.0
        %1356 = vmatprep.subr.mxu0 0.0
        %1357 = vmatpush2.xpose.msra.mxu0 0.0
        %1358 = vmatprep.subr.mxu0 0.0
        %1359 = vmatpush2.xpose.msra.mxu0 0.0
        %1360 = vmatprep.subr.mxu0 0.0
        %1361 = vmatpush2.xpose.msra.mxu0 0.0
        %1362 = vmatprep.subr.mxu0 0.0
        %1363 = vmatpush2.xpose.msra.mxu0 0.0
        %1364 = vmatprep.subr.mxu0 0.0
        %1365 = vmatpush2.xpose.msra.mxu0 0.0
        %1366 = vmatprep.subr.mxu0 0.0
        %1367 = vmatpush2.xpose.msra.mxu0 0.0
        %1368 = vmatprep.mubr.f32.mxu0 0.0
        %1369 = vmatmul.mubr.f32.gmra.mxu0 %v1296
        %v1370 = vpop.f32.mrf.mxu0
        %v1371 = vadd.f32 0.0, %v1370
        %v1372 = vpop.f32.mrf.mxu0
        %1373 = vmatprep.mubr.f32.mxu0 0.0
        %1374 = vmatmul.mubr.f32.gmra.mxu0 %v1298
        %v1375 = vpop.f32.mrf.mxu0
        %v1376 = vadd.f32 0.0, %v1375
        %v1377 = vpop.f32.mrf.mxu0
        %1378 = vdwg.mxu0
        %v1379 = vsel %vm812, %v1371, -inf
        %1380 = vmax.xlane.f32.xlu0 %v1379
        %v1381 = vpop.xlane.xlu0 %1380
        %v1382 = vsel %vm812, %v1376, -inf
        %1383 = vmax.xlane.f32.xlu0 %v1382
        %v1384 = vpop.xlane.xlu0 %1383
        %v1385 = vsub.f32 %v1371, %v1381
        %v1386 = vsub.f32 %v1376, %v1384
        %v1387 = vmul.f32 %v1385, 1.442695
        %v1388 = vpow.pop %v1387
        %v1389 = vmul.f32 %v1386, 1.442695
        %v1390 = vpow.pop %v1389
        %v1391 = vsel %vm812, %v1388, 0.0
        %1392 = vadd.xlane.f32.xlu0 %v1391
        %v1393 = vpop.xlane.xlu0 %1392
        %v1394 = vsel %vm812, %v1390, 0.0
        %1395 = vadd.xlane.f32.xlu0 %v1394
        %v1396 = vpop.xlane.xlu0 %1395
        %v1397 = vrcp.pop %v1393
        %v1398 = vmul.f32 1.0, %v1397
        %v1399 = vrcp.pop %v1396
        %v1400 = vmul.f32 1.0, %v1399
        %1401 = vrot.lane.b32.xlu0 %v699, 112
        %v1402 = vpop.permute.xlu0 %1401
        %1403 = vrot.lane.b32.xlu0 %v704, 112
        %v1404 = vpop.permute.xlu0 %1403
        %v1408 = vsel %vm812, %v1388, 0
        %v1411 = vsel %vm812, %v1390, 0
        %1413 = vmatprep.subr.mxu0 0.0
        %1414 = vmatpush1.msra.mxu0 0.0
        %1415 = vmatprep.subr.mxu0 0.0
        %1416 = vmatpush1.msra.mxu0 0.0
        %1417 = vmatprep.subr.mxu0 0.0
        %1418 = vmatpush1.msra.mxu0 0.0
        %1419 = vmatprep.subr.mxu0 0.0
        %1420 = vmatpush1.msra.mxu0 0.0
        %1421 = vmatprep.subr.mxu0 0.0
        %1422 = vmatpush1.msra.mxu0 0.0
        %1423 = vmatprep.subr.mxu0 0.0
        %1424 = vmatpush1.msra.mxu0 0.0
        %1425 = vmatprep.subr.mxu0 0.0
        %1426 = vmatpush1.msra.mxu0 0.0
        %1427 = vmatprep.subr.mxu0 0.0
        %1428 = vmatpush1.msra.mxu0 0.0
        %1429 = vmatprep.subr.mxu0 0.0
        %1430 = vmatpush1.msra.mxu0 0.0
        %1431 = vmatprep.subr.mxu0 0.0
        %1432 = vmatpush1.msra.mxu0 0.0
        %1433 = vmatprep.subr.mxu0 0.0
        %1434 = vmatpush1.msra.mxu0 0.0
        %1435 = vmatprep.subr.mxu0 0.0
        %1436 = vmatpush1.msra.mxu0 0.0
        %1437 = vmatprep.subr.mxu0 0.0
        %1438 = vmatpush1.msra.mxu0 0.0
        %1439 = vmatprep.subr.mxu0 0.0
        %1440 = vmatpush1.msra.mxu0 0.0
        %1441 = vmatprep.subr.mxu0 0.0
        %1442 = vmatpush1.msra.mxu0 %v1404
        %1443 = vmatprep.subr.mxu0 0.0
        %1444 = vmatpush1.msra.mxu0 %v1402
        %1445 = vmatprep.subr.mxu0 0.0
        %1446 = vmatpush2.msra.mxu0 0.0
        %1447 = vmatprep.subr.mxu0 0.0
        %1448 = vmatpush2.msra.mxu0 0.0
        %1449 = vmatprep.subr.mxu0 0.0
        %1450 = vmatpush2.msra.mxu0 0.0
        %1451 = vmatprep.subr.mxu0 0.0
        %1452 = vmatpush2.msra.mxu0 0.0
        %1453 = vmatprep.subr.mxu0 0.0
        %1454 = vmatpush2.msra.mxu0 0.0
        %1455 = vmatprep.subr.mxu0 0.0
        %1456 = vmatpush2.msra.mxu0 0.0
        %1457 = vmatprep.subr.mxu0 0.0
        %1458 = vmatpush2.msra.mxu0 0.0
        %1459 = vmatprep.subr.mxu0 0.0
        %1460 = vmatpush2.msra.mxu0 0.0
        %1461 = vmatprep.subr.mxu0 0.0
        %1462 = vmatpush2.msra.mxu0 0.0
        %1463 = vmatprep.subr.mxu0 0.0
        %1464 = vmatpush2.msra.mxu0 0.0
        %1465 = vmatprep.subr.mxu0 0.0
        %1466 = vmatpush2.msra.mxu0 0.0
        %1467 = vmatprep.subr.mxu0 0.0
        %1468 = vmatpush2.msra.mxu0 0.0
        %1469 = vmatprep.subr.mxu0 0.0
        %1470 = vmatpush2.msra.mxu0 0.0
        %1471 = vmatprep.subr.mxu0 0.0
        %1472 = vmatpush2.msra.mxu0 0.0
        %1473 = vmatprep.subr.mxu0 0.0
        %1474 = vmatpush2.msra.mxu0 0.0
        %1475 = vmatprep.subr.mxu0 0.0
        %1476 = vmatpush2.msra.mxu0 0.0
        %1477 = vmatprep.mubr.f32.mxu0 0.0
        %1478 = vmatmul.mubr.f32.gmra.mxu0 %v1408
        %v1479 = vpop.f32.mrf.mxu0
        %v1480 = vadd.f32 0.0, %v1479
        %v1481 = vpop.f32.mrf.mxu0
        %1482 = vmatprep.mubr.f32.mxu0 0.0
        %1483 = vmatmul.mubr.f32.gmra.mxu0 %v1411
        %v1484 = vpop.f32.mrf.mxu0
        %v1485 = vadd.f32 0.0, %v1484
        %v1486 = vpop.f32.mrf.mxu0
        %1487 = vdwg.mxu0
        %v1488 = vmul.f32 %v1480, %v1398
        %v1489 = vmul.f32 %v1485, %v1400
        %v1491 = vsel %vm724, %v1488, 0
        %v1494 = vsel %vm724, %v1489, 0
        %1496 = vmatprep.subr.mxu0 0.0
        %1497 = vmatpush1.msra.mxu0 0.0
        %1498 = vmatprep.subr.mxu0 0.0
        %1499 = vmatpush1.msra.mxu0 0.0
        %1500 = vmatprep.subr.mxu0 0.0
        %1501 = vmatpush1.msra.mxu0 0.0
        %1502 = vmatprep.subr.mxu0 0.0
        %1503 = vmatpush1.msra.mxu0 0.0
        %1504 = vmatprep.subr.mxu0 0.0
        %1505 = vmatpush1.msra.mxu0 0.0
        %1506 = vmatprep.subr.mxu0 0.0
        %1507 = vmatpush1.msra.mxu0 0.0
        %1508 = vmatprep.subr.mxu0 0.0
        %1509 = vmatpush1.msra.mxu0 0.0
        %1510 = vmatprep.subr.mxu0 0.0
        %1511 = vmatpush1.msra.mxu0 0.0
        %1512 = vmatprep.subr.mxu0 0.0
        %1513 = vmatpush1.msra.mxu0 0.0
        %1514 = vmatprep.subr.mxu0 0.0
        %1515 = vmatpush1.msra.mxu0 0.0
        %1516 = vmatprep.subr.mxu0 0.0
        %1517 = vmatpush1.msra.mxu0 0.0
        %1518 = vmatprep.subr.mxu0 0.0
        %1519 = vmatpush1.msra.mxu0 0.0
        %1520 = vmatprep.subr.mxu0 0.0
        %1521 = vmatpush1.msra.mxu0 0.0
        %1522 = vmatprep.subr.mxu0 0.0
        %1523 = vmatpush1.msra.mxu0 0.0
        %1524 = vmatprep.subr.mxu0 0.0
        %1525 = vmatpush1.msra.mxu0 0.0
        %1526 = vmatprep.subr.mxu0 0.0
        %1527 = vmatpush1.msra.mxu0 %v709
        %1528 = vmatprep.subr.mxu0 0.0
        %1529 = vmatpush2.msra.mxu0 0.0
        %1530 = vmatprep.subr.mxu0 0.0
        %1531 = vmatpush2.msra.mxu0 0.0
        %1532 = vmatprep.subr.mxu0 0.0
        %1533 = vmatpush2.msra.mxu0 0.0
        %1534 = vmatprep.subr.mxu0 0.0
        %1535 = vmatpush2.msra.mxu0 0.0
        %1536 = vmatprep.subr.mxu0 0.0
        %1537 = vmatpush2.msra.mxu0 0.0
        %1538 = vmatprep.subr.mxu0 0.0
        %1539 = vmatpush2.msra.mxu0 0.0
        %1540 = vmatprep.subr.mxu0 0.0
        %1541 = vmatpush2.msra.mxu0 0.0
        %1542 = vmatprep.subr.mxu0 0.0
        %1543 = vmatpush2.msra.mxu0 0.0
        %1544 = vmatprep.subr.mxu0 0.0
        %1545 = vmatpush2.msra.mxu0 0.0
        %1546 = vmatprep.subr.mxu0 0.0
        %1547 = vmatpush2.msra.mxu0 0.0
        %1548 = vmatprep.subr.mxu0 0.0
        %1549 = vmatpush2.msra.mxu0 0.0
        %1550 = vmatprep.subr.mxu0 0.0
        %1551 = vmatpush2.msra.mxu0 0.0
        %1552 = vmatprep.subr.mxu0 0.0
        %1553 = vmatpush2.msra.mxu0 0.0
        %1554 = vmatprep.subr.mxu0 0.0
        %1555 = vmatpush2.msra.mxu0 0.0
        %1556 = vmatprep.subr.mxu0 0.0
        %1557 = vmatpush2.msra.mxu0 0.0
        %1558 = vmatprep.subr.mxu0 0.0
        %1559 = vmatpush2.msra.mxu0 0.0
        %1560 = vmatprep.mubr.f32.mxu0 0.0
        %1561 = vmatmul.mubr.f32.gmra.mxu0 %v1491
        %v1562 = vpop.f32.mrf.mxu0
        %v1563 = vadd.f32 0.0, %v1562
        %v1564 = vpop.f32.mrf.mxu0
        %1565 = vmatprep.mubr.f32.mxu0 0.0
        %1566 = vmatmul.mubr.f32.gmra.mxu0 %v1494
        %v1567 = vpop.f32.mrf.mxu0
        %v1568 = vadd.f32 0.0, %v1567
        %v1569 = vpop.f32.mrf.mxu0
        %1570 = vdwg.mxu0
        %v1571 = vadd.f32 %v1286, %v1563
        %v1572 = vadd.f32 %v1287, %v1568
        %1573 = vrot.lane.b32.xlu0 %v622, 104
        %v1574 = vpop.permute.xlu0 %1573
        %1575 = vrot.lane.b32.xlu0 %v628, 104
        %v1576 = vpop.permute.xlu0 %1575
        %1577 = vrot.lane.b32.xlu0 %v624, 104
        %v1578 = vpop.permute.xlu0 %1577
        %1579 = vrot.lane.b32.xlu0 %v630, 104
        %v1580 = vpop.permute.xlu0 %1579
        %v1581 = vsel %vm724, %v1574, 0
        %v1583 = vsel %vm724, %v1576, 0
        %v1585 = vsel %vm724, %v1578, 0
        %v1587 = vsel %vm724, %v1580, 0
        %1589 = vmatprep.subr.mxu0 0.0
        %1590 = vmatpush1.xpose.msra.mxu0 0.0
        %1591 = vmatprep.subr.mxu0 0.0
        %1592 = vmatpush1.xpose.msra.mxu0 0.0
        %1593 = vmatprep.subr.mxu0 0.0
        %1594 = vmatpush1.xpose.msra.mxu0 0.0
        %1595 = vmatprep.subr.mxu0 0.0
        %1596 = vmatpush1.xpose.msra.mxu0 0.0
        %1597 = vmatprep.subr.mxu0 0.0
        %1598 = vmatpush1.xpose.msra.mxu0 0.0
        %1599 = vmatprep.subr.mxu0 0.0
        %1600 = vmatpush1.xpose.msra.mxu0 0.0
        %1601 = vmatprep.subr.mxu0 0.0
        %1602 = vmatpush1.xpose.msra.mxu0 0.0
        %1603 = vmatprep.subr.mxu0 0.0
        %1604 = vmatpush1.xpose.msra.mxu0 0.0
        %1605 = vmatprep.subr.mxu0 0.0
        %1606 = vmatpush1.xpose.msra.mxu0 0.0
        %1607 = vmatprep.subr.mxu0 0.0
        %1608 = vmatpush1.xpose.msra.mxu0 0.0
        %1609 = vmatprep.subr.mxu0 0.0
        %1610 = vmatpush1.xpose.msra.mxu0 0.0
        %1611 = vmatprep.subr.mxu0 0.0
        %1612 = vmatpush1.xpose.msra.mxu0 0.0
        %1613 = vmatprep.subr.mxu0 0.0
        %1614 = vmatpush1.xpose.msra.mxu0 0.0
        %1615 = vmatprep.subr.mxu0 0.0
        %1616 = vmatpush1.xpose.msra.mxu0 0.0
        %1617 = vmatprep.subr.mxu0 0.0
        %1618 = vmatpush1.xpose.msra.mxu0 %v1587
        %1619 = vmatprep.subr.mxu0 0.0
        %1620 = vmatpush1.xpose.msra.mxu0 %v1585
        %1621 = vmatprep.subr.mxu0 0.0
        %1622 = vmatpush2.xpose.msra.mxu0 0.0
        %1623 = vmatprep.subr.mxu0 0.0
        %1624 = vmatpush2.xpose.msra.mxu0 0.0
        %1625 = vmatprep.subr.mxu0 0.0
        %1626 = vmatpush2.xpose.msra.mxu0 0.0
        %1627 = vmatprep.subr.mxu0 0.0
        %1628 = vmatpush2.xpose.msra.mxu0 0.0
        %1629 = vmatprep.subr.mxu0 0.0
        %1630 = vmatpush2.xpose.msra.mxu0 0.0
        %1631 = vmatprep.subr.mxu0 0.0
        %1632 = vmatpush2.xpose.msra.mxu0 0.0
        %1633 = vmatprep.subr.mxu0 0.0
        %1634 = vmatpush2.xpose.msra.mxu0 0.0
        %1635 = vmatprep.subr.mxu0 0.0
        %1636 = vmatpush2.xpose.msra.mxu0 0.0
        %1637 = vmatprep.subr.mxu0 0.0
        %1638 = vmatpush2.xpose.msra.mxu0 0.0
        %1639 = vmatprep.subr.mxu0 0.0
        %1640 = vmatpush2.xpose.msra.mxu0 0.0
        %1641 = vmatprep.subr.mxu0 0.0
        %1642 = vmatpush2.xpose.msra.mxu0 0.0
        %1643 = vmatprep.subr.mxu0 0.0
        %1644 = vmatpush2.xpose.msra.mxu0 0.0
        %1645 = vmatprep.subr.mxu0 0.0
        %1646 = vmatpush2.xpose.msra.mxu0 0.0
        %1647 = vmatprep.subr.mxu0 0.0
        %1648 = vmatpush2.xpose.msra.mxu0 0.0
        %1649 = vmatprep.subr.mxu0 0.0
        %1650 = vmatpush2.xpose.msra.mxu0 0.0
        %1651 = vmatprep.subr.mxu0 0.0
        %1652 = vmatpush2.xpose.msra.mxu0 0.0
        %1653 = vmatprep.mubr.f32.mxu0 0.0
        %1654 = vmatmul.mubr.f32.gmra.mxu0 %v1581
        %v1655 = vpop.f32.mrf.mxu0
        %v1656 = vadd.f32 0.0, %v1655
        %v1657 = vpop.f32.mrf.mxu0
        %1658 = vmatprep.mubr.f32.mxu0 0.0
        %1659 = vmatmul.mubr.f32.gmra.mxu0 %v1583
        %v1660 = vpop.f32.mrf.mxu0
        %v1661 = vadd.f32 0.0, %v1660
        %v1662 = vpop.f32.mrf.mxu0
        %1663 = vdwg.mxu0
        %v1664 = vsel %vm812, %v1656, -inf
        %1665 = vmax.xlane.f32.xlu0 %v1664
        %v1666 = vpop.xlane.xlu0 %1665
        %v1667 = vsel %vm812, %v1661, -inf
        %1668 = vmax.xlane.f32.xlu0 %v1667
        %v1669 = vpop.xlane.xlu0 %1668
        %v1670 = vsub.f32 %v1656, %v1666
        %v1671 = vsub.f32 %v1661, %v1669
        %v1672 = vmul.f32 %v1670, 1.442695
        %v1673 = vpow.pop %v1672
        %v1674 = vmul.f32 %v1671, 1.442695
        %v1675 = vpow.pop %v1674
        %v1676 = vsel %vm812, %v1673, 0.0
        %1677 = vadd.xlane.f32.xlu0 %v1676
        %v1678 = vpop.xlane.xlu0 %1677
        %v1679 = vsel %vm812, %v1675, 0.0
        %1680 = vadd.xlane.f32.xlu0 %v1679
        %v1681 = vpop.xlane.xlu0 %1680
        %v1682 = vrcp.pop %v1678
        %v1683 = vmul.f32 1.0, %v1682
        %v1684 = vrcp.pop %v1681
        %v1685 = vmul.f32 1.0, %v1684
        %1686 = vrot.lane.b32.xlu0 %v699, 104
        %v1687 = vpop.permute.xlu0 %1686
        %1688 = vrot.lane.b32.xlu0 %v704, 104
        %v1689 = vpop.permute.xlu0 %1688
        %v1693 = vsel %vm812, %v1673, 0
        %v1696 = vsel %vm812, %v1675, 0
        %1698 = vmatprep.subr.mxu0 0.0
        %1699 = vmatpush1.msra.mxu0 0.0
        %1700 = vmatprep.subr.mxu0 0.0
        %1701 = vmatpush1.msra.mxu0 0.0
        %1702 = vmatprep.subr.mxu0 0.0
        %1703 = vmatpush1.msra.mxu0 0.0
        %1704 = vmatprep.subr.mxu0 0.0
        %1705 = vmatpush1.msra.mxu0 0.0
        %1706 = vmatprep.subr.mxu0 0.0
        %1707 = vmatpush1.msra.mxu0 0.0
        %1708 = vmatprep.subr.mxu0 0.0
        %1709 = vmatpush1.msra.mxu0 0.0
        %1710 = vmatprep.subr.mxu0 0.0
        %1711 = vmatpush1.msra.mxu0 0.0
        %1712 = vmatprep.subr.mxu0 0.0
        %1713 = vmatpush1.msra.mxu0 0.0
        %1714 = vmatprep.subr.mxu0 0.0
        %1715 = vmatpush1.msra.mxu0 0.0
        %1716 = vmatprep.subr.mxu0 0.0
        %1717 = vmatpush1.msra.mxu0 0.0
        %1718 = vmatprep.subr.mxu0 0.0
        %1719 = vmatpush1.msra.mxu0 0.0
        %1720 = vmatprep.subr.mxu0 0.0
        %1721 = vmatpush1.msra.mxu0 0.0
        %1722 = vmatprep.subr.mxu0 0.0
        %1723 = vmatpush1.msra.mxu0 0.0
        %1724 = vmatprep.subr.mxu0 0.0
        %1725 = vmatpush1.msra.mxu0 0.0
        %1726 = vmatprep.subr.mxu0 0.0
        %1727 = vmatpush1.msra.mxu0 %v1689
        %1728 = vmatprep.subr.mxu0 0.0
        %1729 = vmatpush1.msra.mxu0 %v1687
        %1730 = vmatprep.subr.mxu0 0.0
        %1731 = vmatpush2.msra.mxu0 0.0
        %1732 = vmatprep.subr.mxu0 0.0
        %1733 = vmatpush2.msra.mxu0 0.0
        %1734 = vmatprep.subr.mxu0 0.0
        %1735 = vmatpush2.msra.mxu0 0.0
        %1736 = vmatprep.subr.mxu0 0.0
        %1737 = vmatpush2.msra.mxu0 0.0
        %1738 = vmatprep.subr.mxu0 0.0
        %1739 = vmatpush2.msra.mxu0 0.0
        %1740 = vmatprep.subr.mxu0 0.0
        %1741 = vmatpush2.msra.mxu0 0.0
        %1742 = vmatprep.subr.mxu0 0.0
        %1743 = vmatpush2.msra.mxu0 0.0
        %1744 = vmatprep.subr.mxu0 0.0
        %1745 = vmatpush2.msra.mxu0 0.0
        %1746 = vmatprep.subr.mxu0 0.0
        %1747 = vmatpush2.msra.mxu0 0.0
        %1748 = vmatprep.subr.mxu0 0.0
        %1749 = vmatpush2.msra.mxu0 0.0
        %1750 = vmatprep.subr.mxu0 0.0
        %1751 = vmatpush2.msra.mxu0 0.0
        %1752 = vmatprep.subr.mxu0 0.0
        %1753 = vmatpush2.msra.mxu0 0.0
        %1754 = vmatprep.subr.mxu0 0.0
        %1755 = vmatpush2.msra.mxu0 0.0
        %1756 = vmatprep.subr.mxu0 0.0
        %1757 = vmatpush2.msra.mxu0 0.0
        %1758 = vmatprep.subr.mxu0 0.0
        %1759 = vmatpush2.msra.mxu0 0.0
        %1760 = vmatprep.subr.mxu0 0.0
        %1761 = vmatpush2.msra.mxu0 0.0
        %1762 = vmatprep.mubr.f32.mxu0 0.0
        %1763 = vmatmul.mubr.f32.gmra.mxu0 %v1693
        %v1764 = vpop.f32.mrf.mxu0
        %v1765 = vadd.f32 0.0, %v1764
        %v1766 = vpop.f32.mrf.mxu0
        %1767 = vmatprep.mubr.f32.mxu0 0.0
        %1768 = vmatmul.mubr.f32.gmra.mxu0 %v1696
        %v1769 = vpop.f32.mrf.mxu0
        %v1770 = vadd.f32 0.0, %v1769
        %v1771 = vpop.f32.mrf.mxu0
        %1772 = vdwg.mxu0
        %v1773 = vmul.f32 %v1765, %v1683
        %v1774 = vmul.f32 %v1770, %v1685
        %v1776 = vsel %vm724, %v1773, 0
        %v1779 = vsel %vm724, %v1774, 0
        %1781 = vmatprep.subr.mxu0 0.0
        %1782 = vmatpush1.msra.mxu0 0.0
        %1783 = vmatprep.subr.mxu0 0.0
        %1784 = vmatpush1.msra.mxu0 0.0
        %1785 = vmatprep.subr.mxu0 0.0
        %1786 = vmatpush1.msra.mxu0 0.0
        %1787 = vmatprep.subr.mxu0 0.0
        %1788 = vmatpush1.msra.mxu0 0.0
        %1789 = vmatprep.subr.mxu0 0.0
        %1790 = vmatpush1.msra.mxu0 0.0
        %1791 = vmatprep.subr.mxu0 0.0
        %1792 = vmatpush1.msra.mxu0 0.0
        %1793 = vmatprep.subr.mxu0 0.0
        %1794 = vmatpush1.msra.mxu0 0.0
        %1795 = vmatprep.subr.mxu0 0.0
        %1796 = vmatpush1.msra.mxu0 0.0
        %1797 = vmatprep.subr.mxu0 0.0
        %1798 = vmatpush1.msra.mxu0 0.0
        %1799 = vmatprep.subr.mxu0 0.0
        %1800 = vmatpush1.msra.mxu0 0.0
        %1801 = vmatprep.subr.mxu0 0.0
        %1802 = vmatpush1.msra.mxu0 0.0
        %1803 = vmatprep.subr.mxu0 0.0
        %1804 = vmatpush1.msra.mxu0 0.0
        %1805 = vmatprep.subr.mxu0 0.0
        %1806 = vmatpush1.msra.mxu0 0.0
        %1807 = vmatprep.subr.mxu0 0.0
        %1808 = vmatpush1.msra.mxu0 0.0
        %1809 = vmatprep.subr.mxu0 0.0
        %1810 = vmatpush1.msra.mxu0 0.0
        %1811 = vmatprep.subr.mxu0 0.0
        %1812 = vmatpush1.msra.mxu0 %v710
        %1813 = vmatprep.subr.mxu0 0.0
        %1814 = vmatpush2.msra.mxu0 0.0
        %1815 = vmatprep.subr.mxu0 0.0
        %1816 = vmatpush2.msra.mxu0 0.0
        %1817 = vmatprep.subr.mxu0 0.0
        %1818 = vmatpush2.msra.mxu0 0.0
        %1819 = vmatprep.subr.mxu0 0.0
        %1820 = vmatpush2.msra.mxu0 0.0
        %1821 = vmatprep.subr.mxu0 0.0
        %1822 = vmatpush2.msra.mxu0 0.0
        %1823 = vmatprep.subr.mxu0 0.0
        %1824 = vmatpush2.msra.mxu0 0.0
        %1825 = vmatprep.subr.mxu0 0.0
        %1826 = vmatpush2.msra.mxu0 0.0
        %1827 = vmatprep.subr.mxu0 0.0
        %1828 = vmatpush2.msra.mxu0 0.0
        %1829 = vmatprep.subr.mxu0 0.0
        %1830 = vmatpush2.msra.mxu0 0.0
        %1831 = vmatprep.subr.mxu0 0.0
        %1832 = vmatpush2.msra.mxu0 0.0
        %1833 = vmatprep.subr.mxu0 0.0
        %1834 = vmatpush2.msra.mxu0 0.0
        %1835 = vmatprep.subr.mxu0 0.0
        %1836 = vmatpush2.msra.mxu0 0.0
        %1837 = vmatprep.subr.mxu0 0.0
        %1838 = vmatpush2.msra.mxu0 0.0
        %1839 = vmatprep.subr.mxu0 0.0
        %1840 = vmatpush2.msra.mxu0 0.0
        %1841 = vmatprep.subr.mxu0 0.0
        %1842 = vmatpush2.msra.mxu0 0.0
        %1843 = vmatprep.subr.mxu0 0.0
        %1844 = vmatpush2.msra.mxu0 0.0
        %1845 = vmatprep.mubr.f32.mxu0 0.0
        %1846 = vmatmul.mubr.f32.gmra.mxu0 %v1776
        %v1847 = vpop.f32.mrf.mxu0
        %v1848 = vadd.f32 0.0, %v1847
        %v1849 = vpop.f32.mrf.mxu0
        %1850 = vmatprep.mubr.f32.mxu0 0.0
        %1851 = vmatmul.mubr.f32.gmra.mxu0 %v1779
        %v1852 = vpop.f32.mrf.mxu0
        %v1853 = vadd.f32 0.0, %v1852
        %v1854 = vpop.f32.mrf.mxu0
        %1855 = vdwg.mxu0
        %v1856 = vadd.f32 %v1571, %v1848
        %v1857 = vadd.f32 %v1572, %v1853
        %1858 = vrot.lane.b32.xlu0 %v622, 96
        %v1859 = vpop.permute.xlu0 %1858
        %1860 = vrot.lane.b32.xlu0 %v628, 96
        %v1861 = vpop.permute.xlu0 %1860
        %1862 = vrot.lane.b32.xlu0 %v624, 96
        %v1863 = vpop.permute.xlu0 %1862
        %1864 = vrot.lane.b32.xlu0 %v630, 96
        %v1865 = vpop.permute.xlu0 %1864
        %v1866 = vsel %vm724, %v1859, 0
        %v1868 = vsel %vm724, %v1861, 0
        %v1870 = vsel %vm724, %v1863, 0
        %v1872 = vsel %vm724, %v1865, 0
        %1874 = vmatprep.subr.mxu0 0.0
        %1875 = vmatpush1.xpose.msra.mxu0 0.0
        %1876 = vmatprep.subr.mxu0 0.0
        %1877 = vmatpush1.xpose.msra.mxu0 0.0
        %1878 = vmatprep.subr.mxu0 0.0
        %1879 = vmatpush1.xpose.msra.mxu0 0.0
        %1880 = vmatprep.subr.mxu0 0.0
        %1881 = vmatpush1.xpose.msra.mxu0 0.0
        %1882 = vmatprep.subr.mxu0 0.0
        %1883 = vmatpush1.xpose.msra.mxu0 0.0
        %1884 = vmatprep.subr.mxu0 0.0
        %1885 = vmatpush1.xpose.msra.mxu0 0.0
        %1886 = vmatprep.subr.mxu0 0.0
        %1887 = vmatpush1.xpose.msra.mxu0 0.0
        %1888 = vmatprep.subr.mxu0 0.0
        %1889 = vmatpush1.xpose.msra.mxu0 0.0
        %1890 = vmatprep.subr.mxu0 0.0
        %1891 = vmatpush1.xpose.msra.mxu0 0.0
        %1892 = vmatprep.subr.mxu0 0.0
        %1893 = vmatpush1.xpose.msra.mxu0 0.0
        %1894 = vmatprep.subr.mxu0 0.0
        %1895 = vmatpush1.xpose.msra.mxu0 0.0
        %1896 = vmatprep.subr.mxu0 0.0
        %1897 = vmatpush1.xpose.msra.mxu0 0.0
        %1898 = vmatprep.subr.mxu0 0.0
        %1899 = vmatpush1.xpose.msra.mxu0 0.0
        %1900 = vmatprep.subr.mxu0 0.0
        %1901 = vmatpush1.xpose.msra.mxu0 0.0
        %1902 = vmatprep.subr.mxu0 0.0
        %1903 = vmatpush1.xpose.msra.mxu0 %v1872
        %1904 = vmatprep.subr.mxu0 0.0
        %1905 = vmatpush1.xpose.msra.mxu0 %v1870
        %1906 = vmatprep.subr.mxu0 0.0
        %1907 = vmatpush2.xpose.msra.mxu0 0.0
        %1908 = vmatprep.subr.mxu0 0.0
        %1909 = vmatpush2.xpose.msra.mxu0 0.0
        %1910 = vmatprep.subr.mxu0 0.0
        %1911 = vmatpush2.xpose.msra.mxu0 0.0
        %1912 = vmatprep.subr.mxu0 0.0
        %1913 = vmatpush2.xpose.msra.mxu0 0.0
        %1914 = vmatprep.subr.mxu0 0.0
        %1915 = vmatpush2.xpose.msra.mxu0 0.0
        %1916 = vmatprep.subr.mxu0 0.0
        %1917 = vmatpush2.xpose.msra.mxu0 0.0
        %1918 = vmatprep.subr.mxu0 0.0
        %1919 = vmatpush2.xpose.msra.mxu0 0.0
        %1920 = vmatprep.subr.mxu0 0.0
        %1921 = vmatpush2.xpose.msra.mxu0 0.0
        %1922 = vmatprep.subr.mxu0 0.0
        %1923 = vmatpush2.xpose.msra.mxu0 0.0
        %1924 = vmatprep.subr.mxu0 0.0
        %1925 = vmatpush2.xpose.msra.mxu0 0.0
        %1926 = vmatprep.subr.mxu0 0.0
        %1927 = vmatpush2.xpose.msra.mxu0 0.0
        %1928 = vmatprep.subr.mxu0 0.0
        %1929 = vmatpush2.xpose.msra.mxu0 0.0
        %1930 = vmatprep.subr.mxu0 0.0
        %1931 = vmatpush2.xpose.msra.mxu0 0.0
        %1932 = vmatprep.subr.mxu0 0.0
        %1933 = vmatpush2.xpose.msra.mxu0 0.0
        %1934 = vmatprep.subr.mxu0 0.0
        %1935 = vmatpush2.xpose.msra.mxu0 0.0
        %1936 = vmatprep.subr.mxu0 0.0
        %1937 = vmatpush2.xpose.msra.mxu0 0.0
        %1938 = vmatprep.mubr.f32.mxu0 0.0
        %1939 = vmatmul.mubr.f32.gmra.mxu0 %v1866
        %v1940 = vpop.f32.mrf.mxu0
        %v1941 = vadd.f32 0.0, %v1940
        %v1942 = vpop.f32.mrf.mxu0
        %1943 = vmatprep.mubr.f32.mxu0 0.0
        %1944 = vmatmul.mubr.f32.gmra.mxu0 %v1868
        %v1945 = vpop.f32.mrf.mxu0
        %v1946 = vadd.f32 0.0, %v1945
        %v1947 = vpop.f32.mrf.mxu0
        %1948 = vdwg.mxu0
        %v1949 = vsel %vm812, %v1941, -inf
        %1950 = vmax.xlane.f32.xlu0 %v1949
        %v1951 = vpop.xlane.xlu0 %1950
        %v1952 = vsel %vm812, %v1946, -inf
        %1953 = vmax.xlane.f32.xlu0 %v1952
        %v1954 = vpop.xlane.xlu0 %1953
        %v1955 = vsub.f32 %v1941, %v1951
        %v1956 = vsub.f32 %v1946, %v1954
        %v1957 = vmul.f32 %v1955, 1.442695
        %v1958 = vpow.pop %v1957
        %v1959 = vmul.f32 %v1956, 1.442695
        %v1960 = vpow.pop %v1959
        %v1961 = vsel %vm812, %v1958, 0.0
        %1962 = vadd.xlane.f32.xlu0 %v1961
        %v1963 = vpop.xlane.xlu0 %1962
        %v1964 = vsel %vm812, %v1960, 0.0
        %1965 = vadd.xlane.f32.xlu0 %v1964
        %v1966 = vpop.xlane.xlu0 %1965
        %v1967 = vrcp.pop %v1963
        %v1968 = vmul.f32 1.0, %v1967
        %v1969 = vrcp.pop %v1966
        %v1970 = vmul.f32 1.0, %v1969
        %1971 = vrot.lane.b32.xlu0 %v699, 96
        %v1972 = vpop.permute.xlu0 %1971
        %1973 = vrot.lane.b32.xlu0 %v704, 96
        %v1974 = vpop.permute.xlu0 %1973
        %v1978 = vsel %vm812, %v1958, 0
        %v1981 = vsel %vm812, %v1960, 0
        %1983 = vmatprep.subr.mxu0 0.0
        %1984 = vmatpush1.msra.mxu0 0.0
        %1985 = vmatprep.subr.mxu0 0.0
        %1986 = vmatpush1.msra.mxu0 0.0
        %1987 = vmatprep.subr.mxu0 0.0
        %1988 = vmatpush1.msra.mxu0 0.0
        %1989 = vmatprep.subr.mxu0 0.0
        %1990 = vmatpush1.msra.mxu0 0.0
        %1991 = vmatprep.subr.mxu0 0.0
        %1992 = vmatpush1.msra.mxu0 0.0
        %1993 = vmatprep.subr.mxu0 0.0
        %1994 = vmatpush1.msra.mxu0 0.0
        %1995 = vmatprep.subr.mxu0 0.0
        %1996 = vmatpush1.msra.mxu0 0.0
        %1997 = vmatprep.subr.mxu0 0.0
        %1998 = vmatpush1.msra.mxu0 0.0
        %1999 = vmatprep.subr.mxu0 0.0
        %2000 = vmatpush1.msra.mxu0 0.0
        %2001 = vmatprep.subr.mxu0 0.0
        %2002 = vmatpush1.msra.mxu0 0.0
        %2003 = vmatprep.subr.mxu0 0.0
        %2004 = vmatpush1.msra.mxu0 0.0
        %2005 = vmatprep.subr.mxu0 0.0
        %2006 = vmatpush1.msra.mxu0 0.0
        %2007 = vmatprep.subr.mxu0 0.0
        %2008 = vmatpush1.msra.mxu0 0.0
        %2009 = vmatprep.subr.mxu0 0.0
        %2010 = vmatpush1.msra.mxu0 0.0
        %2011 = vmatprep.subr.mxu0 0.0
        %2012 = vmatpush1.msra.mxu0 %v1974
        %2013 = vmatprep.subr.mxu0 0.0
        %2014 = vmatpush1.msra.mxu0 %v1972
        %2015 = vmatprep.subr.mxu0 0.0
        %2016 = vmatpush2.msra.mxu0 0.0
        %2017 = vmatprep.subr.mxu0 0.0
        %2018 = vmatpush2.msra.mxu0 0.0
        %2019 = vmatprep.subr.mxu0 0.0
        %2020 = vmatpush2.msra.mxu0 0.0
        %2021 = vmatprep.subr.mxu0 0.0
        %2022 = vmatpush2.msra.mxu0 0.0
        %2023 = vmatprep.subr.mxu0 0.0
        %2024 = vmatpush2.msra.mxu0 0.0
        %2025 = vmatprep.subr.mxu0 0.0
        %2026 = vmatpush2.msra.mxu0 0.0
        %2027 = vmatprep.subr.mxu0 0.0
        %2028 = vmatpush2.msra.mxu0 0.0
        %2029 = vmatprep.subr.mxu0 0.0
        %2030 = vmatpush2.msra.mxu0 0.0
        %2031 = vmatprep.subr.mxu0 0.0
        %2032 = vmatpush2.msra.mxu0 0.0
        %2033 = vmatprep.subr.mxu0 0.0
        %2034 = vmatpush2.msra.mxu0 0.0
        %2035 = vmatprep.subr.mxu0 0.0
        %2036 = vmatpush2.msra.mxu0 0.0
        %2037 = vmatprep.subr.mxu0 0.0
        %2038 = vmatpush2.msra.mxu0 0.0
        %2039 = vmatprep.subr.mxu0 0.0
        %2040 = vmatpush2.msra.mxu0 0.0
        %2041 = vmatprep.subr.mxu0 0.0
        %2042 = vmatpush2.msra.mxu0 0.0
        %2043 = vmatprep.subr.mxu0 0.0
        %2044 = vmatpush2.msra.mxu0 0.0
        %2045 = vmatprep.subr.mxu0 0.0
        %2046 = vmatpush2.msra.mxu0 0.0
        %2047 = vmatprep.mubr.f32.mxu0 0.0
        %2048 = vmatmul.mubr.f32.gmra.mxu0 %v1978
        %v2049 = vpop.f32.mrf.mxu0
        %v2050 = vadd.f32 0.0, %v2049
        %v2051 = vpop.f32.mrf.mxu0
        %2052 = vmatprep.mubr.f32.mxu0 0.0
        %2053 = vmatmul.mubr.f32.gmra.mxu0 %v1981
        %v2054 = vpop.f32.mrf.mxu0
        %v2055 = vadd.f32 0.0, %v2054
        %v2056 = vpop.f32.mrf.mxu0
        %2057 = vdwg.mxu0
        %v2058 = vmul.f32 %v2050, %v1968
        %v2059 = vmul.f32 %v2055, %v1970
        %v2061 = vsel %vm724, %v2058, 0
        %v2064 = vsel %vm724, %v2059, 0
        %2066 = vmatprep.subr.mxu0 0.0
        %2067 = vmatpush1.msra.mxu0 0.0
        %2068 = vmatprep.subr.mxu0 0.0
        %2069 = vmatpush1.msra.mxu0 0.0
        %2070 = vmatprep.subr.mxu0 0.0
        %2071 = vmatpush1.msra.mxu0 0.0
        %2072 = vmatprep.subr.mxu0 0.0
        %2073 = vmatpush1.msra.mxu0 0.0
        %2074 = vmatprep.subr.mxu0 0.0
        %2075 = vmatpush1.msra.mxu0 0.0
        %2076 = vmatprep.subr.mxu0 0.0
        %2077 = vmatpush1.msra.mxu0 0.0
        %2078 = vmatprep.subr.mxu0 0.0
        %2079 = vmatpush1.msra.mxu0 0.0
        %2080 = vmatprep.subr.mxu0 0.0
        %2081 = vmatpush1.msra.mxu0 0.0
        %2082 = vmatprep.subr.mxu0 0.0
        %2083 = vmatpush1.msra.mxu0 0.0
        %2084 = vmatprep.subr.mxu0 0.0
        %2085 = vmatpush1.msra.mxu0 0.0
        %2086 = vmatprep.subr.mxu0 0.0
        %2087 = vmatpush1.msra.mxu0 0.0
        %2088 = vmatprep.subr.mxu0 0.0
        %2089 = vmatpush1.msra.mxu0 0.0
        %2090 = vmatprep.subr.mxu0 0.0
        %2091 = vmatpush1.msra.mxu0 0.0
        %2092 = vmatprep.subr.mxu0 0.0
        %2093 = vmatpush1.msra.mxu0 0.0
        %2094 = vmatprep.subr.mxu0 0.0
        %2095 = vmatpush1.msra.mxu0 0.0
        %2096 = vmatprep.subr.mxu0 0.0
        %2097 = vmatpush1.msra.mxu0 %v711
        %2098 = vmatprep.subr.mxu0 0.0
        %2099 = vmatpush2.msra.mxu0 0.0
        %2100 = vmatprep.subr.mxu0 0.0
        %2101 = vmatpush2.msra.mxu0 0.0
        %2102 = vmatprep.subr.mxu0 0.0
        %2103 = vmatpush2.msra.mxu0 0.0
        %2104 = vmatprep.subr.mxu0 0.0
        %2105 = vmatpush2.msra.mxu0 0.0
        %2106 = vmatprep.subr.mxu0 0.0
        %2107 = vmatpush2.msra.mxu0 0.0
        %2108 = vmatprep.subr.mxu0 0.0
        %2109 = vmatpush2.msra.mxu0 0.0
        %2110 = vmatprep.subr.mxu0 0.0
        %2111 = vmatpush2.msra.mxu0 0.0
        %2112 = vmatprep.subr.mxu0 0.0
        %2113 = vmatpush2.msra.mxu0 0.0
        %2114 = vmatprep.subr.mxu0 0.0
        %2115 = vmatpush2.msra.mxu0 0.0
        %2116 = vmatprep.subr.mxu0 0.0
        %2117 = vmatpush2.msra.mxu0 0.0
        %2118 = vmatprep.subr.mxu0 0.0
        %2119 = vmatpush2.msra.mxu0 0.0
        %2120 = vmatprep.subr.mxu0 0.0
        %2121 = vmatpush2.msra.mxu0 0.0
        %2122 = vmatprep.subr.mxu0 0.0
        %2123 = vmatpush2.msra.mxu0 0.0
        %2124 = vmatprep.subr.mxu0 0.0
        %2125 = vmatpush2.msra.mxu0 0.0
        %2126 = vmatprep.subr.mxu0 0.0
        %2127 = vmatpush2.msra.mxu0 0.0
        %2128 = vmatprep.subr.mxu0 0.0
        %2129 = vmatpush2.msra.mxu0 0.0
        %2130 = vmatprep.mubr.f32.mxu0 0.0
        %2131 = vmatmul.mubr.f32.gmra.mxu0 %v2061
        %v2132 = vpop.f32.mrf.mxu0
        %v2133 = vadd.f32 0.0, %v2132
        %v2134 = vpop.f32.mrf.mxu0
        %2135 = vmatprep.mubr.f32.mxu0 0.0
        %2136 = vmatmul.mubr.f32.gmra.mxu0 %v2064
        %v2137 = vpop.f32.mrf.mxu0
        %v2138 = vadd.f32 0.0, %v2137
        %v2139 = vpop.f32.mrf.mxu0
        %2140 = vdwg.mxu0
        %v2141 = vadd.f32 %v1856, %v2133
        %v2142 = vadd.f32 %v1857, %v2138
        %2143 = vrot.lane.b32.xlu0 %v622, 88
        %v2144 = vpop.permute.xlu0 %2143
        %2145 = vrot.lane.b32.xlu0 %v628, 88
        %v2146 = vpop.permute.xlu0 %2145
        %2147 = vrot.lane.b32.xlu0 %v624, 88
        %v2148 = vpop.permute.xlu0 %2147
        %2149 = vrot.lane.b32.xlu0 %v630, 88
        %v2150 = vpop.permute.xlu0 %2149
        %v2151 = vsel %vm724, %v2144, 0
        %v2153 = vsel %vm724, %v2146, 0
        %v2155 = vsel %vm724, %v2148, 0
        %v2157 = vsel %vm724, %v2150, 0
        %2159 = vmatprep.subr.mxu0 0.0
        %2160 = vmatpush1.xpose.msra.mxu0 0.0
        %2161 = vmatprep.subr.mxu0 0.0
        %2162 = vmatpush1.xpose.msra.mxu0 0.0
        %2163 = vmatprep.subr.mxu0 0.0
        %2164 = vmatpush1.xpose.msra.mxu0 0.0
        %2165 = vmatprep.subr.mxu0 0.0
        %2166 = vmatpush1.xpose.msra.mxu0 0.0
        %2167 = vmatprep.subr.mxu0 0.0
        %2168 = vmatpush1.xpose.msra.mxu0 0.0
        %2169 = vmatprep.subr.mxu0 0.0
        %2170 = vmatpush1.xpose.msra.mxu0 0.0
        %2171 = vmatprep.subr.mxu0 0.0
        %2172 = vmatpush1.xpose.msra.mxu0 0.0
        %2173 = vmatprep.subr.mxu0 0.0
        %2174 = vmatpush1.xpose.msra.mxu0 0.0
        %2175 = vmatprep.subr.mxu0 0.0
        %2176 = vmatpush1.xpose.msra.mxu0 0.0
        %2177 = vmatprep.subr.mxu0 0.0
        %2178 = vmatpush1.xpose.msra.mxu0 0.0
        %2179 = vmatprep.subr.mxu0 0.0
        %2180 = vmatpush1.xpose.msra.mxu0 0.0
        %2181 = vmatprep.subr.mxu0 0.0
        %2182 = vmatpush1.xpose.msra.mxu0 0.0
        %2183 = vmatprep.subr.mxu0 0.0
        %2184 = vmatpush1.xpose.msra.mxu0 0.0
        %2185 = vmatprep.subr.mxu0 0.0
        %2186 = vmatpush1.xpose.msra.mxu0 0.0
        %2187 = vmatprep.subr.mxu0 0.0
        %2188 = vmatpush1.xpose.msra.mxu0 %v2157
        %2189 = vmatprep.subr.mxu0 0.0
        %2190 = vmatpush1.xpose.msra.mxu0 %v2155
        %2191 = vmatprep.subr.mxu0 0.0
        %2192 = vmatpush2.xpose.msra.mxu0 0.0
        %2193 = vmatprep.subr.mxu0 0.0
        %2194 = vmatpush2.xpose.msra.mxu0 0.0
        %2195 = vmatprep.subr.mxu0 0.0
        %2196 = vmatpush2.xpose.msra.mxu0 0.0
        %2197 = vmatprep.subr.mxu0 0.0
        %2198 = vmatpush2.xpose.msra.mxu0 0.0
        %2199 = vmatprep.subr.mxu0 0.0
        %2200 = vmatpush2.xpose.msra.mxu0 0.0
        %2201 = vmatprep.subr.mxu0 0.0
        %2202 = vmatpush2.xpose.msra.mxu0 0.0
        %2203 = vmatprep.subr.mxu0 0.0
        %2204 = vmatpush2.xpose.msra.mxu0 0.0
        %2205 = vmatprep.subr.mxu0 0.0
        %2206 = vmatpush2.xpose.msra.mxu0 0.0
        %2207 = vmatprep.subr.mxu0 0.0
        %2208 = vmatpush2.xpose.msra.mxu0 0.0
        %2209 = vmatprep.subr.mxu0 0.0
        %2210 = vmatpush2.xpose.msra.mxu0 0.0
        %2211 = vmatprep.subr.mxu0 0.0
        %2212 = vmatpush2.xpose.msra.mxu0 0.0
        %2213 = vmatprep.subr.mxu0 0.0
        %2214 = vmatpush2.xpose.msra.mxu0 0.0
        %2215 = vmatprep.subr.mxu0 0.0
        %2216 = vmatpush2.xpose.msra.mxu0 0.0
        %2217 = vmatprep.subr.mxu0 0.0
        %2218 = vmatpush2.xpose.msra.mxu0 0.0
        %2219 = vmatprep.subr.mxu0 0.0
        %2220 = vmatpush2.xpose.msra.mxu0 0.0
        %2221 = vmatprep.subr.mxu0 0.0
        %2222 = vmatpush2.xpose.msra.mxu0 0.0
        %2223 = vmatprep.mubr.f32.mxu0 0.0
        %2224 = vmatmul.mubr.f32.gmra.mxu0 %v2151
        %v2225 = vpop.f32.mrf.mxu0
        %v2226 = vadd.f32 0.0, %v2225
        %v2227 = vpop.f32.mrf.mxu0
        %2228 = vmatprep.mubr.f32.mxu0 0.0
        %2229 = vmatmul.mubr.f32.gmra.mxu0 %v2153
        %v2230 = vpop.f32.mrf.mxu0
        %v2231 = vadd.f32 0.0, %v2230
        %v2232 = vpop.f32.mrf.mxu0
        %2233 = vdwg.mxu0
        %v2234 = vsel %vm812, %v2226, -inf
        %2235 = vmax.xlane.f32.xlu0 %v2234
        %v2236 = vpop.xlane.xlu0 %2235
        %v2237 = vsel %vm812, %v2231, -inf
        %2238 = vmax.xlane.f32.xlu0 %v2237
        %v2239 = vpop.xlane.xlu0 %2238
        %v2240 = vsub.f32 %v2226, %v2236
        %v2241 = vsub.f32 %v2231, %v2239
        %v2242 = vmul.f32 %v2240, 1.442695
        %v2243 = vpow.pop %v2242
        %v2244 = vmul.f32 %v2241, 1.442695
        %v2245 = vpow.pop %v2244
        %v2246 = vsel %vm812, %v2243, 0.0
        %2247 = vadd.xlane.f32.xlu0 %v2246
        %v2248 = vpop.xlane.xlu0 %2247
        %v2249 = vsel %vm812, %v2245, 0.0
        %2250 = vadd.xlane.f32.xlu0 %v2249
        %v2251 = vpop.xlane.xlu0 %2250
        %v2252 = vrcp.pop %v2248
        %v2253 = vmul.f32 1.0, %v2252
        %v2254 = vrcp.pop %v2251
        %v2255 = vmul.f32 1.0, %v2254
        %2256 = vrot.lane.b32.xlu0 %v699, 88
        %v2257 = vpop.permute.xlu0 %2256
        %2258 = vrot.lane.b32.xlu0 %v704, 88
        %v2259 = vpop.permute.xlu0 %2258
        %v2263 = vsel %vm812, %v2243, 0
        %v2266 = vsel %vm812, %v2245, 0
        %2268 = vmatprep.subr.mxu0 0.0
        %2269 = vmatpush1.msra.mxu0 0.0
        %2270 = vmatprep.subr.mxu0 0.0
        %2271 = vmatpush1.msra.mxu0 0.0
        %2272 = vmatprep.subr.mxu0 0.0
        %2273 = vmatpush1.msra.mxu0 0.0
        %2274 = vmatprep.subr.mxu0 0.0
        %2275 = vmatpush1.msra.mxu0 0.0
        %2276 = vmatprep.subr.mxu0 0.0
        %2277 = vmatpush1.msra.mxu0 0.0
        %2278 = vmatprep.subr.mxu0 0.0
        %2279 = vmatpush1.msra.mxu0 0.0
        %2280 = vmatprep.subr.mxu0 0.0
        %2281 = vmatpush1.msra.mxu0 0.0
        %2282 = vmatprep.subr.mxu0 0.0
        %2283 = vmatpush1.msra.mxu0 0.0
        %2284 = vmatprep.subr.mxu0 0.0
        %2285 = vmatpush1.msra.mxu0 0.0
        %2286 = vmatprep.subr.mxu0 0.0
        %2287 = vmatpush1.msra.mxu0 0.0
        %2288 = vmatprep.subr.mxu0 0.0
        %2289 = vmatpush1.msra.mxu0 0.0
        %2290 = vmatprep.subr.mxu0 0.0
        %2291 = vmatpush1.msra.mxu0 0.0
        %2292 = vmatprep.subr.mxu0 0.0
        %2293 = vmatpush1.msra.mxu0 0.0
        %2294 = vmatprep.subr.mxu0 0.0
        %2295 = vmatpush1.msra.mxu0 0.0
        %2296 = vmatprep.subr.mxu0 0.0
        %2297 = vmatpush1.msra.mxu0 %v2259
        %2298 = vmatprep.subr.mxu0 0.0
        %2299 = vmatpush1.msra.mxu0 %v2257
        %2300 = vmatprep.subr.mxu0 0.0
        %2301 = vmatpush2.msra.mxu0 0.0
        %2302 = vmatprep.subr.mxu0 0.0
        %2303 = vmatpush2.msra.mxu0 0.0
        %2304 = vmatprep.subr.mxu0 0.0
        %2305 = vmatpush2.msra.mxu0 0.0
        %2306 = vmatprep.subr.mxu0 0.0
        %2307 = vmatpush2.msra.mxu0 0.0
        %2308 = vmatprep.subr.mxu0 0.0
        %2309 = vmatpush2.msra.mxu0 0.0
        %2310 = vmatprep.subr.mxu0 0.0
        %2311 = vmatpush2.msra.mxu0 0.0
        %2312 = vmatprep.subr.mxu0 0.0
        %2313 = vmatpush2.msra.mxu0 0.0
        %2314 = vmatprep.subr.mxu0 0.0
        %2315 = vmatpush2.msra.mxu0 0.0
        %2316 = vmatprep.subr.mxu0 0.0
        %2317 = vmatpush2.msra.mxu0 0.0
        %2318 = vmatprep.subr.mxu0 0.0
        %2319 = vmatpush2.msra.mxu0 0.0
        %2320 = vmatprep.subr.mxu0 0.0
        %2321 = vmatpush2.msra.mxu0 0.0
        %2322 = vmatprep.subr.mxu0 0.0
        %2323 = vmatpush2.msra.mxu0 0.0
        %2324 = vmatprep.subr.mxu0 0.0
        %2325 = vmatpush2.msra.mxu0 0.0
        %2326 = vmatprep.subr.mxu0 0.0
        %2327 = vmatpush2.msra.mxu0 0.0
        %2328 = vmatprep.subr.mxu0 0.0
        %2329 = vmatpush2.msra.mxu0 0.0
        %2330 = vmatprep.subr.mxu0 0.0
        %2331 = vmatpush2.msra.mxu0 0.0
        %2332 = vmatprep.mubr.f32.mxu0 0.0
        %2333 = vmatmul.mubr.f32.gmra.mxu0 %v2263
        %v2334 = vpop.f32.mrf.mxu0
        %v2335 = vadd.f32 0.0, %v2334
        %v2336 = vpop.f32.mrf.mxu0
        %2337 = vmatprep.mubr.f32.mxu0 0.0
        %2338 = vmatmul.mubr.f32.gmra.mxu0 %v2266
        %v2339 = vpop.f32.mrf.mxu0
        %v2340 = vadd.f32 0.0, %v2339
        %v2341 = vpop.f32.mrf.mxu0
        %2342 = vdwg.mxu0
        %v2343 = vmul.f32 %v2335, %v2253
        %v2344 = vmul.f32 %v2340, %v2255
        %v2346 = vsel %vm724, %v2343, 0
        %v2349 = vsel %vm724, %v2344, 0
        %2351 = vmatprep.subr.mxu0 0.0
        %2352 = vmatpush1.msra.mxu0 0.0
        %2353 = vmatprep.subr.mxu0 0.0
        %2354 = vmatpush1.msra.mxu0 0.0
        %2355 = vmatprep.subr.mxu0 0.0
        %2356 = vmatpush1.msra.mxu0 0.0
        %2357 = vmatprep.subr.mxu0 0.0
        %2358 = vmatpush1.msra.mxu0 0.0
        %2359 = vmatprep.subr.mxu0 0.0
        %2360 = vmatpush1.msra.mxu0 0.0
        %2361 = vmatprep.subr.mxu0 0.0
        %2362 = vmatpush1.msra.mxu0 0.0
        %2363 = vmatprep.subr.mxu0 0.0
        %2364 = vmatpush1.msra.mxu0 0.0
        %2365 = vmatprep.subr.mxu0 0.0
        %2366 = vmatpush1.msra.mxu0 0.0
        %2367 = vmatprep.subr.mxu0 0.0
        %2368 = vmatpush1.msra.mxu0 0.0
        %2369 = vmatprep.subr.mxu0 0.0
        %2370 = vmatpush1.msra.mxu0 0.0
        %2371 = vmatprep.subr.mxu0 0.0
        %2372 = vmatpush1.msra.mxu0 0.0
        %2373 = vmatprep.subr.mxu0 0.0
        %2374 = vmatpush1.msra.mxu0 0.0
        %2375 = vmatprep.subr.mxu0 0.0
        %2376 = vmatpush1.msra.mxu0 0.0
        %2377 = vmatprep.subr.mxu0 0.0
        %2378 = vmatpush1.msra.mxu0 0.0
        %2379 = vmatprep.subr.mxu0 0.0
        %2380 = vmatpush1.msra.mxu0 0.0
        %2381 = vmatprep.subr.mxu0 0.0
        %2382 = vmatpush1.msra.mxu0 %v712
        %2383 = vmatprep.subr.mxu0 0.0
        %2384 = vmatpush2.msra.mxu0 0.0
        %2385 = vmatprep.subr.mxu0 0.0
        %2386 = vmatpush2.msra.mxu0 0.0
        %2387 = vmatprep.subr.mxu0 0.0
        %2388 = vmatpush2.msra.mxu0 0.0
        %2389 = vmatprep.subr.mxu0 0.0
        %2390 = vmatpush2.msra.mxu0 0.0
        %2391 = vmatprep.subr.mxu0 0.0
        %2392 = vmatpush2.msra.mxu0 0.0
        %2393 = vmatprep.subr.mxu0 0.0
        %2394 = vmatpush2.msra.mxu0 0.0
        %2395 = vmatprep.subr.mxu0 0.0
        %2396 = vmatpush2.msra.mxu0 0.0
        %2397 = vmatprep.subr.mxu0 0.0
        %2398 = vmatpush2.msra.mxu0 0.0
        %2399 = vmatprep.subr.mxu0 0.0
        %2400 = vmatpush2.msra.mxu0 0.0
        %2401 = vmatprep.subr.mxu0 0.0
        %2402 = vmatpush2.msra.mxu0 0.0
        %2403 = vmatprep.subr.mxu0 0.0
        %2404 = vmatpush2.msra.mxu0 0.0
        %2405 = vmatprep.subr.mxu0 0.0
        %2406 = vmatpush2.msra.mxu0 0.0
        %2407 = vmatprep.subr.mxu0 0.0
        %2408 = vmatpush2.msra.mxu0 0.0
        %2409 = vmatprep.subr.mxu0 0.0
        %2410 = vmatpush2.msra.mxu0 0.0
        %2411 = vmatprep.subr.mxu0 0.0
        %2412 = vmatpush2.msra.mxu0 0.0
        %2413 = vmatprep.subr.mxu0 0.0
        %2414 = vmatpush2.msra.mxu0 0.0
        %2415 = vmatprep.mubr.f32.mxu0 0.0
        %2416 = vmatmul.mubr.f32.gmra.mxu0 %v2346
        %v2417 = vpop.f32.mrf.mxu0
        %v2418 = vadd.f32 0.0, %v2417
        %v2419 = vpop.f32.mrf.mxu0
        %2420 = vmatprep.mubr.f32.mxu0 0.0
        %2421 = vmatmul.mubr.f32.gmra.mxu0 %v2349
        %v2422 = vpop.f32.mrf.mxu0
        %v2423 = vadd.f32 0.0, %v2422
        %v2424 = vpop.f32.mrf.mxu0
        %2425 = vdwg.mxu0
        %v2426 = vadd.f32 %v2141, %v2418
        %v2427 = vadd.f32 %v2142, %v2423
        %2428 = vrot.lane.b32.xlu0 %v622, 80
        %v2429 = vpop.permute.xlu0 %2428
        %2430 = vrot.lane.b32.xlu0 %v628, 80
        %v2431 = vpop.permute.xlu0 %2430
        %2432 = vrot.lane.b32.xlu0 %v624, 80
        %v2433 = vpop.permute.xlu0 %2432
        %2434 = vrot.lane.b32.xlu0 %v630, 80
        %v2435 = vpop.permute.xlu0 %2434
        %v2436 = vsel %vm724, %v2429, 0
        %v2438 = vsel %vm724, %v2431, 0
        %v2440 = vsel %vm724, %v2433, 0
        %v2442 = vsel %vm724, %v2435, 0
        %2444 = vmatprep.subr.mxu0 0.0
        %2445 = vmatpush1.xpose.msra.mxu0 0.0
        %2446 = vmatprep.subr.mxu0 0.0
        %2447 = vmatpush1.xpose.msra.mxu0 0.0
        %2448 = vmatprep.subr.mxu0 0.0
        %2449 = vmatpush1.xpose.msra.mxu0 0.0
        %2450 = vmatprep.subr.mxu0 0.0
        %2451 = vmatpush1.xpose.msra.mxu0 0.0
        %2452 = vmatprep.subr.mxu0 0.0
        %2453 = vmatpush1.xpose.msra.mxu0 0.0
        %2454 = vmatprep.subr.mxu0 0.0
        %2455 = vmatpush1.xpose.msra.mxu0 0.0
        %2456 = vmatprep.subr.mxu0 0.0
        %2457 = vmatpush1.xpose.msra.mxu0 0.0
        %2458 = vmatprep.subr.mxu0 0.0
        %2459 = vmatpush1.xpose.msra.mxu0 0.0
        %2460 = vmatprep.subr.mxu0 0.0
        %2461 = vmatpush1.xpose.msra.mxu0 0.0
        %2462 = vmatprep.subr.mxu0 0.0
        %2463 = vmatpush1.xpose.msra.mxu0 0.0
        %2464 = vmatprep.subr.mxu0 0.0
        %2465 = vmatpush1.xpose.msra.mxu0 0.0
        %2466 = vmatprep.subr.mxu0 0.0
        %2467 = vmatpush1.xpose.msra.mxu0 0.0
        %2468 = vmatprep.subr.mxu0 0.0
        %2469 = vmatpush1.xpose.msra.mxu0 0.0
        %2470 = vmatprep.subr.mxu0 0.0
        %2471 = vmatpush1.xpose.msra.mxu0 0.0
        %2472 = vmatprep.subr.mxu0 0.0
        %2473 = vmatpush1.xpose.msra.mxu0 %v2442
        %2474 = vmatprep.subr.mxu0 0.0
        %2475 = vmatpush1.xpose.msra.mxu0 %v2440
        %2476 = vmatprep.subr.mxu0 0.0
        %2477 = vmatpush2.xpose.msra.mxu0 0.0
        %2478 = vmatprep.subr.mxu0 0.0
        %2479 = vmatpush2.xpose.msra.mxu0 0.0
        %2480 = vmatprep.subr.mxu0 0.0
        %2481 = vmatpush2.xpose.msra.mxu0 0.0
        %2482 = vmatprep.subr.mxu0 0.0
        %2483 = vmatpush2.xpose.msra.mxu0 0.0
        %2484 = vmatprep.subr.mxu0 0.0
        %2485 = vmatpush2.xpose.msra.mxu0 0.0
        %2486 = vmatprep.subr.mxu0 0.0
        %2487 = vmatpush2.xpose.msra.mxu0 0.0
        %2488 = vmatprep.subr.mxu0 0.0
        %2489 = vmatpush2.xpose.msra.mxu0 0.0
        %2490 = vmatprep.subr.mxu0 0.0
        %2491 = vmatpush2.xpose.msra.mxu0 0.0
        %2492 = vmatprep.subr.mxu0 0.0
        %2493 = vmatpush2.xpose.msra.mxu0 0.0
        %2494 = vmatprep.subr.mxu0 0.0
        %2495 = vmatpush2.xpose.msra.mxu0 0.0
        %2496 = vmatprep.subr.mxu0 0.0
        %2497 = vmatpush2.xpose.msra.mxu0 0.0
        %2498 = vmatprep.subr.mxu0 0.0
        %2499 = vmatpush2.xpose.msra.mxu0 0.0
        %2500 = vmatprep.subr.mxu0 0.0
        %2501 = vmatpush2.xpose.msra.mxu0 0.0
        %2502 = vmatprep.subr.mxu0 0.0
        %2503 = vmatpush2.xpose.msra.mxu0 0.0
        %2504 = vmatprep.subr.mxu0 0.0
        %2505 = vmatpush2.xpose.msra.mxu0 0.0
        %2506 = vmatprep.subr.mxu0 0.0
        %2507 = vmatpush2.xpose.msra.mxu0 0.0
        %2508 = vmatprep.mubr.f32.mxu0 0.0
        %2509 = vmatmul.mubr.f32.gmra.mxu0 %v2436
        %v2510 = vpop.f32.mrf.mxu0
        %v2511 = vadd.f32 0.0, %v2510
        %v2512 = vpop.f32.mrf.mxu0
        %2513 = vmatprep.mubr.f32.mxu0 0.0
        %2514 = vmatmul.mubr.f32.gmra.mxu0 %v2438
        %v2515 = vpop.f32.mrf.mxu0
        %v2516 = vadd.f32 0.0, %v2515
        %v2517 = vpop.f32.mrf.mxu0
        %2518 = vdwg.mxu0
        %v2519 = vsel %vm812, %v2511, -inf
        %2520 = vmax.xlane.f32.xlu0 %v2519
        %v2521 = vpop.xlane.xlu0 %2520
        %v2522 = vsel %vm812, %v2516, -inf
        %2523 = vmax.xlane.f32.xlu0 %v2522
        %v2524 = vpop.xlane.xlu0 %2523
        %v2525 = vsub.f32 %v2511, %v2521
        %v2526 = vsub.f32 %v2516, %v2524
        %v2527 = vmul.f32 %v2525, 1.442695
        %v2528 = vpow.pop %v2527
        %v2529 = vmul.f32 %v2526, 1.442695
        %v2530 = vpow.pop %v2529
        %v2531 = vsel %vm812, %v2528, 0.0
        %2532 = vadd.xlane.f32.xlu0 %v2531
        %v2533 = vpop.xlane.xlu0 %2532
        %v2534 = vsel %vm812, %v2530, 0.0
        %2535 = vadd.xlane.f32.xlu0 %v2534
        %v2536 = vpop.xlane.xlu0 %2535
        %v2537 = vrcp.pop %v2533
        %v2538 = vmul.f32 1.0, %v2537
        %v2539 = vrcp.pop %v2536
        %v2540 = vmul.f32 1.0, %v2539
        %2541 = vrot.lane.b32.xlu0 %v699, 80
        %v2542 = vpop.permute.xlu0 %2541
        %2543 = vrot.lane.b32.xlu0 %v704, 80
        %v2544 = vpop.permute.xlu0 %2543
        %v2548 = vsel %vm812, %v2528, 0
        %v2551 = vsel %vm812, %v2530, 0
        %2553 = vmatprep.subr.mxu0 0.0
        %2554 = vmatpush1.msra.mxu0 0.0
        %2555 = vmatprep.subr.mxu0 0.0
        %2556 = vmatpush1.msra.mxu0 0.0
        %2557 = vmatprep.subr.mxu0 0.0
        %2558 = vmatpush1.msra.mxu0 0.0
        %2559 = vmatprep.subr.mxu0 0.0
        %2560 = vmatpush1.msra.mxu0 0.0
        %2561 = vmatprep.subr.mxu0 0.0
        %2562 = vmatpush1.msra.mxu0 0.0
        %2563 = vmatprep.subr.mxu0 0.0
        %2564 = vmatpush1.msra.mxu0 0.0
        %2565 = vmatprep.subr.mxu0 0.0
        %2566 = vmatpush1.msra.mxu0 0.0
        %2567 = vmatprep.subr.mxu0 0.0
        %2568 = vmatpush1.msra.mxu0 0.0
        %2569 = vmatprep.subr.mxu0 0.0
        %2570 = vmatpush1.msra.mxu0 0.0
        %2571 = vmatprep.subr.mxu0 0.0
        %2572 = vmatpush1.msra.mxu0 0.0
        %2573 = vmatprep.subr.mxu0 0.0
        %2574 = vmatpush1.msra.mxu0 0.0
        %2575 = vmatprep.subr.mxu0 0.0
        %2576 = vmatpush1.msra.mxu0 0.0
        %2577 = vmatprep.subr.mxu0 0.0
        %2578 = vmatpush1.msra.mxu0 0.0
        %2579 = vmatprep.subr.mxu0 0.0
        %2580 = vmatpush1.msra.mxu0 0.0
        %2581 = vmatprep.subr.mxu0 0.0
        %2582 = vmatpush1.msra.mxu0 %v2544
        %2583 = vmatprep.subr.mxu0 0.0
        %2584 = vmatpush1.msra.mxu0 %v2542
        %2585 = vmatprep.subr.mxu0 0.0
        %2586 = vmatpush2.msra.mxu0 0.0
        %2587 = vmatprep.subr.mxu0 0.0
        %2588 = vmatpush2.msra.mxu0 0.0
        %2589 = vmatprep.subr.mxu0 0.0
        %2590 = vmatpush2.msra.mxu0 0.0
        %2591 = vmatprep.subr.mxu0 0.0
        %2592 = vmatpush2.msra.mxu0 0.0
        %2593 = vmatprep.subr.mxu0 0.0
        %2594 = vmatpush2.msra.mxu0 0.0
        %2595 = vmatprep.subr.mxu0 0.0
        %2596 = vmatpush2.msra.mxu0 0.0
        %2597 = vmatprep.subr.mxu0 0.0
        %2598 = vmatpush2.msra.mxu0 0.0
        %2599 = vmatprep.subr.mxu0 0.0
        %2600 = vmatpush2.msra.mxu0 0.0
        %2601 = vmatprep.subr.mxu0 0.0
        %2602 = vmatpush2.msra.mxu0 0.0
        %2603 = vmatprep.subr.mxu0 0.0
        %2604 = vmatpush2.msra.mxu0 0.0
        %2605 = vmatprep.subr.mxu0 0.0
        %2606 = vmatpush2.msra.mxu0 0.0
        %2607 = vmatprep.subr.mxu0 0.0
        %2608 = vmatpush2.msra.mxu0 0.0
        %2609 = vmatprep.subr.mxu0 0.0
        %2610 = vmatpush2.msra.mxu0 0.0
        %2611 = vmatprep.subr.mxu0 0.0
        %2612 = vmatpush2.msra.mxu0 0.0
        %2613 = vmatprep.subr.mxu0 0.0
        %2614 = vmatpush2.msra.mxu0 0.0
        %2615 = vmatprep.subr.mxu0 0.0
        %2616 = vmatpush2.msra.mxu0 0.0
        %2617 = vmatprep.mubr.f32.mxu0 0.0
        %2618 = vmatmul.mubr.f32.gmra.mxu0 %v2548
        %v2619 = vpop.f32.mrf.mxu0
        %v2620 = vadd.f32 0.0, %v2619
        %v2621 = vpop.f32.mrf.mxu0
        %2622 = vmatprep.mubr.f32.mxu0 0.0
        %2623 = vmatmul.mubr.f32.gmra.mxu0 %v2551
        %v2624 = vpop.f32.mrf.mxu0
        %v2625 = vadd.f32 0.0, %v2624
        %v2626 = vpop.f32.mrf.mxu0
        %2627 = vdwg.mxu0
        %v2628 = vmul.f32 %v2620, %v2538
        %v2629 = vmul.f32 %v2625, %v2540
        %v2631 = vsel %vm724, %v2628, 0
        %v2634 = vsel %vm724, %v2629, 0
        %2636 = vmatprep.subr.mxu0 0.0
        %2637 = vmatpush1.msra.mxu0 0.0
        %2638 = vmatprep.subr.mxu0 0.0
        %2639 = vmatpush1.msra.mxu0 0.0
        %2640 = vmatprep.subr.mxu0 0.0
        %2641 = vmatpush1.msra.mxu0 0.0
        %2642 = vmatprep.subr.mxu0 0.0
        %2643 = vmatpush1.msra.mxu0 0.0
        %2644 = vmatprep.subr.mxu0 0.0
        %2645 = vmatpush1.msra.mxu0 0.0
        %2646 = vmatprep.subr.mxu0 0.0
        %2647 = vmatpush1.msra.mxu0 0.0
        %2648 = vmatprep.subr.mxu0 0.0
        %2649 = vmatpush1.msra.mxu0 0.0
        %2650 = vmatprep.subr.mxu0 0.0
        %2651 = vmatpush1.msra.mxu0 0.0
        %2652 = vmatprep.subr.mxu0 0.0
        %2653 = vmatpush1.msra.mxu0 0.0
        %2654 = vmatprep.subr.mxu0 0.0
        %2655 = vmatpush1.msra.mxu0 0.0
        %2656 = vmatprep.subr.mxu0 0.0
        %2657 = vmatpush1.msra.mxu0 0.0
        %2658 = vmatprep.subr.mxu0 0.0
        %2659 = vmatpush1.msra.mxu0 0.0
        %2660 = vmatprep.subr.mxu0 0.0
        %2661 = vmatpush1.msra.mxu0 0.0
        %2662 = vmatprep.subr.mxu0 0.0
        %2663 = vmatpush1.msra.mxu0 0.0
        %2664 = vmatprep.subr.mxu0 0.0
        %2665 = vmatpush1.msra.mxu0 0.0
        %2666 = vmatprep.subr.mxu0 0.0
        %2667 = vmatpush1.msra.mxu0 %v713
        %2668 = vmatprep.subr.mxu0 0.0
        %2669 = vmatpush2.msra.mxu0 0.0
        %2670 = vmatprep.subr.mxu0 0.0
        %2671 = vmatpush2.msra.mxu0 0.0
        %2672 = vmatprep.subr.mxu0 0.0
        %2673 = vmatpush2.msra.mxu0 0.0
        %2674 = vmatprep.subr.mxu0 0.0
        %2675 = vmatpush2.msra.mxu0 0.0
        %2676 = vmatprep.subr.mxu0 0.0
        %2677 = vmatpush2.msra.mxu0 0.0
        %2678 = vmatprep.subr.mxu0 0.0
        %2679 = vmatpush2.msra.mxu0 0.0
        %2680 = vmatprep.subr.mxu0 0.0
        %2681 = vmatpush2.msra.mxu0 0.0
        %2682 = vmatprep.subr.mxu0 0.0
        %2683 = vmatpush2.msra.mxu0 0.0
        %2684 = vmatprep.subr.mxu0 0.0
        %2685 = vmatpush2.msra.mxu0 0.0
        %2686 = vmatprep.subr.mxu0 0.0
        %2687 = vmatpush2.msra.mxu0 0.0
        %2688 = vmatprep.subr.mxu0 0.0
        %2689 = vmatpush2.msra.mxu0 0.0
        %2690 = vmatprep.subr.mxu0 0.0
        %2691 = vmatpush2.msra.mxu0 0.0
        %2692 = vmatprep.subr.mxu0 0.0
        %2693 = vmatpush2.msra.mxu0 0.0
        %2694 = vmatprep.subr.mxu0 0.0
        %2695 = vmatpush2.msra.mxu0 0.0
        %2696 = vmatprep.subr.mxu0 0.0
        %2697 = vmatpush2.msra.mxu0 0.0
        %2698 = vmatprep.subr.mxu0 0.0
        %2699 = vmatpush2.msra.mxu0 0.0
        %2700 = vmatprep.mubr.f32.mxu0 0.0
        %2701 = vmatmul.mubr.f32.gmra.mxu0 %v2631
        %v2702 = vpop.f32.mrf.mxu0
        %v2703 = vadd.f32 0.0, %v2702
        %v2704 = vpop.f32.mrf.mxu0
        %2705 = vmatprep.mubr.f32.mxu0 0.0
        %2706 = vmatmul.mubr.f32.gmra.mxu0 %v2634
        %v2707 = vpop.f32.mrf.mxu0
        %v2708 = vadd.f32 0.0, %v2707
        %v2709 = vpop.f32.mrf.mxu0
        %2710 = vdwg.mxu0
        %v2711 = vadd.f32 %v2426, %v2703
        %v2712 = vadd.f32 %v2427, %v2708
        %2713 = vrot.lane.b32.xlu0 %v622, 72
        %v2714 = vpop.permute.xlu0 %2713
        %2715 = vrot.lane.b32.xlu0 %v628, 72
        %v2716 = vpop.permute.xlu0 %2715
        %2717 = vrot.lane.b32.xlu0 %v624, 72
        %v2718 = vpop.permute.xlu0 %2717
        %2719 = vrot.lane.b32.xlu0 %v630, 72
        %v2720 = vpop.permute.xlu0 %2719
        %v2721 = vsel %vm724, %v2714, 0
        %v2723 = vsel %vm724, %v2716, 0
        %v2725 = vsel %vm724, %v2718, 0
        %v2727 = vsel %vm724, %v2720, 0
        %2729 = vmatprep.subr.mxu0 0.0
        %2730 = vmatpush1.xpose.msra.mxu0 0.0
        %2731 = vmatprep.subr.mxu0 0.0
        %2732 = vmatpush1.xpose.msra.mxu0 0.0
        %2733 = vmatprep.subr.mxu0 0.0
        %2734 = vmatpush1.xpose.msra.mxu0 0.0
        %2735 = vmatprep.subr.mxu0 0.0
        %2736 = vmatpush1.xpose.msra.mxu0 0.0
        %2737 = vmatprep.subr.mxu0 0.0
        %2738 = vmatpush1.xpose.msra.mxu0 0.0
        %2739 = vmatprep.subr.mxu0 0.0
        %2740 = vmatpush1.xpose.msra.mxu0 0.0
        %2741 = vmatprep.subr.mxu0 0.0
        %2742 = vmatpush1.xpose.msra.mxu0 0.0
        %2743 = vmatprep.subr.mxu0 0.0
        %2744 = vmatpush1.xpose.msra.mxu0 0.0
        %2745 = vmatprep.subr.mxu0 0.0
        %2746 = vmatpush1.xpose.msra.mxu0 0.0
        %2747 = vmatprep.subr.mxu0 0.0
        %2748 = vmatpush1.xpose.msra.mxu0 0.0
        %2749 = vmatprep.subr.mxu0 0.0
        %2750 = vmatpush1.xpose.msra.mxu0 0.0
        %2751 = vmatprep.subr.mxu0 0.0
        %2752 = vmatpush1.xpose.msra.mxu0 0.0
        %2753 = vmatprep.subr.mxu0 0.0
        %2754 = vmatpush1.xpose.msra.mxu0 0.0
        %2755 = vmatprep.subr.mxu0 0.0
        %2756 = vmatpush1.xpose.msra.mxu0 0.0
        %2757 = vmatprep.subr.mxu0 0.0
        %2758 = vmatpush1.xpose.msra.mxu0 %v2727
        %2759 = vmatprep.subr.mxu0 0.0
        %2760 = vmatpush1.xpose.msra.mxu0 %v2725
        %2761 = vmatprep.subr.mxu0 0.0
        %2762 = vmatpush2.xpose.msra.mxu0 0.0
        %2763 = vmatprep.subr.mxu0 0.0
        %2764 = vmatpush2.xpose.msra.mxu0 0.0
        %2765 = vmatprep.subr.mxu0 0.0
        %2766 = vmatpush2.xpose.msra.mxu0 0.0
        %2767 = vmatprep.subr.mxu0 0.0
        %2768 = vmatpush2.xpose.msra.mxu0 0.0
        %2769 = vmatprep.subr.mxu0 0.0
        %2770 = vmatpush2.xpose.msra.mxu0 0.0
        %2771 = vmatprep.subr.mxu0 0.0
        %2772 = vmatpush2.xpose.msra.mxu0 0.0
        %2773 = vmatprep.subr.mxu0 0.0
        %2774 = vmatpush2.xpose.msra.mxu0 0.0
        %2775 = vmatprep.subr.mxu0 0.0
        %2776 = vmatpush2.xpose.msra.mxu0 0.0
        %2777 = vmatprep.subr.mxu0 0.0
        %2778 = vmatpush2.xpose.msra.mxu0 0.0
        %2779 = vmatprep.subr.mxu0 0.0
        %2780 = vmatpush2.xpose.msra.mxu0 0.0
        %2781 = vmatprep.subr.mxu0 0.0
        %2782 = vmatpush2.xpose.msra.mxu0 0.0
        %2783 = vmatprep.subr.mxu0 0.0
        %2784 = vmatpush2.xpose.msra.mxu0 0.0
        %2785 = vmatprep.subr.mxu0 0.0
        %2786 = vmatpush2.xpose.msra.mxu0 0.0
        %2787 = vmatprep.subr.mxu0 0.0
        %2788 = vmatpush2.xpose.msra.mxu0 0.0
        %2789 = vmatprep.subr.mxu0 0.0
        %2790 = vmatpush2.xpose.msra.mxu0 0.0
        %2791 = vmatprep.subr.mxu0 0.0
        %2792 = vmatpush2.xpose.msra.mxu0 0.0
        %2793 = vmatprep.mubr.f32.mxu0 0.0
        %2794 = vmatmul.mubr.f32.gmra.mxu0 %v2721
        %v2795 = vpop.f32.mrf.mxu0
        %v2796 = vadd.f32 0.0, %v2795
        %v2797 = vpop.f32.mrf.mxu0
        %2798 = vmatprep.mubr.f32.mxu0 0.0
        %2799 = vmatmul.mubr.f32.gmra.mxu0 %v2723
        %v2800 = vpop.f32.mrf.mxu0
        %v2801 = vadd.f32 0.0, %v2800
        %v2802 = vpop.f32.mrf.mxu0
        %2803 = vdwg.mxu0
        %v2804 = vsel %vm812, %v2796, -inf
        %2805 = vmax.xlane.f32.xlu0 %v2804
        %v2806 = vpop.xlane.xlu0 %2805
        %v2807 = vsel %vm812, %v2801, -inf
        %2808 = vmax.xlane.f32.xlu0 %v2807
        %v2809 = vpop.xlane.xlu0 %2808
        %v2810 = vsub.f32 %v2796, %v2806
        %v2811 = vsub.f32 %v2801, %v2809
        %v2812 = vmul.f32 %v2810, 1.442695
        %v2813 = vpow.pop %v2812
        %v2814 = vmul.f32 %v2811, 1.442695
        %v2815 = vpow.pop %v2814
        %v2816 = vsel %vm812, %v2813, 0.0
        %2817 = vadd.xlane.f32.xlu0 %v2816
        %v2818 = vpop.xlane.xlu0 %2817
        %v2819 = vsel %vm812, %v2815, 0.0
        %2820 = vadd.xlane.f32.xlu0 %v2819
        %v2821 = vpop.xlane.xlu0 %2820
        %v2822 = vrcp.pop %v2818
        %v2823 = vmul.f32 1.0, %v2822
        %v2824 = vrcp.pop %v2821
        %v2825 = vmul.f32 1.0, %v2824
        %2826 = vrot.lane.b32.xlu0 %v699, 72
        %v2827 = vpop.permute.xlu0 %2826
        %2828 = vrot.lane.b32.xlu0 %v704, 72
        %v2829 = vpop.permute.xlu0 %2828
        %v2833 = vsel %vm812, %v2813, 0
        %v2836 = vsel %vm812, %v2815, 0
        %2838 = vmatprep.subr.mxu0 0.0
        %2839 = vmatpush1.msra.mxu0 0.0
        %2840 = vmatprep.subr.mxu0 0.0
        %2841 = vmatpush1.msra.mxu0 0.0
        %2842 = vmatprep.subr.mxu0 0.0
        %2843 = vmatpush1.msra.mxu0 0.0
        %2844 = vmatprep.subr.mxu0 0.0
        %2845 = vmatpush1.msra.mxu0 0.0
        %2846 = vmatprep.subr.mxu0 0.0
        %2847 = vmatpush1.msra.mxu0 0.0
        %2848 = vmatprep.subr.mxu0 0.0
        %2849 = vmatpush1.msra.mxu0 0.0
        %2850 = vmatprep.subr.mxu0 0.0
        %2851 = vmatpush1.msra.mxu0 0.0
        %2852 = vmatprep.subr.mxu0 0.0
        %2853 = vmatpush1.msra.mxu0 0.0
        %2854 = vmatprep.subr.mxu0 0.0
        %2855 = vmatpush1.msra.mxu0 0.0
        %2856 = vmatprep.subr.mxu0 0.0
        %2857 = vmatpush1.msra.mxu0 0.0
        %2858 = vmatprep.subr.mxu0 0.0
        %2859 = vmatpush1.msra.mxu0 0.0
        %2860 = vmatprep.subr.mxu0 0.0
        %2861 = vmatpush1.msra.mxu0 0.0
        %2862 = vmatprep.subr.mxu0 0.0
        %2863 = vmatpush1.msra.mxu0 0.0
        %2864 = vmatprep.subr.mxu0 0.0
        %2865 = vmatpush1.msra.mxu0 0.0
        %2866 = vmatprep.subr.mxu0 0.0
        %2867 = vmatpush1.msra.mxu0 %v2829
        %2868 = vmatprep.subr.mxu0 0.0
        %2869 = vmatpush1.msra.mxu0 %v2827
        %2870 = vmatprep.subr.mxu0 0.0
        %2871 = vmatpush2.msra.mxu0 0.0
        %2872 = vmatprep.subr.mxu0 0.0
        %2873 = vmatpush2.msra.mxu0 0.0
        %2874 = vmatprep.subr.mxu0 0.0
        %2875 = vmatpush2.msra.mxu0 0.0
        %2876 = vmatprep.subr.mxu0 0.0
        %2877 = vmatpush2.msra.mxu0 0.0
        %2878 = vmatprep.subr.mxu0 0.0
        %2879 = vmatpush2.msra.mxu0 0.0
        %2880 = vmatprep.subr.mxu0 0.0
        %2881 = vmatpush2.msra.mxu0 0.0
        %2882 = vmatprep.subr.mxu0 0.0
        %2883 = vmatpush2.msra.mxu0 0.0
        %2884 = vmatprep.subr.mxu0 0.0
        %2885 = vmatpush2.msra.mxu0 0.0
        %2886 = vmatprep.subr.mxu0 0.0
        %2887 = vmatpush2.msra.mxu0 0.0
        %2888 = vmatprep.subr.mxu0 0.0
        %2889 = vmatpush2.msra.mxu0 0.0
        %2890 = vmatprep.subr.mxu0 0.0
        %2891 = vmatpush2.msra.mxu0 0.0
        %2892 = vmatprep.subr.mxu0 0.0
        %2893 = vmatpush2.msra.mxu0 0.0
        %2894 = vmatprep.subr.mxu0 0.0
        %2895 = vmatpush2.msra.mxu0 0.0
        %2896 = vmatprep.subr.mxu0 0.0
        %2897 = vmatpush2.msra.mxu0 0.0
        %2898 = vmatprep.subr.mxu0 0.0
        %2899 = vmatpush2.msra.mxu0 0.0
        %2900 = vmatprep.subr.mxu0 0.0
        %2901 = vmatpush2.msra.mxu0 0.0
        %2902 = vmatprep.mubr.f32.mxu0 0.0
        %2903 = vmatmul.mubr.f32.gmra.mxu0 %v2833
        %v2904 = vpop.f32.mrf.mxu0
        %v2905 = vadd.f32 0.0, %v2904
        %v2906 = vpop.f32.mrf.mxu0
        %2907 = vmatprep.mubr.f32.mxu0 0.0
        %2908 = vmatmul.mubr.f32.gmra.mxu0 %v2836
        %v2909 = vpop.f32.mrf.mxu0
        %v2910 = vadd.f32 0.0, %v2909
        %v2911 = vpop.f32.mrf.mxu0
        %2912 = vdwg.mxu0
        %v2913 = vmul.f32 %v2905, %v2823
        %v2914 = vmul.f32 %v2910, %v2825
        %v2916 = vsel %vm724, %v2913, 0
        %v2919 = vsel %vm724, %v2914, 0
        %2921 = vmatprep.subr.mxu0 0.0
        %2922 = vmatpush1.msra.mxu0 0.0
        %2923 = vmatprep.subr.mxu0 0.0
        %2924 = vmatpush1.msra.mxu0 0.0
        %2925 = vmatprep.subr.mxu0 0.0
        %2926 = vmatpush1.msra.mxu0 0.0
        %2927 = vmatprep.subr.mxu0 0.0
        %2928 = vmatpush1.msra.mxu0 0.0
        %2929 = vmatprep.subr.mxu0 0.0
        %2930 = vmatpush1.msra.mxu0 0.0
        %2931 = vmatprep.subr.mxu0 0.0
        %2932 = vmatpush1.msra.mxu0 0.0
        %2933 = vmatprep.subr.mxu0 0.0
        %2934 = vmatpush1.msra.mxu0 0.0
        %2935 = vmatprep.subr.mxu0 0.0
        %2936 = vmatpush1.msra.mxu0 0.0
        %2937 = vmatprep.subr.mxu0 0.0
        %2938 = vmatpush1.msra.mxu0 0.0
        %2939 = vmatprep.subr.mxu0 0.0
        %2940 = vmatpush1.msra.mxu0 0.0
        %2941 = vmatprep.subr.mxu0 0.0
        %2942 = vmatpush1.msra.mxu0 0.0
        %2943 = vmatprep.subr.mxu0 0.0
        %2944 = vmatpush1.msra.mxu0 0.0
        %2945 = vmatprep.subr.mxu0 0.0
        %2946 = vmatpush1.msra.mxu0 0.0
        %2947 = vmatprep.subr.mxu0 0.0
        %2948 = vmatpush1.msra.mxu0 0.0
        %2949 = vmatprep.subr.mxu0 0.0
        %2950 = vmatpush1.msra.mxu0 0.0
        %2951 = vmatprep.subr.mxu0 0.0
        %2952 = vmatpush1.msra.mxu0 %v714
        %2953 = vmatprep.subr.mxu0 0.0
        %2954 = vmatpush2.msra.mxu0 0.0
        %2955 = vmatprep.subr.mxu0 0.0
        %2956 = vmatpush2.msra.mxu0 0.0
        %2957 = vmatprep.subr.mxu0 0.0
        %2958 = vmatpush2.msra.mxu0 0.0
        %2959 = vmatprep.subr.mxu0 0.0
        %2960 = vmatpush2.msra.mxu0 0.0
        %2961 = vmatprep.subr.mxu0 0.0
        %2962 = vmatpush2.msra.mxu0 0.0
        %2963 = vmatprep.subr.mxu0 0.0
        %2964 = vmatpush2.msra.mxu0 0.0
        %2965 = vmatprep.subr.mxu0 0.0
        %2966 = vmatpush2.msra.mxu0 0.0
        %2967 = vmatprep.subr.mxu0 0.0
        %2968 = vmatpush2.msra.mxu0 0.0
        %2969 = vmatprep.subr.mxu0 0.0
        %2970 = vmatpush2.msra.mxu0 0.0
        %2971 = vmatprep.subr.mxu0 0.0
        %2972 = vmatpush2.msra.mxu0 0.0
        %2973 = vmatprep.subr.mxu0 0.0
        %2974 = vmatpush2.msra.mxu0 0.0
        %2975 = vmatprep.subr.mxu0 0.0
        %2976 = vmatpush2.msra.mxu0 0.0
        %2977 = vmatprep.subr.mxu0 0.0
        %2978 = vmatpush2.msra.mxu0 0.0
        %2979 = vmatprep.subr.mxu0 0.0
        %2980 = vmatpush2.msra.mxu0 0.0
        %2981 = vmatprep.subr.mxu0 0.0
        %2982 = vmatpush2.msra.mxu0 0.0
        %2983 = vmatprep.subr.mxu0 0.0
        %2984 = vmatpush2.msra.mxu0 0.0
        %2985 = vmatprep.mubr.f32.mxu0 0.0
        %2986 = vmatmul.mubr.f32.gmra.mxu0 %v2916
        %v2987 = vpop.f32.mrf.mxu0
        %v2988 = vadd.f32 0.0, %v2987
        %v2989 = vpop.f32.mrf.mxu0
        %2990 = vmatprep.mubr.f32.mxu0 0.0
        %2991 = vmatmul.mubr.f32.gmra.mxu0 %v2919
        %v2992 = vpop.f32.mrf.mxu0
        %v2993 = vadd.f32 0.0, %v2992
        %v2994 = vpop.f32.mrf.mxu0
        %2995 = vdwg.mxu0
        %v2996 = vadd.f32 %v2711, %v2988
        %v2997 = vadd.f32 %v2712, %v2993
        %v2998 = vld [vmem:[%s5] sm:$0x1]
        %v2999 = vld [vmem:[%s6] sm:$0x1]
        %v3000 = vsel %vm548, %v2996, 0.0
        %3001 = vadd.xlane.f32.xlu0 %v3000
        %v3002 = vpop.xlane.xlu0 %3001
        %v3003 = vsel %vm548, %v2997, 0.0
        %3004 = vadd.xlane.f32.xlu0 %v3003
        %v3005 = vpop.xlane.xlu0 %3004
        %v3006 = vrcp.pop 64.0
        %v3007 = vmul.f32 %v3002, %v3006
        %v3008 = vmul.f32 %v3005, %v3006
        %v3009 = vsub.f32 %v2996, %v3007
        %v3010 = vsub.f32 %v2997, %v3008
        %v3011 = vmul.f32 %v3009, %v3009
        %v3012 = vmul.f32 %v3010, %v3010
        %v3013 = vsel %vm548, %v3011, 0.0
        %3014 = vadd.xlane.f32.xlu0 %v3013
        %v3015 = vpop.xlane.xlu0 %3014
        %v3016 = vsel %vm548, %v3012, 0.0
        %3017 = vadd.xlane.f32.xlu0 %v3016
        %v3018 = vpop.xlane.xlu0 %3017
        %v3019 = vmul.f32 %v3015, %v3006
        %v3020 = vmul.f32 %v3018, %v3006
        %v3021 = vadd.f32 %v3019, 1e-05
        %v3022 = vadd.f32 %v3020, 1e-05
        %v3023 = vrsqrt.pop %v3021
        %v3024 = vrsqrt.pop %v3022
        %v3025 = vmul.f32 %v3009, %v3023
        %v3026 = vmul.f32 %v3010, %v3024
        %v3028 = vlaneseq
        %v3029 = vshrl.u32 %v3028, 7
        %v3030 = vsub.s32 0, %v3029
        %v3031 = vrot.slane %v2998, %v3030
        %v3033 = vmul.f32 %v3025, %v3031
        %v3034 = vmul.f32 %v3026, %v3031
        %v3036 = vlaneseq
        %v3037 = vshrl.u32 %v3036, 7
        %v3038 = vsub.s32 0, %v3037
        %v3039 = vrot.slane %v2999, %v3038
        %v3041 = vadd.f32 %v3033, %v3039
        %v3042 = vadd.f32 %v3034, %v3039
        %v3043 = vld [vmem:[#allocation8] sm:$0xff]
        %v3044 = vld [vmem:[#allocation8 + $0x8] sm:$0xff]
        %v3045 = vld [vmem:[#allocation8 + $0x10] sm:$0xff]
        %v3046 = vld [vmem:[#allocation8 + $0x18] sm:$0xff]
        %v3047 = vld [vmem:[#allocation8 + $0x20] sm:$0xff]
        %v3048 = vld [vmem:[#allocation8 + $0x28] sm:$0xff]
        %v3049 = vld [vmem:[#allocation8 + $0x30] sm:$0xff]
        %v3050 = vld [vmem:[#allocation8 + $0x38] sm:$0xff]
        %v3051 = vld [vmem:[%s8] sm:$0x1]
        %v3053 = vlaneseq
        %v3054 = vshrl.u32 %v3053, 7
        %v3055 = vsub.s32 0, %v3054
        %v3056 = vrot.slane %v3051, %v3055
        %v3059 = vsel %vm548, %v3041, 0
        %v3062 = vsel %vm548, %v3042, 0
        %3064 = vmatprep.subr.mxu0 0.0
        %3065 = vmatpush1.msra.mxu0 0.0
        %3066 = vmatprep.subr.mxu0 0.0
        %3067 = vmatpush1.msra.mxu0 0.0
        %3068 = vmatprep.subr.mxu0 0.0
        %3069 = vmatpush1.msra.mxu0 0.0
        %3070 = vmatprep.subr.mxu0 0.0
        %3071 = vmatpush1.msra.mxu0 0.0
        %3072 = vmatprep.subr.mxu0 0.0
        %3073 = vmatpush1.msra.mxu0 0.0
        %3074 = vmatprep.subr.mxu0 0.0
        %3075 = vmatpush1.msra.mxu0 0.0
        %3076 = vmatprep.subr.mxu0 0.0
        %3077 = vmatpush1.msra.mxu0 0.0
        %3078 = vmatprep.subr.mxu0 0.0
        %3079 = vmatpush1.msra.mxu0 0.0
        %3080 = vmatprep.subr.mxu0 0.0
        %3081 = vmatpush1.msra.mxu0 %v3050
        %3082 = vmatprep.subr.mxu0 0.0
        %3083 = vmatpush1.msra.mxu0 %v3049
        %3084 = vmatprep.subr.mxu0 0.0
        %3085 = vmatpush1.msra.mxu0 %v3048
        %3086 = vmatprep.subr.mxu0 0.0
        %3087 = vmatpush1.msra.mxu0 %v3047
        %3088 = vmatprep.subr.mxu0 0.0
        %3089 = vmatpush1.msra.mxu0 %v3046
        %3090 = vmatprep.subr.mxu0 0.0
        %3091 = vmatpush1.msra.mxu0 %v3045
        %3092 = vmatprep.subr.mxu0 0.0
        %3093 = vmatpush1.msra.mxu0 %v3044
        %3094 = vmatprep.subr.mxu0 0.0
        %3095 = vmatpush1.msra.mxu0 %v3043
        %3096 = vmatprep.subr.mxu0 0.0
        %3097 = vmatpush2.msra.mxu0 0.0
        %3098 = vmatprep.subr.mxu0 0.0
        %3099 = vmatpush2.msra.mxu0 0.0
        %3100 = vmatprep.subr.mxu0 0.0
        %3101 = vmatpush2.msra.mxu0 0.0
        %3102 = vmatprep.subr.mxu0 0.0
        %3103 = vmatpush2.msra.mxu0 0.0
        %3104 = vmatprep.subr.mxu0 0.0
        %3105 = vmatpush2.msra.mxu0 0.0
        %3106 = vmatprep.subr.mxu0 0.0
        %3107 = vmatpush2.msra.mxu0 0.0
        %3108 = vmatprep.subr.mxu0 0.0
        %3109 = vmatpush2.msra.mxu0 0.0
        %3110 = vmatprep.subr.mxu0 0.0
        %3111 = vmatpush2.msra.mxu0 0.0
        %3112 = vmatprep.subr.mxu0 0.0
        %3113 = vmatpush2.msra.mxu0 0.0
        %3114 = vmatprep.subr.mxu0 0.0
        %3115 = vmatpush2.msra.mxu0 0.0
        %3116 = vmatprep.subr.mxu0 0.0
        %3117 = vmatpush2.msra.mxu0 0.0
        %3118 = vmatprep.subr.mxu0 0.0
        %3119 = vmatpush2.msra.mxu0 0.0
        %3120 = vmatprep.subr.mxu0 0.0
        %3121 = vmatpush2.msra.mxu0 0.0
        %3122 = vmatprep.subr.mxu0 0.0
        %3123 = vmatpush2.msra.mxu0 0.0
        %3124 = vmatprep.subr.mxu0 0.0
        %3125 = vmatpush2.msra.mxu0 0.0
        %3126 = vmatprep.subr.mxu0 0.0
        %3127 = vmatpush2.msra.mxu0 0.0
        %3128 = vmatprep.mubr.f32.mxu0 0.0
        %3129 = vmatmul.mubr.f32.gmra.mxu0 %v3059
        %v3130 = vpop.f32.mrf.mxu0
        %v3131 = vadd.f32 %v3056, %v3130
        %v3132 = vpop.f32.mrf.mxu0
        %3133 = vmatprep.mubr.f32.mxu0 0.0
        %3134 = vmatmul.mubr.f32.gmra.mxu0 %v3062
        %v3135 = vpop.f32.mrf.mxu0
        %v3136 = vadd.f32 %v3056, %v3135
        %v3137 = vpop.f32.mrf.mxu0
        %3138 = vdwg.mxu0
        %v3139 = vmax.f32 %v3131, 0.0
        %v3140 = vmax.f32 %v3136, 0.0
        %v3141 = vld [vmem:[%s9] sm:$0xff]
        %v3142 = vld [vmem:[%s9 + $0x8] sm:$0xff]
        %v3143 = vld [vmem:[%s9 + $0x10] sm:$0xff]
        %v3144 = vld [vmem:[%s9 + $0x18] sm:$0xff]
        %v3145 = vld [vmem:[%s9 + $0x20] sm:$0xff]
        %v3146 = vld [vmem:[%s9 + $0x28] sm:$0xff]
        %v3147 = vld [vmem:[%s9 + $0x30] sm:$0xff]
        %v3148 = vld [vmem:[%s9 + $0x38] sm:$0xff]
        %v3149 = vld [vmem:[%s9 + $0x40] sm:$0xff]
        %v3150 = vld [vmem:[%s9 + $0x48] sm:$0xff]
        %v3151 = vld [vmem:[%s9 + $0x50] sm:$0xff]
        %v3152 = vld [vmem:[%s9 + $0x58] sm:$0xff]
        %v3153 = vld [vmem:[%s9 + $0x60] sm:$0xff]
        %v3154 = vld [vmem:[%s9 + $0x68] sm:$0xff]
        %v3155 = vld [vmem:[%s9 + $0x70] sm:$0xff]
        %v3156 = vld [vmem:[%s9 + $0x78] sm:$0xff]
        %v3157 = vld [vmem:[%s10] sm:$0x1]
        %v3159 = vlaneseq
        %v3160 = vshrl.u32 %v3159, 7
        %v3161 = vsub.s32 0, %v3160
        %v3162 = vrot.slane %v3157, %v3161
        %3164 = vmatprep.subr.mxu0 0.0
        %3165 = vmatpush1.msra.mxu0 %v3156
        %3166 = vmatprep.subr.mxu0 0.0
        %3167 = vmatpush1.msra.mxu0 %v3155
        %3168 = vmatprep.subr.mxu0 0.0
        %3169 = vmatpush1.msra.mxu0 %v3154
        %3170 = vmatprep.subr.mxu0 0.0
        %3171 = vmatpush1.msra.mxu0 %v3153
        %3172 = vmatprep.subr.mxu0 0.0
        %3173 = vmatpush1.msra.mxu0 %v3152
        %3174 = vmatprep.subr.mxu0 0.0
        %3175 = vmatpush1.msra.mxu0 %v3151
        %3176 = vmatprep.subr.mxu0 0.0
        %3177 = vmatpush1.msra.mxu0 %v3150
        %3178 = vmatprep.subr.mxu0 0.0
        %3179 = vmatpush1.msra.mxu0 %v3149
        %3180 = vmatprep.subr.mxu0 0.0
        %3181 = vmatpush1.msra.mxu0 %v3148
        %3182 = vmatprep.subr.mxu0 0.0
        %3183 = vmatpush1.msra.mxu0 %v3147
        %3184 = vmatprep.subr.mxu0 0.0
        %3185 = vmatpush1.msra.mxu0 %v3146
        %3186 = vmatprep.subr.mxu0 0.0
        %3187 = vmatpush1.msra.mxu0 %v3145
        %3188 = vmatprep.subr.mxu0 0.0
        %3189 = vmatpush1.msra.mxu0 %v3144
        %3190 = vmatprep.subr.mxu0 0.0
        %3191 = vmatpush1.msra.mxu0 %v3143
        %3192 = vmatprep.subr.mxu0 0.0
        %3193 = vmatpush1.msra.mxu0 %v3142
        %3194 = vmatprep.subr.mxu0 0.0
        %3195 = vmatpush1.msra.mxu0 %v3141
        %3196 = vmatprep.subr.mxu0 0.0
        %3197 = vmatpush2.msra.mxu0 0.0
        %3198 = vmatprep.subr.mxu0 0.0
        %3199 = vmatpush2.msra.mxu0 0.0
        %3200 = vmatprep.subr.mxu0 0.0
        %3201 = vmatpush2.msra.mxu0 0.0
        %3202 = vmatprep.subr.mxu0 0.0
        %3203 = vmatpush2.msra.mxu0 0.0
        %3204 = vmatprep.subr.mxu0 0.0
        %3205 = vmatpush2.msra.mxu0 0.0
        %3206 = vmatprep.subr.mxu0 0.0
        %3207 = vmatpush2.msra.mxu0 0.0
        %3208 = vmatprep.subr.mxu0 0.0
        %3209 = vmatpush2.msra.mxu0 0.0
        %3210 = vmatprep.subr.mxu0 0.0
        %3211 = vmatpush2.msra.mxu0 0.0
        %3212 = vmatprep.subr.mxu0 0.0
        %3213 = vmatpush2.msra.mxu0 0.0
        %3214 = vmatprep.subr.mxu0 0.0
        %3215 = vmatpush2.msra.mxu0 0.0
        %3216 = vmatprep.subr.mxu0 0.0
        %3217 = vmatpush2.msra.mxu0 0.0
        %3218 = vmatprep.subr.mxu0 0.0
        %3219 = vmatpush2.msra.mxu0 0.0
        %3220 = vmatprep.subr.mxu0 0.0
        %3221 = vmatpush2.msra.mxu0 0.0
        %3222 = vmatprep.subr.mxu0 0.0
        %3223 = vmatpush2.msra.mxu0 0.0
        %3224 = vmatprep.subr.mxu0 0.0
        %3225 = vmatpush2.msra.mxu0 0.0
        %3226 = vmatprep.subr.mxu0 0.0
        %3227 = vmatpush2.msra.mxu0 0.0
        %3228 = vmatprep.mubr.f32.mxu0 0.0
        %3229 = vmatmul.mubr.f32.gmra.mxu0 %v3139
        %v3230 = vpop.f32.mrf.mxu0
        %v3231 = vadd.f32 %v3162, %v3230
        %v3232 = vpop.f32.mrf.mxu0
        %3233 = vmatprep.mubr.f32.mxu0 0.0
        %3234 = vmatmul.mubr.f32.gmra.mxu0 %v3140
        %v3235 = vpop.f32.mrf.mxu0
        %v3236 = vadd.f32 %v3162, %v3235
        %v3237 = vpop.f32.mrf.mxu0
        %3238 = vdwg.mxu0
        %v3239 = vadd.f32 %v3041, %v3231
        %v3240 = vadd.f32 %v3042, %v3236
        %v3241 = vld [vmem:[%s11] sm:$0x1]
        %v3242 = vld [vmem:[%s12] sm:$0x1]
        %v3243 = vsel %vm548, %v3239, 0.0
        %3244 = vadd.xlane.f32.xlu0 %v3243
        %v3245 = vpop.xlane.xlu0 %3244
        %v3246 = vsel %vm548, %v3240, 0.0
        %3247 = vadd.xlane.f32.xlu0 %v3246
        %v3248 = vpop.xlane.xlu0 %3247
        %v3249 = vmul.f32 %v3245, %v3006
        %v3250 = vmul.f32 %v3248, %v3006
        %v3251 = vsub.f32 %v3239, %v3249
        %v3252 = vsub.f32 %v3240, %v3250
        %v3253 = vmul.f32 %v3251, %v3251
        %v3254 = vmul.f32 %v3252, %v3252
        %v3255 = vsel %vm548, %v3253, 0.0
        %3256 = vadd.xlane.f32.xlu0 %v3255
        %v3257 = vpop.xlane.xlu0 %3256
        %v3258 = vsel %vm548, %v3254, 0.0
        %3259 = vadd.xlane.f32.xlu0 %v3258
        %v3260 = vpop.xlane.xlu0 %3259
        %v3261 = vmul.f32 %v3257, %v3006
        %v3262 = vmul.f32 %v3260, %v3006
        %v3263 = vadd.f32 %v3261, 1e-05
        %v3264 = vadd.f32 %v3262, 1e-05
        %v3265 = vrsqrt.pop %v3263
        %v3266 = vrsqrt.pop %v3264
        %v3267 = vmul.f32 %v3251, %v3265
        %v3268 = vmul.f32 %v3252, %v3266
        %v3270 = vlaneseq
        %v3271 = vshrl.u32 %v3270, 7
        %v3272 = vsub.s32 0, %v3271
        %v3273 = vrot.slane %v3241, %v3272
        %v3275 = vmul.f32 %v3267, %v3273
        %v3276 = vmul.f32 %v3268, %v3273
        %v3278 = vlaneseq
        %v3279 = vshrl.u32 %v3278, 7
        %v3280 = vsub.s32 0, %v3279
        %v3281 = vrot.slane %v3242, %v3280
        %v3283 = vadd.f32 %v3275, %v3281
        %v3284 = vadd.f32 %v3276, %v3281
        %s3285 = scalar_lea.vmem %s1, 192
        %v3286 = vld [vmem:[%s3285] sm:$0xff]
        %v3287 = vld [vmem:[%s3285 + $0x8] sm:$0xff]
        %v3288 = vld [vmem:[%s3285 + $0x10] sm:$0xff]
        %v3289 = vld [vmem:[%s3285 + $0x18] sm:$0xff]
        %v3290 = vld [vmem:[%s3285 + $0x20] sm:$0xff]
        %v3291 = vld [vmem:[%s3285 + $0x28] sm:$0xff]
        %v3292 = vld [vmem:[%s3285 + $0x30] sm:$0xff]
        %v3293 = vld [vmem:[%s3285 + $0x38] sm:$0xff]
        %v3294 = vld [vmem:[%s3285 + $0x40] sm:$0xff]
        %v3295 = vld [vmem:[%s3285 + $0x48] sm:$0xff]
        %v3296 = vld [vmem:[%s3285 + $0x50] sm:$0xff]
        %v3297 = vld [vmem:[%s3285 + $0x58] sm:$0xff]
        %v3298 = vld [vmem:[%s3285 + $0x60] sm:$0xff]
        %v3299 = vld [vmem:[%s3285 + $0x68] sm:$0xff]
        %v3300 = vld [vmem:[%s3285 + $0x70] sm:$0xff]
        %v3301 = vld [vmem:[%s3285 + $0x78] sm:$0xff]
        %v3302 = vld [vmem:[%s3285 + $0x80] sm:$0xff]
        %v3303 = vld [vmem:[%s3285 + $0x88] sm:$0xff]
        %v3304 = vld [vmem:[%s3285 + $0x90] sm:$0xff]
        %v3305 = vld [vmem:[%s3285 + $0x98] sm:$0xff]
        %v3306 = vld [vmem:[%s3285 + $0xa0] sm:$0xff]
        %v3307 = vld [vmem:[%s3285 + $0xa8] sm:$0xff]
        %v3308 = vld [vmem:[%s3285 + $0xb0] sm:$0xff]
        %v3309 = vld [vmem:[%s3285 + $0xb8] sm:$0xff]
        %s3310 = scalar_lea.vmem [#allocation5], 3
        %v3311 = vld [vmem:[%s3310] sm:$0x7]
        %v3313 = vlaneseq
        %v3314 = vshrl.u32 %v3313, 7
        %v3315 = vsub.s32 0, %v3314
        %v3316 = vrot.slane %v3311, %v3315
        %v3317 = vlaneseq
        %v3318 = vshrl.u32 %v3317, 7
        %v3319 = vsub.s32 1, %v3318
        %v3320 = vrot.slane %v3311, %v3319
        %v3321 = vlaneseq
        %v3322 = vshrl.u32 %v3321, 7
        %v3323 = vsub.s32 2, %v3322
        %v3324 = vrot.slane %v3311, %v3323
        %v3329 = vsel %vm548, %v3283, 0
        %v3332 = vsel %vm548, %v3284, 0
        %3334 = vmatprep.subr.mxu0 0.0
        %3335 = vmatpush1.msra.mxu0 0.0
        %3336 = vmatprep.subr.mxu0 0.0
        %3337 = vmatpush1.msra.mxu0 0.0
        %3338 = vmatprep.subr.mxu0 0.0
        %3339 = vmatpush1.msra.mxu0 0.0
        %3340 = vmatprep.subr.mxu0 0.0
        %3341 = vmatpush1.msra.mxu0 0.0
        %3342 = vmatprep.subr.mxu0 0.0
        %3343 = vmatpush1.msra.mxu0 0.0
        %3344 = vmatprep.subr.mxu0 0.0
        %3345 = vmatpush1.msra.mxu0 0.0
        %3346 = vmatprep.subr.mxu0 0.0
        %3347 = vmatpush1.msra.mxu0 0.0
        %3348 = vmatprep.subr.mxu0 0.0
        %3349 = vmatpush1.msra.mxu0 0.0
        %3350 = vmatprep.subr.mxu0 %v3308
        %3351 = vmatpush1.msra.mxu0 %v3307
        %3352 = vmatprep.subr.mxu0 %v3305
        %3353 = vmatpush1.msra.mxu0 %v3304
        %3354 = vmatprep.subr.mxu0 %v3302
        %3355 = vmatpush1.msra.mxu0 %v3301
        %3356 = vmatprep.subr.mxu0 %v3299
        %3357 = vmatpush1.msra.mxu0 %v3298
        %3358 = vmatprep.subr.mxu0 %v3296
        %3359 = vmatpush1.msra.mxu0 %v3295
        %3360 = vmatprep.subr.mxu0 %v3293
        %3361 = vmatpush1.msra.mxu0 %v3292
        %3362 = vmatprep.subr.mxu0 %v3290
        %3363 = vmatpush1.msra.mxu0 %v3289
        %3364 = vmatprep.subr.mxu0 %v3287
        %3365 = vmatpush1.msra.mxu0 %v3286
        %3366 = vmatprep.subr.mxu0 0.0
        %3367 = vmatpush2.msra.mxu0 0.0
        %3368 = vmatprep.subr.mxu0 0.0
        %3369 = vmatpush2.msra.mxu0 0.0
        %3370 = vmatprep.subr.mxu0 0.0
        %3371 = vmatpush2.msra.mxu0 0.0
        %3372 = vmatprep.subr.mxu0 0.0
        %3373 = vmatpush2.msra.mxu0 0.0
        %3374 = vmatprep.subr.mxu0 0.0
        %3375 = vmatpush2.msra.mxu0 0.0
        %3376 = vmatprep.subr.mxu0 0.0
        %3377 = vmatpush2.msra.mxu0 0.0
        %3378 = vmatprep.subr.mxu0 0.0
        %3379 = vmatpush2.msra.mxu0 0.0
        %3380 = vmatprep.subr.mxu0 0.0
        %3381 = vmatpush2.msra.mxu0 0.0
        %3382 = vmatprep.subr.mxu0 0.0
        %3383 = vmatpush2.msra.mxu0 0.0
        %3384 = vmatprep.subr.mxu0 0.0
        %3385 = vmatpush2.msra.mxu0 0.0
        %3386 = vmatprep.subr.mxu0 0.0
        %3387 = vmatpush2.msra.mxu0 0.0
        %3388 = vmatprep.subr.mxu0 0.0
        %3389 = vmatpush2.msra.mxu0 0.0
        %3390 = vmatprep.subr.mxu0 0.0
        %3391 = vmatpush2.msra.mxu0 0.0
        %3392 = vmatprep.subr.mxu0 0.0
        %3393 = vmatpush2.msra.mxu0 0.0
        %3394 = vmatprep.subr.mxu0 0.0
        %3395 = vmatpush2.msra.mxu0 0.0
        %3396 = vmatprep.subr.mxu0 0.0
        %3397 = vmatpush2.msra.mxu0 0.0
        %3398 = vmatprep.mubr.f32.mxu0 0.0
        %3399 = vmatmul.mubr.f32.gmra.mxu0 %v3329
        %v3400 = vpop.f32.mrf.mxu0
        %v3401 = vadd.f32 %v3316, %v3400
        %v3402 = vpop.f32.mrf.mxu0
        %v3403 = vadd.f32 %v3320, %v3402
        %3404 = vmatprep.mubr.f32.mxu0 0.0
        %3405 = vmatmul.mubr.f32.gmra.mxu0 %v3332
        %v3406 = vpop.f32.mrf.mxu0
        %v3407 = vadd.f32 %v3316, %v3406
        %v3408 = vpop.f32.mrf.mxu0
        %v3409 = vadd.f32 %v3320, %v3408
        %3410 = vdwg.mxu0
        %3411 = vmatprep.subr.mxu0 0.0
        %3412 = vmatpush1.msra.mxu0 0.0
        %3413 = vmatprep.subr.mxu0 0.0
        %3414 = vmatpush1.msra.mxu0 0.0
        %3415 = vmatprep.subr.mxu0 0.0
        %3416 = vmatpush1.msra.mxu0 0.0
        %3417 = vmatprep.subr.mxu0 0.0
        %3418 = vmatpush1.msra.mxu0 0.0
        %3419 = vmatprep.subr.mxu0 0.0
        %3420 = vmatpush1.msra.mxu0 0.0
        %3421 = vmatprep.subr.mxu0 0.0
        %3422 = vmatpush1.msra.mxu0 0.0
        %3423 = vmatprep.subr.mxu0 0.0
        %3424 = vmatpush1.msra.mxu0 0.0
        %3425 = vmatprep.subr.mxu0 0.0
        %3426 = vmatpush1.msra.mxu0 0.0
        %3427 = vmatprep.subr.mxu0 0.0
        %3428 = vmatpush1.msra.mxu0 %v3309
        %3429 = vmatprep.subr.mxu0 0.0
        %3430 = vmatpush1.msra.mxu0 %v3306
        %3431 = vmatprep.subr.mxu0 0.0
        %3432 = vmatpush1.msra.mxu0 %v3303
        %3433 = vmatprep.subr.mxu0 0.0
        %3434 = vmatpush1.msra.mxu0 %v3300
        %3435 = vmatprep.subr.mxu0 0.0
        %3436 = vmatpush1.msra.mxu0 %v3297
        %3437 = vmatprep.subr.mxu0 0.0
        %3438 = vmatpush1.msra.mxu0 %v3294
        %3439 = vmatprep.subr.mxu0 0.0
        %3440 = vmatpush1.msra.mxu0 %v3291
        %3441 = vmatprep.subr.mxu0 0.0
        %3442 = vmatpush1.msra.mxu0 %v3288
        %3443 = vmatprep.subr.mxu0 0.0
        %3444 = vmatpush2.msra.mxu0 0.0
        %3445 = vmatprep.subr.mxu0 0.0
        %3446 = vmatpush2.msra.mxu0 0.0
        %3447 = vmatprep.subr.mxu0 0.0
        %3448 = vmatpush2.msra.mxu0 0.0
        %3449 = vmatprep.subr.mxu0 0.0
        %3450 = vmatpush2.msra.mxu0 0.0
        %3451 = vmatprep.subr.mxu0 0.0
        %3452 = vmatpush2.msra.mxu0 0.0
        %3453 = vmatprep.subr.mxu0 0.0
        %3454 = vmatpush2.msra.mxu0 0.0
        %3455 = vmatprep.subr.mxu0 0.0
        %3456 = vmatpush2.msra.mxu0 0.0
        %3457 = vmatprep.subr.mxu0 0.0
        %3458 = vmatpush2.msra.mxu0 0.0
        %3459 = vmatprep.subr.mxu0 0.0
        %3460 = vmatpush2.msra.mxu0 0.0
        %3461 = vmatprep.subr.mxu0 0.0
        %3462 = vmatpush2.msra.mxu0 0.0
        %3463 = vmatprep.subr.mxu0 0.0
        %3464 = vmatpush2.msra.mxu0 0.0
        %3465 = vmatprep.subr.mxu0 0.0
        %3466 = vmatpush2.msra.mxu0 0.0
        %3467 = vmatprep.subr.mxu0 0.0
        %3468 = vmatpush2.msra.mxu0 0.0
        %3469 = vmatprep.subr.mxu0 0.0
        %3470 = vmatpush2.msra.mxu0 0.0
        %3471 = vmatprep.subr.mxu0 0.0
        %3472 = vmatpush2.msra.mxu0 0.0
        %3473 = vmatprep.subr.mxu0 0.0
        %3474 = vmatpush2.msra.mxu0 0.0
        %3475 = vmatprep.mubr.f32.mxu0 0.0
        %3476 = vmatmul.mubr.f32.gmra.mxu0 %v3329
        %v3477 = vpop.f32.mrf.mxu0
        %v3478 = vadd.f32 %v3324, %v3477
        %v3479 = vpop.f32.mrf.mxu0
        %3480 = vmatprep.mubr.f32.mxu0 0.0
        %3481 = vmatmul.mubr.f32.gmra.mxu0 %v3332
        %v3482 = vpop.f32.mrf.mxu0
        %v3483 = vadd.f32 %v3324, %v3482
        %v3484 = vpop.f32.mrf.mxu0
        %3485 = vdwg.mxu0
        %s3486 = scalar_lea.vmem [#allocation7], 64
        %v3487 = vld [vmem:[%s3486] sm:$0xff]
        %v3488 = vld [vmem:[%s3486 + $0x8] sm:$0xff]
        %v3489 = vld [vmem:[%s3486 + $0x10] sm:$0xff]
        %v3490 = vld [vmem:[%s3486 + $0x18] sm:$0xff]
        %v3491 = vld [vmem:[%s3486 + $0x20] sm:$0xff]
        %v3492 = vld [vmem:[%s3486 + $0x28] sm:$0xff]
        %v3493 = vld [vmem:[%s3486 + $0x30] sm:$0xff]
        %v3494 = vld [vmem:[%s3486 + $0x38] sm:$0xff]
        %s3495 = scalar_lea.vmem %s4, 1
        %v3496 = vld [vmem:[%s3495] sm:$0x1]
        %v3498 = vlaneseq
        %v3499 = vshrl.u32 %v3498, 7
        %v3500 = vsub.s32 0, %v3499
        %v3501 = vrot.slane %v3496, %v3500
        %v3503 = vadd.f32 %v3283, %v3501
        %v3504 = vadd.f32 %v3284, %v3501
        %v3506 = vsel %vm724, %v3401, 0
        %v3509 = vsel %vm724, %v3407, 0
        %v3512 = vsel %vm724, %v3403, 0
        %v3515 = vsel %vm724, %v3409, 0
        %3517 = vmatprep.subr.mxu0 0.0
        %3518 = vmatpush1.xpose.msra.mxu0 0.0
        %3519 = vmatprep.subr.mxu0 0.0
        %3520 = vmatpush1.xpose.msra.mxu0 0.0
        %3521 = vmatprep.subr.mxu0 0.0
        %3522 = vmatpush1.xpose.msra.mxu0 0.0
        %3523 = vmatprep.subr.mxu0 0.0
        %3524 = vmatpush1.xpose.msra.mxu0 0.0
        %3525 = vmatprep.subr.mxu0 0.0
        %3526 = vmatpush1.xpose.msra.mxu0 0.0
        %3527 = vmatprep.subr.mxu0 0.0
        %3528 = vmatpush1.xpose.msra.mxu0 0.0
        %3529 = vmatprep.subr.mxu0 0.0
        %3530 = vmatpush1.xpose.msra.mxu0 0.0
        %3531 = vmatprep.subr.mxu0 0.0
        %3532 = vmatpush1.xpose.msra.mxu0 0.0
        %3533 = vmatprep.subr.mxu0 0.0
        %3534 = vmatpush1.xpose.msra.mxu0 0.0
        %3535 = vmatprep.subr.mxu0 0.0
        %3536 = vmatpush1.xpose.msra.mxu0 0.0
        %3537 = vmatprep.subr.mxu0 0.0
        %3538 = vmatpush1.xpose.msra.mxu0 0.0
        %3539 = vmatprep.subr.mxu0 0.0
        %3540 = vmatpush1.xpose.msra.mxu0 0.0
        %3541 = vmatprep.subr.mxu0 0.0
        %3542 = vmatpush1.xpose.msra.mxu0 0.0
        %3543 = vmatprep.subr.mxu0 0.0
        %3544 = vmatpush1.xpose.msra.mxu0 0.0
        %3545 = vmatprep.subr.mxu0 0.0
        %3546 = vmatpush1.xpose.msra.mxu0 %v3515
        %3547 = vmatprep.subr.mxu0 0.0
        %3548 = vmatpush1.xpose.msra.mxu0 %v3512
        %3549 = vmatprep.subr.mxu0 0.0
        %3550 = vmatpush2.xpose.msra.mxu0 0.0
        %3551 = vmatprep.subr.mxu0 0.0
        %3552 = vmatpush2.xpose.msra.mxu0 0.0
        %3553 = vmatprep.subr.mxu0 0.0
        %3554 = vmatpush2.xpose.msra.mxu0 0.0
        %3555 = vmatprep.subr.mxu0 0.0
        %3556 = vmatpush2.xpose.msra.mxu0 0.0
        %3557 = vmatprep.subr.mxu0 0.0
        %3558 = vmatpush2.xpose.msra.mxu0 0.0
        %3559 = vmatprep.subr.mxu0 0.0
        %3560 = vmatpush2.xpose.msra.mxu0 0.0
        %3561 = vmatprep.subr.mxu0 0.0
        %3562 = vmatpush2.xpose.msra.mxu0 0.0
        %3563 = vmatprep.subr.mxu0 0.0
        %3564 = vmatpush2.xpose.msra.mxu0 0.0
        %3565 = vmatprep.subr.mxu0 0.0
        %3566 = vmatpush2.xpose.msra.mxu0 0.0
        %3567 = vmatprep.subr.mxu0 0.0
        %3568 = vmatpush2.xpose.msra.mxu0 0.0
        %3569 = vmatprep.subr.mxu0 0.0
        %3570 = vmatpush2.xpose.msra.mxu0 0.0
        %3571 = vmatprep.subr.mxu0 0.0
        %3572 = vmatpush2.xpose.msra.mxu0 0.0
        %3573 = vmatprep.subr.mxu0 0.0
        %3574 = vmatpush2.xpose.msra.mxu0 0.0
        %3575 = vmatprep.subr.mxu0 0.0
        %3576 = vmatpush2.xpose.msra.mxu0 0.0
        %3577 = vmatprep.subr.mxu0 0.0
        %3578 = vmatpush2.xpose.msra.mxu0 0.0
        %3579 = vmatprep.subr.mxu0 0.0
        %3580 = vmatpush2.xpose.msra.mxu0 0.0
        %3581 = vmatprep.mubr.f32.mxu0 0.0
        %3582 = vmatmul.mubr.f32.gmra.mxu0 %v3506
        %v3583 = vpop.f32.mrf.mxu0
        %v3584 = vadd.f32 0.0, %v3583
        %v3585 = vpop.f32.mrf.mxu0
        %3586 = vmatprep.mubr.f32.mxu0 0.0
        %3587 = vmatmul.mubr.f32.gmra.mxu0 %v3509
        %v3588 = vpop.f32.mrf.mxu0
        %v3589 = vadd.f32 0.0, %v3588
        %v3590 = vpop.f32.mrf.mxu0
        %3591 = vdwg.mxu0
        %v3592 = vsel %vm812, %v3584, -inf
        %3593 = vmax.xlane.f32.xlu0 %v3592
        %v3594 = vpop.xlane.xlu0 %3593
        %v3595 = vsel %vm812, %v3589, -inf
        %3596 = vmax.xlane.f32.xlu0 %v3595
        %v3597 = vpop.xlane.xlu0 %3596
        %v3598 = vsub.f32 %v3584, %v3594
        %v3599 = vsub.f32 %v3589, %v3597
        %v3600 = vmul.f32 %v3598, 1.442695
        %v3601 = vpow.pop %v3600
        %v3602 = vmul.f32 %v3599, 1.442695
        %v3603 = vpow.pop %v3602
        %v3604 = vsel %vm812, %v3601, 0.0
        %3605 = vadd.xlane.f32.xlu0 %v3604
        %v3606 = vpop.xlane.xlu0 %3605
        %v3607 = vsel %vm812, %v3603, 0.0
        %3608 = vadd.xlane.f32.xlu0 %v3607
        %v3609 = vpop.xlane.xlu0 %3608
        %v3610 = vrcp.pop %v3606
        %v3611 = vmul.f32 1.0, %v3610
        %v3612 = vrcp.pop %v3609
        %v3613 = vmul.f32 1.0, %v3612
        %v3615 = vsel %vm812, %v3601, 0
        %v3618 = vsel %vm812, %v3603, 0
        %3620 = vmatprep.subr.mxu0 0.0
        %3621 = vmatpush1.msra.mxu0 0.0
        %3622 = vmatprep.subr.mxu0 0.0
        %3623 = vmatpush1.msra.mxu0 0.0
        %3624 = vmatprep.subr.mxu0 0.0
        %3625 = vmatpush1.msra.mxu0 0.0
        %3626 = vmatprep.subr.mxu0 0.0
        %3627 = vmatpush1.msra.mxu0 0.0
        %3628 = vmatprep.subr.mxu0 0.0
        %3629 = vmatpush1.msra.mxu0 0.0
        %3630 = vmatprep.subr.mxu0 0.0
        %3631 = vmatpush1.msra.mxu0 0.0
        %3632 = vmatprep.subr.mxu0 0.0
        %3633 = vmatpush1.msra.mxu0 0.0
        %3634 = vmatprep.subr.mxu0 0.0
        %3635 = vmatpush1.msra.mxu0 0.0
        %3636 = vmatprep.subr.mxu0 0.0
        %3637 = vmatpush1.msra.mxu0 0.0
        %3638 = vmatprep.subr.mxu0 0.0
        %3639 = vmatpush1.msra.mxu0 0.0
        %3640 = vmatprep.subr.mxu0 0.0
        %3641 = vmatpush1.msra.mxu0 0.0
        %3642 = vmatprep.subr.mxu0 0.0
        %3643 = vmatpush1.msra.mxu0 0.0
        %3644 = vmatprep.subr.mxu0 0.0
        %3645 = vmatpush1.msra.mxu0 0.0
        %3646 = vmatprep.subr.mxu0 0.0
        %3647 = vmatpush1.msra.mxu0 0.0
        %3648 = vmatprep.subr.mxu0 0.0
        %3649 = vmatpush1.msra.mxu0 %v3483
        %3650 = vmatprep.subr.mxu0 0.0
        %3651 = vmatpush1.msra.mxu0 %v3478
        %3652 = vmatprep.subr.mxu0 0.0
        %3653 = vmatpush2.msra.mxu0 0.0
        %3654 = vmatprep.subr.mxu0 0.0
        %3655 = vmatpush2.msra.mxu0 0.0
        %3656 = vmatprep.subr.mxu0 0.0
        %3657 = vmatpush2.msra.mxu0 0.0
        %3658 = vmatprep.subr.mxu0 0.0
        %3659 = vmatpush2.msra.mxu0 0.0
        %3660 = vmatprep.subr.mxu0 0.0
        %3661 = vmatpush2.msra.mxu0 0.0
        %3662 = vmatprep.subr.mxu0 0.0
        %3663 = vmatpush2.msra.mxu0 0.0
        %3664 = vmatprep.subr.mxu0 0.0
        %3665 = vmatpush2.msra.mxu0 0.0
        %3666 = vmatprep.subr.mxu0 0.0
        %3667 = vmatpush2.msra.mxu0 0.0
        %3668 = vmatprep.subr.mxu0 0.0
        %3669 = vmatpush2.msra.mxu0 0.0
        %3670 = vmatprep.subr.mxu0 0.0
        %3671 = vmatpush2.msra.mxu0 0.0
        %3672 = vmatprep.subr.mxu0 0.0
        %3673 = vmatpush2.msra.mxu0 0.0
        %3674 = vmatprep.subr.mxu0 0.0
        %3675 = vmatpush2.msra.mxu0 0.0
        %3676 = vmatprep.subr.mxu0 0.0
        %3677 = vmatpush2.msra.mxu0 0.0
        %3678 = vmatprep.subr.mxu0 0.0
        %3679 = vmatpush2.msra.mxu0 0.0
        %3680 = vmatprep.subr.mxu0 0.0
        %3681 = vmatpush2.msra.mxu0 0.0
        %3682 = vmatprep.subr.mxu0 0.0
        %3683 = vmatpush2.msra.mxu0 0.0
        %3684 = vmatprep.mubr.f32.mxu0 0.0
        %3685 = vmatmul.mubr.f32.gmra.mxu0 %v3615
        %v3686 = vpop.f32.mrf.mxu0
        %v3687 = vadd.f32 0.0, %v3686
        %v3688 = vpop.f32.mrf.mxu0
        %3689 = vmatprep.mubr.f32.mxu0 0.0
        %3690 = vmatmul.mubr.f32.gmra.mxu0 %v3618
        %v3691 = vpop.f32.mrf.mxu0
        %v3692 = vadd.f32 0.0, %v3691
        %v3693 = vpop.f32.mrf.mxu0
        %3694 = vdwg.mxu0
        %v3695 = vmul.f32 %v3687, %v3611
        %v3696 = vmul.f32 %v3692, %v3613
        %v3698 = vsel %vm724, %v3695, 0
        %v3701 = vsel %vm724, %v3696, 0
        %3703 = vmatprep.subr.mxu0 0.0
        %3704 = vmatpush1.msra.mxu0 0.0
        %3705 = vmatprep.subr.mxu0 0.0
        %3706 = vmatpush1.msra.mxu0 0.0
        %3707 = vmatprep.subr.mxu0 0.0
        %3708 = vmatpush1.msra.mxu0 0.0
        %3709 = vmatprep.subr.mxu0 0.0
        %3710 = vmatpush1.msra.mxu0 0.0
        %3711 = vmatprep.subr.mxu0 0.0
        %3712 = vmatpush1.msra.mxu0 0.0
        %3713 = vmatprep.subr.mxu0 0.0
        %3714 = vmatpush1.msra.mxu0 0.0
        %3715 = vmatprep.subr.mxu0 0.0
        %3716 = vmatpush1.msra.mxu0 0.0
        %3717 = vmatprep.subr.mxu0 0.0
        %3718 = vmatpush1.msra.mxu0 0.0
        %3719 = vmatprep.subr.mxu0 0.0
        %3720 = vmatpush1.msra.mxu0 0.0
        %3721 = vmatprep.subr.mxu0 0.0
        %3722 = vmatpush1.msra.mxu0 0.0
        %3723 = vmatprep.subr.mxu0 0.0
        %3724 = vmatpush1.msra.mxu0 0.0
        %3725 = vmatprep.subr.mxu0 0.0
        %3726 = vmatpush1.msra.mxu0 0.0
        %3727 = vmatprep.subr.mxu0 0.0
        %3728 = vmatpush1.msra.mxu0 0.0
        %3729 = vmatprep.subr.mxu0 0.0
        %3730 = vmatpush1.msra.mxu0 0.0
        %3731 = vmatprep.subr.mxu0 0.0
        %3732 = vmatpush1.msra.mxu0 0.0
        %3733 = vmatprep.subr.mxu0 0.0
        %3734 = vmatpush1.msra.mxu0 %v3487
        %3735 = vmatprep.subr.mxu0 0.0
        %3736 = vmatpush2.msra.mxu0 0.0
        %3737 = vmatprep.subr.mxu0 0.0
        %3738 = vmatpush2.msra.mxu0 0.0
        %3739 = vmatprep.subr.mxu0 0.0
        %3740 = vmatpush2.msra.mxu0 0.0
        %3741 = vmatprep.subr.mxu0 0.0
        %3742 = vmatpush2.msra.mxu0 0.0
        %3743 = vmatprep.subr.mxu0 0.0
        %3744 = vmatpush2.msra.mxu0 0.0
        %3745 = vmatprep.subr.mxu0 0.0
        %3746 = vmatpush2.msra.mxu0 0.0
        %3747 = vmatprep.subr.mxu0 0.0
        %3748 = vmatpush2.msra.mxu0 0.0
        %3749 = vmatprep.subr.mxu0 0.0
        %3750 = vmatpush2.msra.mxu0 0.0
        %3751 = vmatprep.subr.mxu0 0.0
        %3752 = vmatpush2.msra.mxu0 0.0
        %3753 = vmatprep.subr.mxu0 0.0
        %3754 = vmatpush2.msra.mxu0 0.0
        %3755 = vmatprep.subr.mxu0 0.0
        %3756 = vmatpush2.msra.mxu0 0.0
        %3757 = vmatprep.subr.mxu0 0.0
        %3758 = vmatpush2.msra.mxu0 0.0
        %3759 = vmatprep.subr.mxu0 0.0
        %3760 = vmatpush2.msra.mxu0 0.0
        %3761 = vmatprep.subr.mxu0 0.0
        %3762 = vmatpush2.msra.mxu0 0.0
        %3763 = vmatprep.subr.mxu0 0.0
        %3764 = vmatpush2.msra.mxu0 0.0
        %3765 = vmatprep.subr.mxu0 0.0
        %3766 = vmatpush2.msra.mxu0 0.0
        %3767 = vmatprep.mubr.f32.mxu0 0.0
        %3768 = vmatmul.mubr.f32.gmra.mxu0 %v3698
        %v3769 = vpop.f32.mrf.mxu0
        %v3770 = vadd.f32 0.0, %v3769
        %v3771 = vpop.f32.mrf.mxu0
        %3772 = vmatprep.mubr.f32.mxu0 0.0
        %3773 = vmatmul.mubr.f32.gmra.mxu0 %v3701
        %v3774 = vpop.f32.mrf.mxu0
        %v3775 = vadd.f32 0.0, %v3774
        %v3776 = vpop.f32.mrf.mxu0
        %3777 = vdwg.mxu0
        %v3778 = vadd.f32 %v3503, %v3770
        %v3779 = vadd.f32 %v3504, %v3775
        %3780 = vrot.lane.b32.xlu0 %v3401, 120
        %v3781 = vpop.permute.xlu0 %3780
        %3782 = vrot.lane.b32.xlu0 %v3407, 120
        %v3783 = vpop.permute.xlu0 %3782
        %3784 = vrot.lane.b32.xlu0 %v3403, 120
        %v3785 = vpop.permute.xlu0 %3784
        %3786 = vrot.lane.b32.xlu0 %v3409, 120
        %v3787 = vpop.permute.xlu0 %3786
        %v3788 = vsel %vm724, %v3781, 0
        %v3790 = vsel %vm724, %v3783, 0
        %v3792 = vsel %vm724, %v3785, 0
        %v3794 = vsel %vm724, %v3787, 0
        %3796 = vmatprep.subr.mxu0 0.0
        %3797 = vmatpush1.xpose.msra.mxu0 0.0
        %3798 = vmatprep.subr.mxu0 0.0
        %3799 = vmatpush1.xpose.msra.mxu0 0.0
        %3800 = vmatprep.subr.mxu0 0.0
        %3801 = vmatpush1.xpose.msra.mxu0 0.0
        %3802 = vmatprep.subr.mxu0 0.0
        %3803 = vmatpush1.xpose.msra.mxu0 0.0
        %3804 = vmatprep.subr.mxu0 0.0
        %3805 = vmatpush1.xpose.msra.mxu0 0.0
        %3806 = vmatprep.subr.mxu0 0.0
        %3807 = vmatpush1.xpose.msra.mxu0 0.0
        %3808 = vmatprep.subr.mxu0 0.0
        %3809 = vmatpush1.xpose.msra.mxu0 0.0
        %3810 = vmatprep.subr.mxu0 0.0
        %3811 = vmatpush1.xpose.msra.mxu0 0.0
        %3812 = vmatprep.subr.mxu0 0.0
        %3813 = vmatpush1.xpose.msra.mxu0 0.0
        %3814 = vmatprep.subr.mxu0 0.0
        %3815 = vmatpush1.xpose.msra.mxu0 0.0
        %3816 = vmatprep.subr.mxu0 0.0
        %3817 = vmatpush1.xpose.msra.mxu0 0.0
        %3818 = vmatprep.subr.mxu0 0.0
        %3819 = vmatpush1.xpose.msra.mxu0 0.0
        %3820 = vmatprep.subr.mxu0 0.0
        %3821 = vmatpush1.xpose.msra.mxu0 0.0
        %3822 = vmatprep.subr.mxu0 0.0
        %3823 = vmatpush1.xpose.msra.mxu0 0.0
        %3824 = vmatprep.subr.mxu0 0.0
        %3825 = vmatpush1.xpose.msra.mxu0 %v3794
        %3826 = vmatprep.subr.mxu0 0.0
        %3827 = vmatpush1.xpose.msra.mxu0 %v3792
        %3828 = vmatprep.subr.mxu0 0.0
        %3829 = vmatpush2.xpose.msra.mxu0 0.0
        %3830 = vmatprep.subr.mxu0 0.0
        %3831 = vmatpush2.xpose.msra.mxu0 0.0
        %3832 = vmatprep.subr.mxu0 0.0
        %3833 = vmatpush2.xpose.msra.mxu0 0.0
        %3834 = vmatprep.subr.mxu0 0.0
        %3835 = vmatpush2.xpose.msra.mxu0 0.0
        %3836 = vmatprep.subr.mxu0 0.0
        %3837 = vmatpush2.xpose.msra.mxu0 0.0
        %3838 = vmatprep.subr.mxu0 0.0
        %3839 = vmatpush2.xpose.msra.mxu0 0.0
        %3840 = vmatprep.subr.mxu0 0.0
        %3841 = vmatpush2.xpose.msra.mxu0 0.0
        %3842 = vmatprep.subr.mxu0 0.0
        %3843 = vmatpush2.xpose.msra.mxu0 0.0
        %3844 = vmatprep.subr.mxu0 0.0
        %3845 = vmatpush2.xpose.msra.mxu0 0.0
        %3846 = vmatprep.subr.mxu0 0.0
        %3847 = vmatpush2.xpose.msra.mxu0 0.0
        %3848 = vmatprep.subr.mxu0 0.0
        %3849 = vmatpush2.xpose.msra.mxu0 0.0
        %3850 = vmatprep.subr.mxu0 0.0
        %3851 = vmatpush2.xpose.msra.mxu0 0.0
        %3852 = vmatprep.subr.mxu0 0.0
        %3853 = vmatpush2.xpose.msra.mxu0 0.0
        %3854 = vmatprep.subr.mxu0 0.0
        %3855 = vmatpush2.xpose.msra.mxu0 0.0
        %3856 = vmatprep.subr.mxu0 0.0
        %3857 = vmatpush2.xpose.msra.mxu0 0.0
        %3858 = vmatprep.subr.mxu0 0.0
        %3859 = vmatpush2.xpose.msra.mxu0 0.0
        %3860 = vmatprep.mubr.f32.mxu0 0.0
        %3861 = vmatmul.mubr.f32.gmra.mxu0 %v3788
        %v3862 = vpop.f32.mrf.mxu0
        %v3863 = vadd.f32 0.0, %v3862
        %v3864 = vpop.f32.mrf.mxu0
        %3865 = vmatprep.mubr.f32.mxu0 0.0
        %3866 = vmatmul.mubr.f32.gmra.mxu0 %v3790
        %v3867 = vpop.f32.mrf.mxu0
        %v3868 = vadd.f32 0.0, %v3867
        %v3869 = vpop.f32.mrf.mxu0
        %3870 = vdwg.mxu0
        %v3871 = vsel %vm812, %v3863, -inf
        %3872 = vmax.xlane.f32.xlu0 %v3871
        %v3873 = vpop.xlane.xlu0 %3872
        %v3874 = vsel %vm812, %v3868, -inf
        %3875 = vmax.xlane.f32.xlu0 %v3874
        %v3876 = vpop.xlane.xlu0 %3875
        %v3877 = vsub.f32 %v3863, %v3873
        %v3878 = vsub.f32 %v3868, %v3876
        %v3879 = vmul.f32 %v3877, 1.442695
        %v3880 = vpow.pop %v3879
        %v3881 = vmul.f32 %v3878, 1.442695
        %v3882 = vpow.pop %v3881
        %v3883 = vsel %vm812, %v3880, 0.0
        %3884 = vadd.xlane.f32.xlu0 %v3883
        %v3885 = vpop.xlane.xlu0 %3884
        %v3886 = vsel %vm812, %v3882, 0.0
        %3887 = vadd.xlane.f32.xlu0 %v3886
        %v3888 = vpop.xlane.xlu0 %3887
        %v3889 = vrcp.pop %v3885
        %v3890 = vmul.f32 1.0, %v3889
        %v3891 = vrcp.pop %v3888
        %v3892 = vmul.f32 1.0, %v3891
        %3895 = vrot.lane.b32.xlu0 %v3478, 120
        %v3896 = vpop.permute.xlu0 %3895
        %3897 = vrot.lane.b32.xlu0 %v3483, 120
        %v3898 = vpop.permute.xlu0 %3897
        %v3902 = vsel %vm812, %v3880, 0
        %v3905 = vsel %vm812, %v3882, 0
        %3907 = vmatprep.subr.mxu0 0.0
        %3908 = vmatpush1.msra.mxu0 0.0
        %3909 = vmatprep.subr.mxu0 0.0
        %3910 = vmatpush1.msra.mxu0 0.0
        %3911 = vmatprep.subr.mxu0 0.0
        %3912 = vmatpush1.msra.mxu0 0.0
        %3913 = vmatprep.subr.mxu0 0.0
        %3914 = vmatpush1.msra.mxu0 0.0
        %3915 = vmatprep.subr.mxu0 0.0
        %3916 = vmatpush1.msra.mxu0 0.0
        %3917 = vmatprep.subr.mxu0 0.0
        %3918 = vmatpush1.msra.mxu0 0.0
        %3919 = vmatprep.subr.mxu0 0.0
        %3920 = vmatpush1.msra.mxu0 0.0
        %3921 = vmatprep.subr.mxu0 0.0
        %3922 = vmatpush1.msra.mxu0 0.0
        %3923 = vmatprep.subr.mxu0 0.0
        %3924 = vmatpush1.msra.mxu0 0.0
        %3925 = vmatprep.subr.mxu0 0.0
        %3926 = vmatpush1.msra.mxu0 0.0
        %3927 = vmatprep.subr.mxu0 0.0
        %3928 = vmatpush1.msra.mxu0 0.0
        %3929 = vmatprep.subr.mxu0 0.0
        %3930 = vmatpush1.msra.mxu0 0.0
        %3931 = vmatprep.subr.mxu0 0.0
        %3932 = vmatpush1.msra.mxu0 0.0
        %3933 = vmatprep.subr.mxu0 0.0
        %3934 = vmatpush1.msra.mxu0 0.0
        %3935 = vmatprep.subr.mxu0 0.0
        %3936 = vmatpush1.msra.mxu0 %v3898
        %3937 = vmatprep.subr.mxu0 0.0
        %3938 = vmatpush1.msra.mxu0 %v3896
        %3939 = vmatprep.subr.mxu0 0.0
        %3940 = vmatpush2.msra.mxu0 0.0
        %3941 = vmatprep.subr.mxu0 0.0
        %3942 = vmatpush2.msra.mxu0 0.0
        %3943 = vmatprep.subr.mxu0 0.0
        %3944 = vmatpush2.msra.mxu0 0.0
        %3945 = vmatprep.subr.mxu0 0.0
        %3946 = vmatpush2.msra.mxu0 0.0
        %3947 = vmatprep.subr.mxu0 0.0
        %3948 = vmatpush2.msra.mxu0 0.0
        %3949 = vmatprep.subr.mxu0 0.0
        %3950 = vmatpush2.msra.mxu0 0.0
        %3951 = vmatprep.subr.mxu0 0.0
        %3952 = vmatpush2.msra.mxu0 0.0
        %3953 = vmatprep.subr.mxu0 0.0
        %3954 = vmatpush2.msra.mxu0 0.0
        %3955 = vmatprep.subr.mxu0 0.0
        %3956 = vmatpush2.msra.mxu0 0.0
        %3957 = vmatprep.subr.mxu0 0.0
        %3958 = vmatpush2.msra.mxu0 0.0
        %3959 = vmatprep.subr.mxu0 0.0
        %3960 = vmatpush2.msra.mxu0 0.0
        %3961 = vmatprep.subr.mxu0 0.0
        %3962 = vmatpush2.msra.mxu0 0.0
        %3963 = vmatprep.subr.mxu0 0.0
        %3964 = vmatpush2.msra.mxu0 0.0
        %3965 = vmatprep.subr.mxu0 0.0
        %3966 = vmatpush2.msra.mxu0 0.0
        %3967 = vmatprep.subr.mxu0 0.0
        %3968 = vmatpush2.msra.mxu0 0.0
        %3969 = vmatprep.subr.mxu0 0.0
        %3970 = vmatpush2.msra.mxu0 0.0
        %3971 = vmatprep.mubr.f32.mxu0 0.0
        %3972 = vmatmul.mubr.f32.gmra.mxu0 %v3902
        %v3973 = vpop.f32.mrf.mxu0
        %v3974 = vadd.f32 0.0, %v3973
        %v3975 = vpop.f32.mrf.mxu0
        %3976 = vmatprep.mubr.f32.mxu0 0.0
        %3977 = vmatmul.mubr.f32.gmra.mxu0 %v3905
        %v3978 = vpop.f32.mrf.mxu0
        %v3979 = vadd.f32 0.0, %v3978
        %v3980 = vpop.f32.mrf.mxu0
        %3981 = vdwg.mxu0
        %v3982 = vmul.f32 %v3974, %v3890
        %v3983 = vmul.f32 %v3979, %v3892
        %v3985 = vsel %vm724, %v3982, 0
        %v3988 = vsel %vm724, %v3983, 0
        %3990 = vmatprep.subr.mxu0 0.0
        %3991 = vmatpush1.msra.mxu0 0.0
        %3992 = vmatprep.subr.mxu0 0.0
        %3993 = vmatpush1.msra.mxu0 0.0
        %3994 = vmatprep.subr.mxu0 0.0
        %3995 = vmatpush1.msra.mxu0 0.0
        %3996 = vmatprep.subr.mxu0 0.0
        %3997 = vmatpush1.msra.mxu0 0.0
        %3998 = vmatprep.subr.mxu0 0.0
        %3999 = vmatpush1.msra.mxu0 0.0
        %4000 = vmatprep.subr.mxu0 0.0
        %4001 = vmatpush1.msra.mxu0 0.0
        %4002 = vmatprep.subr.mxu0 0.0
        %4003 = vmatpush1.msra.mxu0 0.0
        %4004 = vmatprep.subr.mxu0 0.0
        %4005 = vmatpush1.msra.mxu0 0.0
        %4006 = vmatprep.subr.mxu0 0.0
        %4007 = vmatpush1.msra.mxu0 0.0
        %4008 = vmatprep.subr.mxu0 0.0
        %4009 = vmatpush1.msra.mxu0 0.0
        %4010 = vmatprep.subr.mxu0 0.0
        %4011 = vmatpush1.msra.mxu0 0.0
        %4012 = vmatprep.subr.mxu0 0.0
        %4013 = vmatpush1.msra.mxu0 0.0
        %4014 = vmatprep.subr.mxu0 0.0
        %4015 = vmatpush1.msra.mxu0 0.0
        %4016 = vmatprep.subr.mxu0 0.0
        %4017 = vmatpush1.msra.mxu0 0.0
        %4018 = vmatprep.subr.mxu0 0.0
        %4019 = vmatpush1.msra.mxu0 0.0
        %4020 = vmatprep.subr.mxu0 0.0
        %4021 = vmatpush1.msra.mxu0 %v3488
        %4022 = vmatprep.subr.mxu0 0.0
        %4023 = vmatpush2.msra.mxu0 0.0
        %4024 = vmatprep.subr.mxu0 0.0
        %4025 = vmatpush2.msra.mxu0 0.0
        %4026 = vmatprep.subr.mxu0 0.0
        %4027 = vmatpush2.msra.mxu0 0.0
        %4028 = vmatprep.subr.mxu0 0.0
        %4029 = vmatpush2.msra.mxu0 0.0
        %4030 = vmatprep.subr.mxu0 0.0
        %4031 = vmatpush2.msra.mxu0 0.0
        %4032 = vmatprep.subr.mxu0 0.0
        %4033 = vmatpush2.msra.mxu0 0.0
        %4034 = vmatprep.subr.mxu0 0.0
        %4035 = vmatpush2.msra.mxu0 0.0
        %4036 = vmatprep.subr.mxu0 0.0
        %4037 = vmatpush2.msra.mxu0 0.0
        %4038 = vmatprep.subr.mxu0 0.0
        %4039 = vmatpush2.msra.mxu0 0.0
        %4040 = vmatprep.subr.mxu0 0.0
        %4041 = vmatpush2.msra.mxu0 0.0
        %4042 = vmatprep.subr.mxu0 0.0
        %4043 = vmatpush2.msra.mxu0 0.0
        %4044 = vmatprep.subr.mxu0 0.0
        %4045 = vmatpush2.msra.mxu0 0.0
        %4046 = vmatprep.subr.mxu0 0.0
        %4047 = vmatpush2.msra.mxu0 0.0
        %4048 = vmatprep.subr.mxu0 0.0
        %4049 = vmatpush2.msra.mxu0 0.0
        %4050 = vmatprep.subr.mxu0 0.0
        %4051 = vmatpush2.msra.mxu0 0.0
        %4052 = vmatprep.subr.mxu0 0.0
        %4053 = vmatpush2.msra.mxu0 0.0
        %4054 = vmatprep.mubr.f32.mxu0 0.0
        %4055 = vmatmul.mubr.f32.gmra.mxu0 %v3985
        %v4056 = vpop.f32.mrf.mxu0
        %v4057 = vadd.f32 0.0, %v4056
        %v4058 = vpop.f32.mrf.mxu0
        %4059 = vmatprep.mubr.f32.mxu0 0.0
        %4060 = vmatmul.mubr.f32.gmra.mxu0 %v3988
        %v4061 = vpop.f32.mrf.mxu0
        %v4062 = vadd.f32 0.0, %v4061
        %v4063 = vpop.f32.mrf.mxu0
        %4064 = vdwg.mxu0
        %v4065 = vadd.f32 %v3778, %v4057
        %v4066 = vadd.f32 %v3779, %v4062
        %4067 = vrot.lane.b32.xlu0 %v3401, 112
        %v4068 = vpop.permute.xlu0 %4067
        %4069 = vrot.lane.b32.xlu0 %v3407, 112
        %v4070 = vpop.permute.xlu0 %4069
        %4071 = vrot.lane.b32.xlu0 %v3403, 112
        %v4072 = vpop.permute.xlu0 %4071
        %4073 = vrot.lane.b32.xlu0 %v3409, 112
        %v4074 = vpop.permute.xlu0 %4073
        %v4075 = vsel %vm724, %v4068, 0
        %v4077 = vsel %vm724, %v4070, 0
        %v4079 = vsel %vm724, %v4072, 0
        %v4081 = vsel %vm724, %v4074, 0
        %4083 = vmatprep.subr.mxu0 0.0
        %4084 = vmatpush1.xpose.msra.mxu0 0.0
        %4085 = vmatprep.subr.mxu0 0.0
        %4086 = vmatpush1.xpose.msra.mxu0 0.0
        %4087 = vmatprep.subr.mxu0 0.0
        %4088 = vmatpush1.xpose.msra.mxu0 0.0
        %4089 = vmatprep.subr.mxu0 0.0
        %4090 = vmatpush1.xpose.msra.mxu0 0.0
        %4091 = vmatprep.subr.mxu0 0.0
        %4092 = vmatpush1.xpose.msra.mxu0 0.0
        %4093 = vmatprep.subr.mxu0 0.0
        %4094 = vmatpush1.xpose.msra.mxu0 0.0
        %4095 = vmatprep.subr.mxu0 0.0
        %4096 = vmatpush1.xpose.msra.mxu0 0.0
        %4097 = vmatprep.subr.mxu0 0.0
        %4098 = vmatpush1.xpose.msra.mxu0 0.0
        %4099 = vmatprep.subr.mxu0 0.0
        %4100 = vmatpush1.xpose.msra.mxu0 0.0
        %4101 = vmatprep.subr.mxu0 0.0
        %4102 = vmatpush1.xpose.msra.mxu0 0.0
        %4103 = vmatprep.subr.mxu0 0.0
        %4104 = vmatpush1.xpose.msra.mxu0 0.0
        %4105 = vmatprep.subr.mxu0 0.0
        %4106 = vmatpush1.xpose.msra.mxu0 0.0
        %4107 = vmatprep.subr.mxu0 0.0
        %4108 = vmatpush1.xpose.msra.mxu0 0.0
        %4109 = vmatprep.subr.mxu0 0.0
        %4110 = vmatpush1.xpose.msra.mxu0 0.0
        %4111 = vmatprep.subr.mxu0 0.0
        %4112 = vmatpush1.xpose.msra.mxu0 %v4081
        %4113 = vmatprep.subr.mxu0 0.0
        %4114 = vmatpush1.xpose.msra.mxu0 %v4079
        %4115 = vmatprep.subr.mxu0 0.0
        %4116 = vmatpush2.xpose.msra.mxu0 0.0
        %4117 = vmatprep.subr.mxu0 0.0
        %4118 = vmatpush2.xpose.msra.mxu0 0.0
        %4119 = vmatprep.subr.mxu0 0.0
        %4120 = vmatpush2.xpose.msra.mxu0 0.0
        %4121 = vmatprep.subr.mxu0 0.0
        %4122 = vmatpush2.xpose.msra.mxu0 0.0
        %4123 = vmatprep.subr.mxu0 0.0
        %4124 = vmatpush2.xpose.msra.mxu0 0.0
        %4125 = vmatprep.subr.mxu0 0.0
        %4126 = vmatpush2.xpose.msra.mxu0 0.0
        %4127 = vmatprep.subr.mxu0 0.0
        %4128 = vmatpush2.xpose.msra.mxu0 0.0
        %4129 = vmatprep.subr.mxu0 0.0
        %4130 = vmatpush2.xpose.msra.mxu0 0.0
        %4131 = vmatprep.subr.mxu0 0.0
        %4132 = vmatpush2.xpose.msra.mxu0 0.0
        %4133 = vmatprep.subr.mxu0 0.0
        %4134 = vmatpush2.xpose.msra.mxu0 0.0
        %4135 = vmatprep.subr.mxu0 0.0
        %4136 = vmatpush2.xpose.msra.mxu0 0.0
        %4137 = vmatprep.subr.mxu0 0.0
        %4138 = vmatpush2.xpose.msra.mxu0 0.0
        %4139 = vmatprep.subr.mxu0 0.0
        %4140 = vmatpush2.xpose.msra.mxu0 0.0
        %4141 = vmatprep.subr.mxu0 0.0
        %4142 = vmatpush2.xpose.msra.mxu0 0.0
        %4143 = vmatprep.subr.mxu0 0.0
        %4144 = vmatpush2.xpose.msra.mxu0 0.0
        %4145 = vmatprep.subr.mxu0 0.0
        %4146 = vmatpush2.xpose.msra.mxu0 0.0
        %4147 = vmatprep.mubr.f32.mxu0 0.0
        %4148 = vmatmul.mubr.f32.gmra.mxu0 %v4075
        %v4149 = vpop.f32.mrf.mxu0
        %v4150 = vadd.f32 0.0, %v4149
        %v4151 = vpop.f32.mrf.mxu0
        %4152 = vmatprep.mubr.f32.mxu0 0.0
        %4153 = vmatmul.mubr.f32.gmra.mxu0 %v4077
        %v4154 = vpop.f32.mrf.mxu0
        %v4155 = vadd.f32 0.0, %v4154
        %v4156 = vpop.f32.mrf.mxu0
        %4157 = vdwg.mxu0
        %v4158 = vsel %vm812, %v4150, -inf
        %4159 = vmax.xlane.f32.xlu0 %v4158
        %v4160 = vpop.xlane.xlu0 %4159
        %v4161 = vsel %vm812, %v4155, -inf
        %4162 = vmax.xlane.f32.xlu0 %v4161
        %v4163 = vpop.xlane.xlu0 %4162
        %v4164 = vsub.f32 %v4150, %v4160
        %v4165 = vsub.f32 %v4155, %v4163
        %v4166 = vmul.f32 %v4164, 1.442695
        %v4167 = vpow.pop %v4166
        %v4168 = vmul.f32 %v4165, 1.442695
        %v4169 = vpow.pop %v4168
        %v4170 = vsel %vm812, %v4167, 0.0
        %4171 = vadd.xlane.f32.xlu0 %v4170
        %v4172 = vpop.xlane.xlu0 %4171
        %v4173 = vsel %vm812, %v4169, 0.0
        %4174 = vadd.xlane.f32.xlu0 %v4173
        %v4175 = vpop.xlane.xlu0 %4174
        %v4176 = vrcp.pop %v4172
        %v4177 = vmul.f32 1.0, %v4176
        %v4178 = vrcp.pop %v4175
        %v4179 = vmul.f32 1.0, %v4178
        %4180 = vrot.lane.b32.xlu0 %v3478, 112
        %v4181 = vpop.permute.xlu0 %4180
        %4182 = vrot.lane.b32.xlu0 %v3483, 112
        %v4183 = vpop.permute.xlu0 %4182
        %v4187 = vsel %vm812, %v4167, 0
        %v4190 = vsel %vm812, %v4169, 0
        %4192 = vmatprep.subr.mxu0 0.0
        %4193 = vmatpush1.msra.mxu0 0.0
        %4194 = vmatprep.subr.mxu0 0.0
        %4195 = vmatpush1.msra.mxu0 0.0
        %4196 = vmatprep.subr.mxu0 0.0
        %4197 = vmatpush1.msra.mxu0 0.0
        %4198 = vmatprep.subr.mxu0 0.0
        %4199 = vmatpush1.msra.mxu0 0.0
        %4200 = vmatprep.subr.mxu0 0.0
        %4201 = vmatpush1.msra.mxu0 0.0
        %4202 = vmatprep.subr.mxu0 0.0
        %4203 = vmatpush1.msra.mxu0 0.0
        %4204 = vmatprep.subr.mxu0 0.0
        %4205 = vmatpush1.msra.mxu0 0.0
        %4206 = vmatprep.subr.mxu0 0.0
        %4207 = vmatpush1.msra.mxu0 0.0
        %4208 = vmatprep.subr.mxu0 0.0
        %4209 = vmatpush1.msra.mxu0 0.0
        %4210 = vmatprep.subr.mxu0 0.0
        %4211 = vmatpush1.msra.mxu0 0.0
        %4212 = vmatprep.subr.mxu0 0.0
        %4213 = vmatpush1.msra.mxu0 0.0
        %4214 = vmatprep.subr.mxu0 0.0
        %4215 = vmatpush1.msra.mxu0 0.0
        %4216 = vmatprep.subr.mxu0 0.0
        %4217 = vmatpush1.msra.mxu0 0.0
        %4218 = vmatprep.subr.mxu0 0.0
        %4219 = vmatpush1.msra.mxu0 0.0
        %4220 = vmatprep.subr.mxu0 0.0
        %4221 = vmatpush1.msra.mxu0 %v4183
        %4222 = vmatprep.subr.mxu0 0.0
        %4223 = vmatpush1.msra.mxu0 %v4181
        %4224 = vmatprep.subr.mxu0 0.0
        %4225 = vmatpush2.msra.mxu0 0.0
        %4226 = vmatprep.subr.mxu0 0.0
        %4227 = vmatpush2.msra.mxu0 0.0
        %4228 = vmatprep.subr.mxu0 0.0
        %4229 = vmatpush2.msra.mxu0 0.0
        %4230 = vmatprep.subr.mxu0 0.0
        %4231 = vmatpush2.msra.mxu0 0.0
        %4232 = vmatprep.subr.mxu0 0.0
        %4233 = vmatpush2.msra.mxu0 0.0
        %4234 = vmatprep.subr.mxu0 0.0
        %4235 = vmatpush2.msra.mxu0 0.0
        %4236 = vmatprep.subr.mxu0 0.0
        %4237 = vmatpush2.msra.mxu0 0.0
        %4238 = vmatprep.subr.mxu0 0.0
        %4239 = vmatpush2.msra.mxu0 0.0
        %4240 = vmatprep.subr.mxu0 0.0
        %4241 = vmatpush2.msra.mxu0 0.0
        %4242 = vmatprep.subr.mxu0 0.0
        %4243 = vmatpush2.msra.mxu0 0.0
        %4244 = vmatprep.subr.mxu0 0.0
        %4245 = vmatpush2.msra.mxu0 0.0
        %4246 = vmatprep.subr.mxu0 0.0
        %4247 = vmatpush2.msra.mxu0 0.0
        %4248 = vmatprep.subr.mxu0 0.0
        %4249 = vmatpush2.msra.mxu0 0.0
        %4250 = vmatprep.subr.mxu0 0.0
        %4251 = vmatpush2.msra.mxu0 0.0
        %4252 = vmatprep.subr.mxu0 0.0
        %4253 = vmatpush2.msra.mxu0 0.0
        %4254 = vmatprep.subr.mxu0 0.0
        %4255 = vmatpush2.msra.mxu0 0.0
        %4256 = vmatprep.mubr.f32.mxu0 0.0
        %4257 = vmatmul.mubr.f32.gmra.mxu0 %v4187
        %v4258 = vpop.f32.mrf.mxu0
        %v4259 = vadd.f32 0.0, %v4258
        %v4260 = vpop.f32.mrf.mxu0
        %4261 = vmatprep.mubr.f32.mxu0 0.0
        %4262 = vmatmul.mubr.f32.gmra.mxu0 %v4190
        %v4263 = vpop.f32.mrf.mxu0
        %v4264 = vadd.f32 0.0, %v4263
        %v4265 = vpop.f32.mrf.mxu0
        %4266 = vdwg.mxu0
        %v4267 = vmul.f32 %v4259, %v4177
        %v4268 = vmul.f32 %v4264, %v4179
        %v4270 = vsel %vm724, %v4267, 0
        %v4273 = vsel %vm724, %v4268, 0
        %4275 = vmatprep.subr.mxu0 0.0
        %4276 = vmatpush1.msra.mxu0 0.0
        %4277 = vmatprep.subr.mxu0 0.0
        %4278 = vmatpush1.msra.mxu0 0.0
        %4279 = vmatprep.subr.mxu0 0.0
        %4280 = vmatpush1.msra.mxu0 0.0
        %4281 = vmatprep.subr.mxu0 0.0
        %4282 = vmatpush1.msra.mxu0 0.0
        %4283 = vmatprep.subr.mxu0 0.0
        %4284 = vmatpush1.msra.mxu0 0.0
        %4285 = vmatprep.subr.mxu0 0.0
        %4286 = vmatpush1.msra.mxu0 0.0
        %4287 = vmatprep.subr.mxu0 0.0
        %4288 = vmatpush1.msra.mxu0 0.0
        %4289 = vmatprep.subr.mxu0 0.0
        %4290 = vmatpush1.msra.mxu0 0.0
        %4291 = vmatprep.subr.mxu0 0.0
        %4292 = vmatpush1.msra.mxu0 0.0
        %4293 = vmatprep.subr.mxu0 0.0
        %4294 = vmatpush1.msra.mxu0 0.0
        %4295 = vmatprep.subr.mxu0 0.0
        %4296 = vmatpush1.msra.mxu0 0.0
        %4297 = vmatprep.subr.mxu0 0.0
        %4298 = vmatpush1.msra.mxu0 0.0
        %4299 = vmatprep.subr.mxu0 0.0
        %4300 = vmatpush1.msra.mxu0 0.0
        %4301 = vmatprep.subr.mxu0 0.0
        %4302 = vmatpush1.msra.mxu0 0.0
        %4303 = vmatprep.subr.mxu0 0.0
        %4304 = vmatpush1.msra.mxu0 0.0
        %4305 = vmatprep.subr.mxu0 0.0
        %4306 = vmatpush1.msra.mxu0 %v3489
        %4307 = vmatprep.subr.mxu0 0.0
        %4308 = vmatpush2.msra.mxu0 0.0
        %4309 = vmatprep.subr.mxu0 0.0
        %4310 = vmatpush2.msra.mxu0 0.0
        %4311 = vmatprep.subr.mxu0 0.0
        %4312 = vmatpush2.msra.mxu0 0.0
        %4313 = vmatprep.subr.mxu0 0.0
        %4314 = vmatpush2.msra.mxu0 0.0
        %4315 = vmatprep.subr.mxu0 0.0
        %4316 = vmatpush2.msra.mxu0 0.0
        %4317 = vmatprep.subr.mxu0 0.0
        %4318 = vmatpush2.msra.mxu0 0.0
        %4319 = vmatprep.subr.mxu0 0.0
        %4320 = vmatpush2.msra.mxu0 0.0
        %4321 = vmatprep.subr.mxu0 0.0
        %4322 = vmatpush2.msra.mxu0 0.0
        %4323 = vmatprep.subr.mxu0 0.0
        %4324 = vmatpush2.msra.mxu0 0.0
        %4325 = vmatprep.subr.mxu0 0.0
        %4326 = vmatpush2.msra.mxu0 0.0
        %4327 = vmatprep.subr.mxu0 0.0
        %4328 = vmatpush2.msra.mxu0 0.0
        %4329 = vmatprep.subr.mxu0 0.0
        %4330 = vmatpush2.msra.mxu0 0.0
        %4331 = vmatprep.subr.mxu0 0.0
        %4332 = vmatpush2.msra.mxu0 0.0
        %4333 = vmatprep.subr.mxu0 0.0
        %4334 = vmatpush2.msra.mxu0 0.0
        %4335 = vmatprep.subr.mxu0 0.0
        %4336 = vmatpush2.msra.mxu0 0.0
        %4337 = vmatprep.subr.mxu0 0.0
        %4338 = vmatpush2.msra.mxu0 0.0
        %4339 = vmatprep.mubr.f32.mxu0 0.0
        %4340 = vmatmul.mubr.f32.gmra.mxu0 %v4270
        %v4341 = vpop.f32.mrf.mxu0
        %v4342 = vadd.f32 0.0, %v4341
        %v4343 = vpop.f32.mrf.mxu0
        %4344 = vmatprep.mubr.f32.mxu0 0.0
        %4345 = vmatmul.mubr.f32.gmra.mxu0 %v4273
        %v4346 = vpop.f32.mrf.mxu0
        %v4347 = vadd.f32 0.0, %v4346
        %v4348 = vpop.f32.mrf.mxu0
        %4349 = vdwg.mxu0
        %v4350 = vadd.f32 %v4065, %v4342
        %v4351 = vadd.f32 %v4066, %v4347
        %4352 = vrot.lane.b32.xlu0 %v3401, 104
        %v4353 = vpop.permute.xlu0 %4352
        %4354 = vrot.lane.b32.xlu0 %v3407, 104
        %v4355 = vpop.permute.xlu0 %4354
        %4356 = vrot.lane.b32.xlu0 %v3403, 104
        %v4357 = vpop.permute.xlu0 %4356
        %4358 = vrot.lane.b32.xlu0 %v3409, 104
        %v4359 = vpop.permute.xlu0 %4358
        %v4360 = vsel %vm724, %v4353, 0
        %v4362 = vsel %vm724, %v4355, 0
        %v4364 = vsel %vm724, %v4357, 0
        %v4366 = vsel %vm724, %v4359, 0
        %4368 = vmatprep.subr.mxu0 0.0
        %4369 = vmatpush1.xpose.msra.mxu0 0.0
        %4370 = vmatprep.subr.mxu0 0.0
        %4371 = vmatpush1.xpose.msra.mxu0 0.0
        %4372 = vmatprep.subr.mxu0 0.0
        %4373 = vmatpush1.xpose.msra.mxu0 0.0
        %4374 = vmatprep.subr.mxu0 0.0
        %4375 = vmatpush1.xpose.msra.mxu0 0.0
        %4376 = vmatprep.subr.mxu0 0.0
        %4377 = vmatpush1.xpose.msra.mxu0 0.0
        %4378 = vmatprep.subr.mxu0 0.0
        %4379 = vmatpush1.xpose.msra.mxu0 0.0
        %4380 = vmatprep.subr.mxu0 0.0
        %4381 = vmatpush1.xpose.msra.mxu0 0.0
        %4382 = vmatprep.subr.mxu0 0.0
        %4383 = vmatpush1.xpose.msra.mxu0 0.0
        %4384 = vmatprep.subr.mxu0 0.0
        %4385 = vmatpush1.xpose.msra.mxu0 0.0
        %4386 = vmatprep.subr.mxu0 0.0
        %4387 = vmatpush1.xpose.msra.mxu0 0.0
        %4388 = vmatprep.subr.mxu0 0.0
        %4389 = vmatpush1.xpose.msra.mxu0 0.0
        %4390 = vmatprep.subr.mxu0 0.0
        %4391 = vmatpush1.xpose.msra.mxu0 0.0
        %4392 = vmatprep.subr.mxu0 0.0
        %4393 = vmatpush1.xpose.msra.mxu0 0.0
        %4394 = vmatprep.subr.mxu0 0.0
        %4395 = vmatpush1.xpose.msra.mxu0 0.0
        %4396 = vmatprep.subr.mxu0 0.0
        %4397 = vmatpush1.xpose.msra.mxu0 %v4366
        %4398 = vmatprep.subr.mxu0 0.0
        %4399 = vmatpush1.xpose.msra.mxu0 %v4364
        %4400 = vmatprep.subr.mxu0 0.0
        %4401 = vmatpush2.xpose.msra.mxu0 0.0
        %4402 = vmatprep.subr.mxu0 0.0
        %4403 = vmatpush2.xpose.msra.mxu0 0.0
        %4404 = vmatprep.subr.mxu0 0.0
        %4405 = vmatpush2.xpose.msra.mxu0 0.0
        %4406 = vmatprep.subr.mxu0 0.0
        %4407 = vmatpush2.xpose.msra.mxu0 0.0
        %4408 = vmatprep.subr.mxu0 0.0
        %4409 = vmatpush2.xpose.msra.mxu0 0.0
        %4410 = vmatprep.subr.mxu0 0.0
        %4411 = vmatpush2.xpose.msra.mxu0 0.0
        %4412 = vmatprep.subr.mxu0 0.0
        %4413 = vmatpush2.xpose.msra.mxu0 0.0
        %4414 = vmatprep.subr.mxu0 0.0
        %4415 = vmatpush2.xpose.msra.mxu0 0.0
        %4416 = vmatprep.subr.mxu0 0.0
        %4417 = vmatpush2.xpose.msra.mxu0 0.0
        %4418 = vmatprep.subr.mxu0 0.0
        %4419 = vmatpush2.xpose.msra.mxu0 0.0
        %4420 = vmatprep.subr.mxu0 0.0
        %4421 = vmatpush2.xpose.msra.mxu0 0.0
        %4422 = vmatprep.subr.mxu0 0.0
        %4423 = vmatpush2.xpose.msra.mxu0 0.0
        %4424 = vmatprep.subr.mxu0 0.0
        %4425 = vmatpush2.xpose.msra.mxu0 0.0
        %4426 = vmatprep.subr.mxu0 0.0
        %4427 = vmatpush2.xpose.msra.mxu0 0.0
        %4428 = vmatprep.subr.mxu0 0.0
        %4429 = vmatpush2.xpose.msra.mxu0 0.0
        %4430 = vmatprep.subr.mxu0 0.0
        %4431 = vmatpush2.xpose.msra.mxu0 0.0
        %4432 = vmatprep.mubr.f32.mxu0 0.0
        %4433 = vmatmul.mubr.f32.gmra.mxu0 %v4360
        %v4434 = vpop.f32.mrf.mxu0
        %v4435 = vadd.f32 0.0, %v4434
        %v4436 = vpop.f32.mrf.mxu0
        %4437 = vmatprep.mubr.f32.mxu0 0.0
        %4438 = vmatmul.mubr.f32.gmra.mxu0 %v4362
        %v4439 = vpop.f32.mrf.mxu0
        %v4440 = vadd.f32 0.0, %v4439
        %v4441 = vpop.f32.mrf.mxu0
        %4442 = vdwg.mxu0
        %v4443 = vsel %vm812, %v4435, -inf
        %4444 = vmax.xlane.f32.xlu0 %v4443
        %v4445 = vpop.xlane.xlu0 %4444
        %v4446 = vsel %vm812, %v4440, -inf
        %4447 = vmax.xlane.f32.xlu0 %v4446
        %v4448 = vpop.xlane.xlu0 %4447
        %v4449 = vsub.f32 %v4435, %v4445
        %v4450 = vsub.f32 %v4440, %v4448
        %v4451 = vmul.f32 %v4449, 1.442695
        %v4452 = vpow.pop %v4451
        %v4453 = vmul.f32 %v4450, 1.442695
        %v4454 = vpow.pop %v4453
        %v4455 = vsel %vm812, %v4452, 0.0
        %4456 = vadd.xlane.f32.xlu0 %v4455
        %v4457 = vpop.xlane.xlu0 %4456
        %v4458 = vsel %vm812, %v4454, 0.0
        %4459 = vadd.xlane.f32.xlu0 %v4458
        %v4460 = vpop.xlane.xlu0 %4459
        %v4461 = vrcp.pop %v4457
        %v4462 = vmul.f32 1.0, %v4461
        %v4463 = vrcp.pop %v4460
        %v4464 = vmul.f32 1.0, %v4463
        %4465 = vrot.lane.b32.xlu0 %v3478, 104
        %v4466 = vpop.permute.xlu0 %4465
        %4467 = vrot.lane.b32.xlu0 %v3483, 104
        %v4468 = vpop.permute.xlu0 %4467
        %v4472 = vsel %vm812, %v4452, 0
        %v4475 = vsel %vm812, %v4454, 0
        %4477 = vmatprep.subr.mxu0 0.0
        %4478 = vmatpush1.msra.mxu0 0.0
        %4479 = vmatprep.subr.mxu0 0.0
        %4480 = vmatpush1.msra.mxu0 0.0
        %4481 = vmatprep.subr.mxu0 0.0
        %4482 = vmatpush1.msra.mxu0 0.0
        %4483 = vmatprep.subr.mxu0 0.0
        %4484 = vmatpush1.msra.mxu0 0.0
        %4485 = vmatprep.subr.mxu0 0.0
        %4486 = vmatpush1.msra.mxu0 0.0
        %4487 = vmatprep.subr.mxu0 0.0
        %4488 = vmatpush1.msra.mxu0 0.0
        %4489 = vmatprep.subr.mxu0 0.0
        %4490 = vmatpush1.msra.mxu0 0.0
        %4491 = vmatprep.subr.mxu0 0.0
        %4492 = vmatpush1.msra.mxu0 0.0
        %4493 = vmatprep.subr.mxu0 0.0
        %4494 = vmatpush1.msra.mxu0 0.0
        %4495 = vmatprep.subr.mxu0 0.0
        %4496 = vmatpush1.msra.mxu0 0.0
        %4497 = vmatprep.subr.mxu0 0.0
        %4498 = vmatpush1.msra.mxu0 0.0
        %4499 = vmatprep.subr.mxu0 0.0
        %4500 = vmatpush1.msra.mxu0 0.0
        %4501 = vmatprep.subr.mxu0 0.0
        %4502 = vmatpush1.msra.mxu0 0.0
        %4503 = vmatprep.subr.mxu0 0.0
        %4504 = vmatpush1.msra.mxu0 0.0
        %4505 = vmatprep.subr.mxu0 0.0
        %4506 = vmatpush1.msra.mxu0 %v4468
        %4507 = vmatprep.subr.mxu0 0.0
        %4508 = vmatpush1.msra.mxu0 %v4466
        %4509 = vmatprep.subr.mxu0 0.0
        %4510 = vmatpush2.msra.mxu0 0.0
        %4511 = vmatprep.subr.mxu0 0.0
        %4512 = vmatpush2.msra.mxu0 0.0
        %4513 = vmatprep.subr.mxu0 0.0
        %4514 = vmatpush2.msra.mxu0 0.0
        %4515 = vmatprep.subr.mxu0 0.0
        %4516 = vmatpush2.msra.mxu0 0.0
        %4517 = vmatprep.subr.mxu0 0.0
        %4518 = vmatpush2.msra.mxu0 0.0
        %4519 = vmatprep.subr.mxu0 0.0
        %4520 = vmatpush2.msra.mxu0 0.0
        %4521 = vmatprep.subr.mxu0 0.0
        %4522 = vmatpush2.msra.mxu0 0.0
        %4523 = vmatprep.subr.mxu0 0.0
        %4524 = vmatpush2.msra.mxu0 0.0
        %4525 = vmatprep.subr.mxu0 0.0
        %4526 = vmatpush2.msra.mxu0 0.0
        %4527 = vmatprep.subr.mxu0 0.0
        %4528 = vmatpush2.msra.mxu0 0.0
        %4529 = vmatprep.subr.mxu0 0.0
        %4530 = vmatpush2.msra.mxu0 0.0
        %4531 = vmatprep.subr.mxu0 0.0
        %4532 = vmatpush2.msra.mxu0 0.0
        %4533 = vmatprep.subr.mxu0 0.0
        %4534 = vmatpush2.msra.mxu0 0.0
        %4535 = vmatprep.subr.mxu0 0.0
        %4536 = vmatpush2.msra.mxu0 0.0
        %4537 = vmatprep.subr.mxu0 0.0
        %4538 = vmatpush2.msra.mxu0 0.0
        %4539 = vmatprep.subr.mxu0 0.0
        %4540 = vmatpush2.msra.mxu0 0.0
        %4541 = vmatprep.mubr.f32.mxu0 0.0
        %4542 = vmatmul.mubr.f32.gmra.mxu0 %v4472
        %v4543 = vpop.f32.mrf.mxu0
        %v4544 = vadd.f32 0.0, %v4543
        %v4545 = vpop.f32.mrf.mxu0
        %4546 = vmatprep.mubr.f32.mxu0 0.0
        %4547 = vmatmul.mubr.f32.gmra.mxu0 %v4475
        %v4548 = vpop.f32.mrf.mxu0
        %v4549 = vadd.f32 0.0, %v4548
        %v4550 = vpop.f32.mrf.mxu0
        %4551 = vdwg.mxu0
        %v4552 = vmul.f32 %v4544, %v4462
        %v4553 = vmul.f32 %v4549, %v4464
        %v4555 = vsel %vm724, %v4552, 0
        %v4558 = vsel %vm724, %v4553, 0
        %4560 = vmatprep.subr.mxu0 0.0
        %4561 = vmatpush1.msra.mxu0 0.0
        %4562 = vmatprep.subr.mxu0 0.0
        %4563 = vmatpush1.msra.mxu0 0.0
        %4564 = vmatprep.subr.mxu0 0.0
        %4565 = vmatpush1.msra.mxu0 0.0
        %4566 = vmatprep.subr.mxu0 0.0
        %4567 = vmatpush1.msra.mxu0 0.0
        %4568 = vmatprep.subr.mxu0 0.0
        %4569 = vmatpush1.msra.mxu0 0.0
        %4570 = vmatprep.subr.mxu0 0.0
        %4571 = vmatpush1.msra.mxu0 0.0
        %4572 = vmatprep.subr.mxu0 0.0
        %4573 = vmatpush1.msra.mxu0 0.0
        %4574 = vmatprep.subr.mxu0 0.0
        %4575 = vmatpush1.msra.mxu0 0.0
        %4576 = vmatprep.subr.mxu0 0.0
        %4577 = vmatpush1.msra.mxu0 0.0
        %4578 = vmatprep.subr.mxu0 0.0
        %4579 = vmatpush1.msra.mxu0 0.0
        %4580 = vmatprep.subr.mxu0 0.0
        %4581 = vmatpush1.msra.mxu0 0.0
        %4582 = vmatprep.subr.mxu0 0.0
        %4583 = vmatpush1.msra.mxu0 0.0
        %4584 = vmatprep.subr.mxu0 0.0
        %4585 = vmatpush1.msra.mxu0 0.0
        %4586 = vmatprep.subr.mxu0 0.0
        %4587 = vmatpush1.msra.mxu0 0.0
        %4588 = vmatprep.subr.mxu0 0.0
        %4589 = vmatpush1.msra.mxu0 0.0
        %4590 = vmatprep.subr.mxu0 0.0
        %4591 = vmatpush1.msra.mxu0 %v3490
        %4592 = vmatprep.subr.mxu0 0.0
        %4593 = vmatpush2.msra.mxu0 0.0
        %4594 = vmatprep.subr.mxu0 0.0
        %4595 = vmatpush2.msra.mxu0 0.0
        %4596 = vmatprep.subr.mxu0 0.0
        %4597 = vmatpush2.msra.mxu0 0.0
        %4598 = vmatprep.subr.mxu0 0.0
        %4599 = vmatpush2.msra.mxu0 0.0
        %4600 = vmatprep.subr.mxu0 0.0
        %4601 = vmatpush2.msra.mxu0 0.0
        %4602 = vmatprep.subr.mxu0 0.0
        %4603 = vmatpush2.msra.mxu0 0.0
        %4604 = vmatprep.subr.mxu0 0.0
        %4605 = vmatpush2.msra.mxu0 0.0
        %4606 = vmatprep.subr.mxu0 0.0
        %4607 = vmatpush2.msra.mxu0 0.0
        %4608 = vmatprep.subr.mxu0 0.0
        %4609 = vmatpush2.msra.mxu0 0.0
        %4610 = vmatprep.subr.mxu0 0.0
        %4611 = vmatpush2.msra.mxu0 0.0
        %4612 = vmatprep.subr.mxu0 0.0
        %4613 = vmatpush2.msra.mxu0 0.0
        %4614 = vmatprep.subr.mxu0 0.0
        %4615 = vmatpush2.msra.mxu0 0.0
        %4616 = vmatprep.subr.mxu0 0.0
        %4617 = vmatpush2.msra.mxu0 0.0
        %4618 = vmatprep.subr.mxu0 0.0
        %4619 = vmatpush2.msra.mxu0 0.0
        %4620 = vmatprep.subr.mxu0 0.0
        %4621 = vmatpush2.msra.mxu0 0.0
        %4622 = vmatprep.subr.mxu0 0.0
        %4623 = vmatpush2.msra.mxu0 0.0
        %4624 = vmatprep.mubr.f32.mxu0 0.0
        %4625 = vmatmul.mubr.f32.gmra.mxu0 %v4555
        %v4626 = vpop.f32.mrf.mxu0
        %v4627 = vadd.f32 0.0, %v4626
        %v4628 = vpop.f32.mrf.mxu0
        %4629 = vmatprep.mubr.f32.mxu0 0.0
        %4630 = vmatmul.mubr.f32.gmra.mxu0 %v4558
        %v4631 = vpop.f32.mrf.mxu0
        %v4632 = vadd.f32 0.0, %v4631
        %v4633 = vpop.f32.mrf.mxu0
        %4634 = vdwg.mxu0
        %v4635 = vadd.f32 %v4350, %v4627
        %v4636 = vadd.f32 %v4351, %v4632
        %4637 = vrot.lane.b32.xlu0 %v3401, 96
        %v4638 = vpop.permute.xlu0 %4637
        %4639 = vrot.lane.b32.xlu0 %v3407, 96
        %v4640 = vpop.permute.xlu0 %4639
        %4641 = vrot.lane.b32.xlu0 %v3403, 96
        %v4642 = vpop.permute.xlu0 %4641
        %4643 = vrot.lane.b32.xlu0 %v3409, 96
        %v4644 = vpop.permute.xlu0 %4643
        %v4645 = vsel %vm724, %v4638, 0
        %v4647 = vsel %vm724, %v4640, 0
        %v4649 = vsel %vm724, %v4642, 0
        %v4651 = vsel %vm724, %v4644, 0
        %4653 = vmatprep.subr.mxu0 0.0
        %4654 = vmatpush1.xpose.msra.mxu0 0.0
        %4655 = vmatprep.subr.mxu0 0.0
        %4656 = vmatpush1.xpose.msra.mxu0 0.0
        %4657 = vmatprep.subr.mxu0 0.0
        %4658 = vmatpush1.xpose.msra.mxu0 0.0
        %4659 = vmatprep.subr.mxu0 0.0
        %4660 = vmatpush1.xpose.msra.mxu0 0.0
        %4661 = vmatprep.subr.mxu0 0.0
        %4662 = vmatpush1.xpose.msra.mxu0 0.0
        %4663 = vmatprep.subr.mxu0 0.0
        %4664 = vmatpush1.xpose.msra.mxu0 0.0
        %4665 = vmatprep.subr.mxu0 0.0
        %4666 = vmatpush1.xpose.msra.mxu0 0.0
        %4667 = vmatprep.subr.mxu0 0.0
        %4668 = vmatpush1.xpose.msra.mxu0 0.0
        %4669 = vmatprep.subr.mxu0 0.0
        %4670 = vmatpush1.xpose.msra.mxu0 0.0
        %4671 = vmatprep.subr.mxu0 0.0
        %4672 = vmatpush1.xpose.msra.mxu0 0.0
        %4673 = vmatprep.subr.mxu0 0.0
        %4674 = vmatpush1.xpose.msra.mxu0 0.0
        %4675 = vmatprep.subr.mxu0 0.0
        %4676 = vmatpush1.xpose.msra.mxu0 0.0
        %4677 = vmatprep.subr.mxu0 0.0
        %4678 = vmatpush1.xpose.msra.mxu0 0.0
        %4679 = vmatprep.subr.mxu0 0.0
        %4680 = vmatpush1.xpose.msra.mxu0 0.0
        %4681 = vmatprep.subr.mxu0 0.0
        %4682 = vmatpush1.xpose.msra.mxu0 %v4651
        %4683 = vmatprep.subr.mxu0 0.0
        %4684 = vmatpush1.xpose.msra.mxu0 %v4649
        %4685 = vmatprep.subr.mxu0 0.0
        %4686 = vmatpush2.xpose.msra.mxu0 0.0
        %4687 = vmatprep.subr.mxu0 0.0
        %4688 = vmatpush2.xpose.msra.mxu0 0.0
        %4689 = vmatprep.subr.mxu0 0.0
        %4690 = vmatpush2.xpose.msra.mxu0 0.0
        %4691 = vmatprep.subr.mxu0 0.0
        %4692 = vmatpush2.xpose.msra.mxu0 0.0
        %4693 = vmatprep.subr.mxu0 0.0
        %4694 = vmatpush2.xpose.msra.mxu0 0.0
        %4695 = vmatprep.subr.mxu0 0.0
        %4696 = vmatpush2.xpose.msra.mxu0 0.0
        %4697 = vmatprep.subr.mxu0 0.0
        %4698 = vmatpush2.xpose.msra.mxu0 0.0
        %4699 = vmatprep.subr.mxu0 0.0
        %4700 = vmatpush2.xpose.msra.mxu0 0.0
        %4701 = vmatprep.subr.mxu0 0.0
        %4702 = vmatpush2.xpose.msra.mxu0 0.0
        %4703 = vmatprep.subr.mxu0 0.0
        %4704 = vmatpush2.xpose.msra.mxu0 0.0
        %4705 = vmatprep.subr.mxu0 0.0
        %4706 = vmatpush2.xpose.msra.mxu0 0.0
        %4707 = vmatprep.subr.mxu0 0.0
        %4708 = vmatpush2.xpose.msra.mxu0 0.0
        %4709 = vmatprep.subr.mxu0 0.0
        %4710 = vmatpush2.xpose.msra.mxu0 0.0
        %4711 = vmatprep.subr.mxu0 0.0
        %4712 = vmatpush2.xpose.msra.mxu0 0.0
        %4713 = vmatprep.subr.mxu0 0.0
        %4714 = vmatpush2.xpose.msra.mxu0 0.0
        %4715 = vmatprep.subr.mxu0 0.0
        %4716 = vmatpush2.xpose.msra.mxu0 0.0
        %4717 = vmatprep.mubr.f32.mxu0 0.0
        %4718 = vmatmul.mubr.f32.gmra.mxu0 %v4645
        %v4719 = vpop.f32.mrf.mxu0
        %v4720 = vadd.f32 0.0, %v4719
        %v4721 = vpop.f32.mrf.mxu0
        %4722 = vmatprep.mubr.f32.mxu0 0.0
        %4723 = vmatmul.mubr.f32.gmra.mxu0 %v4647
        %v4724 = vpop.f32.mrf.mxu0
        %v4725 = vadd.f32 0.0, %v4724
        %v4726 = vpop.f32.mrf.mxu0
        %4727 = vdwg.mxu0
        %v4728 = vsel %vm812, %v4720, -inf
        %4729 = vmax.xlane.f32.xlu0 %v4728
        %v4730 = vpop.xlane.xlu0 %4729
        %v4731 = vsel %vm812, %v4725, -inf
        %4732 = vmax.xlane.f32.xlu0 %v4731
        %v4733 = vpop.xlane.xlu0 %4732
        %v4734 = vsub.f32 %v4720, %v4730
        %v4735 = vsub.f32 %v4725, %v4733
        %v4736 = vmul.f32 %v4734, 1.442695
        %v4737 = vpow.pop %v4736
        %v4738 = vmul.f32 %v4735, 1.442695
        %v4739 = vpow.pop %v4738
        %v4740 = vsel %vm812, %v4737, 0.0
        %4741 = vadd.xlane.f32.xlu0 %v4740
        %v4742 = vpop.xlane.xlu0 %4741
        %v4743 = vsel %vm812, %v4739, 0.0
        %4744 = vadd.xlane.f32.xlu0 %v4743
        %v4745 = vpop.xlane.xlu0 %4744
        %v4746 = vrcp.pop %v4742
        %v4747 = vmul.f32 1.0, %v4746
        %v4748 = vrcp.pop %v4745
        %v4749 = vmul.f32 1.0, %v4748
        %4750 = vrot.lane.b32.xlu0 %v3478, 96
        %v4751 = vpop.permute.xlu0 %4750
        %4752 = vrot.lane.b32.xlu0 %v3483, 96
        %v4753 = vpop.permute.xlu0 %4752
        %v4757 = vsel %vm812, %v4737, 0
        %v4760 = vsel %vm812, %v4739, 0
        %4762 = vmatprep.subr.mxu0 0.0
        %4763 = vmatpush1.msra.mxu0 0.0
        %4764 = vmatprep.subr.mxu0 0.0
        %4765 = vmatpush1.msra.mxu0 0.0
        %4766 = vmatprep.subr.mxu0 0.0
        %4767 = vmatpush1.msra.mxu0 0.0
        %4768 = vmatprep.subr.mxu0 0.0
        %4769 = vmatpush1.msra.mxu0 0.0
        %4770 = vmatprep.subr.mxu0 0.0
        %4771 = vmatpush1.msra.mxu0 0.0
        %4772 = vmatprep.subr.mxu0 0.0
        %4773 = vmatpush1.msra.mxu0 0.0
        %4774 = vmatprep.subr.mxu0 0.0
        %4775 = vmatpush1.msra.mxu0 0.0
        %4776 = vmatprep.subr.mxu0 0.0
        %4777 = vmatpush1.msra.mxu0 0.0
        %4778 = vmatprep.subr.mxu0 0.0
        %4779 = vmatpush1.msra.mxu0 0.0
        %4780 = vmatprep.subr.mxu0 0.0
        %4781 = vmatpush1.msra.mxu0 0.0
        %4782 = vmatprep.subr.mxu0 0.0
        %4783 = vmatpush1.msra.mxu0 0.0
        %4784 = vmatprep.subr.mxu0 0.0
        %4785 = vmatpush1.msra.mxu0 0.0
        %4786 = vmatprep.subr.mxu0 0.0
        %4787 = vmatpush1.msra.mxu0 0.0
        %4788 = vmatprep.subr.mxu0 0.0
        %4789 = vmatpush1.msra.mxu0 0.0
        %4790 = vmatprep.subr.mxu0 0.0
        %4791 = vmatpush1.msra.mxu0 %v4753
        %4792 = vmatprep.subr.mxu0 0.0
        %4793 = vmatpush1.msra.mxu0 %v4751
        %4794 = vmatprep.subr.mxu0 0.0
        %4795 = vmatpush2.msra.mxu0 0.0
        %4796 = vmatprep.subr.mxu0 0.0
        %4797 = vmatpush2.msra.mxu0 0.0
        %4798 = vmatprep.subr.mxu0 0.0
        %4799 = vmatpush2.msra.mxu0 0.0
        %4800 = vmatprep.subr.mxu0 0.0
        %4801 = vmatpush2.msra.mxu0 0.0
        %4802 = vmatprep.subr.mxu0 0.0
        %4803 = vmatpush2.msra.mxu0 0.0
        %4804 = vmatprep.subr.mxu0 0.0
        %4805 = vmatpush2.msra.mxu0 0.0
        %4806 = vmatprep.subr.mxu0 0.0
        %4807 = vmatpush2.msra.mxu0 0.0
        %4808 = vmatprep.subr.mxu0 0.0
        %4809 = vmatpush2.msra.mxu0 0.0
        %4810 = vmatprep.subr.mxu0 0.0
        %4811 = vmatpush2.msra.mxu0 0.0
        %4812 = vmatprep.subr.mxu0 0.0
        %4813 = vmatpush2.msra.mxu0 0.0
        %4814 = vmatprep.subr.mxu0 0.0
        %4815 = vmatpush2.msra.mxu0 0.0
        %4816 = vmatprep.subr.mxu0 0.0
        %4817 = vmatpush2.msra.mxu0 0.0
        %4818 = vmatprep.subr.mxu0 0.0
        %4819 = vmatpush2.msra.mxu0 0.0
        %4820 = vmatprep.subr.mxu0 0.0
        %4821 = vmatpush2.msra.mxu0 0.0
        %4822 = vmatprep.subr.mxu0 0.0
        %4823 = vmatpush2.msra.mxu0 0.0
        %4824 = vmatprep.subr.mxu0 0.0
        %4825 = vmatpush2.msra.mxu0 0.0
        %4826 = vmatprep.mubr.f32.mxu0 0.0
        %4827 = vmatmul.mubr.f32.gmra.mxu0 %v4757
        %v4828 = vpop.f32.mrf.mxu0
        %v4829 = vadd.f32 0.0, %v4828
        %v4830 = vpop.f32.mrf.mxu0
        %4831 = vmatprep.mubr.f32.mxu0 0.0
        %4832 = vmatmul.mubr.f32.gmra.mxu0 %v4760
        %v4833 = vpop.f32.mrf.mxu0
        %v4834 = vadd.f32 0.0, %v4833
        %v4835 = vpop.f32.mrf.mxu0
        %4836 = vdwg.mxu0
        %v4837 = vmul.f32 %v4829, %v4747
        %v4838 = vmul.f32 %v4834, %v4749
        %v4840 = vsel %vm724, %v4837, 0
        %v4843 = vsel %vm724, %v4838, 0
        %4845 = vmatprep.subr.mxu0 0.0
        %4846 = vmatpush1.msra.mxu0 0.0
        %4847 = vmatprep.subr.mxu0 0.0
        %4848 = vmatpush1.msra.mxu0 0.0
        %4849 = vmatprep.subr.mxu0 0.0
        %4850 = vmatpush1.msra.mxu0 0.0
        %4851 = vmatprep.subr.mxu0 0.0
        %4852 = vmatpush1.msra.mxu0 0.0
        %4853 = vmatprep.subr.mxu0 0.0
        %4854 = vmatpush1.msra.mxu0 0.0
        %4855 = vmatprep.subr.mxu0 0.0
        %4856 = vmatpush1.msra.mxu0 0.0
        %4857 = vmatprep.subr.mxu0 0.0
        %4858 = vmatpush1.msra.mxu0 0.0
        %4859 = vmatprep.subr.mxu0 0.0
        %4860 = vmatpush1.msra.mxu0 0.0
        %4861 = vmatprep.subr.mxu0 0.0
        %4862 = vmatpush1.msra.mxu0 0.0
        %4863 = vmatprep.subr.mxu0 0.0
        %4864 = vmatpush1.msra.mxu0 0.0
        %4865 = vmatprep.subr.mxu0 0.0
        %4866 = vmatpush1.msra.mxu0 0.0
        %4867 = vmatprep.subr.mxu0 0.0
        %4868 = vmatpush1.msra.mxu0 0.0
        %4869 = vmatprep.subr.mxu0 0.0
        %4870 = vmatpush1.msra.mxu0 0.0
        %4871 = vmatprep.subr.mxu0 0.0
        %4872 = vmatpush1.msra.mxu0 0.0
        %4873 = vmatprep.subr.mxu0 0.0
        %4874 = vmatpush1.msra.mxu0 0.0
        %4875 = vmatprep.subr.mxu0 0.0
        %4876 = vmatpush1.msra.mxu0 %v3491
        %4877 = vmatprep.subr.mxu0 0.0
        %4878 = vmatpush2.msra.mxu0 0.0
        %4879 = vmatprep.subr.mxu0 0.0
        %4880 = vmatpush2.msra.mxu0 0.0
        %4881 = vmatprep.subr.mxu0 0.0
        %4882 = vmatpush2.msra.mxu0 0.0
        %4883 = vmatprep.subr.mxu0 0.0
        %4884 = vmatpush2.msra.mxu0 0.0
        %4885 = vmatprep.subr.mxu0 0.0
        %4886 = vmatpush2.msra.mxu0 0.0
        %4887 = vmatprep.subr.mxu0 0.0
        %4888 = vmatpush2.msra.mxu0 0.0
        %4889 = vmatprep.subr.mxu0 0.0
        %4890 = vmatpush2.msra.mxu0 0.0
        %4891 = vmatprep.subr.mxu0 0.0
        %4892 = vmatpush2.msra.mxu0 0.0
        %4893 = vmatprep.subr.mxu0 0.0
        %4894 = vmatpush2.msra.mxu0 0.0
        %4895 = vmatprep.subr.mxu0 0.0
        %4896 = vmatpush2.msra.mxu0 0.0
        %4897 = vmatprep.subr.mxu0 0.0
        %4898 = vmatpush2.msra.mxu0 0.0
        %4899 = vmatprep.subr.mxu0 0.0
        %4900 = vmatpush2.msra.mxu0 0.0
        %4901 = vmatprep.subr.mxu0 0.0
        %4902 = vmatpush2.msra.mxu0 0.0
        %4903 = vmatprep.subr.mxu0 0.0
        %4904 = vmatpush2.msra.mxu0 0.0
        %4905 = vmatprep.subr.mxu0 0.0
        %4906 = vmatpush2.msra.mxu0 0.0
        %4907 = vmatprep.subr.mxu0 0.0
        %4908 = vmatpush2.msra.mxu0 0.0
        %4909 = vmatprep.mubr.f32.mxu0 0.0
        %4910 = vmatmul.mubr.f32.gmra.mxu0 %v4840
        %v4911 = vpop.f32.mrf.mxu0
        %v4912 = vadd.f32 0.0, %v4911
        %v4913 = vpop.f32.mrf.mxu0
        %4914 = vmatprep.mubr.f32.mxu0 0.0
        %4915 = vmatmul.mubr.f32.gmra.mxu0 %v4843
        %v4916 = vpop.f32.mrf.mxu0
        %v4917 = vadd.f32 0.0, %v4916
        %v4918 = vpop.f32.mrf.mxu0
        %4919 = vdwg.mxu0
        %v4920 = vadd.f32 %v4635, %v4912
        %v4921 = vadd.f32 %v4636, %v4917
        %4922 = vrot.lane.b32.xlu0 %v3401, 88
        %v4923 = vpop.permute.xlu0 %4922
        %4924 = vrot.lane.b32.xlu0 %v3407, 88
        %v4925 = vpop.permute.xlu0 %4924
        %4926 = vrot.lane.b32.xlu0 %v3403, 88
        %v4927 = vpop.permute.xlu0 %4926
        %4928 = vrot.lane.b32.xlu0 %v3409, 88
        %v4929 = vpop.permute.xlu0 %4928
        %v4930 = vsel %vm724, %v4923, 0
        %v4932 = vsel %vm724, %v4925, 0
        %v4934 = vsel %vm724, %v4927, 0
        %v4936 = vsel %vm724, %v4929, 0
        %4938 = vmatprep.subr.mxu0 0.0
        %4939 = vmatpush1.xpose.msra.mxu0 0.0
        %4940 = vmatprep.subr.mxu0 0.0
        %4941 = vmatpush1.xpose.msra.mxu0 0.0
        %4942 = vmatprep.subr.mxu0 0.0
        %4943 = vmatpush1.xpose.msra.mxu0 0.0
        %4944 = vmatprep.subr.mxu0 0.0
        %4945 = vmatpush1.xpose.msra.mxu0 0.0
        %4946 = vmatprep.subr.mxu0 0.0
        %4947 = vmatpush1.xpose.msra.mxu0 0.0
        %4948 = vmatprep.subr.mxu0 0.0
        %4949 = vmatpush1.xpose.msra.mxu0 0.0
        %4950 = vmatprep.subr.mxu0 0.0
        %4951 = vmatpush1.xpose.msra.mxu0 0.0
        %4952 = vmatprep.subr.mxu0 0.0
        %4953 = vmatpush1.xpose.msra.mxu0 0.0
        %4954 = vmatprep.subr.mxu0 0.0
        %4955 = vmatpush1.xpose.msra.mxu0 0.0
        %4956 = vmatprep.subr.mxu0 0.0
        %4957 = vmatpush1.xpose.msra.mxu0 0.0
        %4958 = vmatprep.subr.mxu0 0.0
        %4959 = vmatpush1.xpose.msra.mxu0 0.0
        %4960 = vmatprep.subr.mxu0 0.0
        %4961 = vmatpush1.xpose.msra.mxu0 0.0
        %4962 = vmatprep.subr.mxu0 0.0
        %4963 = vmatpush1.xpose.msra.mxu0 0.0
        %4964 = vmatprep.subr.mxu0 0.0
        %4965 = vmatpush1.xpose.msra.mxu0 0.0
        %4966 = vmatprep.subr.mxu0 0.0
        %4967 = vmatpush1.xpose.msra.mxu0 %v4936
        %4968 = vmatprep.subr.mxu0 0.0
        %4969 = vmatpush1.xpose.msra.mxu0 %v4934
        %4970 = vmatprep.subr.mxu0 0.0
        %4971 = vmatpush2.xpose.msra.mxu0 0.0
        %4972 = vmatprep.subr.mxu0 0.0
        %4973 = vmatpush2.xpose.msra.mxu0 0.0
        %4974 = vmatprep.subr.mxu0 0.0
        %4975 = vmatpush2.xpose.msra.mxu0 0.0
        %4976 = vmatprep.subr.mxu0 0.0
        %4977 = vmatpush2.xpose.msra.mxu0 0.0
        %4978 = vmatprep.subr.mxu0 0.0
        %4979 = vmatpush2.xpose.msra.mxu0 0.0
        %4980 = vmatprep.subr.mxu0 0.0
        %4981 = vmatpush2.xpose.msra.mxu0 0.0
        %4982 = vmatprep.subr.mxu0 0.0
        %4983 = vmatpush2.xpose.msra.mxu0 0.0
        %4984 = vmatprep.subr.mxu0 0.0
        %4985 = vmatpush2.xpose.msra.mxu0 0.0
        %4986 = vmatprep.subr.mxu0 0.0
        %4987 = vmatpush2.xpose.msra.mxu0 0.0
        %4988 = vmatprep.subr.mxu0 0.0
        %4989 = vmatpush2.xpose.msra.mxu0 0.0
        %4990 = vmatprep.subr.mxu0 0.0
        %4991 = vmatpush2.xpose.msra.mxu0 0.0
        %4992 = vmatprep.subr.mxu0 0.0
        %4993 = vmatpush2.xpose.msra.mxu0 0.0
        %4994 = vmatprep.subr.mxu0 0.0
        %4995 = vmatpush2.xpose.msra.mxu0 0.0
        %4996 = vmatprep.subr.mxu0 0.0
        %4997 = vmatpush2.xpose.msra.mxu0 0.0
        %4998 = vmatprep.subr.mxu0 0.0
        %4999 = vmatpush2.xpose.msra.mxu0 0.0
        %5000 = vmatprep.subr.mxu0 0.0
        %5001 = vmatpush2.xpose.msra.mxu0 0.0
        %5002 = vmatprep.mubr.f32.mxu0 0.0
        %5003 = vmatmul.mubr.f32.gmra.mxu0 %v4930
        %v5004 = vpop.f32.mrf.mxu0
        %v5005 = vadd.f32 0.0, %v5004
        %v5006 = vpop.f32.mrf.mxu0
        %5007 = vmatprep.mubr.f32.mxu0 0.0
        %5008 = vmatmul.mubr.f32.gmra.mxu0 %v4932
        %v5009 = vpop.f32.mrf.mxu0
        %v5010 = vadd.f32 0.0, %v5009
        %v5011 = vpop.f32.mrf.mxu0
        %5012 = vdwg.mxu0
        %v5013 = vsel %vm812, %v5005, -inf
        %5014 = vmax.xlane.f32.xlu0 %v5013
        %v5015 = vpop.xlane.xlu0 %5014
        %v5016 = vsel %vm812, %v5010, -inf
        %5017 = vmax.xlane.f32.xlu0 %v5016
        %v5018 = vpop.xlane.xlu0 %5017
        %v5019 = vsub.f32 %v5005, %v5015
        %v5020 = vsub.f32 %v5010, %v5018
        %v5021 = vmul.f32 %v5019, 1.442695
        %v5022 = vpow.pop %v5021
        %v5023 = vmul.f32 %v5020, 1.442695
        %v5024 = vpow.pop %v5023
        %v5025 = vsel %vm812, %v5022, 0.0
        %5026 = vadd.xlane.f32.xlu0 %v5025
        %v5027 = vpop.xlane.xlu0 %5026
        %v5028 = vsel %vm812, %v5024, 0.0
        %5029 = vadd.xlane.f32.xlu0 %v5028
        %v5030 = vpop.xlane.xlu0 %5029
        %v5031 = vrcp.pop %v5027
        %v5032 = vmul.f32 1.0, %v5031
        %v5033 = vrcp.pop %v5030
        %v5034 = vmul.f32 1.0, %v5033
        %5035 = vrot.lane.b32.xlu0 %v3478, 88
        %v5036 = vpop.permute.xlu0 %5035
        %5037 = vrot.lane.b32.xlu0 %v3483, 88
        %v5038 = vpop.permute.xlu0 %5037
        %v5042 = vsel %vm812, %v5022, 0
        %v5045 = vsel %vm812, %v5024, 0
        %5047 = vmatprep.subr.mxu0 0.0
        %5048 = vmatpush1.msra.mxu0 0.0
        %5049 = vmatprep.subr.mxu0 0.0
        %5050 = vmatpush1.msra.mxu0 0.0
        %5051 = vmatprep.subr.mxu0 0.0
        %5052 = vmatpush1.msra.mxu0 0.0
        %5053 = vmatprep.subr.mxu0 0.0
        %5054 = vmatpush1.msra.mxu0 0.0
        %5055 = vmatprep.subr.mxu0 0.0
        %5056 = vmatpush1.msra.mxu0 0.0
        %5057 = vmatprep.subr.mxu0 0.0
        %5058 = vmatpush1.msra.mxu0 0.0
        %5059 = vmatprep.subr.mxu0 0.0
        %5060 = vmatpush1.msra.mxu0 0.0
        %5061 = vmatprep.subr.mxu0 0.0
        %5062 = vmatpush1.msra.mxu0 0.0
        %5063 = vmatprep.subr.mxu0 0.0
        %5064 = vmatpush1.msra.mxu0 0.0
        %5065 = vmatprep.subr.mxu0 0.0
        %5066 = vmatpush1.msra.mxu0 0.0
        %5067 = vmatprep.subr.mxu0 0.0
        %5068 = vmatpush1.msra.mxu0 0.0
        %5069 = vmatprep.subr.mxu0 0.0
        %5070 = vmatpush1.msra.mxu0 0.0
        %5071 = vmatprep.subr.mxu0 0.0
        %5072 = vmatpush1.msra.mxu0 0.0
        %5073 = vmatprep.subr.mxu0 0.0
        %5074 = vmatpush1.msra.mxu0 0.0
        %5075 = vmatprep.subr.mxu0 0.0
        %5076 = vmatpush1.msra.mxu0 %v5038
        %5077 = vmatprep.subr.mxu0 0.0
        %5078 = vmatpush1.msra.mxu0 %v5036
        %5079 = vmatprep.subr.mxu0 0.0
        %5080 = vmatpush2.msra.mxu0 0.0
        %5081 = vmatprep.subr.mxu0 0.0
        %5082 = vmatpush2.msra.mxu0 0.0
        %5083 = vmatprep.subr.mxu0 0.0
        %5084 = vmatpush2.msra.mxu0 0.0
        %5085 = vmatprep.subr.mxu0 0.0
        %5086 = vmatpush2.msra.mxu0 0.0
        %5087 = vmatprep.subr.mxu0 0.0
        %5088 = vmatpush2.msra.mxu0 0.0
        %5089 = vmatprep.subr.mxu0 0.0
        %5090 = vmatpush2.msra.mxu0 0.0
        %5091 = vmatprep.subr.mxu0 0.0
        %5092 = vmatpush2.msra.mxu0 0.0
        %5093 = vmatprep.subr.mxu0 0.0
        %5094 = vmatpush2.msra.mxu0 0.0
        %5095 = vmatprep.subr.mxu0 0.0
        %5096 = vmatpush2.msra.mxu0 0.0
        %5097 = vmatprep.subr.mxu0 0.0
        %5098 = vmatpush2.msra.mxu0 0.0
        %5099 = vmatprep.subr.mxu0 0.0
        %5100 = vmatpush2.msra.mxu0 0.0
        %5101 = vmatprep.subr.mxu0 0.0
        %5102 = vmatpush2.msra.mxu0 0.0
        %5103 = vmatprep.subr.mxu0 0.0
        %5104 = vmatpush2.msra.mxu0 0.0
        %5105 = vmatprep.subr.mxu0 0.0
        %5106 = vmatpush2.msra.mxu0 0.0
        %5107 = vmatprep.subr.mxu0 0.0
        %5108 = vmatpush2.msra.mxu0 0.0
        %5109 = vmatprep.subr.mxu0 0.0
        %5110 = vmatpush2.msra.mxu0 0.0
        %5111 = vmatprep.mubr.f32.mxu0 0.0
        %5112 = vmatmul.mubr.f32.gmra.mxu0 %v5042
        %v5113 = vpop.f32.mrf.mxu0
        %v5114 = vadd.f32 0.0, %v5113
        %v5115 = vpop.f32.mrf.mxu0
        %5116 = vmatprep.mubr.f32.mxu0 0.0
        %5117 = vmatmul.mubr.f32.gmra.mxu0 %v5045
        %v5118 = vpop.f32.mrf.mxu0
        %v5119 = vadd.f32 0.0, %v5118
        %v5120 = vpop.f32.mrf.mxu0
        %5121 = vdwg.mxu0
        %v5122 = vmul.f32 %v5114, %v5032
        %v5123 = vmul.f32 %v5119, %v5034
        %v5125 = vsel %vm724, %v5122, 0
        %v5128 = vsel %vm724, %v5123, 0
        %5130 = vmatprep.subr.mxu0 0.0
        %5131 = vmatpush1.msra.mxu0 0.0
        %5132 = vmatprep.subr.mxu0 0.0
        %5133 = vmatpush1.msra.mxu0 0.0
        %5134 = vmatprep.subr.mxu0 0.0
        %5135 = vmatpush1.msra.mxu0 0.0
        %5136 = vmatprep.subr.mxu0 0.0
        %5137 = vmatpush1.msra.mxu0 0.0
        %5138 = vmatprep.subr.mxu0 0.0
        %5139 = vmatpush1.msra.mxu0 0.0
        %5140 = vmatprep.subr.mxu0 0.0
        %5141 = vmatpush1.msra.mxu0 0.0
        %5142 = vmatprep.subr.mxu0 0.0
        %5143 = vmatpush1.msra.mxu0 0.0
        %5144 = vmatprep.subr.mxu0 0.0
        %5145 = vmatpush1.msra.mxu0 0.0
        %5146 = vmatprep.subr.mxu0 0.0
        %5147 = vmatpush1.msra.mxu0 0.0
        %5148 = vmatprep.subr.mxu0 0.0
        %5149 = vmatpush1.msra.mxu0 0.0
        %5150 = vmatprep.subr.mxu0 0.0
        %5151 = vmatpush1.msra.mxu0 0.0
        %5152 = vmatprep.subr.mxu0 0.0
        %5153 = vmatpush1.msra.mxu0 0.0
        %5154 = vmatprep.subr.mxu0 0.0
        %5155 = vmatpush1.msra.mxu0 0.0
        %5156 = vmatprep.subr.mxu0 0.0
        %5157 = vmatpush1.msra.mxu0 0.0
        %5158 = vmatprep.subr.mxu0 0.0
        %5159 = vmatpush1.msra.mxu0 0.0
        %5160 = vmatprep.subr.mxu0 0.0
        %5161 = vmatpush1.msra.mxu0 %v3492
        %5162 = vmatprep.subr.mxu0 0.0
        %5163 = vmatpush2.msra.mxu0 0.0
        %5164 = vmatprep.subr.mxu0 0.0
        %5165 = vmatpush2.msra.mxu0 0.0
        %5166 = vmatprep.subr.mxu0 0.0
        %5167 = vmatpush2.msra.mxu0 0.0
        %5168 = vmatprep.subr.mxu0 0.0
        %5169 = vmatpush2.msra.mxu0 0.0
        %5170 = vmatprep.subr.mxu0 0.0
        %5171 = vmatpush2.msra.mxu0 0.0
        %5172 = vmatprep.subr.mxu0 0.0
        %5173 = vmatpush2.msra.mxu0 0.0
        %5174 = vmatprep.subr.mxu0 0.0
        %5175 = vmatpush2.msra.mxu0 0.0
        %5176 = vmatprep.subr.mxu0 0.0
        %5177 = vmatpush2.msra.mxu0 0.0
        %5178 = vmatprep.subr.mxu0 0.0
        %5179 = vmatpush2.msra.mxu0 0.0
        %5180 = vmatprep.subr.mxu0 0.0
        %5181 = vmatpush2.msra.mxu0 0.0
        %5182 = vmatprep.subr.mxu0 0.0
        %5183 = vmatpush2.msra.mxu0 0.0
        %5184 = vmatprep.subr.mxu0 0.0
        %5185 = vmatpush2.msra.mxu0 0.0
        %5186 = vmatprep.subr.mxu0 0.0
        %5187 = vmatpush2.msra.mxu0 0.0
        %5188 = vmatprep.subr.mxu0 0.0
        %5189 = vmatpush2.msra.mxu0 0.0
        %5190 = vmatprep.subr.mxu0 0.0
        %5191 = vmatpush2.msra.mxu0 0.0
        %5192 = vmatprep.subr.mxu0 0.0
        %5193 = vmatpush2.msra.mxu0 0.0
        %5194 = vmatprep.mubr.f32.mxu0 0.0
        %5195 = vmatmul.mubr.f32.gmra.mxu0 %v5125
        %v5196 = vpop.f32.mrf.mxu0
        %v5197 = vadd.f32 0.0, %v5196
        %v5198 = vpop.f32.mrf.mxu0
        %5199 = vmatprep.mubr.f32.mxu0 0.0
        %5200 = vmatmul.mubr.f32.gmra.mxu0 %v5128
        %v5201 = vpop.f32.mrf.mxu0
        %v5202 = vadd.f32 0.0, %v5201
        %v5203 = vpop.f32.mrf.mxu0
        %5204 = vdwg.mxu0
        %v5205 = vadd.f32 %v4920, %v5197
        %v5206 = vadd.f32 %v4921, %v5202
        %5207 = vrot.lane.b32.xlu0 %v3401, 80
        %v5208 = vpop.permute.xlu0 %5207
        %5209 = vrot.lane.b32.xlu0 %v3407, 80
        %v5210 = vpop.permute.xlu0 %5209
        %5211 = vrot.lane.b32.xlu0 %v3403, 80
        %v5212 = vpop.permute.xlu0 %5211
        %5213 = vrot.lane.b32.xlu0 %v3409, 80
        %v5214 = vpop.permute.xlu0 %5213
        %v5215 = vsel %vm724, %v5208, 0
        %v5217 = vsel %vm724, %v5210, 0
        %v5219 = vsel %vm724, %v5212, 0
        %v5221 = vsel %vm724, %v5214, 0
        %5223 = vmatprep.subr.mxu0 0.0
        %5224 = vmatpush1.xpose.msra.mxu0 0.0
        %5225 = vmatprep.subr.mxu0 0.0
        %5226 = vmatpush1.xpose.msra.mxu0 0.0
        %5227 = vmatprep.subr.mxu0 0.0
        %5228 = vmatpush1.xpose.msra.mxu0 0.0
        %5229 = vmatprep.subr.mxu0 0.0
        %5230 = vmatpush1.xpose.msra.mxu0 0.0
        %5231 = vmatprep.subr.mxu0 0.0
        %5232 = vmatpush1.xpose.msra.mxu0 0.0
        %5233 = vmatprep.subr.mxu0 0.0
        %5234 = vmatpush1.xpose.msra.mxu0 0.0
        %5235 = vmatprep.subr.mxu0 0.0
        %5236 = vmatpush1.xpose.msra.mxu0 0.0
        %5237 = vmatprep.subr.mxu0 0.0
        %5238 = vmatpush1.xpose.msra.mxu0 0.0
        %5239 = vmatprep.subr.mxu0 0.0
        %5240 = vmatpush1.xpose.msra.mxu0 0.0
        %5241 = vmatprep.subr.mxu0 0.0
        %5242 = vmatpush1.xpose.msra.mxu0 0.0
        %5243 = vmatprep.subr.mxu0 0.0
        %5244 = vmatpush1.xpose.msra.mxu0 0.0
        %5245 = vmatprep.subr.mxu0 0.0
        %5246 = vmatpush1.xpose.msra.mxu0 0.0
        %5247 = vmatprep.subr.mxu0 0.0
        %5248 = vmatpush1.xpose.msra.mxu0 0.0
        %5249 = vmatprep.subr.mxu0 0.0
        %5250 = vmatpush1.xpose.msra.mxu0 0.0
        %5251 = vmatprep.subr.mxu0 0.0
        %5252 = vmatpush1.xpose.msra.mxu0 %v5221
        %5253 = vmatprep.subr.mxu0 0.0
        %5254 = vmatpush1.xpose.msra.mxu0 %v5219
        %5255 = vmatprep.subr.mxu0 0.0
        %5256 = vmatpush2.xpose.msra.mxu0 0.0
        %5257 = vmatprep.subr.mxu0 0.0
        %5258 = vmatpush2.xpose.msra.mxu0 0.0
        %5259 = vmatprep.subr.mxu0 0.0
        %5260 = vmatpush2.xpose.msra.mxu0 0.0
        %5261 = vmatprep.subr.mxu0 0.0
        %5262 = vmatpush2.xpose.msra.mxu0 0.0
        %5263 = vmatprep.subr.mxu0 0.0
        %5264 = vmatpush2.xpose.msra.mxu0 0.0
        %5265 = vmatprep.subr.mxu0 0.0
        %5266 = vmatpush2.xpose.msra.mxu0 0.0
        %5267 = vmatprep.subr.mxu0 0.0
        %5268 = vmatpush2.xpose.msra.mxu0 0.0
        %5269 = vmatprep.subr.mxu0 0.0
        %5270 = vmatpush2.xpose.msra.mxu0 0.0
        %5271 = vmatprep.subr.mxu0 0.0
        %5272 = vmatpush2.xpose.msra.mxu0 0.0
        %5273 = vmatprep.subr.mxu0 0.0
        %5274 = vmatpush2.xpose.msra.mxu0 0.0
        %5275 = vmatprep.subr.mxu0 0.0
        %5276 = vmatpush2.xpose.msra.mxu0 0.0
        %5277 = vmatprep.subr.mxu0 0.0
        %5278 = vmatpush2.xpose.msra.mxu0 0.0
        %5279 = vmatprep.subr.mxu0 0.0
        %5280 = vmatpush2.xpose.msra.mxu0 0.0
        %5281 = vmatprep.subr.mxu0 0.0
        %5282 = vmatpush2.xpose.msra.mxu0 0.0
        %5283 = vmatprep.subr.mxu0 0.0
        %5284 = vmatpush2.xpose.msra.mxu0 0.0
        %5285 = vmatprep.subr.mxu0 0.0
        %5286 = vmatpush2.xpose.msra.mxu0 0.0
        %5287 = vmatprep.mubr.f32.mxu0 0.0
        %5288 = vmatmul.mubr.f32.gmra.mxu0 %v5215
        %v5289 = vpop.f32.mrf.mxu0
        %v5290 = vadd.f32 0.0, %v5289
        %v5291 = vpop.f32.mrf.mxu0
        %5292 = vmatprep.mubr.f32.mxu0 0.0
        %5293 = vmatmul.mubr.f32.gmra.mxu0 %v5217
        %v5294 = vpop.f32.mrf.mxu0
        %v5295 = vadd.f32 0.0, %v5294
        %v5296 = vpop.f32.mrf.mxu0
        %5297 = vdwg.mxu0
        %v5298 = vsel %vm812, %v5290, -inf
        %5299 = vmax.xlane.f32.xlu0 %v5298
        %v5300 = vpop.xlane.xlu0 %5299
        %v5301 = vsel %vm812, %v5295, -inf
        %5302 = vmax.xlane.f32.xlu0 %v5301
        %v5303 = vpop.xlane.xlu0 %5302
        %v5304 = vsub.f32 %v5290, %v5300
        %v5305 = vsub.f32 %v5295, %v5303
        %v5306 = vmul.f32 %v5304, 1.442695
        %v5307 = vpow.pop %v5306
        %v5308 = vmul.f32 %v5305, 1.442695
        %v5309 = vpow.pop %v5308
        %v5310 = vsel %vm812, %v5307, 0.0
        %5311 = vadd.xlane.f32.xlu0 %v5310
        %v5312 = vpop.xlane.xlu0 %5311
        %v5313 = vsel %vm812, %v5309, 0.0
        %5314 = vadd.xlane.f32.xlu0 %v5313
        %v5315 = vpop.xlane.xlu0 %5314
        %v5316 = vrcp.pop %v5312
        %v5317 = vmul.f32 1.0, %v5316
        %v5318 = vrcp.pop %v5315
        %v5319 = vmul.f32 1.0, %v5318
        %5320 = vrot.lane.b32.xlu0 %v3478, 80
        %v5321 = vpop.permute.xlu0 %5320
        %5322 = vrot.lane.b32.xlu0 %v3483, 80
        %v5323 = vpop.permute.xlu0 %5322
        %v5327 = vsel %vm812, %v5307, 0
        %v5330 = vsel %vm812, %v5309, 0
        %5332 = vmatprep.subr.mxu0 0.0
        %5333 = vmatpush1.msra.mxu0 0.0
        %5334 = vmatprep.subr.mxu0 0.0
        %5335 = vmatpush1.msra.mxu0 0.0
        %5336 = vmatprep.subr.mxu0 0.0
        %5337 = vmatpush1.msra.mxu0 0.0
        %5338 = vmatprep.subr.mxu0 0.0
        %5339 = vmatpush1.msra.mxu0 0.0
        %5340 = vmatprep.subr.mxu0 0.0
        %5341 = vmatpush1.msra.mxu0 0.0
        %5342 = vmatprep.subr.mxu0 0.0
        %5343 = vmatpush1.msra.mxu0 0.0
        %5344 = vmatprep.subr.mxu0 0.0
        %5345 = vmatpush1.msra.mxu0 0.0
        %5346 = vmatprep.subr.mxu0 0.0
        %5347 = vmatpush1.msra.mxu0 0.0
        %5348 = vmatprep.subr.mxu0 0.0
        %5349 = vmatpush1.msra.mxu0 0.0
        %5350 = vmatprep.subr.mxu0 0.0
        %5351 = vmatpush1.msra.mxu0 0.0
        %5352 = vmatprep.subr.mxu0 0.0
        %5353 = vmatpush1.msra.mxu0 0.0
        %5354 = vmatprep.subr.mxu0 0.0
        %5355 = vmatpush1.msra.mxu0 0.0
        %5356 = vmatprep.subr.mxu0 0.0
        %5357 = vmatpush1.msra.mxu0 0.0
        %5358 = vmatprep.subr.mxu0 0.0
        %5359 = vmatpush1.msra.mxu0 0.0
        %5360 = vmatprep.subr.mxu0 0.0
        %5361 = vmatpush1.msra.mxu0 %v5323
        %5362 = vmatprep.subr.mxu0 0.0
        %5363 = vmatpush1.msra.mxu0 %v5321
        %5364 = vmatprep.subr.mxu0 0.0
        %5365 = vmatpush2.msra.mxu0 0.0
        %5366 = vmatprep.subr.mxu0 0.0
        %5367 = vmatpush2.msra.mxu0 0.0
        %5368 = vmatprep.subr.mxu0 0.0
        %5369 = vmatpush2.msra.mxu0 0.0
        %5370 = vmatprep.subr.mxu0 0.0
        %5371 = vmatpush2.msra.mxu0 0.0
        %5372 = vmatprep.subr.mxu0 0.0
        %5373 = vmatpush2.msra.mxu0 0.0
        %5374 = vmatprep.subr.mxu0 0.0
        %5375 = vmatpush2.msra.mxu0 0.0
        %5376 = vmatprep.subr.mxu0 0.0
        %5377 = vmatpush2.msra.mxu0 0.0
        %5378 = vmatprep.subr.mxu0 0.0
        %5379 = vmatpush2.msra.mxu0 0.0
        %5380 = vmatprep.subr.mxu0 0.0
        %5381 = vmatpush2.msra.mxu0 0.0
        %5382 = vmatprep.subr.mxu0 0.0
        %5383 = vmatpush2.msra.mxu0 0.0
        %5384 = vmatprep.subr.mxu0 0.0
        %5385 = vmatpush2.msra.mxu0 0.0
        %5386 = vmatprep.subr.mxu0 0.0
        %5387 = vmatpush2.msra.mxu0 0.0
        %5388 = vmatprep.subr.mxu0 0.0
        %5389 = vmatpush2.msra.mxu0 0.0
        %5390 = vmatprep.subr.mxu0 0.0
        %5391 = vmatpush2.msra.mxu0 0.0
        %5392 = vmatprep.subr.mxu0 0.0
        %5393 = vmatpush2.msra.mxu0 0.0
        %5394 = vmatprep.subr.mxu0 0.0
        %5395 = vmatpush2.msra.mxu0 0.0
        %5396 = vmatprep.mubr.f32.mxu0 0.0
        %5397 = vmatmul.mubr.f32.gmra.mxu0 %v5327
        %v5398 = vpop.f32.mrf.mxu0
        %v5399 = vadd.f32 0.0, %v5398
        %v5400 = vpop.f32.mrf.mxu0
        %5401 = vmatprep.mubr.f32.mxu0 0.0
        %5402 = vmatmul.mubr.f32.gmra.mxu0 %v5330
        %v5403 = vpop.f32.mrf.mxu0
        %v5404 = vadd.f32 0.0, %v5403
        %v5405 = vpop.f32.mrf.mxu0
        %5406 = vdwg.mxu0
        %v5407 = vmul.f32 %v5399, %v5317
        %v5408 = vmul.f32 %v5404, %v5319
        %v5410 = vsel %vm724, %v5407, 0
        %v5413 = vsel %vm724, %v5408, 0
        %5415 = vmatprep.subr.mxu0 0.0
        %5416 = vmatpush1.msra.mxu0 0.0
        %5417 = vmatprep.subr.mxu0 0.0
        %5418 = vmatpush1.msra.mxu0 0.0
        %5419 = vmatprep.subr.mxu0 0.0
        %5420 = vmatpush1.msra.mxu0 0.0
        %5421 = vmatprep.subr.mxu0 0.0
        %5422 = vmatpush1.msra.mxu0 0.0
        %5423 = vmatprep.subr.mxu0 0.0
        %5424 = vmatpush1.msra.mxu0 0.0
        %5425 = vmatprep.subr.mxu0 0.0
        %5426 = vmatpush1.msra.mxu0 0.0
        %5427 = vmatprep.subr.mxu0 0.0
        %5428 = vmatpush1.msra.mxu0 0.0
        %5429 = vmatprep.subr.mxu0 0.0
        %5430 = vmatpush1.msra.mxu0 0.0
        %5431 = vmatprep.subr.mxu0 0.0
        %5432 = vmatpush1.msra.mxu0 0.0
        %5433 = vmatprep.subr.mxu0 0.0
        %5434 = vmatpush1.msra.mxu0 0.0
        %5435 = vmatprep.subr.mxu0 0.0
        %5436 = vmatpush1.msra.mxu0 0.0
        %5437 = vmatprep.subr.mxu0 0.0
        %5438 = vmatpush1.msra.mxu0 0.0
        %5439 = vmatprep.subr.mxu0 0.0
        %5440 = vmatpush1.msra.mxu0 0.0
        %5441 = vmatprep.subr.mxu0 0.0
        %5442 = vmatpush1.msra.mxu0 0.0
        %5443 = vmatprep.subr.mxu0 0.0
        %5444 = vmatpush1.msra.mxu0 0.0
        %5445 = vmatprep.subr.mxu0 0.0
        %5446 = vmatpush1.msra.mxu0 %v3493
        %5447 = vmatprep.subr.mxu0 0.0
        %5448 = vmatpush2.msra.mxu0 0.0
        %5449 = vmatprep.subr.mxu0 0.0
        %5450 = vmatpush2.msra.mxu0 0.0
        %5451 = vmatprep.subr.mxu0 0.0
        %5452 = vmatpush2.msra.mxu0 0.0
        %5453 = vmatprep.subr.mxu0 0.0
        %5454 = vmatpush2.msra.mxu0 0.0
        %5455 = vmatprep.subr.mxu0 0.0
        %5456 = vmatpush2.msra.mxu0 0.0
        %5457 = vmatprep.subr.mxu0 0.0
        %5458 = vmatpush2.msra.mxu0 0.0
        %5459 = vmatprep.subr.mxu0 0.0
        %5460 = vmatpush2.msra.mxu0 0.0
        %5461 = vmatprep.subr.mxu0 0.0
        %5462 = vmatpush2.msra.mxu0 0.0
        %5463 = vmatprep.subr.mxu0 0.0
        %5464 = vmatpush2.msra.mxu0 0.0
        %5465 = vmatprep.subr.mxu0 0.0
        %5466 = vmatpush2.msra.mxu0 0.0
        %5467 = vmatprep.subr.mxu0 0.0
        %5468 = vmatpush2.msra.mxu0 0.0
        %5469 = vmatprep.subr.mxu0 0.0
        %5470 = vmatpush2.msra.mxu0 0.0
        %5471 = vmatprep.subr.mxu0 0.0
        %5472 = vmatpush2.msra.mxu0 0.0
        %5473 = vmatprep.subr.mxu0 0.0
        %5474 = vmatpush2.msra.mxu0 0.0
        %5475 = vmatprep.subr.mxu0 0.0
        %5476 = vmatpush2.msra.mxu0 0.0
        %5477 = vmatprep.subr.mxu0 0.0
        %5478 = vmatpush2.msra.mxu0 0.0
        %5479 = vmatprep.mubr.f32.mxu0 0.0
        %5480 = vmatmul.mubr.f32.gmra.mxu0 %v5410
        %v5481 = vpop.f32.mrf.mxu0
        %v5482 = vadd.f32 0.0, %v5481
        %v5483 = vpop.f32.mrf.mxu0
        %5484 = vmatprep.mubr.f32.mxu0 0.0
        %5485 = vmatmul.mubr.f32.gmra.mxu0 %v5413
        %v5486 = vpop.f32.mrf.mxu0
        %v5487 = vadd.f32 0.0, %v5486
        %v5488 = vpop.f32.mrf.mxu0
        %5489 = vdwg.mxu0
        %v5490 = vadd.f32 %v5205, %v5482
        %v5491 = vadd.f32 %v5206, %v5487
        %5492 = vrot.lane.b32.xlu0 %v3401, 72
        %v5493 = vpop.permute.xlu0 %5492
        %5494 = vrot.lane.b32.xlu0 %v3407, 72
        %v5495 = vpop.permute.xlu0 %5494
        %5496 = vrot.lane.b32.xlu0 %v3403, 72
        %v5497 = vpop.permute.xlu0 %5496
        %5498 = vrot.lane.b32.xlu0 %v3409, 72
        %v5499 = vpop.permute.xlu0 %5498
        %v5500 = vsel %vm724, %v5493, 0
        %v5502 = vsel %vm724, %v5495, 0
        %v5504 = vsel %vm724, %v5497, 0
        %v5506 = vsel %vm724, %v5499, 0
        %5508 = vmatprep.subr.mxu0 0.0
        %5509 = vmatpush1.xpose.msra.mxu0 0.0
        %5510 = vmatprep.subr.mxu0 0.0
        %5511 = vmatpush1.xpose.msra.mxu0 0.0
        %5512 = vmatprep.subr.mxu0 0.0
        %5513 = vmatpush1.xpose.msra.mxu0 0.0
        %5514 = vmatprep.subr.mxu0 0.0
        %5515 = vmatpush1.xpose.msra.mxu0 0.0
        %5516 = vmatprep.subr.mxu0 0.0
        %5517 = vmatpush1.xpose.msra.mxu0 0.0
        %5518 = vmatprep.subr.mxu0 0.0
        %5519 = vmatpush1.xpose.msra.mxu0 0.0
        %5520 = vmatprep.subr.mxu0 0.0
        %5521 = vmatpush1.xpose.msra.mxu0 0.0
        %5522 = vmatprep.subr.mxu0 0.0
        %5523 = vmatpush1.xpose.msra.mxu0 0.0
        %5524 = vmatprep.subr.mxu0 0.0
        %5525 = vmatpush1.xpose.msra.mxu0 0.0
        %5526 = vmatprep.subr.mxu0 0.0
        %5527 = vmatpush1.xpose.msra.mxu0 0.0
        %5528 = vmatprep.subr.mxu0 0.0
        %5529 = vmatpush1.xpose.msra.mxu0 0.0
        %5530 = vmatprep.subr.mxu0 0.0
        %5531 = vmatpush1.xpose.msra.mxu0 0.0
        %5532 = vmatprep.subr.mxu0 0.0
        %5533 = vmatpush1.xpose.msra.mxu0 0.0
        %5534 = vmatprep.subr.mxu0 0.0
        %5535 = vmatpush1.xpose.msra.mxu0 0.0
        %5536 = vmatprep.subr.mxu0 0.0
        %5537 = vmatpush1.xpose.msra.mxu0 %v5506
        %5538 = vmatprep.subr.mxu0 0.0
        %5539 = vmatpush1.xpose.msra.mxu0 %v5504
        %5540 = vmatprep.subr.mxu0 0.0
        %5541 = vmatpush2.xpose.msra.mxu0 0.0
        %5542 = vmatprep.subr.mxu0 0.0
        %5543 = vmatpush2.xpose.msra.mxu0 0.0
        %5544 = vmatprep.subr.mxu0 0.0
        %5545 = vmatpush2.xpose.msra.mxu0 0.0
        %5546 = vmatprep.subr.mxu0 0.0
        %5547 = vmatpush2.xpose.msra.mxu0 0.0
        %5548 = vmatprep.subr.mxu0 0.0
        %5549 = vmatpush2.xpose.msra.mxu0 0.0
        %5550 = vmatprep.subr.mxu0 0.0
        %5551 = vmatpush2.xpose.msra.mxu0 0.0
        %5552 = vmatprep.subr.mxu0 0.0
        %5553 = vmatpush2.xpose.msra.mxu0 0.0
        %5554 = vmatprep.subr.mxu0 0.0
        %5555 = vmatpush2.xpose.msra.mxu0 0.0
        %5556 = vmatprep.subr.mxu0 0.0
        %5557 = vmatpush2.xpose.msra.mxu0 0.0
        %5558 = vmatprep.subr.mxu0 0.0
        %5559 = vmatpush2.xpose.msra.mxu0 0.0
        %5560 = vmatprep.subr.mxu0 0.0
        %5561 = vmatpush2.xpose.msra.mxu0 0.0
        %5562 = vmatprep.subr.mxu0 0.0
        %5563 = vmatpush2.xpose.msra.mxu0 0.0
        %5564 = vmatprep.subr.mxu0 0.0
        %5565 = vmatpush2.xpose.msra.mxu0 0.0
        %5566 = vmatprep.subr.mxu0 0.0
        %5567 = vmatpush2.xpose.msra.mxu0 0.0
        %5568 = vmatprep.subr.mxu0 0.0
        %5569 = vmatpush2.xpose.msra.mxu0 0.0
        %5570 = vmatprep.subr.mxu0 0.0
        %5571 = vmatpush2.xpose.msra.mxu0 0.0
        %5572 = vmatprep.mubr.f32.mxu0 0.0
        %5573 = vmatmul.mubr.f32.gmra.mxu0 %v5500
        %v5574 = vpop.f32.mrf.mxu0
        %v5575 = vadd.f32 0.0, %v5574
        %v5576 = vpop.f32.mrf.mxu0
        %5577 = vmatprep.mubr.f32.mxu0 0.0
        %5578 = vmatmul.mubr.f32.gmra.mxu0 %v5502
        %v5579 = vpop.f32.mrf.mxu0
        %v5580 = vadd.f32 0.0, %v5579
        %v5581 = vpop.f32.mrf.mxu0
        %5582 = vdwg.mxu0
        %v5583 = vsel %vm812, %v5575, -inf
        %5584 = vmax.xlane.f32.xlu0 %v5583
        %v5585 = vpop.xlane.xlu0 %5584
        %v5586 = vsel %vm812, %v5580, -inf
        %5587 = vmax.xlane.f32.xlu0 %v5586
        %v5588 = vpop.xlane.xlu0 %5587
        %v5589 = vsub.f32 %v5575, %v5585
        %v5590 = vsub.f32 %v5580, %v5588
        %v5591 = vmul.f32 %v5589, 1.442695
        %v5592 = vpow.pop %v5591
        %v5593 = vmul.f32 %v5590, 1.442695
        %v5594 = vpow.pop %v5593
        %v5595 = vsel %vm812, %v5592, 0.0
        %5596 = vadd.xlane.f32.xlu0 %v5595
        %v5597 = vpop.xlane.xlu0 %5596
        %v5598 = vsel %vm812, %v5594, 0.0
        %5599 = vadd.xlane.f32.xlu0 %v5598
        %v5600 = vpop.xlane.xlu0 %5599
        %v5601 = vrcp.pop %v5597
        %v5602 = vmul.f32 1.0, %v5601
        %v5603 = vrcp.pop %v5600
        %v5604 = vmul.f32 1.0, %v5603
        %5605 = vrot.lane.b32.xlu0 %v3478, 72
        %v5606 = vpop.permute.xlu0 %5605
        %5607 = vrot.lane.b32.xlu0 %v3483, 72
        %v5608 = vpop.permute.xlu0 %5607
        %v5612 = vsel %vm812, %v5592, 0
        %v5615 = vsel %vm812, %v5594, 0
        %5617 = vmatprep.subr.mxu0 0.0
        %5618 = vmatpush1.msra.mxu0 0.0
        %5619 = vmatprep.subr.mxu0 0.0
        %5620 = vmatpush1.msra.mxu0 0.0
        %5621 = vmatprep.subr.mxu0 0.0
        %5622 = vmatpush1.msra.mxu0 0.0
        %5623 = vmatprep.subr.mxu0 0.0
        %5624 = vmatpush1.msra.mxu0 0.0
        %5625 = vmatprep.subr.mxu0 0.0
        %5626 = vmatpush1.msra.mxu0 0.0
        %5627 = vmatprep.subr.mxu0 0.0
        %5628 = vmatpush1.msra.mxu0 0.0
        %5629 = vmatprep.subr.mxu0 0.0
        %5630 = vmatpush1.msra.mxu0 0.0
        %5631 = vmatprep.subr.mxu0 0.0
        %5632 = vmatpush1.msra.mxu0 0.0
        %5633 = vmatprep.subr.mxu0 0.0
        %5634 = vmatpush1.msra.mxu0 0.0
        %5635 = vmatprep.subr.mxu0 0.0
        %5636 = vmatpush1.msra.mxu0 0.0
        %5637 = vmatprep.subr.mxu0 0.0
        %5638 = vmatpush1.msra.mxu0 0.0
        %5639 = vmatprep.subr.mxu0 0.0
        %5640 = vmatpush1.msra.mxu0 0.0
        %5641 = vmatprep.subr.mxu0 0.0
        %5642 = vmatpush1.msra.mxu0 0.0
        %5643 = vmatprep.subr.mxu0 0.0
        %5644 = vmatpush1.msra.mxu0 0.0
        %5645 = vmatprep.subr.mxu0 0.0
        %5646 = vmatpush1.msra.mxu0 %v5608
        %5647 = vmatprep.subr.mxu0 0.0
        %5648 = vmatpush1.msra.mxu0 %v5606
        %5649 = vmatprep.subr.mxu0 0.0
        %5650 = vmatpush2.msra.mxu0 0.0
        %5651 = vmatprep.subr.mxu0 0.0
        %5652 = vmatpush2.msra.mxu0 0.0
        %5653 = vmatprep.subr.mxu0 0.0
        %5654 = vmatpush2.msra.mxu0 0.0
        %5655 = vmatprep.subr.mxu0 0.0
        %5656 = vmatpush2.msra.mxu0 0.0
        %5657 = vmatprep.subr.mxu0 0.0
        %5658 = vmatpush2.msra.mxu0 0.0
        %5659 = vmatprep.subr.mxu0 0.0
        %5660 = vmatpush2.msra.mxu0 0.0
        %5661 = vmatprep.subr.mxu0 0.0
        %5662 = vmatpush2.msra.mxu0 0.0
        %5663 = vmatprep.subr.mxu0 0.0
        %5664 = vmatpush2.msra.mxu0 0.0
        %5665 = vmatprep.subr.mxu0 0.0
        %5666 = vmatpush2.msra.mxu0 0.0
        %5667 = vmatprep.subr.mxu0 0.0
        %5668 = vmatpush2.msra.mxu0 0.0
        %5669 = vmatprep.subr.mxu0 0.0
        %5670 = vmatpush2.msra.mxu0 0.0
        %5671 = vmatprep.subr.mxu0 0.0
        %5672 = vmatpush2.msra.mxu0 0.0
        %5673 = vmatprep.subr.mxu0 0.0
        %5674 = vmatpush2.msra.mxu0 0.0
        %5675 = vmatprep.subr.mxu0 0.0
        %5676 = vmatpush2.msra.mxu0 0.0
        %5677 = vmatprep.subr.mxu0 0.0
        %5678 = vmatpush2.msra.mxu0 0.0
        %5679 = vmatprep.subr.mxu0 0.0
        %5680 = vmatpush2.msra.mxu0 0.0
        %5681 = vmatprep.mubr.f32.mxu0 0.0
        %5682 = vmatmul.mubr.f32.gmra.mxu0 %v5612
        %v5683 = vpop.f32.mrf.mxu0
        %v5684 = vadd.f32 0.0, %v5683
        %v5685 = vpop.f32.mrf.mxu0
        %5686 = vmatprep.mubr.f32.mxu0 0.0
        %5687 = vmatmul.mubr.f32.gmra.mxu0 %v5615
        %v5688 = vpop.f32.mrf.mxu0
        %v5689 = vadd.f32 0.0, %v5688
        %v5690 = vpop.f32.mrf.mxu0
        %5691 = vdwg.mxu0
        %v5692 = vmul.f32 %v5684, %v5602
        %v5693 = vmul.f32 %v5689, %v5604
        %v5695 = vsel %vm724, %v5692, 0
        %v5698 = vsel %vm724, %v5693, 0
        %5700 = vmatprep.subr.mxu0 0.0
        %5701 = vmatpush1.msra.mxu0 0.0
        %5702 = vmatprep.subr.mxu0 0.0
        %5703 = vmatpush1.msra.mxu0 0.0
        %5704 = vmatprep.subr.mxu0 0.0
        %5705 = vmatpush1.msra.mxu0 0.0
        %5706 = vmatprep.subr.mxu0 0.0
        %5707 = vmatpush1.msra.mxu0 0.0
        %5708 = vmatprep.subr.mxu0 0.0
        %5709 = vmatpush1.msra.mxu0 0.0
        %5710 = vmatprep.subr.mxu0 0.0
        %5711 = vmatpush1.msra.mxu0 0.0
        %5712 = vmatprep.subr.mxu0 0.0
        %5713 = vmatpush1.msra.mxu0 0.0
        %5714 = vmatprep.subr.mxu0 0.0
        %5715 = vmatpush1.msra.mxu0 0.0
        %5716 = vmatprep.subr.mxu0 0.0
        %5717 = vmatpush1.msra.mxu0 0.0
        %5718 = vmatprep.subr.mxu0 0.0
        %5719 = vmatpush1.msra.mxu0 0.0
        %5720 = vmatprep.subr.mxu0 0.0
        %5721 = vmatpush1.msra.mxu0 0.0
        %5722 = vmatprep.subr.mxu0 0.0
        %5723 = vmatpush1.msra.mxu0 0.0
        %5724 = vmatprep.subr.mxu0 0.0
        %5725 = vmatpush1.msra.mxu0 0.0
        %5726 = vmatprep.subr.mxu0 0.0
        %5727 = vmatpush1.msra.mxu0 0.0
        %5728 = vmatprep.subr.mxu0 0.0
        %5729 = vmatpush1.msra.mxu0 0.0
        %5730 = vmatprep.subr.mxu0 0.0
        %5731 = vmatpush1.msra.mxu0 %v3494
        %5732 = vmatprep.subr.mxu0 0.0
        %5733 = vmatpush2.msra.mxu0 0.0
        %5734 = vmatprep.subr.mxu0 0.0
        %5735 = vmatpush2.msra.mxu0 0.0
        %5736 = vmatprep.subr.mxu0 0.0
        %5737 = vmatpush2.msra.mxu0 0.0
        %5738 = vmatprep.subr.mxu0 0.0
        %5739 = vmatpush2.msra.mxu0 0.0
        %5740 = vmatprep.subr.mxu0 0.0
        %5741 = vmatpush2.msra.mxu0 0.0
        %5742 = vmatprep.subr.mxu0 0.0
        %5743 = vmatpush2.msra.mxu0 0.0
        %5744 = vmatprep.subr.mxu0 0.0
        %5745 = vmatpush2.msra.mxu0 0.0
        %5746 = vmatprep.subr.mxu0 0.0
        %5747 = vmatpush2.msra.mxu0 0.0
        %5748 = vmatprep.subr.mxu0 0.0
        %5749 = vmatpush2.msra.mxu0 0.0
        %5750 = vmatprep.subr.mxu0 0.0
        %5751 = vmatpush2.msra.mxu0 0.0
        %5752 = vmatprep.subr.mxu0 0.0
        %5753 = vmatpush2.msra.mxu0 0.0
        %5754 = vmatprep.subr.mxu0 0.0
        %5755 = vmatpush2.msra.mxu0 0.0
        %5756 = vmatprep.subr.mxu0 0.0
        %5757 = vmatpush2.msra.mxu0 0.0
        %5758 = vmatprep.subr.mxu0 0.0
        %5759 = vmatpush2.msra.mxu0 0.0
        %5760 = vmatprep.subr.mxu0 0.0
        %5761 = vmatpush2.msra.mxu0 0.0
        %5762 = vmatprep.subr.mxu0 0.0
        %5763 = vmatpush2.msra.mxu0 0.0
        %5764 = vmatprep.mubr.f32.mxu0 0.0
        %5765 = vmatmul.mubr.f32.gmra.mxu0 %v5695
        %v5766 = vpop.f32.mrf.mxu0
        %v5767 = vadd.f32 0.0, %v5766
        %v5768 = vpop.f32.mrf.mxu0
        %5769 = vmatprep.mubr.f32.mxu0 0.0
        %5770 = vmatmul.mubr.f32.gmra.mxu0 %v5698
        %v5771 = vpop.f32.mrf.mxu0
        %v5772 = vadd.f32 0.0, %v5771
        %v5773 = vpop.f32.mrf.mxu0
        %5774 = vdwg.mxu0
        %v5775 = vadd.f32 %v5490, %v5767
        %v5776 = vadd.f32 %v5491, %v5772
        %s5777 = scalar_lea.vmem %s5, 1
        %v5778 = vld [vmem:[%s5777] sm:$0x1]
        %s5779 = scalar_lea.vmem %s6, 1
        %v5780 = vld [vmem:[%s5779] sm:$0x1]
        %v5781 = vsel %vm548, %v5775, 0.0
        %5782 = vadd.xlane.f32.xlu0 %v5781
        %v5783 = vpop.xlane.xlu0 %5782
        %v5784 = vsel %vm548, %v5776, 0.0
        %5785 = vadd.xlane.f32.xlu0 %v5784
        %v5786 = vpop.xlane.xlu0 %5785
        %v5787 = vmul.f32 %v5783, %v3006
        %v5788 = vmul.f32 %v5786, %v3006
        %v5789 = vsub.f32 %v5775, %v5787
        %v5790 = vsub.f32 %v5776, %v5788
        %v5791 = vmul.f32 %v5789, %v5789
        %v5792 = vmul.f32 %v5790, %v5790
        %v5793 = vsel %vm548, %v5791, 0.0
        %5794 = vadd.xlane.f32.xlu0 %v5793
        %v5795 = vpop.xlane.xlu0 %5794
        %v5796 = vsel %vm548, %v5792, 0.0
        %5797 = vadd.xlane.f32.xlu0 %v5796
        %v5798 = vpop.xlane.xlu0 %5797
        %v5799 = vmul.f32 %v5795, %v3006
        %v5800 = vmul.f32 %v5798, %v3006
        %v5801 = vadd.f32 %v5799, 1e-05
        %v5802 = vadd.f32 %v5800, 1e-05
        %v5803 = vrsqrt.pop %v5801
        %v5804 = vrsqrt.pop %v5802
        %v5805 = vmul.f32 %v5789, %v5803
        %v5806 = vmul.f32 %v5790, %v5804
        %v5808 = vlaneseq
        %v5809 = vshrl.u32 %v5808, 7
        %v5810 = vsub.s32 0, %v5809
        %v5811 = vrot.slane %v5778, %v5810
        %v5813 = vmul.f32 %v5805, %v5811
        %v5814 = vmul.f32 %v5806, %v5811
        %v5816 = vlaneseq
        %v5817 = vshrl.u32 %v5816, 7
        %v5818 = vsub.s32 0, %v5817
        %v5819 = vrot.slane %v5780, %v5818
        %v5821 = vadd.f32 %v5813, %v5819
        %v5822 = vadd.f32 %v5814, %v5819
        %s5823 = scalar_lea.vmem [#allocation8], 64
        %v5824 = vld [vmem:[%s5823] sm:$0xff]
        %v5825 = vld [vmem:[%s5823 + $0x8] sm:$0xff]
        %v5826 = vld [vmem:[%s5823 + $0x10] sm:$0xff]
        %v5827 = vld [vmem:[%s5823 + $0x18] sm:$0xff]
        %v5828 = vld [vmem:[%s5823 + $0x20] sm:$0xff]
        %v5829 = vld [vmem:[%s5823 + $0x28] sm:$0xff]
        %v5830 = vld [vmem:[%s5823 + $0x30] sm:$0xff]
        %v5831 = vld [vmem:[%s5823 + $0x38] sm:$0xff]
        %s5832 = scalar_lea.vmem %s8, 1
        %v5833 = vld [vmem:[%s5832] sm:$0x1]
        %v5835 = vlaneseq
        %v5836 = vshrl.u32 %v5835, 7
        %v5837 = vsub.s32 0, %v5836
        %v5838 = vrot.slane %v5833, %v5837
        %v5841 = vsel %vm548, %v5821, 0
        %v5844 = vsel %vm548, %v5822, 0
        %5846 = vmatprep.subr.mxu0 0.0
        %5847 = vmatpush1.msra.mxu0 0.0
        %5848 = vmatprep.subr.mxu0 0.0
        %5849 = vmatpush1.msra.mxu0 0.0
        %5850 = vmatprep.subr.mxu0 0.0
        %5851 = vmatpush1.msra.mxu0 0.0
        %5852 = vmatprep.subr.mxu0 0.0
        %5853 = vmatpush1.msra.mxu0 0.0
        %5854 = vmatprep.subr.mxu0 0.0
        %5855 = vmatpush1.msra.mxu0 0.0
        %5856 = vmatprep.subr.mxu0 0.0
        %5857 = vmatpush1.msra.mxu0 0.0
        %5858 = vmatprep.subr.mxu0 0.0
        %5859 = vmatpush1.msra.mxu0 0.0
        %5860 = vmatprep.subr.mxu0 0.0
        %5861 = vmatpush1.msra.mxu0 0.0
        %5862 = vmatprep.subr.mxu0 0.0
        %5863 = vmatpush1.msra.mxu0 %v5831
        %5864 = vmatprep.subr.mxu0 0.0
        %5865 = vmatpush1.msra.mxu0 %v5830
        %5866 = vmatprep.subr.mxu0 0.0
        %5867 = vmatpush1.msra.mxu0 %v5829
        %5868 = vmatprep.subr.mxu0 0.0
        %5869 = vmatpush1.msra.mxu0 %v5828
        %5870 = vmatprep.subr.mxu0 0.0
        %5871 = vmatpush1.msra.mxu0 %v5827
        %5872 = vmatprep.subr.mxu0 0.0
        %5873 = vmatpush1.msra.mxu0 %v5826
        %5874 = vmatprep.subr.mxu0 0.0
        %5875 = vmatpush1.msra.mxu0 %v5825
        %5876 = vmatprep.subr.mxu0 0.0
        %5877 = vmatpush1.msra.mxu0 %v5824
        %5878 = vmatprep.subr.mxu0 0.0
        %5879 = vmatpush2.msra.mxu0 0.0
        %5880 = vmatprep.subr.mxu0 0.0
        %5881 = vmatpush2.msra.mxu0 0.0
        %5882 = vmatprep.subr.mxu0 0.0
        %5883 = vmatpush2.msra.mxu0 0.0
        %5884 = vmatprep.subr.mxu0 0.0
        %5885 = vmatpush2.msra.mxu0 0.0
        %5886 = vmatprep.subr.mxu0 0.0
        %5887 = vmatpush2.msra.mxu0 0.0
        %5888 = vmatprep.subr.mxu0 0.0
        %5889 = vmatpush2.msra.mxu0 0.0
        %5890 = vmatprep.subr.mxu0 0.0
        %5891 = vmatpush2.msra.mxu0 0.0
        %5892 = vmatprep.subr.mxu0 0.0
        %5893 = vmatpush2.msra.mxu0 0.0
        %5894 = vmatprep.subr.mxu0 0.0
        %5895 = vmatpush2.msra.mxu0 0.0
        %5896 = vmatprep.subr.mxu0 0.0
        %5897 = vmatpush2.msra.mxu0 0.0
        %5898 = vmatprep.subr.mxu0 0.0
        %5899 = vmatpush2.msra.mxu0 0.0
        %5900 = vmatprep.subr.mxu0 0.0
        %5901 = vmatpush2.msra.mxu0 0.0
        %5902 = vmatprep.subr.mxu0 0.0
        %5903 = vmatpush2.msra.mxu0 0.0
        %5904 = vmatprep.subr.mxu0 0.0
        %5905 = vmatpush2.msra.mxu0 0.0
        %5906 = vmatprep.subr.mxu0 0.0
        %5907 = vmatpush2.msra.mxu0 0.0
        %5908 = vmatprep.subr.mxu0 0.0
        %5909 = vmatpush2.msra.mxu0 0.0
        %5910 = vmatprep.mubr.f32.mxu0 0.0
        %5911 = vmatmul.mubr.f32.gmra.mxu0 %v5841
        %v5912 = vpop.f32.mrf.mxu0
        %v5913 = vadd.f32 %v5838, %v5912
        %v5914 = vpop.f32.mrf.mxu0
        %5915 = vmatprep.mubr.f32.mxu0 0.0
        %5916 = vmatmul.mubr.f32.gmra.mxu0 %v5844
        %v5917 = vpop.f32.mrf.mxu0
        %v5918 = vadd.f32 %v5838, %v5917
        %v5919 = vpop.f32.mrf.mxu0
        %5920 = vdwg.mxu0
        %v5921 = vmax.f32 %v5913, 0.0
        %v5922 = vmax.f32 %v5918, 0.0
        %s5923 = scalar_lea.vmem %s9, 128
        %v5924 = vld [vmem:[%s5923] sm:$0xff]
        %v5925 = vld [vmem:[%s5923 + $0x8] sm:$0xff]
        %v5926 = vld [vmem:[%s5923 + $0x10] sm:$0xff]
        %v5927 = vld [vmem:[%s5923 + $0x18] sm:$0xff]
        %v5928 = vld [vmem:[%s5923 + $0x20] sm:$0xff]
        %v5929 = vld [vmem:[%s5923 + $0x28] sm:$0xff]
        %v5930 = vld [vmem:[%s5923 + $0x30] sm:$0xff]
        %v5931 = vld [vmem:[%s5923 + $0x38] sm:$0xff]
        %v5932 = vld [vmem:[%s5923 + $0x40] sm:$0xff]
        %v5933 = vld [vmem:[%s5923 + $0x48] sm:$0xff]
        %v5934 = vld [vmem:[%s5923 + $0x50] sm:$0xff]
        %v5935 = vld [vmem:[%s5923 + $0x58] sm:$0xff]
        %v5936 = vld [vmem:[%s5923 + $0x60] sm:$0xff]
        %v5937 = vld [vmem:[%s5923 + $0x68] sm:$0xff]
        %v5938 = vld [vmem:[%s5923 + $0x70] sm:$0xff]
        %v5939 = vld [vmem:[%s5923 + $0x78] sm:$0xff]
        %s5940 = scalar_lea.vmem %s10, 1
        %v5941 = vld [vmem:[%s5940] sm:$0x1]
        %v5943 = vlaneseq
        %v5944 = vshrl.u32 %v5943, 7
        %v5945 = vsub.s32 0, %v5944
        %v5946 = vrot.slane %v5941, %v5945
        %5948 = vmatprep.subr.mxu0 0.0
        %5949 = vmatpush1.msra.mxu0 %v5939
        %5950 = vmatprep.subr.mxu0 0.0
        %5951 = vmatpush1.msra.mxu0 %v5938
        %5952 = vmatprep.subr.mxu0 0.0
        %5953 = vmatpush1.msra.mxu0 %v5937
        %5954 = vmatprep.subr.mxu0 0.0
        %5955 = vmatpush1.msra.mxu0 %v5936
        %5956 = vmatprep.subr.mxu0 0.0
        %5957 = vmatpush1.msra.mxu0 %v5935
        %5958 = vmatprep.subr.mxu0 0.0
        %5959 = vmatpush1.msra.mxu0 %v5934
        %5960 = vmatprep.subr.mxu0 0.0
        %5961 = vmatpush1.msra.mxu0 %v5933
        %5962 = vmatprep.subr.mxu0 0.0
        %5963 = vmatpush1.msra.mxu0 %v5932
        %5964 = vmatprep.subr.mxu0 0.0
        %5965 = vmatpush1.msra.mxu0 %v5931
        %5966 = vmatprep.subr.mxu0 0.0
        %5967 = vmatpush1.msra.mxu0 %v5930
        %5968 = vmatprep.subr.mxu0 0.0
        %5969 = vmatpush1.msra.mxu0 %v5929
        %5970 = vmatprep.subr.mxu0 0.0
        %5971 = vmatpush1.msra.mxu0 %v5928
        %5972 = vmatprep.subr.mxu0 0.0
        %5973 = vmatpush1.msra.mxu0 %v5927
        %5974 = vmatprep.subr.mxu0 0.0
        %5975 = vmatpush1.msra.mxu0 %v5926
        %5976 = vmatprep.subr.mxu0 0.0
        %5977 = vmatpush1.msra.mxu0 %v5925
        %5978 = vmatprep.subr.mxu0 0.0
        %5979 = vmatpush1.msra.mxu0 %v5924
        %5980 = vmatprep.subr.mxu0 0.0
        %5981 = vmatpush2.msra.mxu0 0.0
        %5982 = vmatprep.subr.mxu0 0.0
        %5983 = vmatpush2.msra.mxu0 0.0
        %5984 = vmatprep.subr.mxu0 0.0
        %5985 = vmatpush2.msra.mxu0 0.0
        %5986 = vmatprep.subr.mxu0 0.0
        %5987 = vmatpush2.msra.mxu0 0.0
        %5988 = vmatprep.subr.mxu0 0.0
        %5989 = vmatpush2.msra.mxu0 0.0
        %5990 = vmatprep.subr.mxu0 0.0
        %5991 = vmatpush2.msra.mxu0 0.0
        %5992 = vmatprep.subr.mxu0 0.0
        %5993 = vmatpush2.msra.mxu0 0.0
        %5994 = vmatprep.subr.mxu0 0.0
        %5995 = vmatpush2.msra.mxu0 0.0
        %5996 = vmatprep.subr.mxu0 0.0
        %5997 = vmatpush2.msra.mxu0 0.0
        %5998 = vmatprep.subr.mxu0 0.0
        %5999 = vmatpush2.msra.mxu0 0.0
        %6000 = vmatprep.subr.mxu0 0.0
        %6001 = vmatpush2.msra.mxu0 0.0
        %6002 = vmatprep.subr.mxu0 0.0
        %6003 = vmatpush2.msra.mxu0 0.0
        %6004 = vmatprep.subr.mxu0 0.0
        %6005 = vmatpush2.msra.mxu0 0.0
        %6006 = vmatprep.subr.mxu0 0.0
        %6007 = vmatpush2.msra.mxu0 0.0
        %6008 = vmatprep.subr.mxu0 0.0
        %6009 = vmatpush2.msra.mxu0 0.0
        %6010 = vmatprep.subr.mxu0 0.0
        %6011 = vmatpush2.msra.mxu0 0.0
        %6012 = vmatprep.mubr.f32.mxu0 0.0
        %6013 = vmatmul.mubr.f32.gmra.mxu0 %v5921
        %v6014 = vpop.f32.mrf.mxu0
        %v6015 = vadd.f32 %v5946, %v6014
        %v6016 = vpop.f32.mrf.mxu0
        %6017 = vmatprep.mubr.f32.mxu0 0.0
        %6018 = vmatmul.mubr.f32.gmra.mxu0 %v5922
        %v6019 = vpop.f32.mrf.mxu0
        %v6020 = vadd.f32 %v5946, %v6019
        %v6021 = vpop.f32.mrf.mxu0
        %6022 = vdwg.mxu0
        %v6023 = vadd.f32 %v5821, %v6015
        %v6024 = vadd.f32 %v5822, %v6020
        %s6025 = scalar_lea.vmem %s11, 1
        %v6026 = vld [vmem:[%s6025] sm:$0x1]
        %s6027 = scalar_lea.vmem %s12, 1
        %v6028 = vld [vmem:[%s6027] sm:$0x1]
        %v6029 = vsel %vm548, %v6023, 0.0
        %6030 = vadd.xlane.f32.xlu0 %v6029
        %v6031 = vpop.xlane.xlu0 %6030
        %v6032 = vsel %vm548, %v6024, 0.0
        %6033 = vadd.xlane.f32.xlu0 %v6032
        %v6034 = vpop.xlane.xlu0 %6033
        %v6035 = vmul.f32 %v6031, %v3006
        %v6036 = vmul.f32 %v6034, %v3006
        %v6037 = vsub.f32 %v6023, %v6035
        %v6038 = vsub.f32 %v6024, %v6036
        %v6039 = vmul.f32 %v6037, %v6037
        %v6040 = vmul.f32 %v6038, %v6038
        %v6041 = vsel %vm548, %v6039, 0.0
        %6042 = vadd.xlane.f32.xlu0 %v6041
        %v6043 = vpop.xlane.xlu0 %6042
        %v6044 = vsel %vm548, %v6040, 0.0
        %6045 = vadd.xlane.f32.xlu0 %v6044
        %v6046 = vpop.xlane.xlu0 %6045
        %v6047 = vmul.f32 %v6043, %v3006
        %v6048 = vmul.f32 %v6046, %v3006
        %v6049 = vadd.f32 %v6047, 1e-05
        %v6050 = vadd.f32 %v6048, 1e-05
        %v6051 = vrsqrt.pop %v6049
        %v6052 = vrsqrt.pop %v6050
        %v6053 = vmul.f32 %v6037, %v6051
        %v6054 = vmul.f32 %v6038, %v6052
        %v6056 = vlaneseq
        %v6057 = vshrl.u32 %v6056, 7
        %v6058 = vsub.s32 0, %v6057
        %v6059 = vrot.slane %v6026, %v6058
        %v6061 = vmul.f32 %v6053, %v6059
        %v6062 = vmul.f32 %v6054, %v6059
        %v6064 = vlaneseq
        %v6065 = vshrl.u32 %v6064, 7
        %v6066 = vsub.s32 0, %v6065
        %v6067 = vrot.slane %v6028, %v6066
        %v6069 = vadd.f32 %v6061, %v6067
        %v6070 = vadd.f32 %v6062, %v6067
        %6071 = vst.msk [vmem:[%s502] sm:$0xff] %vm548, %v6069
        %6072 = vst.msk [vmem:[%s502 + $0x8] sm:$0xff] %vm548, %v6070
        %s6073 = sand.u32 %s318, 1
        %s6074 = scalar_lea.sflag [#allocation4], %s6073
        %s6075 = sand.u32 %s318, 1
        %s6076 = smul.addr %s6075, 16
        %s6077 = scalar_lea.vmem [#allocation10], %s6076
        // Predicated region
        $region89: #{tpu_custom_call.1} parent=71 // pred_check
          %p6078 = pneg %p328
        $region90: #{tpu_custom_call.1} parent=71 // pred_check_branch
          %6080 = sbr.rel (%p6078) target = $region92
        $region91: #{tpu_custom_call.1} parent=71 // pred_region
          %s6081 = smul.u32 2, %s32
          %s6083 = ssub.s32 256, 256
          %6084 = vsyncadd %s6074, %s6083
          %s6085 = smul.addr %s6081, 128
          %s6086 = scalar_lea.hbm %s13, %s6085
          %s6087 = sshll.u32 %s6077, 4
          %s6088 = int_to_ptr.vmem [resolvable:$true] %s6087
          %6093 = dma.vmem_to_hbm [thread:$0]  %s6088, 256, %s6086, %s6074, 128, 128, 8
        $region92: #{tpu_custom_call.1} parent=71 // pred_fallthru
          _
      $region72: #{tpu_custom_call.1} parent=5 // pred_fallthru
        _
      %p6094 = scmp.le.s32.totalorder 2, %s27
      // Predicated region
      $region93: #{tpu_custom_call.1} parent=5 // pred_check
        %p6095 = pneg %p6094
      $region94: #{tpu_custom_call.1} parent=5 // pred_check_branch
        %6097 = sbr.rel (%p6095) target = $region96
      $region95: #{tpu_custom_call.1} parent=5 // pred_region
        %s6098 = ssub.s32 %s27, 2
        // Predicated region
        $region97: #{tpu_custom_call.1} parent=95 // pred_check
          %p6099 = pneg %p334
        $region98: #{tpu_custom_call.1} parent=95 // pred_check_branch
          %6101 = sbr.rel (%p6099) target = $region100
        $region99: #{tpu_custom_call.1} parent=95 // pred_region
          %s6102 = sand.u32 %s319, 1
          %s6103 = scalar_lea.sflag [#allocation4], %s6102
          %s6104 = sand.u32 %s319, 1
          %s6105 = smul.addr %s6104, 16
          %s6106 = scalar_lea.vmem [#allocation10], %s6105
          %6107 = dma.done %s6103, 256
        $region100: #{tpu_custom_call.1} parent=95 // pred_fallthru
          _
      $region96: #{tpu_custom_call.1} parent=5 // pred_fallthru
        _
    $region6: #{tpu_custom_call.1} parent=1 // loop_footer
      %s31 = sadd.s32 1, %s27
    $region7: #{tpu_custom_call.1} parent=1 // loop_footer_branch
      %26 = sbr.rel target = $region3
    $region8: #{tpu_custom_call.1} parent=1 // loop_exit
      _
    %6108 = vsyncpa [#allocation3], 1
    %s6109 = scalar_lea.sflag [#allocation3], 1
    %6110 = vsyncpa %s6109, 1
    %6111 = vsyncpa [#allocation6], 1
    %6112 = vsyncpa [#allocation9], 1
    %6113 = vsyncpa [#allocation4], 1
    %s6114 = scalar_lea.sflag [#allocation4], 1
    %6115 = vsyncpa %s6114, 1

</llo_original>
